<compile_context>
chip_gen: v7x
topology: tpu7x:2x2x1
jax: 0.10.0
libtpu: 0.0.40
codegen_flags: <defaults>
</compile_context>

<pallas_src>
import jax
import jax.numpy as jnp
from jax import lax
from jax.experimental import pallas as pl
from jax.experimental.pallas import tpu as pltpu

LANE = 128  # TPU lane width — channels are zero-padded up to a multiple of this.


def _basic_block_kernel(x_ref, w1_ref, w2_ref, s1_ref, b1_ref, s2_ref, b2_ref,
                        o_ref, acc_ref, ypad_ref):
    """Processes one batch image per grid step.

    x_ref   : (1, H+2, W+2, Cp)  input with 1-pixel zero halo, channels padded
    w1_ref  : (3, 3, Cp, Cp)     conv1 weights (HWIO, zero-padded channels)
    w2_ref  : (3, 3, Cp, Cp)     conv2 weights
    s*/b*   : (1, Cp)            folded BatchNorm scale / shift (eval mode)
    o_ref   : (1, H, W, Cp)      block output
    acc_ref : (H*W, Cp) f32      VMEM accumulator (reused by both convs)
    ypad_ref: (H+2, W+2, Cp) f32 VMEM scratch: zero-padded intermediate activation
    """
    _, H, W, Cp = o_ref.shape

    # ---- conv1 (3x3, stride=1, pad=1): 9 shifted MXU matmuls, f32 accumulate.
    acc_ref[...] = jnp.zeros_like(acc_ref)
    for kh in range(3):
        for kw in range(3):
            win = x_ref[0, kh:kh + H, kw:kw + W, :].reshape(H * W, Cp)
            acc_ref[...] += jnp.dot(win, w1_ref[kh, kw],
                                    preferred_element_type=jnp.float32)

    # ---- bn1 + relu; write into zero-halo scratch so conv2 sees padding=1.
    y1 = jnp.maximum(acc_ref[...] * s1_ref[...] + b1_ref[...], 0.0)
    ypad_ref[...] = jnp.zeros_like(ypad_ref)
    ypad_ref[1:H + 1, 1:W + 1, :] = y1.reshape(H, W, Cp)

    # ---- conv2 (3x3, stride=1, pad=1).
    acc_ref[...] = jnp.zeros_like(acc_ref)
    for kh in range(3):
        for kw in range(3):
            win = ypad_ref[kh:kh + H, kw:kw + W, :].reshape(H * W, Cp)
            acc_ref[...] += jnp.dot(win, w2_ref[kh, kw],
                                    preferred_element_type=jnp.float32)

    # ---- bn2 + identity shortcut + relu (single epilogue, single store).
    shortcut = x_ref[0, 1:H + 1, 1:W + 1, :].reshape(H * W, Cp)
    out = jnp.maximum(acc_ref[...] * s2_ref[...] + b2_ref[...] + shortcut, 0.0)
    o_ref[...] = out.reshape(1, H, W, Cp).astype(o_ref.dtype)


def _round_up(n, m):
    return ((n + m - 1) // m) * m


def fold_batchnorm(gamma, beta, running_mean, running_var, eps=1e-5):
    scale = gamma / jnp.sqrt(running_var + eps)
    shift = beta - running_mean * scale
    return scale, shift


def prepare_block_params(conv1_w, conv2_w, bn1, bn2, eps=1e-5):
    """One-time parameter prep (NOT on the per-forward-call path).

    conv*_w : PyTorch layout [Cout, Cin, 3, 3]
    bn*     : (gamma, beta, running_mean, running_var), each [Cout]
    """
    planes, in_planes = conv1_w.shape[0], conv1_w.shape[1]
    assert in_planes == planes, "identity shortcut requires in_planes == planes"
    cp = _round_up(planes, LANE)

    def to_hwio_padded(w):
        co, ci = w.shape[0], w.shape[1]
        w = jnp.transpose(w, (2, 3, 1, 0))                 # OIHW -> HWIO
        return jnp.pad(w, ((0, 0), (0, 0), (0, cp - ci), (0, cp - co)))

    def pad_vec(v):
        return jnp.pad(v, (0, cp - v.shape[0])).reshape(1, cp)

    s1, b1 = fold_batchnorm(*bn1, eps=eps)
    s2, b2 = fold_batchnorm(*bn2, eps=eps)
    return {
        "w1": to_hwio_padded(conv1_w), "w2": to_hwio_padded(conv2_w),
        "s1": pad_vec(s1), "b1": pad_vec(b1),
        "s2": pad_vec(s2), "b2": pad_vec(b2),
        "planes": planes, "cp": cp,
    }


def basic_block_forward(x_nchw, params):
    """BasicBlock forward (stride=1, identity shortcut). NCHW in / NCHW out."""
    # TODO(synk): stride != 1 / option-'A' downsampling shortcut (strided slice
    #             + channel zero-pad) is not implemented in the kernel.
    # TODO(synk): BatchNorm uses eval-mode running statistics folded into a
    #             per-channel scale/shift; training-mode batch statistics and
    #             running-stat updates are not computed.
    N, C, H, W = x_nchw.shape
    cp, planes = params["cp"], params["planes"]
    assert C == planes, "kernel supports the identity-shortcut BasicBlock only"

    # NCHW -> NHWC (channels on lanes), 1-pixel spatial halo, channel pad to cp.
    x = jnp.transpose(x_nchw, (0, 2, 3, 1))
    x = jnp.pad(x, ((0, 0), (1, 1), (1, 1), (0, cp - C)))

    out = pl.pallas_call(
        _basic_block_kernel,
        out_shape=jax.ShapeDtypeStruct((N, H, W, cp), x_nchw.dtype),
        grid_spec=pltpu.PrefetchScalarGridSpec(
            num_scalar_prefetch=0,
            grid=(N,),
            in_specs=[
                pl.BlockSpec((1, H + 2, W + 2, cp), lambda n: (n, 0, 0, 0)),
                pl.BlockSpec((3, 3, cp, cp), lambda n: (0, 0, 0, 0)),
                pl.BlockSpec((3, 3, cp, cp), lambda n: (0, 0, 0, 0)),
                pl.BlockSpec((1, cp), lambda n: (0, 0)),
                pl.BlockSpec((1, cp), lambda n: (0, 0)),
                pl.BlockSpec((1, cp), lambda n: (0, 0)),
                pl.BlockSpec((1, cp), lambda n: (0, 0)),
            ],
            out_specs=pl.BlockSpec((1, H, W, cp), lambda n: (n, 0, 0, 0)),
            scratch_shapes=[
                pltpu.VMEM((H * W, cp), jnp.float32),
                pltpu.VMEM((H + 2, W + 2, cp), jnp.float32),
            ],
        ),
        compiler_params=pltpu.CompilerParams(
            dimension_semantics=("parallel",),   # batch axis -> megacore on v7x
            vmem_limit_bytes=32 * 1024 * 1024,
        ),
    )(x, params["w1"], params["w2"],
      params["s1"], params["b1"], params["s2"], params["b2"])

    # Drop the zero-padded channels and return in PyTorch NCHW layout.
    return jnp.transpose(out[..., :planes], (0, 3, 1, 2))


def basic_block_reference(x_nchw, conv1_w, conv2_w, bn1, bn2, eps=1e-5):
    """Plain-JAX reference (eval-mode BN), for correctness checking."""
    def conv(x, w):
        return lax.conv_general_dilated(
            x, w, window_strides=(1, 1), padding=((1, 1), (1, 1)),
            dimension_numbers=("NCHW", "OIHW", "NCHW"))

    def bn(x, p):
        gamma, beta, mean, var = p
        inv = gamma / jnp.sqrt(var + eps)
        return ((x - mean[None, :, None, None]) * inv[None, :, None, None]
                + beta[None, :, None, None])

    out = jax.nn.relu(bn(conv(x_nchw, conv1_w), bn1))
    out = bn(conv(out, conv2_w), bn2)
    out = out + x_nchw          # identity shortcut (stride=1, in_planes==planes)
    return jax.nn.relu(out)


if __name__ == "__main__":
    # Small CIFAR-ResNet-like shapes: BasicBlock(16, 16, stride=1).
    N, planes, H, W = 2, 16, 16, 16

    key = jax.random.PRNGKey(0)
    (kx, kw1, kw2,
     kg1, kb1, km1, kv1,
     kg2, kb2, km2, kv2) = jax.random.split(key, 11)

    def kaiming(k, shape):
        fan_in = shape[1] * shape[2] * shape[3]
        return (2.0 / fan_in) ** 0.5 * jax.random.normal(k, shape, jnp.float32)

    x = jax.random.normal(kx, (N, planes, H, W), dtype=jnp.float32)
    conv1_w = kaiming(kw1, (planes, planes, 3, 3))
    conv2_w = kaiming(kw2, (planes, planes, 3, 3))

    bn1 = (1.0 + 0.1 * jax.random.normal(kg1, (planes,), jnp.float32),
           0.1 * jax.random.normal(kb1, (planes,), jnp.float32),
           0.1 * jax.random.normal(km1, (planes,), jnp.float32),
           1.0 + 0.1 * jax.random.uniform(kv1, (planes,), jnp.float32))
    bn2 = (1.0 + 0.1 * jax.random.normal(kg2, (planes,), jnp.float32),
           0.1 * jax.random.normal(kb2, (planes,), jnp.float32),
           0.1 * jax.random.normal(km2, (planes,), jnp.float32),
           1.0 + 0.1 * jax.random.uniform(kv2, (planes,), jnp.float32))

    # One-time parameter prep (transpose / channel pad / BN fold).
    params = prepare_block_params(conv1_w, conv2_w, bn1, bn2)

    y = basic_block_forward(x, params)
    jax.block_until_ready(y)

    y_ref = basic_block_reference(x, conv1_w, conv2_w, bn1, bn2)
    assert y.shape == (N, planes, H, W)
    assert bool(jnp.allclose(y, y_ref, atol=1e-4, rtol=1e-4)), (
        "max abs diff = %g" % float(jnp.max(jnp.abs(y - y_ref))))

    print("KERNEL_OK")
</pallas_src>

<mosaic_0001>
module attributes {stable_mosaic.version = 11 : i64} {
  func.func @_basic_block_kernel(%arg0: i32, %arg1: memref<1x18x18x128xf32, #tpu.memory_space<vmem>>, %arg2: memref<3x3x128x128xf32, #tpu.memory_space<vmem>>, %arg3: memref<3x3x128x128xf32, #tpu.memory_space<vmem>>, %arg4: memref<1x128xf32, #tpu.memory_space<vmem>>, %arg5: memref<1x128xf32, #tpu.memory_space<vmem>>, %arg6: memref<1x128xf32, #tpu.memory_space<vmem>>, %arg7: memref<1x128xf32, #tpu.memory_space<vmem>>, %arg8: memref<1x16x16x128xf32, #tpu.memory_space<vmem>>, %arg9: memref<256x128xf32, #tpu.memory_space<vmem>>, %arg10: memref<18x18x128xf32, #tpu.memory_space<vmem>>) attributes {dimension_semantics = [#tpu.dimension_semantics<parallel>], iteration_bounds = array<i64: 2>, scalar_prefetch = 0 : i64, scratch_operands = 2 : i64, tpu.core_type = #tpu.core_type<tc>, window_params = [{transform_indices = @transform_0, window_bounds = array<i64: 1, 18, 18, 128>}, {pipeline_mode = #tpu.pipeline_mode<synchronous>, transform_indices = @transform_1, window_bounds = array<i64: 3, 3, 128, 128>}, {pipeline_mode = #tpu.pipeline_mode<synchronous>, transform_indices = @transform_2, window_bounds = array<i64: 3, 3, 128, 128>}, {pipeline_mode = #tpu.pipeline_mode<synchronous>, transform_indices = @transform_3, window_bounds = array<i64: 1, 128>}, {pipeline_mode = #tpu.pipeline_mode<synchronous>, transform_indices = @transform_4, window_bounds = array<i64: 1, 128>}, {pipeline_mode = #tpu.pipeline_mode<synchronous>, transform_indices = @transform_5, window_bounds = array<i64: 1, 128>}, {pipeline_mode = #tpu.pipeline_mode<synchronous>, transform_indices = @transform_6, window_bounds = array<i64: 1, 128>}, {transform_indices = @transform_7, window_bounds = array<i64: 1, 16, 16, 128>}]} {
    %cst = arith.constant 0.000000e+00 : f32
    %0 = vector.broadcast %cst : f32 to vector<256x128xf32>
    %c0 = arith.constant 0 : index
    %c0_0 = arith.constant 0 : index
    %1 = vector.load %arg9[%c0, %c0_0] : memref<256x128xf32, #tpu.memory_space<vmem>>, vector<256x128xf32>
    tpu.vector_store %arg9[%c0, %c0_0], %0 {strides = array<i32>} : memref<256x128xf32, #tpu.memory_space<vmem>>, vector<256x128xf32>,
    %c0_1 = arith.constant 0 : index
    %c0_2 = arith.constant 0 : index
    %c0_3 = arith.constant 0 : index
    %c0_4 = arith.constant 0 : index
    %2 = vector.load %arg1[%c0_1, %c0_2, %c0_3, %c0_4] : memref<1x18x18x128xf32, #tpu.memory_space<vmem>>, vector<1x16x16x128xf32>
    %3 = vector.shape_cast %2 : vector<1x16x16x128xf32> to vector<16x16x128xf32>
    %4 = vector.shape_cast %3 : vector<16x16x128xf32> to vector<256x128xf32>
    %c0_5 = arith.constant 0 : index
    %c0_6 = arith.constant 0 : index
    %5 = vector.load %arg9[%c0_5, %c0_6] : memref<256x128xf32, #tpu.memory_space<vmem>>, vector<256x128xf32>
    %c0_7 = arith.constant 0 : index
    %c0_8 = arith.constant 0 : index
    %c0_9 = arith.constant 0 : index
    %c0_10 = arith.constant 0 : index
    %6 = vector.load %arg2[%c0_7, %c0_8, %c0_9, %c0_10] : memref<3x3x128x128xf32, #tpu.memory_space<vmem>>, vector<1x1x128x128xf32>
    %7 = vector.shape_cast %6 : vector<1x1x128x128xf32> to vector<128x128xf32>
    %cst_11 = arith.constant dense<0.000000e+00> : vector<256x128xf32>
    %8 = tpu.matmul %4, %7, %cst_11 {dimension_numbers = #tpu.dot_dimension_numbers<[1], [0], [0], [1], [0, 0, 1, 1], [], []>} : vector<256x128xf32>, vector<128x128xf32>, vector<256x128xf32> -> vector<256x128xf32>
    %9 = arith.addf %5, %8 : vector<256x128xf32>
    %c0_12 = arith.constant 0 : index
    %c0_13 = arith.constant 0 : index
    %10 = vector.load %arg9[%c0_12, %c0_13] : memref<256x128xf32, #tpu.memory_space<vmem>>, vector<256x128xf32>
    tpu.vector_store %arg9[%c0_12, %c0_13], %9 {strides = array<i32>} : memref<256x128xf32, #tpu.memory_space<vmem>>, vector<256x128xf32>,
    %c0_14 = arith.constant 0 : index
    %c0_15 = arith.constant 0 : index
    %c1 = arith.constant 1 : index
    %c0_16 = arith.constant 0 : index
    %11 = vector.load %arg1[%c0_14, %c0_15, %c1, %c0_16] : memref<1x18x18x128xf32, #tpu.memory_space<vmem>>, vector<1x16x16x128xf32>
    %12 = vector.shape_cast %11 : vector<1x16x16x128xf32> to vector<16x16x128xf32>
    %13 = vector.shape_cast %12 : vector<16x16x128xf32> to vector<256x128xf32>
    %c0_17 = arith.constant 0 : index
    %c0_18 = arith.constant 0 : index
    %14 = vector.load %arg9[%c0_17, %c0_18] : memref<256x128xf32, #tpu.memory_space<vmem>>, vector<256x128xf32>
    %c0_19 = arith.constant 0 : index
    %c1_20 = arith.constant 1 : index
    %c0_21 = arith.constant 0 : index
    %c0_22 = arith.constant 0 : index
    %15 = vector.load %arg2[%c0_19, %c1_20, %c0_21, %c0_22] : memref<3x3x128x128xf32, #tpu.memory_space<vmem>>, vector<1x1x128x128xf32>
    %16 = vector.shape_cast %15 : vector<1x1x128x128xf32> to vector<128x128xf32>
    %cst_23 = arith.constant dense<0.000000e+00> : vector<256x128xf32>
    %17 = tpu.matmul %13, %16, %cst_23 {dimension_numbers = #tpu.dot_dimension_numbers<[1], [0], [0], [1], [0, 0, 1, 1], [], []>} : vector<256x128xf32>, vector<128x128xf32>, vector<256x128xf32> -> vector<256x128xf32>
    %18 = arith.addf %14, %17 : vector<256x128xf32>
    %c0_24 = arith.constant 0 : index
    %c0_25 = arith.constant 0 : index
    %19 = vector.load %arg9[%c0_24, %c0_25] : memref<256x128xf32, #tpu.memory_space<vmem>>, vector<256x128xf32>
    tpu.vector_store %arg9[%c0_24, %c0_25], %18 {strides = array<i32>} : memref<256x128xf32, #tpu.memory_space<vmem>>, vector<256x128xf32>,
    %c0_26 = arith.constant 0 : index
    %c0_27 = arith.constant 0 : index
    %c2 = arith.constant 2 : index
    %c0_28 = arith.constant 0 : index
    %20 = vector.load %arg1[%c0_26, %c0_27, %c2, %c0_28] : memref<1x18x18x128xf32, #tpu.memory_space<vmem>>, vector<1x16x16x128xf32>
    %21 = vector.shape_cast %20 : vector<1x16x16x128xf32> to vector<16x16x128xf32>
    %22 = vector.shape_cast %21 : vector<16x16x128xf32> to vector<256x128xf32>
    %c0_29 = arith.constant 0 : index
    %c0_30 = arith.constant 0 : index
    %23 = vector.load %arg9[%c0_29, %c0_30] : memref<256x128xf32, #tpu.memory_space<vmem>>, vector<256x128xf32>
    %c0_31 = arith.constant 0 : index
    %c2_32 = arith.constant 2 : index
    %c0_33 = arith.constant 0 : index
    %c0_34 = arith.constant 0 : index
    %24 = vector.load %arg2[%c0_31, %c2_32, %c0_33, %c0_34] : memref<3x3x128x128xf32, #tpu.memory_space<vmem>>, vector<1x1x128x128xf32>
    %25 = vector.shape_cast %24 : vector<1x1x128x128xf32> to vector<128x128xf32>
    %cst_35 = arith.constant dense<0.000000e+00> : vector<256x128xf32>
    %26 = tpu.matmul %22, %25, %cst_35 {dimension_numbers = #tpu.dot_dimension_numbers<[1], [0], [0], [1], [0, 0, 1, 1], [], []>} : vector<256x128xf32>, vector<128x128xf32>, vector<256x128xf32> -> vector<256x128xf32>
    %27 = arith.addf %23, %26 : vector<256x128xf32>
    %c0_36 = arith.constant 0 : index
    %c0_37 = arith.constant 0 : index
    %28 = vector.load %arg9[%c0_36, %c0_37] : memref<256x128xf32, #tpu.memory_space<vmem>>, vector<256x128xf32>
    tpu.vector_store %arg9[%c0_36, %c0_37], %27 {strides = array<i32>} : memref<256x128xf32, #tpu.memory_space<vmem>>, vector<256x128xf32>,
    %c0_38 = arith.constant 0 : index
    %c1_39 = arith.constant 1 : index
    %c0_40 = arith.constant 0 : index
    %c0_41 = arith.constant 0 : index
    %29 = vector.load %arg1[%c0_38, %c1_39, %c0_40, %c0_41] : memref<1x18x18x128xf32, #tpu.memory_space<vmem>>, vector<1x16x16x128xf32>
    %30 = vector.shape_cast %29 : vector<1x16x16x128xf32> to vector<16x16x128xf32>
    %31 = vector.shape_cast %30 : vector<16x16x128xf32> to vector<256x128xf32>
    %c0_42 = arith.constant 0 : index
    %c0_43 = arith.constant 0 : index
    %32 = vector.load %arg9[%c0_42, %c0_43] : memref<256x128xf32, #tpu.memory_space<vmem>>, vector<256x128xf32>
    %c1_44 = arith.constant 1 : index
    %c0_45 = arith.constant 0 : index
    %c0_46 = arith.constant 0 : index
    %c0_47 = arith.constant 0 : index
    %33 = vector.load %arg2[%c1_44, %c0_45, %c0_46, %c0_47] : memref<3x3x128x128xf32, #tpu.memory_space<vmem>>, vector<1x1x128x128xf32>
    %34 = vector.shape_cast %33 : vector<1x1x128x128xf32> to vector<128x128xf32>
    %cst_48 = arith.constant dense<0.000000e+00> : vector<256x128xf32>
    %35 = tpu.matmul %31, %34, %cst_48 {dimension_numbers = #tpu.dot_dimension_numbers<[1], [0], [0], [1], [0, 0, 1, 1], [], []>} : vector<256x128xf32>, vector<128x128xf32>, vector<256x128xf32> -> vector<256x128xf32>
    %36 = arith.addf %32, %35 : vector<256x128xf32>
    %c0_49 = arith.constant 0 : index
    %c0_50 = arith.constant 0 : index
    %37 = vector.load %arg9[%c0_49, %c0_50] : memref<256x128xf32, #tpu.memory_space<vmem>>, vector<256x128xf32>
    tpu.vector_store %arg9[%c0_49, %c0_50], %36 {strides = array<i32>} : memref<256x128xf32, #tpu.memory_space<vmem>>, vector<256x128xf32>,
    %c0_51 = arith.constant 0 : index
    %c1_52 = arith.constant 1 : index
    %c1_53 = arith.constant 1 : index
    %c0_54 = arith.constant 0 : index
    %38 = vector.load %arg1[%c0_51, %c1_52, %c1_53, %c0_54] : memref<1x18x18x128xf32, #tpu.memory_space<vmem>>, vector<1x16x16x128xf32>
    %39 = vector.shape_cast %38 : vector<1x16x16x128xf32> to vector<16x16x128xf32>
    %40 = vector.shape_cast %39 : vector<16x16x128xf32> to vector<256x128xf32>
    %c0_55 = arith.constant 0 : index
    %c0_56 = arith.constant 0 : index
    %41 = vector.load %arg9[%c0_55, %c0_56] : memref<256x128xf32, #tpu.memory_space<vmem>>, vector<256x128xf32>
    %c1_57 = arith.constant 1 : index
    %c1_58 = arith.constant 1 : index
    %c0_59 = arith.constant 0 : index
    %c0_60 = arith.constant 0 : index
    %42 = vector.load %arg2[%c1_57, %c1_58, %c0_59, %c0_60] : memref<3x3x128x128xf32, #tpu.memory_space<vmem>>, vector<1x1x128x128xf32>
    %43 = vector.shape_cast %42 : vector<1x1x128x128xf32> to vector<128x128xf32>
    %cst_61 = arith.constant dense<0.000000e+00> : vector<256x128xf32>
    %44 = tpu.matmul %40, %43, %cst_61 {dimension_numbers = #tpu.dot_dimension_numbers<[1], [0], [0], [1], [0, 0, 1, 1], [], []>} : vector<256x128xf32>, vector<128x128xf32>, vector<256x128xf32> -> vector<256x128xf32>
    %45 = arith.addf %41, %44 : vector<256x128xf32>
    %c0_62 = arith.constant 0 : index
    %c0_63 = arith.constant 0 : index
    %46 = vector.load %arg9[%c0_62, %c0_63] : memref<256x128xf32, #tpu.memory_space<vmem>>, vector<256x128xf32>
    tpu.vector_store %arg9[%c0_62, %c0_63], %45 {strides = array<i32>} : memref<256x128xf32, #tpu.memory_space<vmem>>, vector<256x128xf32>,
    %c0_64 = arith.constant 0 : index
    %c1_65 = arith.constant 1 : index
    %c2_66 = arith.constant 2 : index
    %c0_67 = arith.constant 0 : index
    %47 = vector.load %arg1[%c0_64, %c1_65, %c2_66, %c0_67] : memref<1x18x18x128xf32, #tpu.memory_space<vmem>>, vector<1x16x16x128xf32>
    %48 = vector.shape_cast %47 : vector<1x16x16x128xf32> to vector<16x16x128xf32>
    %49 = vector.shape_cast %48 : vector<16x16x128xf32> to vector<256x128xf32>
    %c0_68 = arith.constant 0 : index
    %c0_69 = arith.constant 0 : index
    %50 = vector.load %arg9[%c0_68, %c0_69] : memref<256x128xf32, #tpu.memory_space<vmem>>, vector<256x128xf32>
    %c1_70 = arith.constant 1 : index
    %c2_71 = arith.constant 2 : index
    %c0_72 = arith.constant 0 : index
    %c0_73 = arith.constant 0 : index
    %51 = vector.load %arg2[%c1_70, %c2_71, %c0_72, %c0_73] : memref<3x3x128x128xf32, #tpu.memory_space<vmem>>, vector<1x1x128x128xf32>
    %52 = vector.shape_cast %51 : vector<1x1x128x128xf32> to vector<128x128xf32>
    %cst_74 = arith.constant dense<0.000000e+00> : vector<256x128xf32>
    %53 = tpu.matmul %49, %52, %cst_74 {dimension_numbers = #tpu.dot_dimension_numbers<[1], [0], [0], [1], [0, 0, 1, 1], [], []>} : vector<256x128xf32>, vector<128x128xf32>, vector<256x128xf32> -> vector<256x128xf32>
    %54 = arith.addf %50, %53 : vector<256x128xf32>
    %c0_75 = arith.constant 0 : index
    %c0_76 = arith.constant 0 : index
    %55 = vector.load %arg9[%c0_75, %c0_76] : memref<256x128xf32, #tpu.memory_space<vmem>>, vector<256x128xf32>
    tpu.vector_store %arg9[%c0_75, %c0_76], %54 {strides = array<i32>} : memref<256x128xf32, #tpu.memory_space<vmem>>, vector<256x128xf32>,
    %c0_77 = arith.constant 0 : index
    %c2_78 = arith.constant 2 : index
    %c0_79 = arith.constant 0 : index
    %c0_80 = arith.constant 0 : index
    %56 = vector.load %arg1[%c0_77, %c2_78, %c0_79, %c0_80] : memref<1x18x18x128xf32, #tpu.memory_space<vmem>>, vector<1x16x16x128xf32>
    %57 = vector.shape_cast %56 : vector<1x16x16x128xf32> to vector<16x16x128xf32>
    %58 = vector.shape_cast %57 : vector<16x16x128xf32> to vector<256x128xf32>
    %c0_81 = arith.constant 0 : index
    %c0_82 = arith.constant 0 : index
    %59 = vector.load %arg9[%c0_81, %c0_82] : memref<256x128xf32, #tpu.memory_space<vmem>>, vector<256x128xf32>
    %c2_83 = arith.constant 2 : index
    %c0_84 = arith.constant 0 : index
    %c0_85 = arith.constant 0 : index
    %c0_86 = arith.constant 0 : index
    %60 = vector.load %arg2[%c2_83, %c0_84, %c0_85, %c0_86] : memref<3x3x128x128xf32, #tpu.memory_space<vmem>>, vector<1x1x128x128xf32>
    %61 = vector.shape_cast %60 : vector<1x1x128x128xf32> to vector<128x128xf32>
    %cst_87 = arith.constant dense<0.000000e+00> : vector<256x128xf32>
    %62 = tpu.matmul %58, %61, %cst_87 {dimension_numbers = #tpu.dot_dimension_numbers<[1], [0], [0], [1], [0, 0, 1, 1], [], []>} : vector<256x128xf32>, vector<128x128xf32>, vector<256x128xf32> -> vector<256x128xf32>
    %63 = arith.addf %59, %62 : vector<256x128xf32>
    %c0_88 = arith.constant 0 : index
    %c0_89 = arith.constant 0 : index
    %64 = vector.load %arg9[%c0_88, %c0_89] : memref<256x128xf32, #tpu.memory_space<vmem>>, vector<256x128xf32>
    tpu.vector_store %arg9[%c0_88, %c0_89], %63 {strides = array<i32>} : memref<256x128xf32, #tpu.memory_space<vmem>>, vector<256x128xf32>,
    %c0_90 = arith.constant 0 : index
    %c2_91 = arith.constant 2 : index
    %c1_92 = arith.constant 1 : index
    %c0_93 = arith.constant 0 : index
    %65 = vector.load %arg1[%c0_90, %c2_91, %c1_92, %c0_93] : memref<1x18x18x128xf32, #tpu.memory_space<vmem>>, vector<1x16x16x128xf32>
    %66 = vector.shape_cast %65 : vector<1x16x16x128xf32> to vector<16x16x128xf32>
    %67 = vector.shape_cast %66 : vector<16x16x128xf32> to vector<256x128xf32>
    %c0_94 = arith.constant 0 : index
    %c0_95 = arith.constant 0 : index
    %68 = vector.load %arg9[%c0_94, %c0_95] : memref<256x128xf32, #tpu.memory_space<vmem>>, vector<256x128xf32>
    %c2_96 = arith.constant 2 : index
    %c1_97 = arith.constant 1 : index
    %c0_98 = arith.constant 0 : index
    %c0_99 = arith.constant 0 : index
    %69 = vector.load %arg2[%c2_96, %c1_97, %c0_98, %c0_99] : memref<3x3x128x128xf32, #tpu.memory_space<vmem>>, vector<1x1x128x128xf32>
    %70 = vector.shape_cast %69 : vector<1x1x128x128xf32> to vector<128x128xf32>
    %cst_100 = arith.constant dense<0.000000e+00> : vector<256x128xf32>
    %71 = tpu.matmul %67, %70, %cst_100 {dimension_numbers = #tpu.dot_dimension_numbers<[1], [0], [0], [1], [0, 0, 1, 1], [], []>} : vector<256x128xf32>, vector<128x128xf32>, vector<256x128xf32> -> vector<256x128xf32>
    %72 = arith.addf %68, %71 : vector<256x128xf32>
    %c0_101 = arith.constant 0 : index
    %c0_102 = arith.constant 0 : index
    %73 = vector.load %arg9[%c0_101, %c0_102] : memref<256x128xf32, #tpu.memory_space<vmem>>, vector<256x128xf32>
    tpu.vector_store %arg9[%c0_101, %c0_102], %72 {strides = array<i32>} : memref<256x128xf32, #tpu.memory_space<vmem>>, vector<256x128xf32>,
    %c0_103 = arith.constant 0 : index
    %c2_104 = arith.constant 2 : index
    %c2_105 = arith.constant 2 : index
    %c0_106 = arith.constant 0 : index
    %74 = vector.load %arg1[%c0_103, %c2_104, %c2_105, %c0_106] : memref<1x18x18x128xf32, #tpu.memory_space<vmem>>, vector<1x16x16x128xf32>
    %75 = vector.shape_cast %74 : vector<1x16x16x128xf32> to vector<16x16x128xf32>
    %76 = vector.shape_cast %75 : vector<16x16x128xf32> to vector<256x128xf32>
    %c0_107 = arith.constant 0 : index
    %c0_108 = arith.constant 0 : index
    %77 = vector.load %arg9[%c0_107, %c0_108] : memref<256x128xf32, #tpu.memory_space<vmem>>, vector<256x128xf32>
    %c2_109 = arith.constant 2 : index
    %c2_110 = arith.constant 2 : index
    %c0_111 = arith.constant 0 : index
    %c0_112 = arith.constant 0 : index
    %78 = vector.load %arg2[%c2_109, %c2_110, %c0_111, %c0_112] : memref<3x3x128x128xf32, #tpu.memory_space<vmem>>, vector<1x1x128x128xf32>
    %79 = vector.shape_cast %78 : vector<1x1x128x128xf32> to vector<128x128xf32>
    %cst_113 = arith.constant dense<0.000000e+00> : vector<256x128xf32>
    %80 = tpu.matmul %76, %79, %cst_113 {dimension_numbers = #tpu.dot_dimension_numbers<[1], [0], [0], [1], [0, 0, 1, 1], [], []>} : vector<256x128xf32>, vector<128x128xf32>, vector<256x128xf32> -> vector<256x128xf32>
    %81 = arith.addf %77, %80 : vector<256x128xf32>
    %c0_114 = arith.constant 0 : index
    %c0_115 = arith.constant 0 : index
    %82 = vector.load %arg9[%c0_114, %c0_115] : memref<256x128xf32, #tpu.memory_space<vmem>>, vector<256x128xf32>
    tpu.vector_store %arg9[%c0_114, %c0_115], %81 {strides = array<i32>} : memref<256x128xf32, #tpu.memory_space<vmem>>, vector<256x128xf32>,
    %c0_116 = arith.constant 0 : index
    %c0_117 = arith.constant 0 : index
    %83 = vector.load %arg9[%c0_116, %c0_117] : memref<256x128xf32, #tpu.memory_space<vmem>>, vector<256x128xf32>
    %c0_118 = arith.constant 0 : index
    %c0_119 = arith.constant 0 : index
    %84 = vector.load %arg4[%c0_118, %c0_119] : memref<1x128xf32, #tpu.memory_space<vmem>>, vector<1x128xf32>
    %85 = vector.broadcast %84 : vector<1x128xf32> to vector<256x128xf32>
    %86 = arith.mulf %83, %85 : vector<256x128xf32>
    %c0_120 = arith.constant 0 : index
    %c0_121 = arith.constant 0 : index
    %87 = vector.load %arg5[%c0_120, %c0_121] : memref<1x128xf32, #tpu.memory_space<vmem>>, vector<1x128xf32>
    %88 = vector.broadcast %87 : vector<1x128xf32> to vector<256x128xf32>
    %89 = arith.addf %86, %88 : vector<256x128xf32>
    %cst_122 = arith.constant 0.000000e+00 : f32
    %90 = vector.broadcast %cst_122 : f32 to vector<256x128xf32>
    %91 = arith.maximumf %89, %90 : vector<256x128xf32>
    %cst_123 = arith.constant 0.000000e+00 : f32
    %92 = vector.broadcast %cst_123 : f32 to vector<18x18x128xf32>
    %c0_124 = arith.constant 0 : index
    %c0_125 = arith.constant 0 : index
    %c0_126 = arith.constant 0 : index
    %93 = vector.load %arg10[%c0_124, %c0_125, %c0_126] : memref<18x18x128xf32, #tpu.memory_space<vmem>>, vector<18x18x128xf32>
    tpu.vector_store %arg10[%c0_124, %c0_125, %c0_126], %92 {strides = array<i32>} : memref<18x18x128xf32, #tpu.memory_space<vmem>>, vector<18x18x128xf32>,
    %94 = vector.shape_cast %91 : vector<256x128xf32> to vector<16x16x128xf32>
    %c1_127 = arith.constant 1 : index
    %c1_128 = arith.constant 1 : index
    %c0_129 = arith.constant 0 : index
    %95 = vector.load %arg10[%c1_127, %c1_128, %c0_129] : memref<18x18x128xf32, #tpu.memory_space<vmem>>, vector<16x16x128xf32>
    tpu.vector_store %arg10[%c1_127, %c1_128, %c0_129], %94 {strides = array<i32>} : memref<18x18x128xf32, #tpu.memory_space<vmem>>, vector<16x16x128xf32>,
    %cst_130 = arith.constant 0.000000e+00 : f32
    %96 = vector.broadcast %cst_130 : f32 to vector<256x128xf32>
    %c0_131 = arith.constant 0 : index
    %c0_132 = arith.constant 0 : index
    %97 = vector.load %arg9[%c0_131, %c0_132] : memref<256x128xf32, #tpu.memory_space<vmem>>, vector<256x128xf32>
    tpu.vector_store %arg9[%c0_131, %c0_132], %96 {strides = array<i32>} : memref<256x128xf32, #tpu.memory_space<vmem>>, vector<256x128xf32>,
    %c0_133 = arith.constant 0 : index
    %c0_134 = arith.constant 0 : index
    %c0_135 = arith.constant 0 : index
    %98 = vector.load %arg10[%c0_133, %c0_134, %c0_135] : memref<18x18x128xf32, #tpu.memory_space<vmem>>, vector<16x16x128xf32>
    %99 = vector.shape_cast %98 : vector<16x16x128xf32> to vector<256x128xf32>
    %c0_136 = arith.constant 0 : index
    %c0_137 = arith.constant 0 : index
    %100 = vector.load %arg9[%c0_136, %c0_137] : memref<256x128xf32, #tpu.memory_space<vmem>>, vector<256x128xf32>
    %c0_138 = arith.constant 0 : index
    %c0_139 = arith.constant 0 : index
    %c0_140 = arith.constant 0 : index
    %c0_141 = arith.constant 0 : index
    %101 = vector.load %arg3[%c0_138, %c0_139, %c0_140, %c0_141] : memref<3x3x128x128xf32, #tpu.memory_space<vmem>>, vector<1x1x128x128xf32>
    %102 = vector.shape_cast %101 : vector<1x1x128x128xf32> to vector<128x128xf32>
    %cst_142 = arith.constant dense<0.000000e+00> : vector<256x128xf32>
    %103 = tpu.matmul %99, %102, %cst_142 {dimension_numbers = #tpu.dot_dimension_numbers<[1], [0], [0], [1], [0, 0, 1, 1], [], []>} : vector<256x128xf32>, vector<128x128xf32>, vector<256x128xf32> -> vector<256x128xf32>
    %104 = arith.addf %100, %103 : vector<256x128xf32>
    %c0_143 = arith.constant 0 : index
    %c0_144 = arith.constant 0 : index
    %105 = vector.load %arg9[%c0_143, %c0_144] : memref<256x128xf32, #tpu.memory_space<vmem>>, vector<256x128xf32>
    tpu.vector_store %arg9[%c0_143, %c0_144], %104 {strides = array<i32>} : memref<256x128xf32, #tpu.memory_space<vmem>>, vector<256x128xf32>,
    %c0_145 = arith.constant 0 : index
    %c1_146 = arith.constant 1 : index
    %c0_147 = arith.constant 0 : index
    %106 = vector.load %arg10[%c0_145, %c1_146, %c0_147] : memref<18x18x128xf32, #tpu.memory_space<vmem>>, vector<16x16x128xf32>
    %107 = vector.shape_cast %106 : vector<16x16x128xf32> to vector<256x128xf32>
    %c0_148 = arith.constant 0 : index
    %c0_149 = arith.constant 0 : index
    %108 = vector.load %arg9[%c0_148, %c0_149] : memref<256x128xf32, #tpu.memory_space<vmem>>, vector<256x128xf32>
    %c0_150 = arith.constant 0 : index
    %c1_151 = arith.constant 1 : index
    %c0_152 = arith.constant 0 : index
    %c0_153 = arith.constant 0 : index
    %109 = vector.load %arg3[%c0_150, %c1_151, %c0_152, %c0_153] : memref<3x3x128x128xf32, #tpu.memory_space<vmem>>, vector<1x1x128x128xf32>
    %110 = vector.shape_cast %109 : vector<1x1x128x128xf32> to vector<128x128xf32>
    %cst_154 = arith.constant dense<0.000000e+00> : vector<256x128xf32>
    %111 = tpu.matmul %107, %110, %cst_154 {dimension_numbers = #tpu.dot_dimension_numbers<[1], [0], [0], [1], [0, 0, 1, 1], [], []>} : vector<256x128xf32>, vector<128x128xf32>, vector<256x128xf32> -> vector<256x128xf32>
    %112 = arith.addf %108, %111 : vector<256x128xf32>
    %c0_155 = arith.constant 0 : index
    %c0_156 = arith.constant 0 : index
    %113 = vector.load %arg9[%c0_155, %c0_156] : memref<256x128xf32, #tpu.memory_space<vmem>>, vector<256x128xf32>
    tpu.vector_store %arg9[%c0_155, %c0_156], %112 {strides = array<i32>} : memref<256x128xf32, #tpu.memory_space<vmem>>, vector<256x128xf32>,
    %c0_157 = arith.constant 0 : index
    %c2_158 = arith.constant 2 : index
    %c0_159 = arith.constant 0 : index
    %114 = vector.load %arg10[%c0_157, %c2_158, %c0_159] : memref<18x18x128xf32, #tpu.memory_space<vmem>>, vector<16x16x128xf32>
    %115 = vector.shape_cast %114 : vector<16x16x128xf32> to vector<256x128xf32>
    %c0_160 = arith.constant 0 : index
    %c0_161 = arith.constant 0 : index
    %116 = vector.load %arg9[%c0_160, %c0_161] : memref<256x128xf32, #tpu.memory_space<vmem>>, vector<256x128xf32>
    %c0_162 = arith.constant 0 : index
    %c2_163 = arith.constant 2 : index
    %c0_164 = arith.constant 0 : index
    %c0_165 = arith.constant 0 : index
    %117 = vector.load %arg3[%c0_162, %c2_163, %c0_164, %c0_165] : memref<3x3x128x128xf32, #tpu.memory_space<vmem>>, vector<1x1x128x128xf32>
    %118 = vector.shape_cast %117 : vector<1x1x128x128xf32> to vector<128x128xf32>
    %cst_166 = arith.constant dense<0.000000e+00> : vector<256x128xf32>
    %119 = tpu.matmul %115, %118, %cst_166 {dimension_numbers = #tpu.dot_dimension_numbers<[1], [0], [0], [1], [0, 0, 1, 1], [], []>} : vector<256x128xf32>, vector<128x128xf32>, vector<256x128xf32> -> vector<256x128xf32>
    %120 = arith.addf %116, %119 : vector<256x128xf32>
    %c0_167 = arith.constant 0 : index
    %c0_168 = arith.constant 0 : index
    %121 = vector.load %arg9[%c0_167, %c0_168] : memref<256x128xf32, #tpu.memory_space<vmem>>, vector<256x128xf32>
    tpu.vector_store %arg9[%c0_167, %c0_168], %120 {strides = array<i32>} : memref<256x128xf32, #tpu.memory_space<vmem>>, vector<256x128xf32>,
    %c1_169 = arith.constant 1 : index
    %c0_170 = arith.constant 0 : index
    %c0_171 = arith.constant 0 : index
    %122 = vector.load %arg10[%c1_169, %c0_170, %c0_171] : memref<18x18x128xf32, #tpu.memory_space<vmem>>, vector<16x16x128xf32>
    %123 = vector.shape_cast %122 : vector<16x16x128xf32> to vector<256x128xf32>
    %c0_172 = arith.constant 0 : index
    %c0_173 = arith.constant 0 : index
    %124 = vector.load %arg9[%c0_172, %c0_173] : memref<256x128xf32, #tpu.memory_space<vmem>>, vector<256x128xf32>
    %c1_174 = arith.constant 1 : index
    %c0_175 = arith.constant 0 : index
    %c0_176 = arith.constant 0 : index
    %c0_177 = arith.constant 0 : index
    %125 = vector.load %arg3[%c1_174, %c0_175, %c0_176, %c0_177] : memref<3x3x128x128xf32, #tpu.memory_space<vmem>>, vector<1x1x128x128xf32>
    %126 = vector.shape_cast %125 : vector<1x1x128x128xf32> to vector<128x128xf32>
    %cst_178 = arith.constant dense<0.000000e+00> : vector<256x128xf32>
    %127 = tpu.matmul %123, %126, %cst_178 {dimension_numbers = #tpu.dot_dimension_numbers<[1], [0], [0], [1], [0, 0, 1, 1], [], []>} : vector<256x128xf32>, vector<128x128xf32>, vector<256x128xf32> -> vector<256x128xf32>
    %128 = arith.addf %124, %127 : vector<256x128xf32>
    %c0_179 = arith.constant 0 : index
    %c0_180 = arith.constant 0 : index
    %129 = vector.load %arg9[%c0_179, %c0_180] : memref<256x128xf32, #tpu.memory_space<vmem>>, vector<256x128xf32>
    tpu.vector_store %arg9[%c0_179, %c0_180], %128 {strides = array<i32>} : memref<256x128xf32, #tpu.memory_space<vmem>>, vector<256x128xf32>,
    %c1_181 = arith.constant 1 : index
    %c1_182 = arith.constant 1 : index
    %c0_183 = arith.constant 0 : index
    %130 = vector.load %arg10[%c1_181, %c1_182, %c0_183] : memref<18x18x128xf32, #tpu.memory_space<vmem>>, vector<16x16x128xf32>
    %131 = vector.shape_cast %130 : vector<16x16x128xf32> to vector<256x128xf32>
    %c0_184 = arith.constant 0 : index
    %c0_185 = arith.constant 0 : index
    %132 = vector.load %arg9[%c0_184, %c0_185] : memref<256x128xf32, #tpu.memory_space<vmem>>, vector<256x128xf32>
    %c1_186 = arith.constant 1 : index
    %c1_187 = arith.constant 1 : index
    %c0_188 = arith.constant 0 : index
    %c0_189 = arith.constant 0 : index
    %133 = vector.load %arg3[%c1_186, %c1_187, %c0_188, %c0_189] : memref<3x3x128x128xf32, #tpu.memory_space<vmem>>, vector<1x1x128x128xf32>
    %134 = vector.shape_cast %133 : vector<1x1x128x128xf32> to vector<128x128xf32>
    %cst_190 = arith.constant dense<0.000000e+00> : vector<256x128xf32>
    %135 = tpu.matmul %131, %134, %cst_190 {dimension_numbers = #tpu.dot_dimension_numbers<[1], [0], [0], [1], [0, 0, 1, 1], [], []>} : vector<256x128xf32>, vector<128x128xf32>, vector<256x128xf32> -> vector<256x128xf32>
    %136 = arith.addf %132, %135 : vector<256x128xf32>
    %c0_191 = arith.constant 0 : index
    %c0_192 = arith.constant 0 : index
    %137 = vector.load %arg9[%c0_191, %c0_192] : memref<256x128xf32, #tpu.memory_space<vmem>>, vector<256x128xf32>
    tpu.vector_store %arg9[%c0_191, %c0_192], %136 {strides = array<i32>} : memref<256x128xf32, #tpu.memory_space<vmem>>, vector<256x128xf32>,
    %c1_193 = arith.constant 1 : index
    %c2_194 = arith.constant 2 : index
    %c0_195 = arith.constant 0 : index
    %138 = vector.load %arg10[%c1_193, %c2_194, %c0_195] : memref<18x18x128xf32, #tpu.memory_space<vmem>>, vector<16x16x128xf32>
    %139 = vector.shape_cast %138 : vector<16x16x128xf32> to vector<256x128xf32>
    %c0_196 = arith.constant 0 : index
    %c0_197 = arith.constant 0 : index
    %140 = vector.load %arg9[%c0_196, %c0_197] : memref<256x128xf32, #tpu.memory_space<vmem>>, vector<256x128xf32>
    %c1_198 = arith.constant 1 : index
    %c2_199 = arith.constant 2 : index
    %c0_200 = arith.constant 0 : index
    %c0_201 = arith.constant 0 : index
    %141 = vector.load %arg3[%c1_198, %c2_199, %c0_200, %c0_201] : memref<3x3x128x128xf32, #tpu.memory_space<vmem>>, vector<1x1x128x128xf32>
    %142 = vector.shape_cast %141 : vector<1x1x128x128xf32> to vector<128x128xf32>
    %cst_202 = arith.constant dense<0.000000e+00> : vector<256x128xf32>
    %143 = tpu.matmul %139, %142, %cst_202 {dimension_numbers = #tpu.dot_dimension_numbers<[1], [0], [0], [1], [0, 0, 1, 1], [], []>} : vector<256x128xf32>, vector<128x128xf32>, vector<256x128xf32> -> vector<256x128xf32>
    %144 = arith.addf %140, %143 : vector<256x128xf32>
    %c0_203 = arith.constant 0 : index
    %c0_204 = arith.constant 0 : index
    %145 = vector.load %arg9[%c0_203, %c0_204] : memref<256x128xf32, #tpu.memory_space<vmem>>, vector<256x128xf32>
    tpu.vector_store %arg9[%c0_203, %c0_204], %144 {strides = array<i32>} : memref<256x128xf32, #tpu.memory_space<vmem>>, vector<256x128xf32>,
    %c2_205 = arith.constant 2 : index
    %c0_206 = arith.constant 0 : index
    %c0_207 = arith.constant 0 : index
    %146 = vector.load %arg10[%c2_205, %c0_206, %c0_207] : memref<18x18x128xf32, #tpu.memory_space<vmem>>, vector<16x16x128xf32>
    %147 = vector.shape_cast %146 : vector<16x16x128xf32> to vector<256x128xf32>
    %c0_208 = arith.constant 0 : index
    %c0_209 = arith.constant 0 : index
    %148 = vector.load %arg9[%c0_208, %c0_209] : memref<256x128xf32, #tpu.memory_space<vmem>>, vector<256x128xf32>
    %c2_210 = arith.constant 2 : index
    %c0_211 = arith.constant 0 : index
    %c0_212 = arith.constant 0 : index
    %c0_213 = arith.constant 0 : index
    %149 = vector.load %arg3[%c2_210, %c0_211, %c0_212, %c0_213] : memref<3x3x128x128xf32, #tpu.memory_space<vmem>>, vector<1x1x128x128xf32>
    %150 = vector.shape_cast %149 : vector<1x1x128x128xf32> to vector<128x128xf32>
    %cst_214 = arith.constant dense<0.000000e+00> : vector<256x128xf32>
    %151 = tpu.matmul %147, %150, %cst_214 {dimension_numbers = #tpu.dot_dimension_numbers<[1], [0], [0], [1], [0, 0, 1, 1], [], []>} : vector<256x128xf32>, vector<128x128xf32>, vector<256x128xf32> -> vector<256x128xf32>
    %152 = arith.addf %148, %151 : vector<256x128xf32>
    %c0_215 = arith.constant 0 : index
    %c0_216 = arith.constant 0 : index
    %153 = vector.load %arg9[%c0_215, %c0_216] : memref<256x128xf32, #tpu.memory_space<vmem>>, vector<256x128xf32>
    tpu.vector_store %arg9[%c0_215, %c0_216], %152 {strides = array<i32>} : memref<256x128xf32, #tpu.memory_space<vmem>>, vector<256x128xf32>,
    %c2_217 = arith.constant 2 : index
    %c1_218 = arith.constant 1 : index
    %c0_219 = arith.constant 0 : index
    %154 = vector.load %arg10[%c2_217, %c1_218, %c0_219] : memref<18x18x128xf32, #tpu.memory_space<vmem>>, vector<16x16x128xf32>
    %155 = vector.shape_cast %154 : vector<16x16x128xf32> to vector<256x128xf32>
    %c0_220 = arith.constant 0 : index
    %c0_221 = arith.constant 0 : index
    %156 = vector.load %arg9[%c0_220, %c0_221] : memref<256x128xf32, #tpu.memory_space<vmem>>, vector<256x128xf32>
    %c2_222 = arith.constant 2 : index
    %c1_223 = arith.constant 1 : index
    %c0_224 = arith.constant 0 : index
    %c0_225 = arith.constant 0 : index
    %157 = vector.load %arg3[%c2_222, %c1_223, %c0_224, %c0_225] : memref<3x3x128x128xf32, #tpu.memory_space<vmem>>, vector<1x1x128x128xf32>
    %158 = vector.shape_cast %157 : vector<1x1x128x128xf32> to vector<128x128xf32>
    %cst_226 = arith.constant dense<0.000000e+00> : vector<256x128xf32>
    %159 = tpu.matmul %155, %158, %cst_226 {dimension_numbers = #tpu.dot_dimension_numbers<[1], [0], [0], [1], [0, 0, 1, 1], [], []>} : vector<256x128xf32>, vector<128x128xf32>, vector<256x128xf32> -> vector<256x128xf32>
    %160 = arith.addf %156, %159 : vector<256x128xf32>
    %c0_227 = arith.constant 0 : index
    %c0_228 = arith.constant 0 : index
    %161 = vector.load %arg9[%c0_227, %c0_228] : memref<256x128xf32, #tpu.memory_space<vmem>>, vector<256x128xf32>
    tpu.vector_store %arg9[%c0_227, %c0_228], %160 {strides = array<i32>} : memref<256x128xf32, #tpu.memory_space<vmem>>, vector<256x128xf32>,
    %c2_229 = arith.constant 2 : index
    %c2_230 = arith.constant 2 : index
    %c0_231 = arith.constant 0 : index
    %162 = vector.load %arg10[%c2_229, %c2_230, %c0_231] : memref<18x18x128xf32, #tpu.memory_space<vmem>>, vector<16x16x128xf32>
    %163 = vector.shape_cast %162 : vector<16x16x128xf32> to vector<256x128xf32>
    %c0_232 = arith.constant 0 : index
    %c0_233 = arith.constant 0 : index
    %164 = vector.load %arg9[%c0_232, %c0_233] : memref<256x128xf32, #tpu.memory_space<vmem>>, vector<256x128xf32>
    %c2_234 = arith.constant 2 : index
    %c2_235 = arith.constant 2 : index
    %c0_236 = arith.constant 0 : index
    %c0_237 = arith.constant 0 : index
    %165 = vector.load %arg3[%c2_234, %c2_235, %c0_236, %c0_237] : memref<3x3x128x128xf32, #tpu.memory_space<vmem>>, vector<1x1x128x128xf32>
    %166 = vector.shape_cast %165 : vector<1x1x128x128xf32> to vector<128x128xf32>
    %cst_238 = arith.constant dense<0.000000e+00> : vector<256x128xf32>
    %167 = tpu.matmul %163, %166, %cst_238 {dimension_numbers = #tpu.dot_dimension_numbers<[1], [0], [0], [1], [0, 0, 1, 1], [], []>} : vector<256x128xf32>, vector<128x128xf32>, vector<256x128xf32> -> vector<256x128xf32>
    %168 = arith.addf %164, %167 : vector<256x128xf32>
    %c0_239 = arith.constant 0 : index
    %c0_240 = arith.constant 0 : index
    %169 = vector.load %arg9[%c0_239, %c0_240] : memref<256x128xf32, #tpu.memory_space<vmem>>, vector<256x128xf32>
    tpu.vector_store %arg9[%c0_239, %c0_240], %168 {strides = array<i32>} : memref<256x128xf32, #tpu.memory_space<vmem>>, vector<256x128xf32>,
    %c0_241 = arith.constant 0 : index
    %c1_242 = arith.constant 1 : index
    %c1_243 = arith.constant 1 : index
    %c0_244 = arith.constant 0 : index
    %170 = vector.load %arg1[%c0_241, %c1_242, %c1_243, %c0_244] : memref<1x18x18x128xf32, #tpu.memory_space<vmem>>, vector<1x16x16x128xf32>
    %171 = vector.shape_cast %170 : vector<1x16x16x128xf32> to vector<16x16x128xf32>
    %172 = vector.shape_cast %171 : vector<16x16x128xf32> to vector<256x128xf32>
    %c0_245 = arith.constant 0 : index
    %c0_246 = arith.constant 0 : index
    %173 = vector.load %arg9[%c0_245, %c0_246] : memref<256x128xf32, #tpu.memory_space<vmem>>, vector<256x128xf32>
    %c0_247 = arith.constant 0 : index
    %c0_248 = arith.constant 0 : index
    %174 = vector.load %arg6[%c0_247, %c0_248] : memref<1x128xf32, #tpu.memory_space<vmem>>, vector<1x128xf32>
    %175 = vector.broadcast %174 : vector<1x128xf32> to vector<256x128xf32>
    %176 = arith.mulf %173, %175 : vector<256x128xf32>
    %c0_249 = arith.constant 0 : index
    %c0_250 = arith.constant 0 : index
    %177 = vector.load %arg7[%c0_249, %c0_250] : memref<1x128xf32, #tpu.memory_space<vmem>>, vector<1x128xf32>
    %178 = vector.broadcast %177 : vector<1x128xf32> to vector<256x128xf32>
    %179 = arith.addf %176, %178 : vector<256x128xf32>
    %180 = arith.addf %179, %172 : vector<256x128xf32>
    %cst_251 = arith.constant 0.000000e+00 : f32
    %181 = vector.broadcast %cst_251 : f32 to vector<256x128xf32>
    %182 = arith.maximumf %180, %181 : vector<256x128xf32>
    %183 = vector.shape_cast %182 : vector<256x128xf32> to vector<1x16x16x128xf32>
    %c0_252 = arith.constant 0 : index
    %c0_253 = arith.constant 0 : index
    %c0_254 = arith.constant 0 : index
    %c0_255 = arith.constant 0 : index
    %184 = vector.load %arg8[%c0_252, %c0_253, %c0_254, %c0_255] : memref<1x16x16x128xf32, #tpu.memory_space<vmem>>, vector<1x16x16x128xf32>
    tpu.vector_store %arg8[%c0_252, %c0_253, %c0_254, %c0_255], %183 {strides = array<i32>} : memref<1x16x16x128xf32, #tpu.memory_space<vmem>>, vector<1x16x16x128xf32>,
    return
  }
  func.func @transform_0(%arg0: i32) -> (i32, i32, i32, i32) {
    %c0_i32 = arith.constant 0 : i32
    %c0_i32_0 = arith.constant 0 : i32
    %c0_i32_1 = arith.constant 0 : i32
    %c0_i32_2 = arith.constant 0 : i32
    return %arg0, %c0_i32, %c0_i32_0, %c0_i32_1 : i32, i32, i32, i32
  }
  func.func @transform_1(%arg0: i32) -> (i32, i32, i32, i32) {
    %c0_i32 = arith.constant 0 : i32
    %c0_i32_0 = arith.constant 0 : i32
    %c0_i32_1 = arith.constant 0 : i32
    %c0_i32_2 = arith.constant 0 : i32
    %c0_i32_3 = arith.constant 0 : i32
    return %c0_i32, %c0_i32_0, %c0_i32_1, %c0_i32_2 : i32, i32, i32, i32
  }
  func.func @transform_2(%arg0: i32) -> (i32, i32, i32, i32) {
    %c0_i32 = arith.constant 0 : i32
    %c0_i32_0 = arith.constant 0 : i32
    %c0_i32_1 = arith.constant 0 : i32
    %c0_i32_2 = arith.constant 0 : i32
    %c0_i32_3 = arith.constant 0 : i32
    return %c0_i32, %c0_i32_0, %c0_i32_1, %c0_i32_2 : i32, i32, i32, i32
  }
  func.func @transform_3(%arg0: i32) -> (i32, i32) {
    %c0_i32 = arith.constant 0 : i32
    %c0_i32_0 = arith.constant 0 : i32
    %c0_i32_1 = arith.constant 0 : i32
    return %c0_i32, %c0_i32_0 : i32, i32
  }
  func.func @transform_4(%arg0: i32) -> (i32, i32) {
    %c0_i32 = arith.constant 0 : i32
    %c0_i32_0 = arith.constant 0 : i32
    %c0_i32_1 = arith.constant 0 : i32
    return %c0_i32, %c0_i32_0 : i32, i32
  }
  func.func @transform_5(%arg0: i32) -> (i32, i32) {
    %c0_i32 = arith.constant 0 : i32
    %c0_i32_0 = arith.constant 0 : i32
    %c0_i32_1 = arith.constant 0 : i32
    return %c0_i32, %c0_i32_0 : i32, i32
  }
  func.func @transform_6(%arg0: i32) -> (i32, i32) {
    %c0_i32 = arith.constant 0 : i32
    %c0_i32_0 = arith.constant 0 : i32
    %c0_i32_1 = arith.constant 0 : i32
    return %c0_i32, %c0_i32_0 : i32, i32
  }
  func.func @transform_7(%arg0: i32) -> (i32, i32, i32, i32) {
    %c0_i32 = arith.constant 0 : i32
    %c0_i32_0 = arith.constant 0 : i32
    %c0_i32_1 = arith.constant 0 : i32
    %c0_i32_2 = arith.constant 0 : i32
    return %arg0, %c0_i32, %c0_i32_0, %c0_i32_1 : i32, i32, i32, i32
  }
}

</mosaic_0001>

<llo_original>
// kernel: tpu_custom_call.1
$region0: #{tpu_custom_call.1}
  #allocation0 [shape = 'u32[]', space=smem, size = 0x4, offset = 0x4, fixed_abs, tag = 'smem constant byte address 0x4 - core index']
  #allocation1 [shape = 'u32[144,128]{1,0:T(1,128)}', space=vmem, size = 0x12000, scoped, tag = 'internal scratch']
  #allocation2 [shape = 'f32[256,128]{1,0:T(8,128)}', space=vmem, size = 0x20000, scoped, tag = 'scratch operand']
  #allocation3 [shape = 'f32[18,18,128]{2,1,0:T(8,128)}', space=vmem, size = 0x36000, scoped, tag = 'scratch operand']
  %s0 = inlined_call_operand.vmem [shape: f32[2,18,18,128], index: 0, kind: input, shape index: {}]
  %s1 = inlined_call_operand.vmem [shape: f32[3,3,128,128], index: 1, kind: input, shape index: {}]
  %s2 = inlined_call_operand.hbm [shape: f32[3,3,128,128], index: 2, kind: input, shape index: {}]
  %s3 = inlined_call_operand.vmem [shape: f32[1,128], index: 3, kind: input, shape index: {}]
  %s4 = inlined_call_operand.vmem [shape: f32[1,128], index: 4, kind: input, shape index: {}]
  %s5 = inlined_call_operand.vmem [shape: f32[1,128], index: 5, kind: input, shape index: {}]
  %s6 = inlined_call_operand.vmem [shape: f32[1,128], index: 6, kind: input, shape index: {}]
  %s7 = inlined_call_operand.hbm [shape: f32[2,16,16,128], index: 7, kind: output, shape index: {}]
  %s8 = sld [smem:[#allocation0]]
  $region65: #{tpu_custom_call.1} parent=0
    _
  %s10 = ssub.s32 1, %s8
  %s11 = scalar_select 0, %s10, %s8
  $region1: #{tpu_custom_call.1} parent=0
    #allocation4 [shape = 'u8[589824]{0}', space=vmem, size = 0x90000, scoped, tag = 'input window, operand 2, single buffered']
    #allocation5 [shape = 's32[2]{0}', space=sflag, size = 0x8, scoped, tag = 'scoped memory for tpu_custom_call.1']
    #allocation6 [shape = 's32[2]{0}', space=sflag, size = 0x8, scoped, tag = 'scoped memory for tpu_custom_call.1']
    #allocation7 [shape = 'u8[262144]{0}', space=vmem, size = 0x40000, scoped, tag = 'output window, operand 0']
    %12 = vsyncpa [#allocation5], 0
    %13 = vsyncpa [#allocation6], 0
    %s14 = scalar_lea.sflag [#allocation6], 1
    %15 = vsyncpa %s14, 0
    loop: start=0, step=1, limit=4
    $region2: #{tpu_custom_call.1} parent=1 // loop_pre_header
      _
    $region3: #{tpu_custom_call.1} parent=1 // loop_header
      %s17 = sphi 0, %s21
      %p18 = scmp.ge.s32.totalorder %s17, 4
      %s27 = sphi 0, %s29
      %s30 = sphi 0, %s27
      %s31 = sphi 0, %s30
      %s47 = sphi 0, %s31
      %s51 = sphi 0, %s51
      %s53 = sphi 0, %s51
      %s54 = sphi 0, %s53
      %s68 = sphi 0, %s54
      %s72 = sphi 0, %s72
      %s74 = sphi 0, %s72
      %s75 = sphi 0, %s74
      %s89 = sphi 0, %s75
      %s93 = sphi 0, %s93
      %s95 = sphi 0, %s93
      %s96 = sphi 0, %s95
      %s110 = sphi 0, %s96
      %s114 = sphi 0, %s114
      %s116 = sphi 0, %s114
      %s117 = sphi 0, %s116
      %s131 = sphi 0, %s117
      %s135 = sphi 0, %s135
      %s137 = sphi 0, %s135
      %s138 = sphi 0, %s137
      %s152 = sphi 0, %s138
      %s156 = sphi 0, %s156
      %s158 = sphi 0, %s156
      %s159 = sphi 0, %s158
      %s173 = sphi 0, %s159
      %s179 = sphi 0, %s181
      %s182 = sphi 0, %s179
      %s183 = sphi 0, %s182
      %s199 = sphi 0, %s183
    $region4: #{tpu_custom_call.1} parent=1 // loop_header_branch
      %20 = sbr.rel (%p18) target = $region8
    $region5: #{tpu_custom_call.1} parent=1 // loop_body
      %s22 = ssub.s32 %s17, 1
      %s23 = ssub.s32 %s17, 2
      %s24 = sadd.s32 %s17, 1
      %s25 = ssub.s32 %s17, %s24
      %p26 = scmp.eq.s32.totalorder %s25, 0
      %s28 = sadd.s32 %s27, 1
      %s29 = scalar_select %p26, %s27, %s28
      %p32 = pneg %p26
      %p33 = scmp.eq.s32.totalorder %s17, 1
      %p34 = por %p32, %p33
      %p35 = scmp.ne.s32.totalorder %s27, %s30
      %p36 = scmp.eq.s32.totalorder %s17, 0
      %p37 = por %p35, %p36
      %p38 = scmp.ne.s32.totalorder %s27, %s30
      %p39 = scmp.eq.s32.totalorder %s22, 1
      %p40 = por %p38, %p39
      %p41 = scmp.ne.s32.totalorder %s30, %s31
      %p42 = scmp.eq.s32.totalorder %s22, 0
      %p43 = por %p41, %p42
      %p44 = scmp.ne.s32.totalorder %s30, %s31
      %p45 = scmp.eq.s32.totalorder %s23, 1
      %p46 = por %p44, %p45
      %p48 = scmp.ne.s32.totalorder %s31, %s47
      %p49 = scmp.eq.s32.totalorder %s23, 0
      %p50 = por %p48, %p49
      %s52 = sadd.s32 %s51, 1
      %p55 = scmp.eq.s32.totalorder %s17, 1
      %p56 = scmp.ne.s32.totalorder %s51, %s53
      %p57 = scmp.eq.s32.totalorder %s17, 0
      %p58 = por %p56, %p57
      %p59 = scmp.ne.s32.totalorder %s51, %s53
      %p60 = scmp.eq.s32.totalorder %s22, 1
      %p61 = por %p59, %p60
      %p62 = scmp.ne.s32.totalorder %s53, %s54
      %p63 = scmp.eq.s32.totalorder %s22, 0
      %p64 = por %p62, %p63
      %p65 = scmp.ne.s32.totalorder %s53, %s54
      %p66 = scmp.eq.s32.totalorder %s23, 1
      %p67 = por %p65, %p66
      %p69 = scmp.ne.s32.totalorder %s54, %s68
      %p70 = scmp.eq.s32.totalorder %s23, 0
      %p71 = por %p69, %p70
      %s73 = sadd.s32 %s72, 1
      %p76 = scmp.eq.s32.totalorder %s17, 1
      %p77 = scmp.ne.s32.totalorder %s72, %s74
      %p78 = scmp.eq.s32.totalorder %s17, 0
      %p79 = por %p77, %p78
      %p80 = scmp.ne.s32.totalorder %s72, %s74
      %p81 = scmp.eq.s32.totalorder %s22, 1
      %p82 = por %p80, %p81
      %p83 = scmp.ne.s32.totalorder %s74, %s75
      %p84 = scmp.eq.s32.totalorder %s22, 0
      %p85 = por %p83, %p84
      %p86 = scmp.ne.s32.totalorder %s74, %s75
      %p87 = scmp.eq.s32.totalorder %s23, 1
      %p88 = por %p86, %p87
      %p90 = scmp.ne.s32.totalorder %s75, %s89
      %p91 = scmp.eq.s32.totalorder %s23, 0
      %p92 = por %p90, %p91
      %s94 = sadd.s32 %s93, 1
      %p97 = scmp.eq.s32.totalorder %s17, 1
      %p98 = scmp.ne.s32.totalorder %s93, %s95
      %p99 = scmp.eq.s32.totalorder %s17, 0
      %p100 = por %p98, %p99
      %p101 = scmp.ne.s32.totalorder %s93, %s95
      %p102 = scmp.eq.s32.totalorder %s22, 1
      %p103 = por %p101, %p102
      %p104 = scmp.ne.s32.totalorder %s95, %s96
      %p105 = scmp.eq.s32.totalorder %s22, 0
      %p106 = por %p104, %p105
      %p107 = scmp.ne.s32.totalorder %s95, %s96
      %p108 = scmp.eq.s32.totalorder %s23, 1
      %p109 = por %p107, %p108
      %p111 = scmp.ne.s32.totalorder %s96, %s110
      %p112 = scmp.eq.s32.totalorder %s23, 0
      %p113 = por %p111, %p112
      %s115 = sadd.s32 %s114, 1
      %p118 = scmp.eq.s32.totalorder %s17, 1
      %p119 = scmp.ne.s32.totalorder %s114, %s116
      %p120 = scmp.eq.s32.totalorder %s17, 0
      %p121 = por %p119, %p120
      %p122 = scmp.ne.s32.totalorder %s114, %s116
      %p123 = scmp.eq.s32.totalorder %s22, 1
      %p124 = por %p122, %p123
      %p125 = scmp.ne.s32.totalorder %s116, %s117
      %p126 = scmp.eq.s32.totalorder %s22, 0
      %p127 = por %p125, %p126
      %p128 = scmp.ne.s32.totalorder %s116, %s117
      %p129 = scmp.eq.s32.totalorder %s23, 1
      %p130 = por %p128, %p129
      %p132 = scmp.ne.s32.totalorder %s117, %s131
      %p133 = scmp.eq.s32.totalorder %s23, 0
      %p134 = por %p132, %p133
      %s136 = sadd.s32 %s135, 1
      %p139 = scmp.eq.s32.totalorder %s17, 1
      %p140 = scmp.ne.s32.totalorder %s135, %s137
      %p141 = scmp.eq.s32.totalorder %s17, 0
      %p142 = por %p140, %p141
      %p143 = scmp.ne.s32.totalorder %s135, %s137
      %p144 = scmp.eq.s32.totalorder %s22, 1
      %p145 = por %p143, %p144
      %p146 = scmp.ne.s32.totalorder %s137, %s138
      %p147 = scmp.eq.s32.totalorder %s22, 0
      %p148 = por %p146, %p147
      %p149 = scmp.ne.s32.totalorder %s137, %s138
      %p150 = scmp.eq.s32.totalorder %s23, 1
      %p151 = por %p149, %p150
      %p153 = scmp.ne.s32.totalorder %s138, %s152
      %p154 = scmp.eq.s32.totalorder %s23, 0
      %p155 = por %p153, %p154
      %s157 = sadd.s32 %s156, 1
      %p160 = scmp.eq.s32.totalorder %s17, 1
      %p161 = scmp.ne.s32.totalorder %s156, %s158
      %p162 = scmp.eq.s32.totalorder %s17, 0
      %p163 = por %p161, %p162
      %p164 = scmp.ne.s32.totalorder %s156, %s158
      %p165 = scmp.eq.s32.totalorder %s22, 1
      %p166 = por %p164, %p165
      %p167 = scmp.ne.s32.totalorder %s158, %s159
      %p168 = scmp.eq.s32.totalorder %s22, 0
      %p169 = por %p167, %p168
      %p170 = scmp.ne.s32.totalorder %s158, %s159
      %p171 = scmp.eq.s32.totalorder %s23, 1
      %p172 = por %p170, %p171
      %p174 = scmp.ne.s32.totalorder %s159, %s173
      %p175 = scmp.eq.s32.totalorder %s23, 0
      %p176 = por %p174, %p175
      %s177 = ssub.s32 %s17, %s24
      %p178 = scmp.eq.s32.totalorder %s177, 0
      %s180 = sadd.s32 %s179, 1
      %s181 = scalar_select %p178, %s179, %s180
      %p184 = pneg %p178
      %p185 = scmp.eq.s32.totalorder %s17, 1
      %p186 = por %p184, %p185
      %p187 = scmp.ne.s32.totalorder %s179, %s182
      %p188 = scmp.eq.s32.totalorder %s17, 0
      %p189 = por %p187, %p188
      %p190 = scmp.ne.s32.totalorder %s179, %s182
      %p191 = scmp.eq.s32.totalorder %s22, 1
      %p192 = por %p190, %p191
      %p193 = scmp.ne.s32.totalorder %s182, %s183
      %p194 = scmp.eq.s32.totalorder %s22, 0
      %p195 = por %p193, %p194
      %p196 = scmp.ne.s32.totalorder %s182, %s183
      %p197 = scmp.eq.s32.totalorder %s23, 1
      %p198 = por %p196, %p197
      %p200 = scmp.ne.s32.totalorder %s183, %s199
      %p201 = scmp.eq.s32.totalorder %s23, 0
      %p202 = por %p200, %p201
      %p203 = scmp.le.s32.totalorder 1, %s17
      %p204 = scmp.lt.s32.totalorder %s17, 3
      %p205 = pnand %p203, %p204
      %p206 = pneg %p205
      // Predicated region
      $region9: #{tpu_custom_call.1} parent=5 // pred_check
        _
      $region10: #{tpu_custom_call.1} parent=5 // pred_check_branch
        %208 = sbr.rel (%p205) target = $region12
      $region11: #{tpu_custom_call.1} parent=5 // pred_region
        %s209 = ssub.s32 %s17, 1
        // Predicated region
        $region13: #{tpu_custom_call.1} parent=11 // pred_check
          %p210 = pneg %p64
        $region14: #{tpu_custom_call.1} parent=11 // pred_check_branch
          %212 = sbr.rel (%p210) target = $region16
        $region15: #{tpu_custom_call.1} parent=11 // pred_region
          _
        $region16: #{tpu_custom_call.1} parent=11 // pred_fallthru
          _
        // Predicated region
        $region17: #{tpu_custom_call.1} parent=11 // pred_check
          %p213 = pneg %p85
        $region18: #{tpu_custom_call.1} parent=11 // pred_check_branch
          %215 = sbr.rel (%p213) target = $region20
        $region19: #{tpu_custom_call.1} parent=11 // pred_region
          %s217 = ssub.s32 18432, 18432
          %218 = vsyncadd [#allocation5], %s217
          %s219 = sshll.u32 [#allocation4], 4
          %s220 = int_to_ptr.vmem [resolvable:$true] %s219
          %225 = dma.hbm_to_vmem [thread:$0]  %s2, 18432, %s220, [#allocation5], 128, 128, 8
        $region20: #{tpu_custom_call.1} parent=11 // pred_fallthru
          _
        // Predicated region
        $region21: #{tpu_custom_call.1} parent=11 // pred_check
          %p226 = pneg %p106
        $region22: #{tpu_custom_call.1} parent=11 // pred_check_branch
          %228 = sbr.rel (%p226) target = $region24
        $region23: #{tpu_custom_call.1} parent=11 // pred_region
          _
        $region24: #{tpu_custom_call.1} parent=11 // pred_fallthru
          _
        // Predicated region
        $region25: #{tpu_custom_call.1} parent=11 // pred_check
          %p229 = pneg %p127
        $region26: #{tpu_custom_call.1} parent=11 // pred_check_branch
          %231 = sbr.rel (%p229) target = $region28
        $region27: #{tpu_custom_call.1} parent=11 // pred_region
          _
        $region28: #{tpu_custom_call.1} parent=11 // pred_fallthru
          _
        // Predicated region
        $region29: #{tpu_custom_call.1} parent=11 // pred_check
          %p232 = pneg %p148
        $region30: #{tpu_custom_call.1} parent=11 // pred_check_branch
          %234 = sbr.rel (%p232) target = $region32
        $region31: #{tpu_custom_call.1} parent=11 // pred_region
          _
        $region32: #{tpu_custom_call.1} parent=11 // pred_fallthru
          _
        // Predicated region
        $region33: #{tpu_custom_call.1} parent=11 // pred_check
          %p235 = pneg %p169
        $region34: #{tpu_custom_call.1} parent=11 // pred_check_branch
          %237 = sbr.rel (%p235) target = $region36
        $region35: #{tpu_custom_call.1} parent=11 // pred_region
          _
        $region36: #{tpu_custom_call.1} parent=11 // pred_fallthru
          _
      $region12: #{tpu_custom_call.1} parent=5 // pred_fallthru
        _
      %p238 = scmp.lt.s32.totalorder %s17, 2
      // Predicated region
      $region37: #{tpu_custom_call.1} parent=5 // pred_check
        %p239 = pneg %p238
      $region38: #{tpu_custom_call.1} parent=5 // pred_check_branch
        %241 = sbr.rel (%p239) target = $region40
      $region39: #{tpu_custom_call.1} parent=5 // pred_region
        // Predicated region
        $region41: #{tpu_custom_call.1} parent=39 // pred_check
          %p242 = pneg %p37
        $region42: #{tpu_custom_call.1} parent=39 // pred_check_branch
          %244 = sbr.rel (%p242) target = $region44
        $region43: #{tpu_custom_call.1} parent=39 // pred_region
          %p245 = scmp.lt.s32.totalorder %s17, 1
          %s246 = scalar_select %p245, %s17, 1
          %s247 = smul.addr %s246, 54
          %s248 = smul.addr %s247, 8
          %s249 = scalar_lea.vmem %s0, %s248
        $region44: #{tpu_custom_call.1} parent=39 // pred_fallthru
          _
      $region40: #{tpu_custom_call.1} parent=5 // pred_fallthru
        _
      %p250 = scmp.le.s32.totalorder 1, %s17
      %p251 = scmp.lt.s32.totalorder %s17, 3
      %p252 = pnand %p250, %p251
      %p253 = pneg %p252
      // Predicated region
      $region45: #{tpu_custom_call.1} parent=5 // pred_check
        _
      $region46: #{tpu_custom_call.1} parent=5 // pred_check_branch
        %255 = sbr.rel (%p252) target = $region48
      $region47: #{tpu_custom_call.1} parent=5 // pred_region
        %s256 = ssub.s32 %s17, 1
        // Predicated region
        $region49: #{tpu_custom_call.1} parent=47 // pred_check
          %p257 = pneg %p85
        $region50: #{tpu_custom_call.1} parent=47 // pred_check_branch
          %259 = sbr.rel (%p257) target = $region52
        $region51: #{tpu_custom_call.1} parent=47 // pred_region
          %260 = dma.done [#allocation5], 18432
        $region52: #{tpu_custom_call.1} parent=47 // pred_fallthru
          _
        %p261 = scmp.lt.s32.totalorder %s22, 1
        %s262 = scalar_select %p261, %s22, 1
        %s263 = smul.addr %s262, 54
        %s264 = smul.addr %s263, 8
        %s265 = scalar_lea.vmem %s0, %s264
        %p266 = pneg %p43
        %p267 = pneg %p40
        %p268 = pneg %p64
        %p269 = pneg %p61
        %p270 = pneg %p85
        %p271 = pneg %p82
        %p272 = pneg %p106
        %p273 = pneg %p103
        %p274 = pneg %p127
        %p275 = pneg %p124
        %p276 = pneg %p148
        %p277 = pneg %p145
        %p278 = pneg %p169
        %p279 = pneg %p166
        %p280 = pneg %p195
        %p281 = pneg %p192
        %s282 = sand.u32 %s182, 1
        %s283 = scalar_lea.sflag [#allocation6], %s282
        %s284 = sand.u32 %s182, 1
        %s285 = smul.addr %s284, 256
        %s286 = scalar_lea.vmem [#allocation7], %s285
        %p287 = scmp.lt.s32.totalorder %s22, 1
        %s288 = scalar_select %p287, %s22, 1
        %s289 = smul.addr %s288, 54
        %s290 = smul.addr %s289, 8
        %s291 = scalar_lea.vmem %s0, %s290
        %292 = vst [vmem:[#allocation2] sm:$0xff] 0.0
        %293 = vst [vmem:[#allocation2 + $0x8] sm:$0xff] 0.0
        %294 = vst [vmem:[#allocation2 + $0x10] sm:$0xff] 0.0
        %295 = vst [vmem:[#allocation2 + $0x18] sm:$0xff] 0.0
        %296 = vst [vmem:[#allocation2 + $0x20] sm:$0xff] 0.0
        %297 = vst [vmem:[#allocation2 + $0x28] sm:$0xff] 0.0
        %298 = vst [vmem:[#allocation2 + $0x30] sm:$0xff] 0.0
        %299 = vst [vmem:[#allocation2 + $0x38] sm:$0xff] 0.0
        %300 = vst [vmem:[#allocation2 + $0x40] sm:$0xff] 0.0
        %301 = vst [vmem:[#allocation2 + $0x48] sm:$0xff] 0.0
        %302 = vst [vmem:[#allocation2 + $0x50] sm:$0xff] 0.0
        %303 = vst [vmem:[#allocation2 + $0x58] sm:$0xff] 0.0
        %304 = vst [vmem:[#allocation2 + $0x60] sm:$0xff] 0.0
        %305 = vst [vmem:[#allocation2 + $0x68] sm:$0xff] 0.0
        %306 = vst [vmem:[#allocation2 + $0x70] sm:$0xff] 0.0
        %307 = vst [vmem:[#allocation2 + $0x78] sm:$0xff] 0.0
        %308 = vst [vmem:[#allocation2 + $0x80] sm:$0xff] 0.0
        %309 = vst [vmem:[#allocation2 + $0x88] sm:$0xff] 0.0
        %310 = vst [vmem:[#allocation2 + $0x90] sm:$0xff] 0.0
        %311 = vst [vmem:[#allocation2 + $0x98] sm:$0xff] 0.0
        %312 = vst [vmem:[#allocation2 + $0xa0] sm:$0xff] 0.0
        %313 = vst [vmem:[#allocation2 + $0xa8] sm:$0xff] 0.0
        %314 = vst [vmem:[#allocation2 + $0xb0] sm:$0xff] 0.0
        %315 = vst [vmem:[#allocation2 + $0xb8] sm:$0xff] 0.0
        %316 = vst [vmem:[#allocation2 + $0xc0] sm:$0xff] 0.0
        %317 = vst [vmem:[#allocation2 + $0xc8] sm:$0xff] 0.0
        %318 = vst [vmem:[#allocation2 + $0xd0] sm:$0xff] 0.0
        %319 = vst [vmem:[#allocation2 + $0xd8] sm:$0xff] 0.0
        %320 = vst [vmem:[#allocation2 + $0xe0] sm:$0xff] 0.0
        %321 = vst [vmem:[#allocation2 + $0xe8] sm:$0xff] 0.0
        %322 = vst [vmem:[#allocation2 + $0xf0] sm:$0xff] 0.0
        %323 = vst [vmem:[#allocation2 + $0xf8] sm:$0xff] 0.0
        %v324 = vld [vmem:[%s291] sm:$0xff]
        %v325 = vld [vmem:[%s291 + $0x8] sm:$0xff]
        %v326 = vld [vmem:[%s291 + $0x18] sm:$0xff]
        %v327 = vld [vmem:[%s291 + $0x20] sm:$0xff]
        %v328 = vld [vmem:[%s291 + $0x30] sm:$0xff]
        %v329 = vld [vmem:[%s291 + $0x38] sm:$0xff]
        %v330 = vld [vmem:[%s291 + $0x48] sm:$0xff]
        %v331 = vld [vmem:[%s291 + $0x50] sm:$0xff]
        %v332 = vld [vmem:[%s291 + $0x60] sm:$0xff]
        %v333 = vld [vmem:[%s291 + $0x68] sm:$0xff]
        %v334 = vld [vmem:[%s291 + $0x78] sm:$0xff]
        %v335 = vld [vmem:[%s291 + $0x80] sm:$0xff]
        %v336 = vld [vmem:[%s291 + $0x90] sm:$0xff]
        %v337 = vld [vmem:[%s291 + $0x98] sm:$0xff]
        %v338 = vld [vmem:[%s291 + $0xa8] sm:$0xff]
        %v339 = vld [vmem:[%s291 + $0xb0] sm:$0xff]
        %v340 = vld [vmem:[%s291 + $0xc0] sm:$0xff]
        %v341 = vld [vmem:[%s291 + $0xc8] sm:$0xff]
        %v342 = vld [vmem:[%s291 + $0xd8] sm:$0xff]
        %v343 = vld [vmem:[%s291 + $0xe0] sm:$0xff]
        %v344 = vld [vmem:[%s291 + $0xf0] sm:$0xff]
        %v345 = vld [vmem:[%s291 + $0xf8] sm:$0xff]
        %v346 = vld [vmem:[%s291 + $0x108] sm:$0xff]
        %v347 = vld [vmem:[%s291 + $0x110] sm:$0xff]
        %v348 = vld [vmem:[%s291 + $0x120] sm:$0xff]
        %v349 = vld [vmem:[%s291 + $0x128] sm:$0xff]
        %v350 = vld [vmem:[%s291 + $0x138] sm:$0xff]
        %v351 = vld [vmem:[%s291 + $0x140] sm:$0xff]
        %v352 = vld [vmem:[%s291 + $0x150] sm:$0xff]
        %v353 = vld [vmem:[%s291 + $0x158] sm:$0xff]
        %v354 = vld [vmem:[%s291 + $0x168] sm:$0xff]
        %v355 = vld [vmem:[%s291 + $0x170] sm:$0xff]
        %v356 = vld [vmem:[#allocation2] sm:$0xff]
        %v357 = vld [vmem:[#allocation2 + $0x8] sm:$0xff]
        %v358 = vld [vmem:[#allocation2 + $0x10] sm:$0xff]
        %v359 = vld [vmem:[#allocation2 + $0x18] sm:$0xff]
        %v360 = vld [vmem:[#allocation2 + $0x20] sm:$0xff]
        %v361 = vld [vmem:[#allocation2 + $0x28] sm:$0xff]
        %v362 = vld [vmem:[#allocation2 + $0x30] sm:$0xff]
        %v363 = vld [vmem:[#allocation2 + $0x38] sm:$0xff]
        %v364 = vld [vmem:[#allocation2 + $0x40] sm:$0xff]
        %v365 = vld [vmem:[#allocation2 + $0x48] sm:$0xff]
        %v366 = vld [vmem:[#allocation2 + $0x50] sm:$0xff]
        %v367 = vld [vmem:[#allocation2 + $0x58] sm:$0xff]
        %v368 = vld [vmem:[#allocation2 + $0x60] sm:$0xff]
        %v369 = vld [vmem:[#allocation2 + $0x68] sm:$0xff]
        %v370 = vld [vmem:[#allocation2 + $0x70] sm:$0xff]
        %v371 = vld [vmem:[#allocation2 + $0x78] sm:$0xff]
        %v372 = vld [vmem:[#allocation2 + $0x80] sm:$0xff]
        %v373 = vld [vmem:[#allocation2 + $0x88] sm:$0xff]
        %v374 = vld [vmem:[#allocation2 + $0x90] sm:$0xff]
        %v375 = vld [vmem:[#allocation2 + $0x98] sm:$0xff]
        %v376 = vld [vmem:[#allocation2 + $0xa0] sm:$0xff]
        %v377 = vld [vmem:[#allocation2 + $0xa8] sm:$0xff]
        %v378 = vld [vmem:[#allocation2 + $0xb0] sm:$0xff]
        %v379 = vld [vmem:[#allocation2 + $0xb8] sm:$0xff]
        %v380 = vld [vmem:[#allocation2 + $0xc0] sm:$0xff]
        %v381 = vld [vmem:[#allocation2 + $0xc8] sm:$0xff]
        %v382 = vld [vmem:[#allocation2 + $0xd0] sm:$0xff]
        %v383 = vld [vmem:[#allocation2 + $0xd8] sm:$0xff]
        %v384 = vld [vmem:[#allocation2 + $0xe0] sm:$0xff]
        %v385 = vld [vmem:[#allocation2 + $0xe8] sm:$0xff]
        %v386 = vld [vmem:[#allocation2 + $0xf0] sm:$0xff]
        %v387 = vld [vmem:[#allocation2 + $0xf8] sm:$0xff]
        %v388 = vld [vmem:[%s1] sm:$0xff]
        %v389 = vld [vmem:[%s1 + $0x8] sm:$0xff]
        %v390 = vld [vmem:[%s1 + $0x10] sm:$0xff]
        %v391 = vld [vmem:[%s1 + $0x18] sm:$0xff]
        %v392 = vld [vmem:[%s1 + $0x20] sm:$0xff]
        %v393 = vld [vmem:[%s1 + $0x28] sm:$0xff]
        %v394 = vld [vmem:[%s1 + $0x30] sm:$0xff]
        %v395 = vld [vmem:[%s1 + $0x38] sm:$0xff]
        %v396 = vld [vmem:[%s1 + $0x40] sm:$0xff]
        %v397 = vld [vmem:[%s1 + $0x48] sm:$0xff]
        %v398 = vld [vmem:[%s1 + $0x50] sm:$0xff]
        %v399 = vld [vmem:[%s1 + $0x58] sm:$0xff]
        %v400 = vld [vmem:[%s1 + $0x60] sm:$0xff]
        %v401 = vld [vmem:[%s1 + $0x68] sm:$0xff]
        %v402 = vld [vmem:[%s1 + $0x70] sm:$0xff]
        %v403 = vld [vmem:[%s1 + $0x78] sm:$0xff]
        %404 = vmatprep.subr.mxu0 0.0
        %405 = vmatpush1.msra.mxu0 %v388
        %406 = vmatprep.subr.mxu0 0.0
        %407 = vmatpush1.msra.mxu0 %v389
        %408 = vmatprep.subr.mxu0 0.0
        %409 = vmatpush1.msra.mxu0 %v390
        %410 = vmatprep.subr.mxu0 0.0
        %411 = vmatpush1.msra.mxu0 %v391
        %412 = vmatprep.subr.mxu0 0.0
        %413 = vmatpush1.msra.mxu0 %v392
        %414 = vmatprep.subr.mxu0 0.0
        %415 = vmatpush1.msra.mxu0 %v393
        %416 = vmatprep.subr.mxu0 0.0
        %417 = vmatpush1.msra.mxu0 %v394
        %418 = vmatprep.subr.mxu0 0.0
        %419 = vmatpush1.msra.mxu0 %v395
        %420 = vmatprep.subr.mxu0 0.0
        %421 = vmatpush1.msra.mxu0 %v396
        %422 = vmatprep.subr.mxu0 0.0
        %423 = vmatpush1.msra.mxu0 %v397
        %424 = vmatprep.subr.mxu0 0.0
        %425 = vmatpush1.msra.mxu0 %v398
        %426 = vmatprep.subr.mxu0 0.0
        %427 = vmatpush1.msra.mxu0 %v399
        %428 = vmatprep.subr.mxu0 0.0
        %429 = vmatpush1.msra.mxu0 %v400
        %430 = vmatprep.subr.mxu0 0.0
        %431 = vmatpush1.msra.mxu0 %v401
        %432 = vmatprep.subr.mxu0 0.0
        %433 = vmatpush1.msra.mxu0 %v402
        %434 = vmatprep.subr.mxu0 0.0
        %435 = vmatpush1.msra.mxu0 %v403
        %436 = vmatprep.subr.mxu0 0.0
        %437 = vmatpush1.msra.mxu0 0.0
        %438 = vmatprep.subr.mxu0 0.0
        %439 = vmatpush1.msra.mxu0 0.0
        %440 = vmatprep.subr.mxu0 0.0
        %441 = vmatpush1.msra.mxu0 0.0
        %442 = vmatprep.subr.mxu0 0.0
        %443 = vmatpush1.msra.mxu0 0.0
        %444 = vmatprep.subr.mxu0 0.0
        %445 = vmatpush1.msra.mxu0 0.0
        %446 = vmatprep.subr.mxu0 0.0
        %447 = vmatpush1.msra.mxu0 0.0
        %448 = vmatprep.subr.mxu0 0.0
        %449 = vmatpush1.msra.mxu0 0.0
        %450 = vmatprep.subr.mxu0 0.0
        %451 = vmatpush1.msra.mxu0 0.0
        %452 = vmatprep.subr.mxu0 0.0
        %453 = vmatpush1.msra.mxu0 0.0
        %454 = vmatprep.subr.mxu0 0.0
        %455 = vmatpush1.msra.mxu0 0.0
        %456 = vmatprep.subr.mxu0 0.0
        %457 = vmatpush1.msra.mxu0 0.0
        %458 = vmatprep.subr.mxu0 0.0
        %459 = vmatpush1.msra.mxu0 0.0
        %460 = vmatprep.subr.mxu0 0.0
        %461 = vmatpush1.msra.mxu0 0.0
        %462 = vmatprep.subr.mxu0 0.0
        %463 = vmatpush1.msra.mxu0 0.0
        %464 = vmatprep.subr.mxu0 0.0
        %465 = vmatpush1.msra.mxu0 0.0
        %466 = vmatprep.subr.mxu0 0.0
        %467 = vmatpush1.msra.mxu0 0.0
        %468 = vmatprep.mubr.f32.mxu0 0.0
        %469 = vmatmul.mubr.f32.gmra.mrb[0].mxu0 %v324
        %v470 = vpop.f32.mrb[0].mxu0
        %v471 = vadd.f32 0.0, %v470
        %v472 = vpop.f32.mrb[0].mxu0
        %473 = vmatprep.mubr.f32.mxu0 0.0
        %474 = vmatmul.mubr.f32.gmra.mrb[0].mxu0 %v325
        %v475 = vpop.f32.mrb[0].mxu0
        %v476 = vadd.f32 0.0, %v475
        %v477 = vpop.f32.mrb[0].mxu0
        %478 = vmatprep.mubr.f32.mxu0 0.0
        %479 = vmatmul.mubr.f32.gmra.mrb[0].mxu0 %v326
        %v480 = vpop.f32.mrb[0].mxu0
        %v481 = vadd.f32 0.0, %v480
        %v482 = vpop.f32.mrb[0].mxu0
        %483 = vmatprep.mubr.f32.mxu0 0.0
        %484 = vmatmul.mubr.f32.gmra.mrb[0].mxu0 %v327
        %v485 = vpop.f32.mrb[0].mxu0
        %v486 = vadd.f32 0.0, %v485
        %v487 = vpop.f32.mrb[0].mxu0
        %488 = vmatprep.mubr.f32.mxu0 0.0
        %489 = vmatmul.mubr.f32.gmra.mrb[0].mxu0 %v328
        %v490 = vpop.f32.mrb[0].mxu0
        %v491 = vadd.f32 0.0, %v490
        %v492 = vpop.f32.mrb[0].mxu0
        %493 = vmatprep.mubr.f32.mxu0 0.0
        %494 = vmatmul.mubr.f32.gmra.mrb[0].mxu0 %v329
        %v495 = vpop.f32.mrb[0].mxu0
        %v496 = vadd.f32 0.0, %v495
        %v497 = vpop.f32.mrb[0].mxu0
        %498 = vmatprep.mubr.f32.mxu0 0.0
        %499 = vmatmul.mubr.f32.gmra.mrb[0].mxu0 %v330
        %v500 = vpop.f32.mrb[0].mxu0
        %v501 = vadd.f32 0.0, %v500
        %v502 = vpop.f32.mrb[0].mxu0
        %503 = vmatprep.mubr.f32.mxu0 0.0
        %504 = vmatmul.mubr.f32.gmra.mrb[0].mxu0 %v331
        %v505 = vpop.f32.mrb[0].mxu0
        %v506 = vadd.f32 0.0, %v505
        %v507 = vpop.f32.mrb[0].mxu0
        %508 = vmatprep.mubr.f32.mxu0 0.0
        %509 = vmatmul.mubr.f32.gmra.mrb[0].mxu0 %v332
        %v510 = vpop.f32.mrb[0].mxu0
        %v511 = vadd.f32 0.0, %v510
        %v512 = vpop.f32.mrb[0].mxu0
        %513 = vmatprep.mubr.f32.mxu0 0.0
        %514 = vmatmul.mubr.f32.gmra.mrb[0].mxu0 %v333
        %v515 = vpop.f32.mrb[0].mxu0
        %v516 = vadd.f32 0.0, %v515
        %v517 = vpop.f32.mrb[0].mxu0
        %518 = vmatprep.mubr.f32.mxu0 0.0
        %519 = vmatmul.mubr.f32.gmra.mrb[0].mxu0 %v334
        %v520 = vpop.f32.mrb[0].mxu0
        %v521 = vadd.f32 0.0, %v520
        %v522 = vpop.f32.mrb[0].mxu0
        %523 = vmatprep.mubr.f32.mxu0 0.0
        %524 = vmatmul.mubr.f32.gmra.mrb[0].mxu0 %v335
        %v525 = vpop.f32.mrb[0].mxu0
        %v526 = vadd.f32 0.0, %v525
        %v527 = vpop.f32.mrb[0].mxu0
        %528 = vmatprep.mubr.f32.mxu0 0.0
        %529 = vmatmul.mubr.f32.gmra.mrb[0].mxu0 %v336
        %v530 = vpop.f32.mrb[0].mxu0
        %v531 = vadd.f32 0.0, %v530
        %v532 = vpop.f32.mrb[0].mxu0
        %533 = vmatprep.mubr.f32.mxu0 0.0
        %534 = vmatmul.mubr.f32.gmra.mrb[0].mxu0 %v337
        %v535 = vpop.f32.mrb[0].mxu0
        %v536 = vadd.f32 0.0, %v535
        %v537 = vpop.f32.mrb[0].mxu0
        %538 = vmatprep.mubr.f32.mxu0 0.0
        %539 = vmatmul.mubr.f32.gmra.mrb[0].mxu0 %v338
        %v540 = vpop.f32.mrb[0].mxu0
        %v541 = vadd.f32 0.0, %v540
        %v542 = vpop.f32.mrb[0].mxu0
        %543 = vmatprep.mubr.f32.mxu0 0.0
        %544 = vmatmul.mubr.f32.gmra.mrb[0].mxu0 %v339
        %v545 = vpop.f32.mrb[0].mxu0
        %v546 = vadd.f32 0.0, %v545
        %v547 = vpop.f32.mrb[0].mxu0
        %548 = vmatprep.mubr.f32.mxu0 0.0
        %549 = vmatmul.mubr.f32.gmra.mrb[0].mxu0 %v340
        %v550 = vpop.f32.mrb[0].mxu0
        %v551 = vadd.f32 0.0, %v550
        %v552 = vpop.f32.mrb[0].mxu0
        %553 = vmatprep.mubr.f32.mxu0 0.0
        %554 = vmatmul.mubr.f32.gmra.mrb[0].mxu0 %v341
        %v555 = vpop.f32.mrb[0].mxu0
        %v556 = vadd.f32 0.0, %v555
        %v557 = vpop.f32.mrb[0].mxu0
        %558 = vmatprep.mubr.f32.mxu0 0.0
        %559 = vmatmul.mubr.f32.gmra.mrb[0].mxu0 %v342
        %v560 = vpop.f32.mrb[0].mxu0
        %v561 = vadd.f32 0.0, %v560
        %v562 = vpop.f32.mrb[0].mxu0
        %563 = vmatprep.mubr.f32.mxu0 0.0
        %564 = vmatmul.mubr.f32.gmra.mrb[0].mxu0 %v343
        %v565 = vpop.f32.mrb[0].mxu0
        %v566 = vadd.f32 0.0, %v565
        %v567 = vpop.f32.mrb[0].mxu0
        %568 = vmatprep.mubr.f32.mxu0 0.0
        %569 = vmatmul.mubr.f32.gmra.mrb[0].mxu0 %v344
        %v570 = vpop.f32.mrb[0].mxu0
        %v571 = vadd.f32 0.0, %v570
        %v572 = vpop.f32.mrb[0].mxu0
        %573 = vmatprep.mubr.f32.mxu0 0.0
        %574 = vmatmul.mubr.f32.gmra.mrb[0].mxu0 %v345
        %v575 = vpop.f32.mrb[0].mxu0
        %v576 = vadd.f32 0.0, %v575
        %v577 = vpop.f32.mrb[0].mxu0
        %578 = vmatprep.mubr.f32.mxu0 0.0
        %579 = vmatmul.mubr.f32.gmra.mrb[0].mxu0 %v346
        %v580 = vpop.f32.mrb[0].mxu0
        %v581 = vadd.f32 0.0, %v580
        %v582 = vpop.f32.mrb[0].mxu0
        %583 = vmatprep.mubr.f32.mxu0 0.0
        %584 = vmatmul.mubr.f32.gmra.mrb[0].mxu0 %v347
        %v585 = vpop.f32.mrb[0].mxu0
        %v586 = vadd.f32 0.0, %v585
        %v587 = vpop.f32.mrb[0].mxu0
        %588 = vmatprep.mubr.f32.mxu0 0.0
        %589 = vmatmul.mubr.f32.gmra.mrb[0].mxu0 %v348
        %v590 = vpop.f32.mrb[0].mxu0
        %v591 = vadd.f32 0.0, %v590
        %v592 = vpop.f32.mrb[0].mxu0
        %593 = vmatprep.mubr.f32.mxu0 0.0
        %594 = vmatmul.mubr.f32.gmra.mrb[0].mxu0 %v349
        %v595 = vpop.f32.mrb[0].mxu0
        %v596 = vadd.f32 0.0, %v595
        %v597 = vpop.f32.mrb[0].mxu0
        %598 = vmatprep.mubr.f32.mxu0 0.0
        %599 = vmatmul.mubr.f32.gmra.mrb[0].mxu0 %v350
        %v600 = vpop.f32.mrb[0].mxu0
        %v601 = vadd.f32 0.0, %v600
        %v602 = vpop.f32.mrb[0].mxu0
        %603 = vmatprep.mubr.f32.mxu0 0.0
        %604 = vmatmul.mubr.f32.gmra.mrb[0].mxu0 %v351
        %v605 = vpop.f32.mrb[0].mxu0
        %v606 = vadd.f32 0.0, %v605
        %v607 = vpop.f32.mrb[0].mxu0
        %608 = vmatprep.mubr.f32.mxu0 0.0
        %609 = vmatmul.mubr.f32.gmra.mrb[0].mxu0 %v352
        %v610 = vpop.f32.mrb[0].mxu0
        %v611 = vadd.f32 0.0, %v610
        %v612 = vpop.f32.mrb[0].mxu0
        %613 = vmatprep.mubr.f32.mxu0 0.0
        %614 = vmatmul.mubr.f32.gmra.mrb[0].mxu0 %v353
        %v615 = vpop.f32.mrb[0].mxu0
        %v616 = vadd.f32 0.0, %v615
        %v617 = vpop.f32.mrb[0].mxu0
        %618 = vmatprep.mubr.f32.mxu0 0.0
        %619 = vmatmul.mubr.f32.gmra.mrb[0].mxu0 %v354
        %v620 = vpop.f32.mrb[0].mxu0
        %v621 = vadd.f32 0.0, %v620
        %v622 = vpop.f32.mrb[0].mxu0
        %623 = vmatprep.mubr.f32.mxu0 0.0
        %624 = vmatmul.mubr.f32.gmra.mrb[0].mxu0 %v355
        %v625 = vpop.f32.mrb[0].mxu0
        %v626 = vadd.f32 0.0, %v625
        %v627 = vpop.f32.mrb[0].mxu0
        %628 = vdwg.mxu0
        %v629 = vadd.f32 %v356, %v471
        %v630 = vadd.f32 %v357, %v476
        %v631 = vadd.f32 %v358, %v481
        %v632 = vadd.f32 %v359, %v486
        %v633 = vadd.f32 %v360, %v491
        %v634 = vadd.f32 %v361, %v496
        %v635 = vadd.f32 %v362, %v501
        %v636 = vadd.f32 %v363, %v506
        %v637 = vadd.f32 %v364, %v511
        %v638 = vadd.f32 %v365, %v516
        %v639 = vadd.f32 %v366, %v521
        %v640 = vadd.f32 %v367, %v526
        %v641 = vadd.f32 %v368, %v531
        %v642 = vadd.f32 %v369, %v536
        %v643 = vadd.f32 %v370, %v541
        %v644 = vadd.f32 %v371, %v546
        %v645 = vadd.f32 %v372, %v551
        %v646 = vadd.f32 %v373, %v556
        %v647 = vadd.f32 %v374, %v561
        %v648 = vadd.f32 %v375, %v566
        %v649 = vadd.f32 %v376, %v571
        %v650 = vadd.f32 %v377, %v576
        %v651 = vadd.f32 %v378, %v581
        %v652 = vadd.f32 %v379, %v586
        %v653 = vadd.f32 %v380, %v591
        %v654 = vadd.f32 %v381, %v596
        %v655 = vadd.f32 %v382, %v601
        %v656 = vadd.f32 %v383, %v606
        %v657 = vadd.f32 %v384, %v611
        %v658 = vadd.f32 %v385, %v616
        %v659 = vadd.f32 %v386, %v621
        %v660 = vadd.f32 %v387, %v626
        %661 = vst [vmem:[#allocation2] sm:$0xff] %v629
        %662 = vst [vmem:[#allocation2 + $0x8] sm:$0xff] %v630
        %663 = vst [vmem:[#allocation2 + $0x10] sm:$0xff] %v631
        %664 = vst [vmem:[#allocation2 + $0x18] sm:$0xff] %v632
        %665 = vst [vmem:[#allocation2 + $0x20] sm:$0xff] %v633
        %666 = vst [vmem:[#allocation2 + $0x28] sm:$0xff] %v634
        %667 = vst [vmem:[#allocation2 + $0x30] sm:$0xff] %v635
        %668 = vst [vmem:[#allocation2 + $0x38] sm:$0xff] %v636
        %669 = vst [vmem:[#allocation2 + $0x40] sm:$0xff] %v637
        %670 = vst [vmem:[#allocation2 + $0x48] sm:$0xff] %v638
        %671 = vst [vmem:[#allocation2 + $0x50] sm:$0xff] %v639
        %672 = vst [vmem:[#allocation2 + $0x58] sm:$0xff] %v640
        %673 = vst [vmem:[#allocation2 + $0x60] sm:$0xff] %v641
        %674 = vst [vmem:[#allocation2 + $0x68] sm:$0xff] %v642
        %675 = vst [vmem:[#allocation2 + $0x70] sm:$0xff] %v643
        %676 = vst [vmem:[#allocation2 + $0x78] sm:$0xff] %v644
        %677 = vst [vmem:[#allocation2 + $0x80] sm:$0xff] %v645
        %678 = vst [vmem:[#allocation2 + $0x88] sm:$0xff] %v646
        %679 = vst [vmem:[#allocation2 + $0x90] sm:$0xff] %v647
        %680 = vst [vmem:[#allocation2 + $0x98] sm:$0xff] %v648
        %681 = vst [vmem:[#allocation2 + $0xa0] sm:$0xff] %v649
        %682 = vst [vmem:[#allocation2 + $0xa8] sm:$0xff] %v650
        %683 = vst [vmem:[#allocation2 + $0xb0] sm:$0xff] %v651
        %684 = vst [vmem:[#allocation2 + $0xb8] sm:$0xff] %v652
        %685 = vst [vmem:[#allocation2 + $0xc0] sm:$0xff] %v653
        %686 = vst [vmem:[#allocation2 + $0xc8] sm:$0xff] %v654
        %687 = vst [vmem:[#allocation2 + $0xd0] sm:$0xff] %v655
        %688 = vst [vmem:[#allocation2 + $0xd8] sm:$0xff] %v656
        %689 = vst [vmem:[#allocation2 + $0xe0] sm:$0xff] %v657
        %690 = vst [vmem:[#allocation2 + $0xe8] sm:$0xff] %v658
        %691 = vst [vmem:[#allocation2 + $0xf0] sm:$0xff] %v659
        %692 = vst [vmem:[#allocation2 + $0xf8] sm:$0xff] %v660
        %v693 = vld [vmem:[%s291 + $0x1] sm:$0xff]
        %v694 = vld [vmem:[%s291 + $0x9] sm:$0xff]
        %v695 = vld [vmem:[%s291 + $0x19] sm:$0xff]
        %v696 = vld [vmem:[%s291 + $0x21] sm:$0xff]
        %v697 = vld [vmem:[%s291 + $0x31] sm:$0xff]
        %v698 = vld [vmem:[%s291 + $0x39] sm:$0xff]
        %v699 = vld [vmem:[%s291 + $0x49] sm:$0xff]
        %v700 = vld [vmem:[%s291 + $0x51] sm:$0xff]
        %v701 = vld [vmem:[%s291 + $0x61] sm:$0xff]
        %v702 = vld [vmem:[%s291 + $0x69] sm:$0xff]
        %v703 = vld [vmem:[%s291 + $0x79] sm:$0xff]
        %v704 = vld [vmem:[%s291 + $0x81] sm:$0xff]
        %v705 = vld [vmem:[%s291 + $0x91] sm:$0xff]
        %v706 = vld [vmem:[%s291 + $0x99] sm:$0xff]
        %v707 = vld [vmem:[%s291 + $0xa9] sm:$0xff]
        %v708 = vld [vmem:[%s291 + $0xb1] sm:$0xff]
        %v709 = vld [vmem:[%s291 + $0xc1] sm:$0xff]
        %v710 = vld [vmem:[%s291 + $0xc9] sm:$0xff]
        %v711 = vld [vmem:[%s291 + $0xd9] sm:$0xff]
        %v712 = vld [vmem:[%s291 + $0xe1] sm:$0xff]
        %v713 = vld [vmem:[%s291 + $0xf1] sm:$0xff]
        %v714 = vld [vmem:[%s291 + $0xf9] sm:$0xff]
        %v715 = vld [vmem:[%s291 + $0x109] sm:$0xff]
        %v716 = vld [vmem:[%s291 + $0x111] sm:$0xff]
        %v717 = vld [vmem:[%s291 + $0x121] sm:$0xff]
        %v718 = vld [vmem:[%s291 + $0x129] sm:$0xff]
        %v719 = vld [vmem:[%s291 + $0x139] sm:$0xff]
        %v720 = vld [vmem:[%s291 + $0x141] sm:$0xff]
        %v721 = vld [vmem:[%s291 + $0x151] sm:$0xff]
        %v722 = vld [vmem:[%s291 + $0x159] sm:$0xff]
        %v723 = vld [vmem:[%s291 + $0x169] sm:$0xff]
        %v724 = vld [vmem:[%s291 + $0x171] sm:$0xff]
        %v725 = vld [vmem:[#allocation2] sm:$0xff]
        %v726 = vld [vmem:[#allocation2 + $0x8] sm:$0xff]
        %v727 = vld [vmem:[#allocation2 + $0x10] sm:$0xff]
        %v728 = vld [vmem:[#allocation2 + $0x18] sm:$0xff]
        %v729 = vld [vmem:[#allocation2 + $0x20] sm:$0xff]
        %v730 = vld [vmem:[#allocation2 + $0x28] sm:$0xff]
        %v731 = vld [vmem:[#allocation2 + $0x30] sm:$0xff]
        %v732 = vld [vmem:[#allocation2 + $0x38] sm:$0xff]
        %v733 = vld [vmem:[#allocation2 + $0x40] sm:$0xff]
        %v734 = vld [vmem:[#allocation2 + $0x48] sm:$0xff]
        %v735 = vld [vmem:[#allocation2 + $0x50] sm:$0xff]
        %v736 = vld [vmem:[#allocation2 + $0x58] sm:$0xff]
        %v737 = vld [vmem:[#allocation2 + $0x60] sm:$0xff]
        %v738 = vld [vmem:[#allocation2 + $0x68] sm:$0xff]
        %v739 = vld [vmem:[#allocation2 + $0x70] sm:$0xff]
        %v740 = vld [vmem:[#allocation2 + $0x78] sm:$0xff]
        %v741 = vld [vmem:[#allocation2 + $0x80] sm:$0xff]
        %v742 = vld [vmem:[#allocation2 + $0x88] sm:$0xff]
        %v743 = vld [vmem:[#allocation2 + $0x90] sm:$0xff]
        %v744 = vld [vmem:[#allocation2 + $0x98] sm:$0xff]
        %v745 = vld [vmem:[#allocation2 + $0xa0] sm:$0xff]
        %v746 = vld [vmem:[#allocation2 + $0xa8] sm:$0xff]
        %v747 = vld [vmem:[#allocation2 + $0xb0] sm:$0xff]
        %v748 = vld [vmem:[#allocation2 + $0xb8] sm:$0xff]
        %v749 = vld [vmem:[#allocation2 + $0xc0] sm:$0xff]
        %v750 = vld [vmem:[#allocation2 + $0xc8] sm:$0xff]
        %v751 = vld [vmem:[#allocation2 + $0xd0] sm:$0xff]
        %v752 = vld [vmem:[#allocation2 + $0xd8] sm:$0xff]
        %v753 = vld [vmem:[#allocation2 + $0xe0] sm:$0xff]
        %v754 = vld [vmem:[#allocation2 + $0xe8] sm:$0xff]
        %v755 = vld [vmem:[#allocation2 + $0xf0] sm:$0xff]
        %v756 = vld [vmem:[#allocation2 + $0xf8] sm:$0xff]
        %s757 = scalar_lea.vmem %s1, 128
        %v758 = vld [vmem:[%s757] sm:$0xff]
        %v759 = vld [vmem:[%s757 + $0x8] sm:$0xff]
        %v760 = vld [vmem:[%s757 + $0x10] sm:$0xff]
        %v761 = vld [vmem:[%s757 + $0x18] sm:$0xff]
        %v762 = vld [vmem:[%s757 + $0x20] sm:$0xff]
        %v763 = vld [vmem:[%s757 + $0x28] sm:$0xff]
        %v764 = vld [vmem:[%s757 + $0x30] sm:$0xff]
        %v765 = vld [vmem:[%s757 + $0x38] sm:$0xff]
        %v766 = vld [vmem:[%s757 + $0x40] sm:$0xff]
        %v767 = vld [vmem:[%s757 + $0x48] sm:$0xff]
        %v768 = vld [vmem:[%s757 + $0x50] sm:$0xff]
        %v769 = vld [vmem:[%s757 + $0x58] sm:$0xff]
        %v770 = vld [vmem:[%s757 + $0x60] sm:$0xff]
        %v771 = vld [vmem:[%s757 + $0x68] sm:$0xff]
        %v772 = vld [vmem:[%s757 + $0x70] sm:$0xff]
        %v773 = vld [vmem:[%s757 + $0x78] sm:$0xff]
        %774 = vmatprep.subr.mxu0 0.0
        %775 = vmatpush1.msra.mxu0 %v758
        %776 = vmatprep.subr.mxu0 0.0
        %777 = vmatpush1.msra.mxu0 %v759
        %778 = vmatprep.subr.mxu0 0.0
        %779 = vmatpush1.msra.mxu0 %v760
        %780 = vmatprep.subr.mxu0 0.0
        %781 = vmatpush1.msra.mxu0 %v761
        %782 = vmatprep.subr.mxu0 0.0
        %783 = vmatpush1.msra.mxu0 %v762
        %784 = vmatprep.subr.mxu0 0.0
        %785 = vmatpush1.msra.mxu0 %v763
        %786 = vmatprep.subr.mxu0 0.0
        %787 = vmatpush1.msra.mxu0 %v764
        %788 = vmatprep.subr.mxu0 0.0
        %789 = vmatpush1.msra.mxu0 %v765
        %790 = vmatprep.subr.mxu0 0.0
        %791 = vmatpush1.msra.mxu0 %v766
        %792 = vmatprep.subr.mxu0 0.0
        %793 = vmatpush1.msra.mxu0 %v767
        %794 = vmatprep.subr.mxu0 0.0
        %795 = vmatpush1.msra.mxu0 %v768
        %796 = vmatprep.subr.mxu0 0.0
        %797 = vmatpush1.msra.mxu0 %v769
        %798 = vmatprep.subr.mxu0 0.0
        %799 = vmatpush1.msra.mxu0 %v770
        %800 = vmatprep.subr.mxu0 0.0
        %801 = vmatpush1.msra.mxu0 %v771
        %802 = vmatprep.subr.mxu0 0.0
        %803 = vmatpush1.msra.mxu0 %v772
        %804 = vmatprep.subr.mxu0 0.0
        %805 = vmatpush1.msra.mxu0 %v773
        %806 = vmatprep.subr.mxu0 0.0
        %807 = vmatpush1.msra.mxu0 0.0
        %808 = vmatprep.subr.mxu0 0.0
        %809 = vmatpush1.msra.mxu0 0.0
        %810 = vmatprep.subr.mxu0 0.0
        %811 = vmatpush1.msra.mxu0 0.0
        %812 = vmatprep.subr.mxu0 0.0
        %813 = vmatpush1.msra.mxu0 0.0
        %814 = vmatprep.subr.mxu0 0.0
        %815 = vmatpush1.msra.mxu0 0.0
        %816 = vmatprep.subr.mxu0 0.0
        %817 = vmatpush1.msra.mxu0 0.0
        %818 = vmatprep.subr.mxu0 0.0
        %819 = vmatpush1.msra.mxu0 0.0
        %820 = vmatprep.subr.mxu0 0.0
        %821 = vmatpush1.msra.mxu0 0.0
        %822 = vmatprep.subr.mxu0 0.0
        %823 = vmatpush1.msra.mxu0 0.0
        %824 = vmatprep.subr.mxu0 0.0
        %825 = vmatpush1.msra.mxu0 0.0
        %826 = vmatprep.subr.mxu0 0.0
        %827 = vmatpush1.msra.mxu0 0.0
        %828 = vmatprep.subr.mxu0 0.0
        %829 = vmatpush1.msra.mxu0 0.0
        %830 = vmatprep.subr.mxu0 0.0
        %831 = vmatpush1.msra.mxu0 0.0
        %832 = vmatprep.subr.mxu0 0.0
        %833 = vmatpush1.msra.mxu0 0.0
        %834 = vmatprep.subr.mxu0 0.0
        %835 = vmatpush1.msra.mxu0 0.0
        %836 = vmatprep.subr.mxu0 0.0
        %837 = vmatpush1.msra.mxu0 0.0
        %838 = vmatprep.mubr.f32.mxu0 0.0
        %839 = vmatmul.mubr.f32.gmra.mrb[0].mxu0 %v693
        %v840 = vpop.f32.mrb[0].mxu0
        %v841 = vadd.f32 0.0, %v840
        %v842 = vpop.f32.mrb[0].mxu0
        %843 = vmatprep.mubr.f32.mxu0 0.0
        %844 = vmatmul.mubr.f32.gmra.mrb[0].mxu0 %v694
        %v845 = vpop.f32.mrb[0].mxu0
        %v846 = vadd.f32 0.0, %v845
        %v847 = vpop.f32.mrb[0].mxu0
        %848 = vmatprep.mubr.f32.mxu0 0.0
        %849 = vmatmul.mubr.f32.gmra.mrb[0].mxu0 %v695
        %v850 = vpop.f32.mrb[0].mxu0
        %v851 = vadd.f32 0.0, %v850
        %v852 = vpop.f32.mrb[0].mxu0
        %853 = vmatprep.mubr.f32.mxu0 0.0
        %854 = vmatmul.mubr.f32.gmra.mrb[0].mxu0 %v696
        %v855 = vpop.f32.mrb[0].mxu0
        %v856 = vadd.f32 0.0, %v855
        %v857 = vpop.f32.mrb[0].mxu0
        %858 = vmatprep.mubr.f32.mxu0 0.0
        %859 = vmatmul.mubr.f32.gmra.mrb[0].mxu0 %v697
        %v860 = vpop.f32.mrb[0].mxu0
        %v861 = vadd.f32 0.0, %v860
        %v862 = vpop.f32.mrb[0].mxu0
        %863 = vmatprep.mubr.f32.mxu0 0.0
        %864 = vmatmul.mubr.f32.gmra.mrb[0].mxu0 %v698
        %v865 = vpop.f32.mrb[0].mxu0
        %v866 = vadd.f32 0.0, %v865
        %v867 = vpop.f32.mrb[0].mxu0
        %868 = vmatprep.mubr.f32.mxu0 0.0
        %869 = vmatmul.mubr.f32.gmra.mrb[0].mxu0 %v699
        %v870 = vpop.f32.mrb[0].mxu0
        %v871 = vadd.f32 0.0, %v870
        %v872 = vpop.f32.mrb[0].mxu0
        %873 = vmatprep.mubr.f32.mxu0 0.0
        %874 = vmatmul.mubr.f32.gmra.mrb[0].mxu0 %v700
        %v875 = vpop.f32.mrb[0].mxu0
        %v876 = vadd.f32 0.0, %v875
        %v877 = vpop.f32.mrb[0].mxu0
        %878 = vmatprep.mubr.f32.mxu0 0.0
        %879 = vmatmul.mubr.f32.gmra.mrb[0].mxu0 %v701
        %v880 = vpop.f32.mrb[0].mxu0
        %v881 = vadd.f32 0.0, %v880
        %v882 = vpop.f32.mrb[0].mxu0
        %883 = vmatprep.mubr.f32.mxu0 0.0
        %884 = vmatmul.mubr.f32.gmra.mrb[0].mxu0 %v702
        %v885 = vpop.f32.mrb[0].mxu0
        %v886 = vadd.f32 0.0, %v885
        %v887 = vpop.f32.mrb[0].mxu0
        %888 = vmatprep.mubr.f32.mxu0 0.0
        %889 = vmatmul.mubr.f32.gmra.mrb[0].mxu0 %v703
        %v890 = vpop.f32.mrb[0].mxu0
        %v891 = vadd.f32 0.0, %v890
        %v892 = vpop.f32.mrb[0].mxu0
        %893 = vmatprep.mubr.f32.mxu0 0.0
        %894 = vmatmul.mubr.f32.gmra.mrb[0].mxu0 %v704
        %v895 = vpop.f32.mrb[0].mxu0
        %v896 = vadd.f32 0.0, %v895
        %v897 = vpop.f32.mrb[0].mxu0
        %898 = vmatprep.mubr.f32.mxu0 0.0
        %899 = vmatmul.mubr.f32.gmra.mrb[0].mxu0 %v705
        %v900 = vpop.f32.mrb[0].mxu0
        %v901 = vadd.f32 0.0, %v900
        %v902 = vpop.f32.mrb[0].mxu0
        %903 = vmatprep.mubr.f32.mxu0 0.0
        %904 = vmatmul.mubr.f32.gmra.mrb[0].mxu0 %v706
        %v905 = vpop.f32.mrb[0].mxu0
        %v906 = vadd.f32 0.0, %v905
        %v907 = vpop.f32.mrb[0].mxu0
        %908 = vmatprep.mubr.f32.mxu0 0.0
        %909 = vmatmul.mubr.f32.gmra.mrb[0].mxu0 %v707
        %v910 = vpop.f32.mrb[0].mxu0
        %v911 = vadd.f32 0.0, %v910
        %v912 = vpop.f32.mrb[0].mxu0
        %913 = vmatprep.mubr.f32.mxu0 0.0
        %914 = vmatmul.mubr.f32.gmra.mrb[0].mxu0 %v708
        %v915 = vpop.f32.mrb[0].mxu0
        %v916 = vadd.f32 0.0, %v915
        %v917 = vpop.f32.mrb[0].mxu0
        %918 = vmatprep.mubr.f32.mxu0 0.0
        %919 = vmatmul.mubr.f32.gmra.mrb[0].mxu0 %v709
        %v920 = vpop.f32.mrb[0].mxu0
        %v921 = vadd.f32 0.0, %v920
        %v922 = vpop.f32.mrb[0].mxu0
        %923 = vmatprep.mubr.f32.mxu0 0.0
        %924 = vmatmul.mubr.f32.gmra.mrb[0].mxu0 %v710
        %v925 = vpop.f32.mrb[0].mxu0
        %v926 = vadd.f32 0.0, %v925
        %v927 = vpop.f32.mrb[0].mxu0
        %928 = vmatprep.mubr.f32.mxu0 0.0
        %929 = vmatmul.mubr.f32.gmra.mrb[0].mxu0 %v711
        %v930 = vpop.f32.mrb[0].mxu0
        %v931 = vadd.f32 0.0, %v930
        %v932 = vpop.f32.mrb[0].mxu0
        %933 = vmatprep.mubr.f32.mxu0 0.0
        %934 = vmatmul.mubr.f32.gmra.mrb[0].mxu0 %v712
        %v935 = vpop.f32.mrb[0].mxu0
        %v936 = vadd.f32 0.0, %v935
        %v937 = vpop.f32.mrb[0].mxu0
        %938 = vmatprep.mubr.f32.mxu0 0.0
        %939 = vmatmul.mubr.f32.gmra.mrb[0].mxu0 %v713
        %v940 = vpop.f32.mrb[0].mxu0
        %v941 = vadd.f32 0.0, %v940
        %v942 = vpop.f32.mrb[0].mxu0
        %943 = vmatprep.mubr.f32.mxu0 0.0
        %944 = vmatmul.mubr.f32.gmra.mrb[0].mxu0 %v714
        %v945 = vpop.f32.mrb[0].mxu0
        %v946 = vadd.f32 0.0, %v945
        %v947 = vpop.f32.mrb[0].mxu0
        %948 = vmatprep.mubr.f32.mxu0 0.0
        %949 = vmatmul.mubr.f32.gmra.mrb[0].mxu0 %v715
        %v950 = vpop.f32.mrb[0].mxu0
        %v951 = vadd.f32 0.0, %v950
        %v952 = vpop.f32.mrb[0].mxu0
        %953 = vmatprep.mubr.f32.mxu0 0.0
        %954 = vmatmul.mubr.f32.gmra.mrb[0].mxu0 %v716
        %v955 = vpop.f32.mrb[0].mxu0
        %v956 = vadd.f32 0.0, %v955
        %v957 = vpop.f32.mrb[0].mxu0
        %958 = vmatprep.mubr.f32.mxu0 0.0
        %959 = vmatmul.mubr.f32.gmra.mrb[0].mxu0 %v717
        %v960 = vpop.f32.mrb[0].mxu0
        %v961 = vadd.f32 0.0, %v960
        %v962 = vpop.f32.mrb[0].mxu0
        %963 = vmatprep.mubr.f32.mxu0 0.0
        %964 = vmatmul.mubr.f32.gmra.mrb[0].mxu0 %v718
        %v965 = vpop.f32.mrb[0].mxu0
        %v966 = vadd.f32 0.0, %v965
        %v967 = vpop.f32.mrb[0].mxu0
        %968 = vmatprep.mubr.f32.mxu0 0.0
        %969 = vmatmul.mubr.f32.gmra.mrb[0].mxu0 %v719
        %v970 = vpop.f32.mrb[0].mxu0
        %v971 = vadd.f32 0.0, %v970
        %v972 = vpop.f32.mrb[0].mxu0
        %973 = vmatprep.mubr.f32.mxu0 0.0
        %974 = vmatmul.mubr.f32.gmra.mrb[0].mxu0 %v720
        %v975 = vpop.f32.mrb[0].mxu0
        %v976 = vadd.f32 0.0, %v975
        %v977 = vpop.f32.mrb[0].mxu0
        %978 = vmatprep.mubr.f32.mxu0 0.0
        %979 = vmatmul.mubr.f32.gmra.mrb[0].mxu0 %v721
        %v980 = vpop.f32.mrb[0].mxu0
        %v981 = vadd.f32 0.0, %v980
        %v982 = vpop.f32.mrb[0].mxu0
        %983 = vmatprep.mubr.f32.mxu0 0.0
        %984 = vmatmul.mubr.f32.gmra.mrb[0].mxu0 %v722
        %v985 = vpop.f32.mrb[0].mxu0
        %v986 = vadd.f32 0.0, %v985
        %v987 = vpop.f32.mrb[0].mxu0
        %988 = vmatprep.mubr.f32.mxu0 0.0
        %989 = vmatmul.mubr.f32.gmra.mrb[0].mxu0 %v723
        %v990 = vpop.f32.mrb[0].mxu0
        %v991 = vadd.f32 0.0, %v990
        %v992 = vpop.f32.mrb[0].mxu0
        %993 = vmatprep.mubr.f32.mxu0 0.0
        %994 = vmatmul.mubr.f32.gmra.mrb[0].mxu0 %v724
        %v995 = vpop.f32.mrb[0].mxu0
        %v996 = vadd.f32 0.0, %v995
        %v997 = vpop.f32.mrb[0].mxu0
        %998 = vdwg.mxu0
        %v999 = vadd.f32 %v725, %v841
        %v1000 = vadd.f32 %v726, %v846
        %v1001 = vadd.f32 %v727, %v851
        %v1002 = vadd.f32 %v728, %v856
        %v1003 = vadd.f32 %v729, %v861
        %v1004 = vadd.f32 %v730, %v866
        %v1005 = vadd.f32 %v731, %v871
        %v1006 = vadd.f32 %v732, %v876
        %v1007 = vadd.f32 %v733, %v881
        %v1008 = vadd.f32 %v734, %v886
        %v1009 = vadd.f32 %v735, %v891
        %v1010 = vadd.f32 %v736, %v896
        %v1011 = vadd.f32 %v737, %v901
        %v1012 = vadd.f32 %v738, %v906
        %v1013 = vadd.f32 %v739, %v911
        %v1014 = vadd.f32 %v740, %v916
        %v1015 = vadd.f32 %v741, %v921
        %v1016 = vadd.f32 %v742, %v926
        %v1017 = vadd.f32 %v743, %v931
        %v1018 = vadd.f32 %v744, %v936
        %v1019 = vadd.f32 %v745, %v941
        %v1020 = vadd.f32 %v746, %v946
        %v1021 = vadd.f32 %v747, %v951
        %v1022 = vadd.f32 %v748, %v956
        %v1023 = vadd.f32 %v749, %v961
        %v1024 = vadd.f32 %v750, %v966
        %v1025 = vadd.f32 %v751, %v971
        %v1026 = vadd.f32 %v752, %v976
        %v1027 = vadd.f32 %v753, %v981
        %v1028 = vadd.f32 %v754, %v986
        %v1029 = vadd.f32 %v755, %v991
        %v1030 = vadd.f32 %v756, %v996
        %1031 = vst [vmem:[#allocation2] sm:$0xff] %v999
        %1032 = vst [vmem:[#allocation2 + $0x8] sm:$0xff] %v1000
        %1033 = vst [vmem:[#allocation2 + $0x10] sm:$0xff] %v1001
        %1034 = vst [vmem:[#allocation2 + $0x18] sm:$0xff] %v1002
        %1035 = vst [vmem:[#allocation2 + $0x20] sm:$0xff] %v1003
        %1036 = vst [vmem:[#allocation2 + $0x28] sm:$0xff] %v1004
        %1037 = vst [vmem:[#allocation2 + $0x30] sm:$0xff] %v1005
        %1038 = vst [vmem:[#allocation2 + $0x38] sm:$0xff] %v1006
        %1039 = vst [vmem:[#allocation2 + $0x40] sm:$0xff] %v1007
        %1040 = vst [vmem:[#allocation2 + $0x48] sm:$0xff] %v1008
        %1041 = vst [vmem:[#allocation2 + $0x50] sm:$0xff] %v1009
        %1042 = vst [vmem:[#allocation2 + $0x58] sm:$0xff] %v1010
        %1043 = vst [vmem:[#allocation2 + $0x60] sm:$0xff] %v1011
        %1044 = vst [vmem:[#allocation2 + $0x68] sm:$0xff] %v1012
        %1045 = vst [vmem:[#allocation2 + $0x70] sm:$0xff] %v1013
        %1046 = vst [vmem:[#allocation2 + $0x78] sm:$0xff] %v1014
        %1047 = vst [vmem:[#allocation2 + $0x80] sm:$0xff] %v1015
        %1048 = vst [vmem:[#allocation2 + $0x88] sm:$0xff] %v1016
        %1049 = vst [vmem:[#allocation2 + $0x90] sm:$0xff] %v1017
        %1050 = vst [vmem:[#allocation2 + $0x98] sm:$0xff] %v1018
        %1051 = vst [vmem:[#allocation2 + $0xa0] sm:$0xff] %v1019
        %1052 = vst [vmem:[#allocation2 + $0xa8] sm:$0xff] %v1020
        %1053 = vst [vmem:[#allocation2 + $0xb0] sm:$0xff] %v1021
        %1054 = vst [vmem:[#allocation2 + $0xb8] sm:$0xff] %v1022
        %1055 = vst [vmem:[#allocation2 + $0xc0] sm:$0xff] %v1023
        %1056 = vst [vmem:[#allocation2 + $0xc8] sm:$0xff] %v1024
        %1057 = vst [vmem:[#allocation2 + $0xd0] sm:$0xff] %v1025
        %1058 = vst [vmem:[#allocation2 + $0xd8] sm:$0xff] %v1026
        %1059 = vst [vmem:[#allocation2 + $0xe0] sm:$0xff] %v1027
        %1060 = vst [vmem:[#allocation2 + $0xe8] sm:$0xff] %v1028
        %1061 = vst [vmem:[#allocation2 + $0xf0] sm:$0xff] %v1029
        %1062 = vst [vmem:[#allocation2 + $0xf8] sm:$0xff] %v1030
        %v1063 = vld [vmem:[%s291 + $0x2] sm:$0xff]
        %v1064 = vld [vmem:[%s291 + $0xa] sm:$0xff]
        %v1065 = vld [vmem:[%s291 + $0x1a] sm:$0xff]
        %v1066 = vld [vmem:[%s291 + $0x22] sm:$0xff]
        %v1067 = vld [vmem:[%s291 + $0x32] sm:$0xff]
        %v1068 = vld [vmem:[%s291 + $0x3a] sm:$0xff]
        %v1069 = vld [vmem:[%s291 + $0x4a] sm:$0xff]
        %v1070 = vld [vmem:[%s291 + $0x52] sm:$0xff]
        %v1071 = vld [vmem:[%s291 + $0x62] sm:$0xff]
        %v1072 = vld [vmem:[%s291 + $0x6a] sm:$0xff]
        %v1073 = vld [vmem:[%s291 + $0x7a] sm:$0xff]
        %v1074 = vld [vmem:[%s291 + $0x82] sm:$0xff]
        %v1075 = vld [vmem:[%s291 + $0x92] sm:$0xff]
        %v1076 = vld [vmem:[%s291 + $0x9a] sm:$0xff]
        %v1077 = vld [vmem:[%s291 + $0xaa] sm:$0xff]
        %v1078 = vld [vmem:[%s291 + $0xb2] sm:$0xff]
        %v1079 = vld [vmem:[%s291 + $0xc2] sm:$0xff]
        %v1080 = vld [vmem:[%s291 + $0xca] sm:$0xff]
        %v1081 = vld [vmem:[%s291 + $0xda] sm:$0xff]
        %v1082 = vld [vmem:[%s291 + $0xe2] sm:$0xff]
        %v1083 = vld [vmem:[%s291 + $0xf2] sm:$0xff]
        %v1084 = vld [vmem:[%s291 + $0xfa] sm:$0xff]
        %v1085 = vld [vmem:[%s291 + $0x10a] sm:$0xff]
        %v1086 = vld [vmem:[%s291 + $0x112] sm:$0xff]
        %v1087 = vld [vmem:[%s291 + $0x122] sm:$0xff]
        %v1088 = vld [vmem:[%s291 + $0x12a] sm:$0xff]
        %v1089 = vld [vmem:[%s291 + $0x13a] sm:$0xff]
        %v1090 = vld [vmem:[%s291 + $0x142] sm:$0xff]
        %v1091 = vld [vmem:[%s291 + $0x152] sm:$0xff]
        %v1092 = vld [vmem:[%s291 + $0x15a] sm:$0xff]
        %v1093 = vld [vmem:[%s291 + $0x16a] sm:$0xff]
        %v1094 = vld [vmem:[%s291 + $0x172] sm:$0xff]
        %v1095 = vld [vmem:[#allocation2] sm:$0xff]
        %v1096 = vld [vmem:[#allocation2 + $0x8] sm:$0xff]
        %v1097 = vld [vmem:[#allocation2 + $0x10] sm:$0xff]
        %v1098 = vld [vmem:[#allocation2 + $0x18] sm:$0xff]
        %v1099 = vld [vmem:[#allocation2 + $0x20] sm:$0xff]
        %v1100 = vld [vmem:[#allocation2 + $0x28] sm:$0xff]
        %v1101 = vld [vmem:[#allocation2 + $0x30] sm:$0xff]
        %v1102 = vld [vmem:[#allocation2 + $0x38] sm:$0xff]
        %v1103 = vld [vmem:[#allocation2 + $0x40] sm:$0xff]
        %v1104 = vld [vmem:[#allocation2 + $0x48] sm:$0xff]
        %v1105 = vld [vmem:[#allocation2 + $0x50] sm:$0xff]
        %v1106 = vld [vmem:[#allocation2 + $0x58] sm:$0xff]
        %v1107 = vld [vmem:[#allocation2 + $0x60] sm:$0xff]
        %v1108 = vld [vmem:[#allocation2 + $0x68] sm:$0xff]
        %v1109 = vld [vmem:[#allocation2 + $0x70] sm:$0xff]
        %v1110 = vld [vmem:[#allocation2 + $0x78] sm:$0xff]
        %v1111 = vld [vmem:[#allocation2 + $0x80] sm:$0xff]
        %v1112 = vld [vmem:[#allocation2 + $0x88] sm:$0xff]
        %v1113 = vld [vmem:[#allocation2 + $0x90] sm:$0xff]
        %v1114 = vld [vmem:[#allocation2 + $0x98] sm:$0xff]
        %v1115 = vld [vmem:[#allocation2 + $0xa0] sm:$0xff]
        %v1116 = vld [vmem:[#allocation2 + $0xa8] sm:$0xff]
        %v1117 = vld [vmem:[#allocation2 + $0xb0] sm:$0xff]
        %v1118 = vld [vmem:[#allocation2 + $0xb8] sm:$0xff]
        %v1119 = vld [vmem:[#allocation2 + $0xc0] sm:$0xff]
        %v1120 = vld [vmem:[#allocation2 + $0xc8] sm:$0xff]
        %v1121 = vld [vmem:[#allocation2 + $0xd0] sm:$0xff]
        %v1122 = vld [vmem:[#allocation2 + $0xd8] sm:$0xff]
        %v1123 = vld [vmem:[#allocation2 + $0xe0] sm:$0xff]
        %v1124 = vld [vmem:[#allocation2 + $0xe8] sm:$0xff]
        %v1125 = vld [vmem:[#allocation2 + $0xf0] sm:$0xff]
        %v1126 = vld [vmem:[#allocation2 + $0xf8] sm:$0xff]
        %s1127 = scalar_lea.vmem %s1, 256
        %v1128 = vld [vmem:[%s1127] sm:$0xff]
        %v1129 = vld [vmem:[%s1127 + $0x8] sm:$0xff]
        %v1130 = vld [vmem:[%s1127 + $0x10] sm:$0xff]
        %v1131 = vld [vmem:[%s1127 + $0x18] sm:$0xff]
        %v1132 = vld [vmem:[%s1127 + $0x20] sm:$0xff]
        %v1133 = vld [vmem:[%s1127 + $0x28] sm:$0xff]
        %v1134 = vld [vmem:[%s1127 + $0x30] sm:$0xff]
        %v1135 = vld [vmem:[%s1127 + $0x38] sm:$0xff]
        %v1136 = vld [vmem:[%s1127 + $0x40] sm:$0xff]
        %v1137 = vld [vmem:[%s1127 + $0x48] sm:$0xff]
        %v1138 = vld [vmem:[%s1127 + $0x50] sm:$0xff]
        %v1139 = vld [vmem:[%s1127 + $0x58] sm:$0xff]
        %v1140 = vld [vmem:[%s1127 + $0x60] sm:$0xff]
        %v1141 = vld [vmem:[%s1127 + $0x68] sm:$0xff]
        %v1142 = vld [vmem:[%s1127 + $0x70] sm:$0xff]
        %v1143 = vld [vmem:[%s1127 + $0x78] sm:$0xff]
        %1144 = vmatprep.subr.mxu0 0.0
        %1145 = vmatpush1.msra.mxu0 %v1128
        %1146 = vmatprep.subr.mxu0 0.0
        %1147 = vmatpush1.msra.mxu0 %v1129
        %1148 = vmatprep.subr.mxu0 0.0
        %1149 = vmatpush1.msra.mxu0 %v1130
        %1150 = vmatprep.subr.mxu0 0.0
        %1151 = vmatpush1.msra.mxu0 %v1131
        %1152 = vmatprep.subr.mxu0 0.0
        %1153 = vmatpush1.msra.mxu0 %v1132
        %1154 = vmatprep.subr.mxu0 0.0
        %1155 = vmatpush1.msra.mxu0 %v1133
        %1156 = vmatprep.subr.mxu0 0.0
        %1157 = vmatpush1.msra.mxu0 %v1134
        %1158 = vmatprep.subr.mxu0 0.0
        %1159 = vmatpush1.msra.mxu0 %v1135
        %1160 = vmatprep.subr.mxu0 0.0
        %1161 = vmatpush1.msra.mxu0 %v1136
        %1162 = vmatprep.subr.mxu0 0.0
        %1163 = vmatpush1.msra.mxu0 %v1137
        %1164 = vmatprep.subr.mxu0 0.0
        %1165 = vmatpush1.msra.mxu0 %v1138
        %1166 = vmatprep.subr.mxu0 0.0
        %1167 = vmatpush1.msra.mxu0 %v1139
        %1168 = vmatprep.subr.mxu0 0.0
        %1169 = vmatpush1.msra.mxu0 %v1140
        %1170 = vmatprep.subr.mxu0 0.0
        %1171 = vmatpush1.msra.mxu0 %v1141
        %1172 = vmatprep.subr.mxu0 0.0
        %1173 = vmatpush1.msra.mxu0 %v1142
        %1174 = vmatprep.subr.mxu0 0.0
        %1175 = vmatpush1.msra.mxu0 %v1143
        %1176 = vmatprep.subr.mxu0 0.0
        %1177 = vmatpush1.msra.mxu0 0.0
        %1178 = vmatprep.subr.mxu0 0.0
        %1179 = vmatpush1.msra.mxu0 0.0
        %1180 = vmatprep.subr.mxu0 0.0
        %1181 = vmatpush1.msra.mxu0 0.0
        %1182 = vmatprep.subr.mxu0 0.0
        %1183 = vmatpush1.msra.mxu0 0.0
        %1184 = vmatprep.subr.mxu0 0.0
        %1185 = vmatpush1.msra.mxu0 0.0
        %1186 = vmatprep.subr.mxu0 0.0
        %1187 = vmatpush1.msra.mxu0 0.0
        %1188 = vmatprep.subr.mxu0 0.0
        %1189 = vmatpush1.msra.mxu0 0.0
        %1190 = vmatprep.subr.mxu0 0.0
        %1191 = vmatpush1.msra.mxu0 0.0
        %1192 = vmatprep.subr.mxu0 0.0
        %1193 = vmatpush1.msra.mxu0 0.0
        %1194 = vmatprep.subr.mxu0 0.0
        %1195 = vmatpush1.msra.mxu0 0.0
        %1196 = vmatprep.subr.mxu0 0.0
        %1197 = vmatpush1.msra.mxu0 0.0
        %1198 = vmatprep.subr.mxu0 0.0
        %1199 = vmatpush1.msra.mxu0 0.0
        %1200 = vmatprep.subr.mxu0 0.0
        %1201 = vmatpush1.msra.mxu0 0.0
        %1202 = vmatprep.subr.mxu0 0.0
        %1203 = vmatpush1.msra.mxu0 0.0
        %1204 = vmatprep.subr.mxu0 0.0
        %1205 = vmatpush1.msra.mxu0 0.0
        %1206 = vmatprep.subr.mxu0 0.0
        %1207 = vmatpush1.msra.mxu0 0.0
        %1208 = vmatprep.mubr.f32.mxu0 0.0
        %1209 = vmatmul.mubr.f32.gmra.mrb[0].mxu0 %v1063
        %v1210 = vpop.f32.mrb[0].mxu0
        %v1211 = vadd.f32 0.0, %v1210
        %v1212 = vpop.f32.mrb[0].mxu0
        %1213 = vmatprep.mubr.f32.mxu0 0.0
        %1214 = vmatmul.mubr.f32.gmra.mrb[0].mxu0 %v1064
        %v1215 = vpop.f32.mrb[0].mxu0
        %v1216 = vadd.f32 0.0, %v1215
        %v1217 = vpop.f32.mrb[0].mxu0
        %1218 = vmatprep.mubr.f32.mxu0 0.0
        %1219 = vmatmul.mubr.f32.gmra.mrb[0].mxu0 %v1065
        %v1220 = vpop.f32.mrb[0].mxu0
        %v1221 = vadd.f32 0.0, %v1220
        %v1222 = vpop.f32.mrb[0].mxu0
        %1223 = vmatprep.mubr.f32.mxu0 0.0
        %1224 = vmatmul.mubr.f32.gmra.mrb[0].mxu0 %v1066
        %v1225 = vpop.f32.mrb[0].mxu0
        %v1226 = vadd.f32 0.0, %v1225
        %v1227 = vpop.f32.mrb[0].mxu0
        %1228 = vmatprep.mubr.f32.mxu0 0.0
        %1229 = vmatmul.mubr.f32.gmra.mrb[0].mxu0 %v1067
        %v1230 = vpop.f32.mrb[0].mxu0
        %v1231 = vadd.f32 0.0, %v1230
        %v1232 = vpop.f32.mrb[0].mxu0
        %1233 = vmatprep.mubr.f32.mxu0 0.0
        %1234 = vmatmul.mubr.f32.gmra.mrb[0].mxu0 %v1068
        %v1235 = vpop.f32.mrb[0].mxu0
        %v1236 = vadd.f32 0.0, %v1235
        %v1237 = vpop.f32.mrb[0].mxu0
        %1238 = vmatprep.mubr.f32.mxu0 0.0
        %1239 = vmatmul.mubr.f32.gmra.mrb[0].mxu0 %v1069
        %v1240 = vpop.f32.mrb[0].mxu0
        %v1241 = vadd.f32 0.0, %v1240
        %v1242 = vpop.f32.mrb[0].mxu0
        %1243 = vmatprep.mubr.f32.mxu0 0.0
        %1244 = vmatmul.mubr.f32.gmra.mrb[0].mxu0 %v1070
        %v1245 = vpop.f32.mrb[0].mxu0
        %v1246 = vadd.f32 0.0, %v1245
        %v1247 = vpop.f32.mrb[0].mxu0
        %1248 = vmatprep.mubr.f32.mxu0 0.0
        %1249 = vmatmul.mubr.f32.gmra.mrb[0].mxu0 %v1071
        %v1250 = vpop.f32.mrb[0].mxu0
        %v1251 = vadd.f32 0.0, %v1250
        %v1252 = vpop.f32.mrb[0].mxu0
        %1253 = vmatprep.mubr.f32.mxu0 0.0
        %1254 = vmatmul.mubr.f32.gmra.mrb[0].mxu0 %v1072
        %v1255 = vpop.f32.mrb[0].mxu0
        %v1256 = vadd.f32 0.0, %v1255
        %v1257 = vpop.f32.mrb[0].mxu0
        %1258 = vmatprep.mubr.f32.mxu0 0.0
        %1259 = vmatmul.mubr.f32.gmra.mrb[0].mxu0 %v1073
        %v1260 = vpop.f32.mrb[0].mxu0
        %v1261 = vadd.f32 0.0, %v1260
        %v1262 = vpop.f32.mrb[0].mxu0
        %1263 = vmatprep.mubr.f32.mxu0 0.0
        %1264 = vmatmul.mubr.f32.gmra.mrb[0].mxu0 %v1074
        %v1265 = vpop.f32.mrb[0].mxu0
        %v1266 = vadd.f32 0.0, %v1265
        %v1267 = vpop.f32.mrb[0].mxu0
        %1268 = vmatprep.mubr.f32.mxu0 0.0
        %1269 = vmatmul.mubr.f32.gmra.mrb[0].mxu0 %v1075
        %v1270 = vpop.f32.mrb[0].mxu0
        %v1271 = vadd.f32 0.0, %v1270
        %v1272 = vpop.f32.mrb[0].mxu0
        %1273 = vmatprep.mubr.f32.mxu0 0.0
        %1274 = vmatmul.mubr.f32.gmra.mrb[0].mxu0 %v1076
        %v1275 = vpop.f32.mrb[0].mxu0
        %v1276 = vadd.f32 0.0, %v1275
        %v1277 = vpop.f32.mrb[0].mxu0
        %1278 = vmatprep.mubr.f32.mxu0 0.0
        %1279 = vmatmul.mubr.f32.gmra.mrb[0].mxu0 %v1077
        %v1280 = vpop.f32.mrb[0].mxu0
        %v1281 = vadd.f32 0.0, %v1280
        %v1282 = vpop.f32.mrb[0].mxu0
        %1283 = vmatprep.mubr.f32.mxu0 0.0
        %1284 = vmatmul.mubr.f32.gmra.mrb[0].mxu0 %v1078
        %v1285 = vpop.f32.mrb[0].mxu0
        %v1286 = vadd.f32 0.0, %v1285
        %v1287 = vpop.f32.mrb[0].mxu0
        %1288 = vmatprep.mubr.f32.mxu0 0.0
        %1289 = vmatmul.mubr.f32.gmra.mrb[0].mxu0 %v1079
        %v1290 = vpop.f32.mrb[0].mxu0
        %v1291 = vadd.f32 0.0, %v1290
        %v1292 = vpop.f32.mrb[0].mxu0
        %1293 = vmatprep.mubr.f32.mxu0 0.0
        %1294 = vmatmul.mubr.f32.gmra.mrb[0].mxu0 %v1080
        %v1295 = vpop.f32.mrb[0].mxu0
        %v1296 = vadd.f32 0.0, %v1295
        %v1297 = vpop.f32.mrb[0].mxu0
        %1298 = vmatprep.mubr.f32.mxu0 0.0
        %1299 = vmatmul.mubr.f32.gmra.mrb[0].mxu0 %v1081
        %v1300 = vpop.f32.mrb[0].mxu0
        %v1301 = vadd.f32 0.0, %v1300
        %v1302 = vpop.f32.mrb[0].mxu0
        %1303 = vmatprep.mubr.f32.mxu0 0.0
        %1304 = vmatmul.mubr.f32.gmra.mrb[0].mxu0 %v1082
        %v1305 = vpop.f32.mrb[0].mxu0
        %v1306 = vadd.f32 0.0, %v1305
        %v1307 = vpop.f32.mrb[0].mxu0
        %1308 = vmatprep.mubr.f32.mxu0 0.0
        %1309 = vmatmul.mubr.f32.gmra.mrb[0].mxu0 %v1083
        %v1310 = vpop.f32.mrb[0].mxu0
        %v1311 = vadd.f32 0.0, %v1310
        %v1312 = vpop.f32.mrb[0].mxu0
        %1313 = vmatprep.mubr.f32.mxu0 0.0
        %1314 = vmatmul.mubr.f32.gmra.mrb[0].mxu0 %v1084
        %v1315 = vpop.f32.mrb[0].mxu0
        %v1316 = vadd.f32 0.0, %v1315
        %v1317 = vpop.f32.mrb[0].mxu0
        %1318 = vmatprep.mubr.f32.mxu0 0.0
        %1319 = vmatmul.mubr.f32.gmra.mrb[0].mxu0 %v1085
        %v1320 = vpop.f32.mrb[0].mxu0
        %v1321 = vadd.f32 0.0, %v1320
        %v1322 = vpop.f32.mrb[0].mxu0
        %1323 = vmatprep.mubr.f32.mxu0 0.0
        %1324 = vmatmul.mubr.f32.gmra.mrb[0].mxu0 %v1086
        %v1325 = vpop.f32.mrb[0].mxu0
        %v1326 = vadd.f32 0.0, %v1325
        %v1327 = vpop.f32.mrb[0].mxu0
        %1328 = vmatprep.mubr.f32.mxu0 0.0
        %1329 = vmatmul.mubr.f32.gmra.mrb[0].mxu0 %v1087
        %v1330 = vpop.f32.mrb[0].mxu0
        %v1331 = vadd.f32 0.0, %v1330
        %v1332 = vpop.f32.mrb[0].mxu0
        %1333 = vmatprep.mubr.f32.mxu0 0.0
        %1334 = vmatmul.mubr.f32.gmra.mrb[0].mxu0 %v1088
        %v1335 = vpop.f32.mrb[0].mxu0
        %v1336 = vadd.f32 0.0, %v1335
        %v1337 = vpop.f32.mrb[0].mxu0
        %1338 = vmatprep.mubr.f32.mxu0 0.0
        %1339 = vmatmul.mubr.f32.gmra.mrb[0].mxu0 %v1089
        %v1340 = vpop.f32.mrb[0].mxu0
        %v1341 = vadd.f32 0.0, %v1340
        %v1342 = vpop.f32.mrb[0].mxu0
        %1343 = vmatprep.mubr.f32.mxu0 0.0
        %1344 = vmatmul.mubr.f32.gmra.mrb[0].mxu0 %v1090
        %v1345 = vpop.f32.mrb[0].mxu0
        %v1346 = vadd.f32 0.0, %v1345
        %v1347 = vpop.f32.mrb[0].mxu0
        %1348 = vmatprep.mubr.f32.mxu0 0.0
        %1349 = vmatmul.mubr.f32.gmra.mrb[0].mxu0 %v1091
        %v1350 = vpop.f32.mrb[0].mxu0
        %v1351 = vadd.f32 0.0, %v1350
        %v1352 = vpop.f32.mrb[0].mxu0
        %1353 = vmatprep.mubr.f32.mxu0 0.0
        %1354 = vmatmul.mubr.f32.gmra.mrb[0].mxu0 %v1092
        %v1355 = vpop.f32.mrb[0].mxu0
        %v1356 = vadd.f32 0.0, %v1355
        %v1357 = vpop.f32.mrb[0].mxu0
        %1358 = vmatprep.mubr.f32.mxu0 0.0
        %1359 = vmatmul.mubr.f32.gmra.mrb[0].mxu0 %v1093
        %v1360 = vpop.f32.mrb[0].mxu0
        %v1361 = vadd.f32 0.0, %v1360
        %v1362 = vpop.f32.mrb[0].mxu0
        %1363 = vmatprep.mubr.f32.mxu0 0.0
        %1364 = vmatmul.mubr.f32.gmra.mrb[0].mxu0 %v1094
        %v1365 = vpop.f32.mrb[0].mxu0
        %v1366 = vadd.f32 0.0, %v1365
        %v1367 = vpop.f32.mrb[0].mxu0
        %1368 = vdwg.mxu0
        %v1369 = vadd.f32 %v1095, %v1211
        %v1370 = vadd.f32 %v1096, %v1216
        %v1371 = vadd.f32 %v1097, %v1221
        %v1372 = vadd.f32 %v1098, %v1226
        %v1373 = vadd.f32 %v1099, %v1231
        %v1374 = vadd.f32 %v1100, %v1236
        %v1375 = vadd.f32 %v1101, %v1241
        %v1376 = vadd.f32 %v1102, %v1246
        %v1377 = vadd.f32 %v1103, %v1251
        %v1378 = vadd.f32 %v1104, %v1256
        %v1379 = vadd.f32 %v1105, %v1261
        %v1380 = vadd.f32 %v1106, %v1266
        %v1381 = vadd.f32 %v1107, %v1271
        %v1382 = vadd.f32 %v1108, %v1276
        %v1383 = vadd.f32 %v1109, %v1281
        %v1384 = vadd.f32 %v1110, %v1286
        %v1385 = vadd.f32 %v1111, %v1291
        %v1386 = vadd.f32 %v1112, %v1296
        %v1387 = vadd.f32 %v1113, %v1301
        %v1388 = vadd.f32 %v1114, %v1306
        %v1389 = vadd.f32 %v1115, %v1311
        %v1390 = vadd.f32 %v1116, %v1316
        %v1391 = vadd.f32 %v1117, %v1321
        %v1392 = vadd.f32 %v1118, %v1326
        %v1393 = vadd.f32 %v1119, %v1331
        %v1394 = vadd.f32 %v1120, %v1336
        %v1395 = vadd.f32 %v1121, %v1341
        %v1396 = vadd.f32 %v1122, %v1346
        %v1397 = vadd.f32 %v1123, %v1351
        %v1398 = vadd.f32 %v1124, %v1356
        %v1399 = vadd.f32 %v1125, %v1361
        %v1400 = vadd.f32 %v1126, %v1366
        %1401 = vst [vmem:[#allocation2] sm:$0xff] %v1369
        %1402 = vst [vmem:[#allocation2 + $0x8] sm:$0xff] %v1370
        %1403 = vst [vmem:[#allocation2 + $0x10] sm:$0xff] %v1371
        %1404 = vst [vmem:[#allocation2 + $0x18] sm:$0xff] %v1372
        %1405 = vst [vmem:[#allocation2 + $0x20] sm:$0xff] %v1373
        %1406 = vst [vmem:[#allocation2 + $0x28] sm:$0xff] %v1374
        %1407 = vst [vmem:[#allocation2 + $0x30] sm:$0xff] %v1375
        %1408 = vst [vmem:[#allocation2 + $0x38] sm:$0xff] %v1376
        %1409 = vst [vmem:[#allocation2 + $0x40] sm:$0xff] %v1377
        %1410 = vst [vmem:[#allocation2 + $0x48] sm:$0xff] %v1378
        %1411 = vst [vmem:[#allocation2 + $0x50] sm:$0xff] %v1379
        %1412 = vst [vmem:[#allocation2 + $0x58] sm:$0xff] %v1380
        %1413 = vst [vmem:[#allocation2 + $0x60] sm:$0xff] %v1381
        %1414 = vst [vmem:[#allocation2 + $0x68] sm:$0xff] %v1382
        %1415 = vst [vmem:[#allocation2 + $0x70] sm:$0xff] %v1383
        %1416 = vst [vmem:[#allocation2 + $0x78] sm:$0xff] %v1384
        %1417 = vst [vmem:[#allocation2 + $0x80] sm:$0xff] %v1385
        %1418 = vst [vmem:[#allocation2 + $0x88] sm:$0xff] %v1386
        %1419 = vst [vmem:[#allocation2 + $0x90] sm:$0xff] %v1387
        %1420 = vst [vmem:[#allocation2 + $0x98] sm:$0xff] %v1388
        %1421 = vst [vmem:[#allocation2 + $0xa0] sm:$0xff] %v1389
        %1422 = vst [vmem:[#allocation2 + $0xa8] sm:$0xff] %v1390
        %1423 = vst [vmem:[#allocation2 + $0xb0] sm:$0xff] %v1391
        %1424 = vst [vmem:[#allocation2 + $0xb8] sm:$0xff] %v1392
        %1425 = vst [vmem:[#allocation2 + $0xc0] sm:$0xff] %v1393
        %1426 = vst [vmem:[#allocation2 + $0xc8] sm:$0xff] %v1394
        %1427 = vst [vmem:[#allocation2 + $0xd0] sm:$0xff] %v1395
        %1428 = vst [vmem:[#allocation2 + $0xd8] sm:$0xff] %v1396
        %1429 = vst [vmem:[#allocation2 + $0xe0] sm:$0xff] %v1397
        %1430 = vst [vmem:[#allocation2 + $0xe8] sm:$0xff] %v1398
        %1431 = vst [vmem:[#allocation2 + $0xf0] sm:$0xff] %v1399
        %1432 = vst [vmem:[#allocation2 + $0xf8] sm:$0xff] %v1400
        %s1433 = scalar_lea.vmem %s291, 24
        %v1434 = vld [vmem:[%s1433] sm:$0xff]
        %v1435 = vld [vmem:[%s1433 + $0x8] sm:$0xff]
        %v1436 = vld [vmem:[%s1433 + $0x18] sm:$0xff]
        %v1437 = vld [vmem:[%s1433 + $0x20] sm:$0xff]
        %v1438 = vld [vmem:[%s1433 + $0x30] sm:$0xff]
        %v1439 = vld [vmem:[%s1433 + $0x38] sm:$0xff]
        %v1440 = vld [vmem:[%s1433 + $0x48] sm:$0xff]
        %v1441 = vld [vmem:[%s1433 + $0x50] sm:$0xff]
        %v1442 = vld [vmem:[%s1433 + $0x60] sm:$0xff]
        %v1443 = vld [vmem:[%s1433 + $0x68] sm:$0xff]
        %v1444 = vld [vmem:[%s1433 + $0x78] sm:$0xff]
        %v1445 = vld [vmem:[%s1433 + $0x80] sm:$0xff]
        %v1446 = vld [vmem:[%s1433 + $0x90] sm:$0xff]
        %v1447 = vld [vmem:[%s1433 + $0x98] sm:$0xff]
        %v1448 = vld [vmem:[%s1433 + $0xa8] sm:$0xff]
        %v1449 = vld [vmem:[%s1433 + $0xb0] sm:$0xff]
        %v1450 = vld [vmem:[%s1433 + $0xc0] sm:$0xff]
        %v1451 = vld [vmem:[%s1433 + $0xc8] sm:$0xff]
        %v1452 = vld [vmem:[%s1433 + $0xd8] sm:$0xff]
        %v1453 = vld [vmem:[%s1433 + $0xe0] sm:$0xff]
        %v1454 = vld [vmem:[%s1433 + $0xf0] sm:$0xff]
        %v1455 = vld [vmem:[%s1433 + $0xf8] sm:$0xff]
        %v1456 = vld [vmem:[%s1433 + $0x108] sm:$0xff]
        %v1457 = vld [vmem:[%s1433 + $0x110] sm:$0xff]
        %v1458 = vld [vmem:[%s1433 + $0x120] sm:$0xff]
        %v1459 = vld [vmem:[%s1433 + $0x128] sm:$0xff]
        %v1460 = vld [vmem:[%s1433 + $0x138] sm:$0xff]
        %v1461 = vld [vmem:[%s1433 + $0x140] sm:$0xff]
        %v1462 = vld [vmem:[%s1433 + $0x150] sm:$0xff]
        %v1463 = vld [vmem:[%s1433 + $0x158] sm:$0xff]
        %v1464 = vld [vmem:[%s1433 + $0x168] sm:$0xff]
        %v1465 = vld [vmem:[%s1433 + $0x170] sm:$0xff]
        %v1466 = vld [vmem:[#allocation2] sm:$0xff]
        %v1467 = vld [vmem:[#allocation2 + $0x8] sm:$0xff]
        %v1468 = vld [vmem:[#allocation2 + $0x10] sm:$0xff]
        %v1469 = vld [vmem:[#allocation2 + $0x18] sm:$0xff]
        %v1470 = vld [vmem:[#allocation2 + $0x20] sm:$0xff]
        %v1471 = vld [vmem:[#allocation2 + $0x28] sm:$0xff]
        %v1472 = vld [vmem:[#allocation2 + $0x30] sm:$0xff]
        %v1473 = vld [vmem:[#allocation2 + $0x38] sm:$0xff]
        %v1474 = vld [vmem:[#allocation2 + $0x40] sm:$0xff]
        %v1475 = vld [vmem:[#allocation2 + $0x48] sm:$0xff]
        %v1476 = vld [vmem:[#allocation2 + $0x50] sm:$0xff]
        %v1477 = vld [vmem:[#allocation2 + $0x58] sm:$0xff]
        %v1478 = vld [vmem:[#allocation2 + $0x60] sm:$0xff]
        %v1479 = vld [vmem:[#allocation2 + $0x68] sm:$0xff]
        %v1480 = vld [vmem:[#allocation2 + $0x70] sm:$0xff]
        %v1481 = vld [vmem:[#allocation2 + $0x78] sm:$0xff]
        %v1482 = vld [vmem:[#allocation2 + $0x80] sm:$0xff]
        %v1483 = vld [vmem:[#allocation2 + $0x88] sm:$0xff]
        %v1484 = vld [vmem:[#allocation2 + $0x90] sm:$0xff]
        %v1485 = vld [vmem:[#allocation2 + $0x98] sm:$0xff]
        %v1486 = vld [vmem:[#allocation2 + $0xa0] sm:$0xff]
        %v1487 = vld [vmem:[#allocation2 + $0xa8] sm:$0xff]
        %v1488 = vld [vmem:[#allocation2 + $0xb0] sm:$0xff]
        %v1489 = vld [vmem:[#allocation2 + $0xb8] sm:$0xff]
        %v1490 = vld [vmem:[#allocation2 + $0xc0] sm:$0xff]
        %v1491 = vld [vmem:[#allocation2 + $0xc8] sm:$0xff]
        %v1492 = vld [vmem:[#allocation2 + $0xd0] sm:$0xff]
        %v1493 = vld [vmem:[#allocation2 + $0xd8] sm:$0xff]
        %v1494 = vld [vmem:[#allocation2 + $0xe0] sm:$0xff]
        %v1495 = vld [vmem:[#allocation2 + $0xe8] sm:$0xff]
        %v1496 = vld [vmem:[#allocation2 + $0xf0] sm:$0xff]
        %v1497 = vld [vmem:[#allocation2 + $0xf8] sm:$0xff]
        %s1498 = scalar_lea.vmem %s1, 384
        %v1499 = vld [vmem:[%s1498] sm:$0xff]
        %v1500 = vld [vmem:[%s1498 + $0x8] sm:$0xff]
        %v1501 = vld [vmem:[%s1498 + $0x10] sm:$0xff]
        %v1502 = vld [vmem:[%s1498 + $0x18] sm:$0xff]
        %v1503 = vld [vmem:[%s1498 + $0x20] sm:$0xff]
        %v1504 = vld [vmem:[%s1498 + $0x28] sm:$0xff]
        %v1505 = vld [vmem:[%s1498 + $0x30] sm:$0xff]
        %v1506 = vld [vmem:[%s1498 + $0x38] sm:$0xff]
        %v1507 = vld [vmem:[%s1498 + $0x40] sm:$0xff]
        %v1508 = vld [vmem:[%s1498 + $0x48] sm:$0xff]
        %v1509 = vld [vmem:[%s1498 + $0x50] sm:$0xff]
        %v1510 = vld [vmem:[%s1498 + $0x58] sm:$0xff]
        %v1511 = vld [vmem:[%s1498 + $0x60] sm:$0xff]
        %v1512 = vld [vmem:[%s1498 + $0x68] sm:$0xff]
        %v1513 = vld [vmem:[%s1498 + $0x70] sm:$0xff]
        %v1514 = vld [vmem:[%s1498 + $0x78] sm:$0xff]
        %1515 = vmatprep.subr.mxu0 0.0
        %1516 = vmatpush1.msra.mxu0 %v1499
        %1517 = vmatprep.subr.mxu0 0.0
        %1518 = vmatpush1.msra.mxu0 %v1500
        %1519 = vmatprep.subr.mxu0 0.0
        %1520 = vmatpush1.msra.mxu0 %v1501
        %1521 = vmatprep.subr.mxu0 0.0
        %1522 = vmatpush1.msra.mxu0 %v1502
        %1523 = vmatprep.subr.mxu0 0.0
        %1524 = vmatpush1.msra.mxu0 %v1503
        %1525 = vmatprep.subr.mxu0 0.0
        %1526 = vmatpush1.msra.mxu0 %v1504
        %1527 = vmatprep.subr.mxu0 0.0
        %1528 = vmatpush1.msra.mxu0 %v1505
        %1529 = vmatprep.subr.mxu0 0.0
        %1530 = vmatpush1.msra.mxu0 %v1506
        %1531 = vmatprep.subr.mxu0 0.0
        %1532 = vmatpush1.msra.mxu0 %v1507
        %1533 = vmatprep.subr.mxu0 0.0
        %1534 = vmatpush1.msra.mxu0 %v1508
        %1535 = vmatprep.subr.mxu0 0.0
        %1536 = vmatpush1.msra.mxu0 %v1509
        %1537 = vmatprep.subr.mxu0 0.0
        %1538 = vmatpush1.msra.mxu0 %v1510
        %1539 = vmatprep.subr.mxu0 0.0
        %1540 = vmatpush1.msra.mxu0 %v1511
        %1541 = vmatprep.subr.mxu0 0.0
        %1542 = vmatpush1.msra.mxu0 %v1512
        %1543 = vmatprep.subr.mxu0 0.0
        %1544 = vmatpush1.msra.mxu0 %v1513
        %1545 = vmatprep.subr.mxu0 0.0
        %1546 = vmatpush1.msra.mxu0 %v1514
        %1547 = vmatprep.subr.mxu0 0.0
        %1548 = vmatpush1.msra.mxu0 0.0
        %1549 = vmatprep.subr.mxu0 0.0
        %1550 = vmatpush1.msra.mxu0 0.0
        %1551 = vmatprep.subr.mxu0 0.0
        %1552 = vmatpush1.msra.mxu0 0.0
        %1553 = vmatprep.subr.mxu0 0.0
        %1554 = vmatpush1.msra.mxu0 0.0
        %1555 = vmatprep.subr.mxu0 0.0
        %1556 = vmatpush1.msra.mxu0 0.0
        %1557 = vmatprep.subr.mxu0 0.0
        %1558 = vmatpush1.msra.mxu0 0.0
        %1559 = vmatprep.subr.mxu0 0.0
        %1560 = vmatpush1.msra.mxu0 0.0
        %1561 = vmatprep.subr.mxu0 0.0
        %1562 = vmatpush1.msra.mxu0 0.0
        %1563 = vmatprep.subr.mxu0 0.0
        %1564 = vmatpush1.msra.mxu0 0.0
        %1565 = vmatprep.subr.mxu0 0.0
        %1566 = vmatpush1.msra.mxu0 0.0
        %1567 = vmatprep.subr.mxu0 0.0
        %1568 = vmatpush1.msra.mxu0 0.0
        %1569 = vmatprep.subr.mxu0 0.0
        %1570 = vmatpush1.msra.mxu0 0.0
        %1571 = vmatprep.subr.mxu0 0.0
        %1572 = vmatpush1.msra.mxu0 0.0
        %1573 = vmatprep.subr.mxu0 0.0
        %1574 = vmatpush1.msra.mxu0 0.0
        %1575 = vmatprep.subr.mxu0 0.0
        %1576 = vmatpush1.msra.mxu0 0.0
        %1577 = vmatprep.subr.mxu0 0.0
        %1578 = vmatpush1.msra.mxu0 0.0
        %1579 = vmatprep.mubr.f32.mxu0 0.0
        %1580 = vmatmul.mubr.f32.gmra.mrb[0].mxu0 %v1434
        %v1581 = vpop.f32.mrb[0].mxu0
        %v1582 = vadd.f32 0.0, %v1581
        %v1583 = vpop.f32.mrb[0].mxu0
        %1584 = vmatprep.mubr.f32.mxu0 0.0
        %1585 = vmatmul.mubr.f32.gmra.mrb[0].mxu0 %v1435
        %v1586 = vpop.f32.mrb[0].mxu0
        %v1587 = vadd.f32 0.0, %v1586
        %v1588 = vpop.f32.mrb[0].mxu0
        %1589 = vmatprep.mubr.f32.mxu0 0.0
        %1590 = vmatmul.mubr.f32.gmra.mrb[0].mxu0 %v1436
        %v1591 = vpop.f32.mrb[0].mxu0
        %v1592 = vadd.f32 0.0, %v1591
        %v1593 = vpop.f32.mrb[0].mxu0
        %1594 = vmatprep.mubr.f32.mxu0 0.0
        %1595 = vmatmul.mubr.f32.gmra.mrb[0].mxu0 %v1437
        %v1596 = vpop.f32.mrb[0].mxu0
        %v1597 = vadd.f32 0.0, %v1596
        %v1598 = vpop.f32.mrb[0].mxu0
        %1599 = vmatprep.mubr.f32.mxu0 0.0
        %1600 = vmatmul.mubr.f32.gmra.mrb[0].mxu0 %v1438
        %v1601 = vpop.f32.mrb[0].mxu0
        %v1602 = vadd.f32 0.0, %v1601
        %v1603 = vpop.f32.mrb[0].mxu0
        %1604 = vmatprep.mubr.f32.mxu0 0.0
        %1605 = vmatmul.mubr.f32.gmra.mrb[0].mxu0 %v1439
        %v1606 = vpop.f32.mrb[0].mxu0
        %v1607 = vadd.f32 0.0, %v1606
        %v1608 = vpop.f32.mrb[0].mxu0
        %1609 = vmatprep.mubr.f32.mxu0 0.0
        %1610 = vmatmul.mubr.f32.gmra.mrb[0].mxu0 %v1440
        %v1611 = vpop.f32.mrb[0].mxu0
        %v1612 = vadd.f32 0.0, %v1611
        %v1613 = vpop.f32.mrb[0].mxu0
        %1614 = vmatprep.mubr.f32.mxu0 0.0
        %1615 = vmatmul.mubr.f32.gmra.mrb[0].mxu0 %v1441
        %v1616 = vpop.f32.mrb[0].mxu0
        %v1617 = vadd.f32 0.0, %v1616
        %v1618 = vpop.f32.mrb[0].mxu0
        %1619 = vmatprep.mubr.f32.mxu0 0.0
        %1620 = vmatmul.mubr.f32.gmra.mrb[0].mxu0 %v1442
        %v1621 = vpop.f32.mrb[0].mxu0
        %v1622 = vadd.f32 0.0, %v1621
        %v1623 = vpop.f32.mrb[0].mxu0
        %1624 = vmatprep.mubr.f32.mxu0 0.0
        %1625 = vmatmul.mubr.f32.gmra.mrb[0].mxu0 %v1443
        %v1626 = vpop.f32.mrb[0].mxu0
        %v1627 = vadd.f32 0.0, %v1626
        %v1628 = vpop.f32.mrb[0].mxu0
        %1629 = vmatprep.mubr.f32.mxu0 0.0
        %1630 = vmatmul.mubr.f32.gmra.mrb[0].mxu0 %v1444
        %v1631 = vpop.f32.mrb[0].mxu0
        %v1632 = vadd.f32 0.0, %v1631
        %v1633 = vpop.f32.mrb[0].mxu0
        %1634 = vmatprep.mubr.f32.mxu0 0.0
        %1635 = vmatmul.mubr.f32.gmra.mrb[0].mxu0 %v1445
        %v1636 = vpop.f32.mrb[0].mxu0
        %v1637 = vadd.f32 0.0, %v1636
        %v1638 = vpop.f32.mrb[0].mxu0
        %1639 = vmatprep.mubr.f32.mxu0 0.0
        %1640 = vmatmul.mubr.f32.gmra.mrb[0].mxu0 %v1446
        %v1641 = vpop.f32.mrb[0].mxu0
        %v1642 = vadd.f32 0.0, %v1641
        %v1643 = vpop.f32.mrb[0].mxu0
        %1644 = vmatprep.mubr.f32.mxu0 0.0
        %1645 = vmatmul.mubr.f32.gmra.mrb[0].mxu0 %v1447
        %v1646 = vpop.f32.mrb[0].mxu0
        %v1647 = vadd.f32 0.0, %v1646
        %v1648 = vpop.f32.mrb[0].mxu0
        %1649 = vmatprep.mubr.f32.mxu0 0.0
        %1650 = vmatmul.mubr.f32.gmra.mrb[0].mxu0 %v1448
        %v1651 = vpop.f32.mrb[0].mxu0
        %v1652 = vadd.f32 0.0, %v1651
        %v1653 = vpop.f32.mrb[0].mxu0
        %1654 = vmatprep.mubr.f32.mxu0 0.0
        %1655 = vmatmul.mubr.f32.gmra.mrb[0].mxu0 %v1449
        %v1656 = vpop.f32.mrb[0].mxu0
        %v1657 = vadd.f32 0.0, %v1656
        %v1658 = vpop.f32.mrb[0].mxu0
        %1659 = vmatprep.mubr.f32.mxu0 0.0
        %1660 = vmatmul.mubr.f32.gmra.mrb[0].mxu0 %v1450
        %v1661 = vpop.f32.mrb[0].mxu0
        %v1662 = vadd.f32 0.0, %v1661
        %v1663 = vpop.f32.mrb[0].mxu0
        %1664 = vmatprep.mubr.f32.mxu0 0.0
        %1665 = vmatmul.mubr.f32.gmra.mrb[0].mxu0 %v1451
        %v1666 = vpop.f32.mrb[0].mxu0
        %v1667 = vadd.f32 0.0, %v1666
        %v1668 = vpop.f32.mrb[0].mxu0
        %1669 = vmatprep.mubr.f32.mxu0 0.0
        %1670 = vmatmul.mubr.f32.gmra.mrb[0].mxu0 %v1452
        %v1671 = vpop.f32.mrb[0].mxu0
        %v1672 = vadd.f32 0.0, %v1671
        %v1673 = vpop.f32.mrb[0].mxu0
        %1674 = vmatprep.mubr.f32.mxu0 0.0
        %1675 = vmatmul.mubr.f32.gmra.mrb[0].mxu0 %v1453
        %v1676 = vpop.f32.mrb[0].mxu0
        %v1677 = vadd.f32 0.0, %v1676
        %v1678 = vpop.f32.mrb[0].mxu0
        %1679 = vmatprep.mubr.f32.mxu0 0.0
        %1680 = vmatmul.mubr.f32.gmra.mrb[0].mxu0 %v1454
        %v1681 = vpop.f32.mrb[0].mxu0
        %v1682 = vadd.f32 0.0, %v1681
        %v1683 = vpop.f32.mrb[0].mxu0
        %1684 = vmatprep.mubr.f32.mxu0 0.0
        %1685 = vmatmul.mubr.f32.gmra.mrb[0].mxu0 %v1455
        %v1686 = vpop.f32.mrb[0].mxu0
        %v1687 = vadd.f32 0.0, %v1686
        %v1688 = vpop.f32.mrb[0].mxu0
        %1689 = vmatprep.mubr.f32.mxu0 0.0
        %1690 = vmatmul.mubr.f32.gmra.mrb[0].mxu0 %v1456
        %v1691 = vpop.f32.mrb[0].mxu0
        %v1692 = vadd.f32 0.0, %v1691
        %v1693 = vpop.f32.mrb[0].mxu0
        %1694 = vmatprep.mubr.f32.mxu0 0.0
        %1695 = vmatmul.mubr.f32.gmra.mrb[0].mxu0 %v1457
        %v1696 = vpop.f32.mrb[0].mxu0
        %v1697 = vadd.f32 0.0, %v1696
        %v1698 = vpop.f32.mrb[0].mxu0
        %1699 = vmatprep.mubr.f32.mxu0 0.0
        %1700 = vmatmul.mubr.f32.gmra.mrb[0].mxu0 %v1458
        %v1701 = vpop.f32.mrb[0].mxu0
        %v1702 = vadd.f32 0.0, %v1701
        %v1703 = vpop.f32.mrb[0].mxu0
        %1704 = vmatprep.mubr.f32.mxu0 0.0
        %1705 = vmatmul.mubr.f32.gmra.mrb[0].mxu0 %v1459
        %v1706 = vpop.f32.mrb[0].mxu0
        %v1707 = vadd.f32 0.0, %v1706
        %v1708 = vpop.f32.mrb[0].mxu0
        %1709 = vmatprep.mubr.f32.mxu0 0.0
        %1710 = vmatmul.mubr.f32.gmra.mrb[0].mxu0 %v1460
        %v1711 = vpop.f32.mrb[0].mxu0
        %v1712 = vadd.f32 0.0, %v1711
        %v1713 = vpop.f32.mrb[0].mxu0
        %1714 = vmatprep.mubr.f32.mxu0 0.0
        %1715 = vmatmul.mubr.f32.gmra.mrb[0].mxu0 %v1461
        %v1716 = vpop.f32.mrb[0].mxu0
        %v1717 = vadd.f32 0.0, %v1716
        %v1718 = vpop.f32.mrb[0].mxu0
        %1719 = vmatprep.mubr.f32.mxu0 0.0
        %1720 = vmatmul.mubr.f32.gmra.mrb[0].mxu0 %v1462
        %v1721 = vpop.f32.mrb[0].mxu0
        %v1722 = vadd.f32 0.0, %v1721
        %v1723 = vpop.f32.mrb[0].mxu0
        %1724 = vmatprep.mubr.f32.mxu0 0.0
        %1725 = vmatmul.mubr.f32.gmra.mrb[0].mxu0 %v1463
        %v1726 = vpop.f32.mrb[0].mxu0
        %v1727 = vadd.f32 0.0, %v1726
        %v1728 = vpop.f32.mrb[0].mxu0
        %1729 = vmatprep.mubr.f32.mxu0 0.0
        %1730 = vmatmul.mubr.f32.gmra.mrb[0].mxu0 %v1464
        %v1731 = vpop.f32.mrb[0].mxu0
        %v1732 = vadd.f32 0.0, %v1731
        %v1733 = vpop.f32.mrb[0].mxu0
        %1734 = vmatprep.mubr.f32.mxu0 0.0
        %1735 = vmatmul.mubr.f32.gmra.mrb[0].mxu0 %v1465
        %v1736 = vpop.f32.mrb[0].mxu0
        %v1737 = vadd.f32 0.0, %v1736
        %v1738 = vpop.f32.mrb[0].mxu0
        %1739 = vdwg.mxu0
        %v1740 = vadd.f32 %v1466, %v1582
        %v1741 = vadd.f32 %v1467, %v1587
        %v1742 = vadd.f32 %v1468, %v1592
        %v1743 = vadd.f32 %v1469, %v1597
        %v1744 = vadd.f32 %v1470, %v1602
        %v1745 = vadd.f32 %v1471, %v1607
        %v1746 = vadd.f32 %v1472, %v1612
        %v1747 = vadd.f32 %v1473, %v1617
        %v1748 = vadd.f32 %v1474, %v1622
        %v1749 = vadd.f32 %v1475, %v1627
        %v1750 = vadd.f32 %v1476, %v1632
        %v1751 = vadd.f32 %v1477, %v1637
        %v1752 = vadd.f32 %v1478, %v1642
        %v1753 = vadd.f32 %v1479, %v1647
        %v1754 = vadd.f32 %v1480, %v1652
        %v1755 = vadd.f32 %v1481, %v1657
        %v1756 = vadd.f32 %v1482, %v1662
        %v1757 = vadd.f32 %v1483, %v1667
        %v1758 = vadd.f32 %v1484, %v1672
        %v1759 = vadd.f32 %v1485, %v1677
        %v1760 = vadd.f32 %v1486, %v1682
        %v1761 = vadd.f32 %v1487, %v1687
        %v1762 = vadd.f32 %v1488, %v1692
        %v1763 = vadd.f32 %v1489, %v1697
        %v1764 = vadd.f32 %v1490, %v1702
        %v1765 = vadd.f32 %v1491, %v1707
        %v1766 = vadd.f32 %v1492, %v1712
        %v1767 = vadd.f32 %v1493, %v1717
        %v1768 = vadd.f32 %v1494, %v1722
        %v1769 = vadd.f32 %v1495, %v1727
        %v1770 = vadd.f32 %v1496, %v1732
        %v1771 = vadd.f32 %v1497, %v1737
        %1772 = vst [vmem:[#allocation2] sm:$0xff] %v1740
        %1773 = vst [vmem:[#allocation2 + $0x8] sm:$0xff] %v1741
        %1774 = vst [vmem:[#allocation2 + $0x10] sm:$0xff] %v1742
        %1775 = vst [vmem:[#allocation2 + $0x18] sm:$0xff] %v1743
        %1776 = vst [vmem:[#allocation2 + $0x20] sm:$0xff] %v1744
        %1777 = vst [vmem:[#allocation2 + $0x28] sm:$0xff] %v1745
        %1778 = vst [vmem:[#allocation2 + $0x30] sm:$0xff] %v1746
        %1779 = vst [vmem:[#allocation2 + $0x38] sm:$0xff] %v1747
        %1780 = vst [vmem:[#allocation2 + $0x40] sm:$0xff] %v1748
        %1781 = vst [vmem:[#allocation2 + $0x48] sm:$0xff] %v1749
        %1782 = vst [vmem:[#allocation2 + $0x50] sm:$0xff] %v1750
        %1783 = vst [vmem:[#allocation2 + $0x58] sm:$0xff] %v1751
        %1784 = vst [vmem:[#allocation2 + $0x60] sm:$0xff] %v1752
        %1785 = vst [vmem:[#allocation2 + $0x68] sm:$0xff] %v1753
        %1786 = vst [vmem:[#allocation2 + $0x70] sm:$0xff] %v1754
        %1787 = vst [vmem:[#allocation2 + $0x78] sm:$0xff] %v1755
        %1788 = vst [vmem:[#allocation2 + $0x80] sm:$0xff] %v1756
        %1789 = vst [vmem:[#allocation2 + $0x88] sm:$0xff] %v1757
        %1790 = vst [vmem:[#allocation2 + $0x90] sm:$0xff] %v1758
        %1791 = vst [vmem:[#allocation2 + $0x98] sm:$0xff] %v1759
        %1792 = vst [vmem:[#allocation2 + $0xa0] sm:$0xff] %v1760
        %1793 = vst [vmem:[#allocation2 + $0xa8] sm:$0xff] %v1761
        %1794 = vst [vmem:[#allocation2 + $0xb0] sm:$0xff] %v1762
        %1795 = vst [vmem:[#allocation2 + $0xb8] sm:$0xff] %v1763
        %1796 = vst [vmem:[#allocation2 + $0xc0] sm:$0xff] %v1764
        %1797 = vst [vmem:[#allocation2 + $0xc8] sm:$0xff] %v1765
        %1798 = vst [vmem:[#allocation2 + $0xd0] sm:$0xff] %v1766
        %1799 = vst [vmem:[#allocation2 + $0xd8] sm:$0xff] %v1767
        %1800 = vst [vmem:[#allocation2 + $0xe0] sm:$0xff] %v1768
        %1801 = vst [vmem:[#allocation2 + $0xe8] sm:$0xff] %v1769
        %1802 = vst [vmem:[#allocation2 + $0xf0] sm:$0xff] %v1770
        %1803 = vst [vmem:[#allocation2 + $0xf8] sm:$0xff] %v1771
        %v1804 = vld [vmem:[%s1433 + $0x1] sm:$0xff]
        %v1805 = vld [vmem:[%s1433 + $0x9] sm:$0xff]
        %v1806 = vld [vmem:[%s1433 + $0x19] sm:$0xff]
        %v1807 = vld [vmem:[%s1433 + $0x21] sm:$0xff]
        %v1808 = vld [vmem:[%s1433 + $0x31] sm:$0xff]
        %v1809 = vld [vmem:[%s1433 + $0x39] sm:$0xff]
        %v1810 = vld [vmem:[%s1433 + $0x49] sm:$0xff]
        %v1811 = vld [vmem:[%s1433 + $0x51] sm:$0xff]
        %v1812 = vld [vmem:[%s1433 + $0x61] sm:$0xff]
        %v1813 = vld [vmem:[%s1433 + $0x69] sm:$0xff]
        %v1814 = vld [vmem:[%s1433 + $0x79] sm:$0xff]
        %v1815 = vld [vmem:[%s1433 + $0x81] sm:$0xff]
        %v1816 = vld [vmem:[%s1433 + $0x91] sm:$0xff]
        %v1817 = vld [vmem:[%s1433 + $0x99] sm:$0xff]
        %v1818 = vld [vmem:[%s1433 + $0xa9] sm:$0xff]
        %v1819 = vld [vmem:[%s1433 + $0xb1] sm:$0xff]
        %v1820 = vld [vmem:[%s1433 + $0xc1] sm:$0xff]
        %v1821 = vld [vmem:[%s1433 + $0xc9] sm:$0xff]
        %v1822 = vld [vmem:[%s1433 + $0xd9] sm:$0xff]
        %v1823 = vld [vmem:[%s1433 + $0xe1] sm:$0xff]
        %v1824 = vld [vmem:[%s1433 + $0xf1] sm:$0xff]
        %v1825 = vld [vmem:[%s1433 + $0xf9] sm:$0xff]
        %v1826 = vld [vmem:[%s1433 + $0x109] sm:$0xff]
        %v1827 = vld [vmem:[%s1433 + $0x111] sm:$0xff]
        %v1828 = vld [vmem:[%s1433 + $0x121] sm:$0xff]
        %v1829 = vld [vmem:[%s1433 + $0x129] sm:$0xff]
        %v1830 = vld [vmem:[%s1433 + $0x139] sm:$0xff]
        %v1831 = vld [vmem:[%s1433 + $0x141] sm:$0xff]
        %v1832 = vld [vmem:[%s1433 + $0x151] sm:$0xff]
        %v1833 = vld [vmem:[%s1433 + $0x159] sm:$0xff]
        %v1834 = vld [vmem:[%s1433 + $0x169] sm:$0xff]
        %v1835 = vld [vmem:[%s1433 + $0x171] sm:$0xff]
        %v1836 = vld [vmem:[#allocation2] sm:$0xff]
        %v1837 = vld [vmem:[#allocation2 + $0x8] sm:$0xff]
        %v1838 = vld [vmem:[#allocation2 + $0x10] sm:$0xff]
        %v1839 = vld [vmem:[#allocation2 + $0x18] sm:$0xff]
        %v1840 = vld [vmem:[#allocation2 + $0x20] sm:$0xff]
        %v1841 = vld [vmem:[#allocation2 + $0x28] sm:$0xff]
        %v1842 = vld [vmem:[#allocation2 + $0x30] sm:$0xff]
        %v1843 = vld [vmem:[#allocation2 + $0x38] sm:$0xff]
        %v1844 = vld [vmem:[#allocation2 + $0x40] sm:$0xff]
        %v1845 = vld [vmem:[#allocation2 + $0x48] sm:$0xff]
        %v1846 = vld [vmem:[#allocation2 + $0x50] sm:$0xff]
        %v1847 = vld [vmem:[#allocation2 + $0x58] sm:$0xff]
        %v1848 = vld [vmem:[#allocation2 + $0x60] sm:$0xff]
        %v1849 = vld [vmem:[#allocation2 + $0x68] sm:$0xff]
        %v1850 = vld [vmem:[#allocation2 + $0x70] sm:$0xff]
        %v1851 = vld [vmem:[#allocation2 + $0x78] sm:$0xff]
        %v1852 = vld [vmem:[#allocation2 + $0x80] sm:$0xff]
        %v1853 = vld [vmem:[#allocation2 + $0x88] sm:$0xff]
        %v1854 = vld [vmem:[#allocation2 + $0x90] sm:$0xff]
        %v1855 = vld [vmem:[#allocation2 + $0x98] sm:$0xff]
        %v1856 = vld [vmem:[#allocation2 + $0xa0] sm:$0xff]
        %v1857 = vld [vmem:[#allocation2 + $0xa8] sm:$0xff]
        %v1858 = vld [vmem:[#allocation2 + $0xb0] sm:$0xff]
        %v1859 = vld [vmem:[#allocation2 + $0xb8] sm:$0xff]
        %v1860 = vld [vmem:[#allocation2 + $0xc0] sm:$0xff]
        %v1861 = vld [vmem:[#allocation2 + $0xc8] sm:$0xff]
        %v1862 = vld [vmem:[#allocation2 + $0xd0] sm:$0xff]
        %v1863 = vld [vmem:[#allocation2 + $0xd8] sm:$0xff]
        %v1864 = vld [vmem:[#allocation2 + $0xe0] sm:$0xff]
        %v1865 = vld [vmem:[#allocation2 + $0xe8] sm:$0xff]
        %v1866 = vld [vmem:[#allocation2 + $0xf0] sm:$0xff]
        %v1867 = vld [vmem:[#allocation2 + $0xf8] sm:$0xff]
        %s1868 = scalar_lea.vmem %s1, 512
        %v1869 = vld [vmem:[%s1868] sm:$0xff]
        %v1870 = vld [vmem:[%s1868 + $0x8] sm:$0xff]
        %v1871 = vld [vmem:[%s1868 + $0x10] sm:$0xff]
        %v1872 = vld [vmem:[%s1868 + $0x18] sm:$0xff]
        %v1873 = vld [vmem:[%s1868 + $0x20] sm:$0xff]
        %v1874 = vld [vmem:[%s1868 + $0x28] sm:$0xff]
        %v1875 = vld [vmem:[%s1868 + $0x30] sm:$0xff]
        %v1876 = vld [vmem:[%s1868 + $0x38] sm:$0xff]
        %v1877 = vld [vmem:[%s1868 + $0x40] sm:$0xff]
        %v1878 = vld [vmem:[%s1868 + $0x48] sm:$0xff]
        %v1879 = vld [vmem:[%s1868 + $0x50] sm:$0xff]
        %v1880 = vld [vmem:[%s1868 + $0x58] sm:$0xff]
        %v1881 = vld [vmem:[%s1868 + $0x60] sm:$0xff]
        %v1882 = vld [vmem:[%s1868 + $0x68] sm:$0xff]
        %v1883 = vld [vmem:[%s1868 + $0x70] sm:$0xff]
        %v1884 = vld [vmem:[%s1868 + $0x78] sm:$0xff]
        %1885 = vmatprep.subr.mxu0 0.0
        %1886 = vmatpush1.msra.mxu0 %v1869
        %1887 = vmatprep.subr.mxu0 0.0
        %1888 = vmatpush1.msra.mxu0 %v1870
        %1889 = vmatprep.subr.mxu0 0.0
        %1890 = vmatpush1.msra.mxu0 %v1871
        %1891 = vmatprep.subr.mxu0 0.0
        %1892 = vmatpush1.msra.mxu0 %v1872
        %1893 = vmatprep.subr.mxu0 0.0
        %1894 = vmatpush1.msra.mxu0 %v1873
        %1895 = vmatprep.subr.mxu0 0.0
        %1896 = vmatpush1.msra.mxu0 %v1874
        %1897 = vmatprep.subr.mxu0 0.0
        %1898 = vmatpush1.msra.mxu0 %v1875
        %1899 = vmatprep.subr.mxu0 0.0
        %1900 = vmatpush1.msra.mxu0 %v1876
        %1901 = vmatprep.subr.mxu0 0.0
        %1902 = vmatpush1.msra.mxu0 %v1877
        %1903 = vmatprep.subr.mxu0 0.0
        %1904 = vmatpush1.msra.mxu0 %v1878
        %1905 = vmatprep.subr.mxu0 0.0
        %1906 = vmatpush1.msra.mxu0 %v1879
        %1907 = vmatprep.subr.mxu0 0.0
        %1908 = vmatpush1.msra.mxu0 %v1880
        %1909 = vmatprep.subr.mxu0 0.0
        %1910 = vmatpush1.msra.mxu0 %v1881
        %1911 = vmatprep.subr.mxu0 0.0
        %1912 = vmatpush1.msra.mxu0 %v1882
        %1913 = vmatprep.subr.mxu0 0.0
        %1914 = vmatpush1.msra.mxu0 %v1883
        %1915 = vmatprep.subr.mxu0 0.0
        %1916 = vmatpush1.msra.mxu0 %v1884
        %1917 = vmatprep.subr.mxu0 0.0
        %1918 = vmatpush1.msra.mxu0 0.0
        %1919 = vmatprep.subr.mxu0 0.0
        %1920 = vmatpush1.msra.mxu0 0.0
        %1921 = vmatprep.subr.mxu0 0.0
        %1922 = vmatpush1.msra.mxu0 0.0
        %1923 = vmatprep.subr.mxu0 0.0
        %1924 = vmatpush1.msra.mxu0 0.0
        %1925 = vmatprep.subr.mxu0 0.0
        %1926 = vmatpush1.msra.mxu0 0.0
        %1927 = vmatprep.subr.mxu0 0.0
        %1928 = vmatpush1.msra.mxu0 0.0
        %1929 = vmatprep.subr.mxu0 0.0
        %1930 = vmatpush1.msra.mxu0 0.0
        %1931 = vmatprep.subr.mxu0 0.0
        %1932 = vmatpush1.msra.mxu0 0.0
        %1933 = vmatprep.subr.mxu0 0.0
        %1934 = vmatpush1.msra.mxu0 0.0
        %1935 = vmatprep.subr.mxu0 0.0
        %1936 = vmatpush1.msra.mxu0 0.0
        %1937 = vmatprep.subr.mxu0 0.0
        %1938 = vmatpush1.msra.mxu0 0.0
        %1939 = vmatprep.subr.mxu0 0.0
        %1940 = vmatpush1.msra.mxu0 0.0
        %1941 = vmatprep.subr.mxu0 0.0
        %1942 = vmatpush1.msra.mxu0 0.0
        %1943 = vmatprep.subr.mxu0 0.0
        %1944 = vmatpush1.msra.mxu0 0.0
        %1945 = vmatprep.subr.mxu0 0.0
        %1946 = vmatpush1.msra.mxu0 0.0
        %1947 = vmatprep.subr.mxu0 0.0
        %1948 = vmatpush1.msra.mxu0 0.0
        %1949 = vmatprep.mubr.f32.mxu0 0.0
        %1950 = vmatmul.mubr.f32.gmra.mrb[0].mxu0 %v1804
        %v1951 = vpop.f32.mrb[0].mxu0
        %v1952 = vadd.f32 0.0, %v1951
        %v1953 = vpop.f32.mrb[0].mxu0
        %1954 = vmatprep.mubr.f32.mxu0 0.0
        %1955 = vmatmul.mubr.f32.gmra.mrb[0].mxu0 %v1805
        %v1956 = vpop.f32.mrb[0].mxu0
        %v1957 = vadd.f32 0.0, %v1956
        %v1958 = vpop.f32.mrb[0].mxu0
        %1959 = vmatprep.mubr.f32.mxu0 0.0
        %1960 = vmatmul.mubr.f32.gmra.mrb[0].mxu0 %v1806
        %v1961 = vpop.f32.mrb[0].mxu0
        %v1962 = vadd.f32 0.0, %v1961
        %v1963 = vpop.f32.mrb[0].mxu0
        %1964 = vmatprep.mubr.f32.mxu0 0.0
        %1965 = vmatmul.mubr.f32.gmra.mrb[0].mxu0 %v1807
        %v1966 = vpop.f32.mrb[0].mxu0
        %v1967 = vadd.f32 0.0, %v1966
        %v1968 = vpop.f32.mrb[0].mxu0
        %1969 = vmatprep.mubr.f32.mxu0 0.0
        %1970 = vmatmul.mubr.f32.gmra.mrb[0].mxu0 %v1808
        %v1971 = vpop.f32.mrb[0].mxu0
        %v1972 = vadd.f32 0.0, %v1971
        %v1973 = vpop.f32.mrb[0].mxu0
        %1974 = vmatprep.mubr.f32.mxu0 0.0
        %1975 = vmatmul.mubr.f32.gmra.mrb[0].mxu0 %v1809
        %v1976 = vpop.f32.mrb[0].mxu0
        %v1977 = vadd.f32 0.0, %v1976
        %v1978 = vpop.f32.mrb[0].mxu0
        %1979 = vmatprep.mubr.f32.mxu0 0.0
        %1980 = vmatmul.mubr.f32.gmra.mrb[0].mxu0 %v1810
        %v1981 = vpop.f32.mrb[0].mxu0
        %v1982 = vadd.f32 0.0, %v1981
        %v1983 = vpop.f32.mrb[0].mxu0
        %1984 = vmatprep.mubr.f32.mxu0 0.0
        %1985 = vmatmul.mubr.f32.gmra.mrb[0].mxu0 %v1811
        %v1986 = vpop.f32.mrb[0].mxu0
        %v1987 = vadd.f32 0.0, %v1986
        %v1988 = vpop.f32.mrb[0].mxu0
        %1989 = vmatprep.mubr.f32.mxu0 0.0
        %1990 = vmatmul.mubr.f32.gmra.mrb[0].mxu0 %v1812
        %v1991 = vpop.f32.mrb[0].mxu0
        %v1992 = vadd.f32 0.0, %v1991
        %v1993 = vpop.f32.mrb[0].mxu0
        %1994 = vmatprep.mubr.f32.mxu0 0.0
        %1995 = vmatmul.mubr.f32.gmra.mrb[0].mxu0 %v1813
        %v1996 = vpop.f32.mrb[0].mxu0
        %v1997 = vadd.f32 0.0, %v1996
        %v1998 = vpop.f32.mrb[0].mxu0
        %1999 = vmatprep.mubr.f32.mxu0 0.0
        %2000 = vmatmul.mubr.f32.gmra.mrb[0].mxu0 %v1814
        %v2001 = vpop.f32.mrb[0].mxu0
        %v2002 = vadd.f32 0.0, %v2001
        %v2003 = vpop.f32.mrb[0].mxu0
        %2004 = vmatprep.mubr.f32.mxu0 0.0
        %2005 = vmatmul.mubr.f32.gmra.mrb[0].mxu0 %v1815
        %v2006 = vpop.f32.mrb[0].mxu0
        %v2007 = vadd.f32 0.0, %v2006
        %v2008 = vpop.f32.mrb[0].mxu0
        %2009 = vmatprep.mubr.f32.mxu0 0.0
        %2010 = vmatmul.mubr.f32.gmra.mrb[0].mxu0 %v1816
        %v2011 = vpop.f32.mrb[0].mxu0
        %v2012 = vadd.f32 0.0, %v2011
        %v2013 = vpop.f32.mrb[0].mxu0
        %2014 = vmatprep.mubr.f32.mxu0 0.0
        %2015 = vmatmul.mubr.f32.gmra.mrb[0].mxu0 %v1817
        %v2016 = vpop.f32.mrb[0].mxu0
        %v2017 = vadd.f32 0.0, %v2016
        %v2018 = vpop.f32.mrb[0].mxu0
        %2019 = vmatprep.mubr.f32.mxu0 0.0
        %2020 = vmatmul.mubr.f32.gmra.mrb[0].mxu0 %v1818
        %v2021 = vpop.f32.mrb[0].mxu0
        %v2022 = vadd.f32 0.0, %v2021
        %v2023 = vpop.f32.mrb[0].mxu0
        %2024 = vmatprep.mubr.f32.mxu0 0.0
        %2025 = vmatmul.mubr.f32.gmra.mrb[0].mxu0 %v1819
        %v2026 = vpop.f32.mrb[0].mxu0
        %v2027 = vadd.f32 0.0, %v2026
        %v2028 = vpop.f32.mrb[0].mxu0
        %2029 = vmatprep.mubr.f32.mxu0 0.0
        %2030 = vmatmul.mubr.f32.gmra.mrb[0].mxu0 %v1820
        %v2031 = vpop.f32.mrb[0].mxu0
        %v2032 = vadd.f32 0.0, %v2031
        %v2033 = vpop.f32.mrb[0].mxu0
        %2034 = vmatprep.mubr.f32.mxu0 0.0
        %2035 = vmatmul.mubr.f32.gmra.mrb[0].mxu0 %v1821
        %v2036 = vpop.f32.mrb[0].mxu0
        %v2037 = vadd.f32 0.0, %v2036
        %v2038 = vpop.f32.mrb[0].mxu0
        %2039 = vmatprep.mubr.f32.mxu0 0.0
        %2040 = vmatmul.mubr.f32.gmra.mrb[0].mxu0 %v1822
        %v2041 = vpop.f32.mrb[0].mxu0
        %v2042 = vadd.f32 0.0, %v2041
        %v2043 = vpop.f32.mrb[0].mxu0
        %2044 = vmatprep.mubr.f32.mxu0 0.0
        %2045 = vmatmul.mubr.f32.gmra.mrb[0].mxu0 %v1823
        %v2046 = vpop.f32.mrb[0].mxu0
        %v2047 = vadd.f32 0.0, %v2046
        %v2048 = vpop.f32.mrb[0].mxu0
        %2049 = vmatprep.mubr.f32.mxu0 0.0
        %2050 = vmatmul.mubr.f32.gmra.mrb[0].mxu0 %v1824
        %v2051 = vpop.f32.mrb[0].mxu0
        %v2052 = vadd.f32 0.0, %v2051
        %v2053 = vpop.f32.mrb[0].mxu0
        %2054 = vmatprep.mubr.f32.mxu0 0.0
        %2055 = vmatmul.mubr.f32.gmra.mrb[0].mxu0 %v1825
        %v2056 = vpop.f32.mrb[0].mxu0
        %v2057 = vadd.f32 0.0, %v2056
        %v2058 = vpop.f32.mrb[0].mxu0
        %2059 = vmatprep.mubr.f32.mxu0 0.0
        %2060 = vmatmul.mubr.f32.gmra.mrb[0].mxu0 %v1826
        %v2061 = vpop.f32.mrb[0].mxu0
        %v2062 = vadd.f32 0.0, %v2061
        %v2063 = vpop.f32.mrb[0].mxu0
        %2064 = vmatprep.mubr.f32.mxu0 0.0
        %2065 = vmatmul.mubr.f32.gmra.mrb[0].mxu0 %v1827
        %v2066 = vpop.f32.mrb[0].mxu0
        %v2067 = vadd.f32 0.0, %v2066
        %v2068 = vpop.f32.mrb[0].mxu0
        %2069 = vmatprep.mubr.f32.mxu0 0.0
        %2070 = vmatmul.mubr.f32.gmra.mrb[0].mxu0 %v1828
        %v2071 = vpop.f32.mrb[0].mxu0
        %v2072 = vadd.f32 0.0, %v2071
        %v2073 = vpop.f32.mrb[0].mxu0
        %2074 = vmatprep.mubr.f32.mxu0 0.0
        %2075 = vmatmul.mubr.f32.gmra.mrb[0].mxu0 %v1829
        %v2076 = vpop.f32.mrb[0].mxu0
        %v2077 = vadd.f32 0.0, %v2076
        %v2078 = vpop.f32.mrb[0].mxu0
        %2079 = vmatprep.mubr.f32.mxu0 0.0
        %2080 = vmatmul.mubr.f32.gmra.mrb[0].mxu0 %v1830
        %v2081 = vpop.f32.mrb[0].mxu0
        %v2082 = vadd.f32 0.0, %v2081
        %v2083 = vpop.f32.mrb[0].mxu0
        %2084 = vmatprep.mubr.f32.mxu0 0.0
        %2085 = vmatmul.mubr.f32.gmra.mrb[0].mxu0 %v1831
        %v2086 = vpop.f32.mrb[0].mxu0
        %v2087 = vadd.f32 0.0, %v2086
        %v2088 = vpop.f32.mrb[0].mxu0
        %2089 = vmatprep.mubr.f32.mxu0 0.0
        %2090 = vmatmul.mubr.f32.gmra.mrb[0].mxu0 %v1832
        %v2091 = vpop.f32.mrb[0].mxu0
        %v2092 = vadd.f32 0.0, %v2091
        %v2093 = vpop.f32.mrb[0].mxu0
        %2094 = vmatprep.mubr.f32.mxu0 0.0
        %2095 = vmatmul.mubr.f32.gmra.mrb[0].mxu0 %v1833
        %v2096 = vpop.f32.mrb[0].mxu0
        %v2097 = vadd.f32 0.0, %v2096
        %v2098 = vpop.f32.mrb[0].mxu0
        %2099 = vmatprep.mubr.f32.mxu0 0.0
        %2100 = vmatmul.mubr.f32.gmra.mrb[0].mxu0 %v1834
        %v2101 = vpop.f32.mrb[0].mxu0
        %v2102 = vadd.f32 0.0, %v2101
        %v2103 = vpop.f32.mrb[0].mxu0
        %2104 = vmatprep.mubr.f32.mxu0 0.0
        %2105 = vmatmul.mubr.f32.gmra.mrb[0].mxu0 %v1835
        %v2106 = vpop.f32.mrb[0].mxu0
        %v2107 = vadd.f32 0.0, %v2106
        %v2108 = vpop.f32.mrb[0].mxu0
        %2109 = vdwg.mxu0
        %v2110 = vadd.f32 %v1836, %v1952
        %v2111 = vadd.f32 %v1837, %v1957
        %v2112 = vadd.f32 %v1838, %v1962
        %v2113 = vadd.f32 %v1839, %v1967
        %v2114 = vadd.f32 %v1840, %v1972
        %v2115 = vadd.f32 %v1841, %v1977
        %v2116 = vadd.f32 %v1842, %v1982
        %v2117 = vadd.f32 %v1843, %v1987
        %v2118 = vadd.f32 %v1844, %v1992
        %v2119 = vadd.f32 %v1845, %v1997
        %v2120 = vadd.f32 %v1846, %v2002
        %v2121 = vadd.f32 %v1847, %v2007
        %v2122 = vadd.f32 %v1848, %v2012
        %v2123 = vadd.f32 %v1849, %v2017
        %v2124 = vadd.f32 %v1850, %v2022
        %v2125 = vadd.f32 %v1851, %v2027
        %v2126 = vadd.f32 %v1852, %v2032
        %v2127 = vadd.f32 %v1853, %v2037
        %v2128 = vadd.f32 %v1854, %v2042
        %v2129 = vadd.f32 %v1855, %v2047
        %v2130 = vadd.f32 %v1856, %v2052
        %v2131 = vadd.f32 %v1857, %v2057
        %v2132 = vadd.f32 %v1858, %v2062
        %v2133 = vadd.f32 %v1859, %v2067
        %v2134 = vadd.f32 %v1860, %v2072
        %v2135 = vadd.f32 %v1861, %v2077
        %v2136 = vadd.f32 %v1862, %v2082
        %v2137 = vadd.f32 %v1863, %v2087
        %v2138 = vadd.f32 %v1864, %v2092
        %v2139 = vadd.f32 %v1865, %v2097
        %v2140 = vadd.f32 %v1866, %v2102
        %v2141 = vadd.f32 %v1867, %v2107
        %2142 = vst [vmem:[#allocation2] sm:$0xff] %v2110
        %2143 = vst [vmem:[#allocation2 + $0x8] sm:$0xff] %v2111
        %2144 = vst [vmem:[#allocation2 + $0x10] sm:$0xff] %v2112
        %2145 = vst [vmem:[#allocation2 + $0x18] sm:$0xff] %v2113
        %2146 = vst [vmem:[#allocation2 + $0x20] sm:$0xff] %v2114
        %2147 = vst [vmem:[#allocation2 + $0x28] sm:$0xff] %v2115
        %2148 = vst [vmem:[#allocation2 + $0x30] sm:$0xff] %v2116
        %2149 = vst [vmem:[#allocation2 + $0x38] sm:$0xff] %v2117
        %2150 = vst [vmem:[#allocation2 + $0x40] sm:$0xff] %v2118
        %2151 = vst [vmem:[#allocation2 + $0x48] sm:$0xff] %v2119
        %2152 = vst [vmem:[#allocation2 + $0x50] sm:$0xff] %v2120
        %2153 = vst [vmem:[#allocation2 + $0x58] sm:$0xff] %v2121
        %2154 = vst [vmem:[#allocation2 + $0x60] sm:$0xff] %v2122
        %2155 = vst [vmem:[#allocation2 + $0x68] sm:$0xff] %v2123
        %2156 = vst [vmem:[#allocation2 + $0x70] sm:$0xff] %v2124
        %2157 = vst [vmem:[#allocation2 + $0x78] sm:$0xff] %v2125
        %2158 = vst [vmem:[#allocation2 + $0x80] sm:$0xff] %v2126
        %2159 = vst [vmem:[#allocation2 + $0x88] sm:$0xff] %v2127
        %2160 = vst [vmem:[#allocation2 + $0x90] sm:$0xff] %v2128
        %2161 = vst [vmem:[#allocation2 + $0x98] sm:$0xff] %v2129
        %2162 = vst [vmem:[#allocation2 + $0xa0] sm:$0xff] %v2130
        %2163 = vst [vmem:[#allocation2 + $0xa8] sm:$0xff] %v2131
        %2164 = vst [vmem:[#allocation2 + $0xb0] sm:$0xff] %v2132
        %2165 = vst [vmem:[#allocation2 + $0xb8] sm:$0xff] %v2133
        %2166 = vst [vmem:[#allocation2 + $0xc0] sm:$0xff] %v2134
        %2167 = vst [vmem:[#allocation2 + $0xc8] sm:$0xff] %v2135
        %2168 = vst [vmem:[#allocation2 + $0xd0] sm:$0xff] %v2136
        %2169 = vst [vmem:[#allocation2 + $0xd8] sm:$0xff] %v2137
        %2170 = vst [vmem:[#allocation2 + $0xe0] sm:$0xff] %v2138
        %2171 = vst [vmem:[#allocation2 + $0xe8] sm:$0xff] %v2139
        %2172 = vst [vmem:[#allocation2 + $0xf0] sm:$0xff] %v2140
        %2173 = vst [vmem:[#allocation2 + $0xf8] sm:$0xff] %v2141
        %v2174 = vld [vmem:[%s1433 + $0x2] sm:$0xff]
        %v2175 = vld [vmem:[%s1433 + $0xa] sm:$0xff]
        %v2176 = vld [vmem:[%s1433 + $0x1a] sm:$0xff]
        %v2177 = vld [vmem:[%s1433 + $0x22] sm:$0xff]
        %v2178 = vld [vmem:[%s1433 + $0x32] sm:$0xff]
        %v2179 = vld [vmem:[%s1433 + $0x3a] sm:$0xff]
        %v2180 = vld [vmem:[%s1433 + $0x4a] sm:$0xff]
        %v2181 = vld [vmem:[%s1433 + $0x52] sm:$0xff]
        %v2182 = vld [vmem:[%s1433 + $0x62] sm:$0xff]
        %v2183 = vld [vmem:[%s1433 + $0x6a] sm:$0xff]
        %v2184 = vld [vmem:[%s1433 + $0x7a] sm:$0xff]
        %v2185 = vld [vmem:[%s1433 + $0x82] sm:$0xff]
        %v2186 = vld [vmem:[%s1433 + $0x92] sm:$0xff]
        %v2187 = vld [vmem:[%s1433 + $0x9a] sm:$0xff]
        %v2188 = vld [vmem:[%s1433 + $0xaa] sm:$0xff]
        %v2189 = vld [vmem:[%s1433 + $0xb2] sm:$0xff]
        %v2190 = vld [vmem:[%s1433 + $0xc2] sm:$0xff]
        %v2191 = vld [vmem:[%s1433 + $0xca] sm:$0xff]
        %v2192 = vld [vmem:[%s1433 + $0xda] sm:$0xff]
        %v2193 = vld [vmem:[%s1433 + $0xe2] sm:$0xff]
        %v2194 = vld [vmem:[%s1433 + $0xf2] sm:$0xff]
        %v2195 = vld [vmem:[%s1433 + $0xfa] sm:$0xff]
        %v2196 = vld [vmem:[%s1433 + $0x10a] sm:$0xff]
        %v2197 = vld [vmem:[%s1433 + $0x112] sm:$0xff]
        %v2198 = vld [vmem:[%s1433 + $0x122] sm:$0xff]
        %v2199 = vld [vmem:[%s1433 + $0x12a] sm:$0xff]
        %v2200 = vld [vmem:[%s1433 + $0x13a] sm:$0xff]
        %v2201 = vld [vmem:[%s1433 + $0x142] sm:$0xff]
        %v2202 = vld [vmem:[%s1433 + $0x152] sm:$0xff]
        %v2203 = vld [vmem:[%s1433 + $0x15a] sm:$0xff]
        %v2204 = vld [vmem:[%s1433 + $0x16a] sm:$0xff]
        %v2205 = vld [vmem:[%s1433 + $0x172] sm:$0xff]
        %v2206 = vld [vmem:[#allocation2] sm:$0xff]
        %v2207 = vld [vmem:[#allocation2 + $0x8] sm:$0xff]
        %v2208 = vld [vmem:[#allocation2 + $0x10] sm:$0xff]
        %v2209 = vld [vmem:[#allocation2 + $0x18] sm:$0xff]
        %v2210 = vld [vmem:[#allocation2 + $0x20] sm:$0xff]
        %v2211 = vld [vmem:[#allocation2 + $0x28] sm:$0xff]
        %v2212 = vld [vmem:[#allocation2 + $0x30] sm:$0xff]
        %v2213 = vld [vmem:[#allocation2 + $0x38] sm:$0xff]
        %v2214 = vld [vmem:[#allocation2 + $0x40] sm:$0xff]
        %v2215 = vld [vmem:[#allocation2 + $0x48] sm:$0xff]
        %v2216 = vld [vmem:[#allocation2 + $0x50] sm:$0xff]
        %v2217 = vld [vmem:[#allocation2 + $0x58] sm:$0xff]
        %v2218 = vld [vmem:[#allocation2 + $0x60] sm:$0xff]
        %v2219 = vld [vmem:[#allocation2 + $0x68] sm:$0xff]
        %v2220 = vld [vmem:[#allocation2 + $0x70] sm:$0xff]
        %v2221 = vld [vmem:[#allocation2 + $0x78] sm:$0xff]
        %v2222 = vld [vmem:[#allocation2 + $0x80] sm:$0xff]
        %v2223 = vld [vmem:[#allocation2 + $0x88] sm:$0xff]
        %v2224 = vld [vmem:[#allocation2 + $0x90] sm:$0xff]
        %v2225 = vld [vmem:[#allocation2 + $0x98] sm:$0xff]
        %v2226 = vld [vmem:[#allocation2 + $0xa0] sm:$0xff]
        %v2227 = vld [vmem:[#allocation2 + $0xa8] sm:$0xff]
        %v2228 = vld [vmem:[#allocation2 + $0xb0] sm:$0xff]
        %v2229 = vld [vmem:[#allocation2 + $0xb8] sm:$0xff]
        %v2230 = vld [vmem:[#allocation2 + $0xc0] sm:$0xff]
        %v2231 = vld [vmem:[#allocation2 + $0xc8] sm:$0xff]
        %v2232 = vld [vmem:[#allocation2 + $0xd0] sm:$0xff]
        %v2233 = vld [vmem:[#allocation2 + $0xd8] sm:$0xff]
        %v2234 = vld [vmem:[#allocation2 + $0xe0] sm:$0xff]
        %v2235 = vld [vmem:[#allocation2 + $0xe8] sm:$0xff]
        %v2236 = vld [vmem:[#allocation2 + $0xf0] sm:$0xff]
        %v2237 = vld [vmem:[#allocation2 + $0xf8] sm:$0xff]
        %s2238 = scalar_lea.vmem %s1, 640
        %v2239 = vld [vmem:[%s2238] sm:$0xff]
        %v2240 = vld [vmem:[%s2238 + $0x8] sm:$0xff]
        %v2241 = vld [vmem:[%s2238 + $0x10] sm:$0xff]
        %v2242 = vld [vmem:[%s2238 + $0x18] sm:$0xff]
        %v2243 = vld [vmem:[%s2238 + $0x20] sm:$0xff]
        %v2244 = vld [vmem:[%s2238 + $0x28] sm:$0xff]
        %v2245 = vld [vmem:[%s2238 + $0x30] sm:$0xff]
        %v2246 = vld [vmem:[%s2238 + $0x38] sm:$0xff]
        %v2247 = vld [vmem:[%s2238 + $0x40] sm:$0xff]
        %v2248 = vld [vmem:[%s2238 + $0x48] sm:$0xff]
        %v2249 = vld [vmem:[%s2238 + $0x50] sm:$0xff]
        %v2250 = vld [vmem:[%s2238 + $0x58] sm:$0xff]
        %v2251 = vld [vmem:[%s2238 + $0x60] sm:$0xff]
        %v2252 = vld [vmem:[%s2238 + $0x68] sm:$0xff]
        %v2253 = vld [vmem:[%s2238 + $0x70] sm:$0xff]
        %v2254 = vld [vmem:[%s2238 + $0x78] sm:$0xff]
        %2255 = vmatprep.subr.mxu0 0.0
        %2256 = vmatpush1.msra.mxu0 %v2239
        %2257 = vmatprep.subr.mxu0 0.0
        %2258 = vmatpush1.msra.mxu0 %v2240
        %2259 = vmatprep.subr.mxu0 0.0
        %2260 = vmatpush1.msra.mxu0 %v2241
        %2261 = vmatprep.subr.mxu0 0.0
        %2262 = vmatpush1.msra.mxu0 %v2242
        %2263 = vmatprep.subr.mxu0 0.0
        %2264 = vmatpush1.msra.mxu0 %v2243
        %2265 = vmatprep.subr.mxu0 0.0
        %2266 = vmatpush1.msra.mxu0 %v2244
        %2267 = vmatprep.subr.mxu0 0.0
        %2268 = vmatpush1.msra.mxu0 %v2245
        %2269 = vmatprep.subr.mxu0 0.0
        %2270 = vmatpush1.msra.mxu0 %v2246
        %2271 = vmatprep.subr.mxu0 0.0
        %2272 = vmatpush1.msra.mxu0 %v2247
        %2273 = vmatprep.subr.mxu0 0.0
        %2274 = vmatpush1.msra.mxu0 %v2248
        %2275 = vmatprep.subr.mxu0 0.0
        %2276 = vmatpush1.msra.mxu0 %v2249
        %2277 = vmatprep.subr.mxu0 0.0
        %2278 = vmatpush1.msra.mxu0 %v2250
        %2279 = vmatprep.subr.mxu0 0.0
        %2280 = vmatpush1.msra.mxu0 %v2251
        %2281 = vmatprep.subr.mxu0 0.0
        %2282 = vmatpush1.msra.mxu0 %v2252
        %2283 = vmatprep.subr.mxu0 0.0
        %2284 = vmatpush1.msra.mxu0 %v2253
        %2285 = vmatprep.subr.mxu0 0.0
        %2286 = vmatpush1.msra.mxu0 %v2254
        %2287 = vmatprep.subr.mxu0 0.0
        %2288 = vmatpush1.msra.mxu0 0.0
        %2289 = vmatprep.subr.mxu0 0.0
        %2290 = vmatpush1.msra.mxu0 0.0
        %2291 = vmatprep.subr.mxu0 0.0
        %2292 = vmatpush1.msra.mxu0 0.0
        %2293 = vmatprep.subr.mxu0 0.0
        %2294 = vmatpush1.msra.mxu0 0.0
        %2295 = vmatprep.subr.mxu0 0.0
        %2296 = vmatpush1.msra.mxu0 0.0
        %2297 = vmatprep.subr.mxu0 0.0
        %2298 = vmatpush1.msra.mxu0 0.0
        %2299 = vmatprep.subr.mxu0 0.0
        %2300 = vmatpush1.msra.mxu0 0.0
        %2301 = vmatprep.subr.mxu0 0.0
        %2302 = vmatpush1.msra.mxu0 0.0
        %2303 = vmatprep.subr.mxu0 0.0
        %2304 = vmatpush1.msra.mxu0 0.0
        %2305 = vmatprep.subr.mxu0 0.0
        %2306 = vmatpush1.msra.mxu0 0.0
        %2307 = vmatprep.subr.mxu0 0.0
        %2308 = vmatpush1.msra.mxu0 0.0
        %2309 = vmatprep.subr.mxu0 0.0
        %2310 = vmatpush1.msra.mxu0 0.0
        %2311 = vmatprep.subr.mxu0 0.0
        %2312 = vmatpush1.msra.mxu0 0.0
        %2313 = vmatprep.subr.mxu0 0.0
        %2314 = vmatpush1.msra.mxu0 0.0
        %2315 = vmatprep.subr.mxu0 0.0
        %2316 = vmatpush1.msra.mxu0 0.0
        %2317 = vmatprep.subr.mxu0 0.0
        %2318 = vmatpush1.msra.mxu0 0.0
        %2319 = vmatprep.mubr.f32.mxu0 0.0
        %2320 = vmatmul.mubr.f32.gmra.mrb[0].mxu0 %v2174
        %v2321 = vpop.f32.mrb[0].mxu0
        %v2322 = vadd.f32 0.0, %v2321
        %v2323 = vpop.f32.mrb[0].mxu0
        %2324 = vmatprep.mubr.f32.mxu0 0.0
        %2325 = vmatmul.mubr.f32.gmra.mrb[0].mxu0 %v2175
        %v2326 = vpop.f32.mrb[0].mxu0
        %v2327 = vadd.f32 0.0, %v2326
        %v2328 = vpop.f32.mrb[0].mxu0
        %2329 = vmatprep.mubr.f32.mxu0 0.0
        %2330 = vmatmul.mubr.f32.gmra.mrb[0].mxu0 %v2176
        %v2331 = vpop.f32.mrb[0].mxu0
        %v2332 = vadd.f32 0.0, %v2331
        %v2333 = vpop.f32.mrb[0].mxu0
        %2334 = vmatprep.mubr.f32.mxu0 0.0
        %2335 = vmatmul.mubr.f32.gmra.mrb[0].mxu0 %v2177
        %v2336 = vpop.f32.mrb[0].mxu0
        %v2337 = vadd.f32 0.0, %v2336
        %v2338 = vpop.f32.mrb[0].mxu0
        %2339 = vmatprep.mubr.f32.mxu0 0.0
        %2340 = vmatmul.mubr.f32.gmra.mrb[0].mxu0 %v2178
        %v2341 = vpop.f32.mrb[0].mxu0
        %v2342 = vadd.f32 0.0, %v2341
        %v2343 = vpop.f32.mrb[0].mxu0
        %2344 = vmatprep.mubr.f32.mxu0 0.0
        %2345 = vmatmul.mubr.f32.gmra.mrb[0].mxu0 %v2179
        %v2346 = vpop.f32.mrb[0].mxu0
        %v2347 = vadd.f32 0.0, %v2346
        %v2348 = vpop.f32.mrb[0].mxu0
        %2349 = vmatprep.mubr.f32.mxu0 0.0
        %2350 = vmatmul.mubr.f32.gmra.mrb[0].mxu0 %v2180
        %v2351 = vpop.f32.mrb[0].mxu0
        %v2352 = vadd.f32 0.0, %v2351
        %v2353 = vpop.f32.mrb[0].mxu0
        %2354 = vmatprep.mubr.f32.mxu0 0.0
        %2355 = vmatmul.mubr.f32.gmra.mrb[0].mxu0 %v2181
        %v2356 = vpop.f32.mrb[0].mxu0
        %v2357 = vadd.f32 0.0, %v2356
        %v2358 = vpop.f32.mrb[0].mxu0
        %2359 = vmatprep.mubr.f32.mxu0 0.0
        %2360 = vmatmul.mubr.f32.gmra.mrb[0].mxu0 %v2182
        %v2361 = vpop.f32.mrb[0].mxu0
        %v2362 = vadd.f32 0.0, %v2361
        %v2363 = vpop.f32.mrb[0].mxu0
        %2364 = vmatprep.mubr.f32.mxu0 0.0
        %2365 = vmatmul.mubr.f32.gmra.mrb[0].mxu0 %v2183
        %v2366 = vpop.f32.mrb[0].mxu0
        %v2367 = vadd.f32 0.0, %v2366
        %v2368 = vpop.f32.mrb[0].mxu0
        %2369 = vmatprep.mubr.f32.mxu0 0.0
        %2370 = vmatmul.mubr.f32.gmra.mrb[0].mxu0 %v2184
        %v2371 = vpop.f32.mrb[0].mxu0
        %v2372 = vadd.f32 0.0, %v2371
        %v2373 = vpop.f32.mrb[0].mxu0
        %2374 = vmatprep.mubr.f32.mxu0 0.0
        %2375 = vmatmul.mubr.f32.gmra.mrb[0].mxu0 %v2185
        %v2376 = vpop.f32.mrb[0].mxu0
        %v2377 = vadd.f32 0.0, %v2376
        %v2378 = vpop.f32.mrb[0].mxu0
        %2379 = vmatprep.mubr.f32.mxu0 0.0
        %2380 = vmatmul.mubr.f32.gmra.mrb[0].mxu0 %v2186
        %v2381 = vpop.f32.mrb[0].mxu0
        %v2382 = vadd.f32 0.0, %v2381
        %v2383 = vpop.f32.mrb[0].mxu0
        %2384 = vmatprep.mubr.f32.mxu0 0.0
        %2385 = vmatmul.mubr.f32.gmra.mrb[0].mxu0 %v2187
        %v2386 = vpop.f32.mrb[0].mxu0
        %v2387 = vadd.f32 0.0, %v2386
        %v2388 = vpop.f32.mrb[0].mxu0
        %2389 = vmatprep.mubr.f32.mxu0 0.0
        %2390 = vmatmul.mubr.f32.gmra.mrb[0].mxu0 %v2188
        %v2391 = vpop.f32.mrb[0].mxu0
        %v2392 = vadd.f32 0.0, %v2391
        %v2393 = vpop.f32.mrb[0].mxu0
        %2394 = vmatprep.mubr.f32.mxu0 0.0
        %2395 = vmatmul.mubr.f32.gmra.mrb[0].mxu0 %v2189
        %v2396 = vpop.f32.mrb[0].mxu0
        %v2397 = vadd.f32 0.0, %v2396
        %v2398 = vpop.f32.mrb[0].mxu0
        %2399 = vmatprep.mubr.f32.mxu0 0.0
        %2400 = vmatmul.mubr.f32.gmra.mrb[0].mxu0 %v2190
        %v2401 = vpop.f32.mrb[0].mxu0
        %v2402 = vadd.f32 0.0, %v2401
        %v2403 = vpop.f32.mrb[0].mxu0
        %2404 = vmatprep.mubr.f32.mxu0 0.0
        %2405 = vmatmul.mubr.f32.gmra.mrb[0].mxu0 %v2191
        %v2406 = vpop.f32.mrb[0].mxu0
        %v2407 = vadd.f32 0.0, %v2406
        %v2408 = vpop.f32.mrb[0].mxu0
        %2409 = vmatprep.mubr.f32.mxu0 0.0
        %2410 = vmatmul.mubr.f32.gmra.mrb[0].mxu0 %v2192
        %v2411 = vpop.f32.mrb[0].mxu0
        %v2412 = vadd.f32 0.0, %v2411
        %v2413 = vpop.f32.mrb[0].mxu0
        %2414 = vmatprep.mubr.f32.mxu0 0.0
        %2415 = vmatmul.mubr.f32.gmra.mrb[0].mxu0 %v2193
        %v2416 = vpop.f32.mrb[0].mxu0
        %v2417 = vadd.f32 0.0, %v2416
        %v2418 = vpop.f32.mrb[0].mxu0
        %2419 = vmatprep.mubr.f32.mxu0 0.0
        %2420 = vmatmul.mubr.f32.gmra.mrb[0].mxu0 %v2194
        %v2421 = vpop.f32.mrb[0].mxu0
        %v2422 = vadd.f32 0.0, %v2421
        %v2423 = vpop.f32.mrb[0].mxu0
        %2424 = vmatprep.mubr.f32.mxu0 0.0
        %2425 = vmatmul.mubr.f32.gmra.mrb[0].mxu0 %v2195
        %v2426 = vpop.f32.mrb[0].mxu0
        %v2427 = vadd.f32 0.0, %v2426
        %v2428 = vpop.f32.mrb[0].mxu0
        %2429 = vmatprep.mubr.f32.mxu0 0.0
        %2430 = vmatmul.mubr.f32.gmra.mrb[0].mxu0 %v2196
        %v2431 = vpop.f32.mrb[0].mxu0
        %v2432 = vadd.f32 0.0, %v2431
        %v2433 = vpop.f32.mrb[0].mxu0
        %2434 = vmatprep.mubr.f32.mxu0 0.0
        %2435 = vmatmul.mubr.f32.gmra.mrb[0].mxu0 %v2197
        %v2436 = vpop.f32.mrb[0].mxu0
        %v2437 = vadd.f32 0.0, %v2436
        %v2438 = vpop.f32.mrb[0].mxu0
        %2439 = vmatprep.mubr.f32.mxu0 0.0
        %2440 = vmatmul.mubr.f32.gmra.mrb[0].mxu0 %v2198
        %v2441 = vpop.f32.mrb[0].mxu0
        %v2442 = vadd.f32 0.0, %v2441
        %v2443 = vpop.f32.mrb[0].mxu0
        %2444 = vmatprep.mubr.f32.mxu0 0.0
        %2445 = vmatmul.mubr.f32.gmra.mrb[0].mxu0 %v2199
        %v2446 = vpop.f32.mrb[0].mxu0
        %v2447 = vadd.f32 0.0, %v2446
        %v2448 = vpop.f32.mrb[0].mxu0
        %2449 = vmatprep.mubr.f32.mxu0 0.0
        %2450 = vmatmul.mubr.f32.gmra.mrb[0].mxu0 %v2200
        %v2451 = vpop.f32.mrb[0].mxu0
        %v2452 = vadd.f32 0.0, %v2451
        %v2453 = vpop.f32.mrb[0].mxu0
        %2454 = vmatprep.mubr.f32.mxu0 0.0
        %2455 = vmatmul.mubr.f32.gmra.mrb[0].mxu0 %v2201
        %v2456 = vpop.f32.mrb[0].mxu0
        %v2457 = vadd.f32 0.0, %v2456
        %v2458 = vpop.f32.mrb[0].mxu0
        %2459 = vmatprep.mubr.f32.mxu0 0.0
        %2460 = vmatmul.mubr.f32.gmra.mrb[0].mxu0 %v2202
        %v2461 = vpop.f32.mrb[0].mxu0
        %v2462 = vadd.f32 0.0, %v2461
        %v2463 = vpop.f32.mrb[0].mxu0
        %2464 = vmatprep.mubr.f32.mxu0 0.0
        %2465 = vmatmul.mubr.f32.gmra.mrb[0].mxu0 %v2203
        %v2466 = vpop.f32.mrb[0].mxu0
        %v2467 = vadd.f32 0.0, %v2466
        %v2468 = vpop.f32.mrb[0].mxu0
        %2469 = vmatprep.mubr.f32.mxu0 0.0
        %2470 = vmatmul.mubr.f32.gmra.mrb[0].mxu0 %v2204
        %v2471 = vpop.f32.mrb[0].mxu0
        %v2472 = vadd.f32 0.0, %v2471
        %v2473 = vpop.f32.mrb[0].mxu0
        %2474 = vmatprep.mubr.f32.mxu0 0.0
        %2475 = vmatmul.mubr.f32.gmra.mrb[0].mxu0 %v2205
        %v2476 = vpop.f32.mrb[0].mxu0
        %v2477 = vadd.f32 0.0, %v2476
        %v2478 = vpop.f32.mrb[0].mxu0
        %2479 = vdwg.mxu0
        %v2480 = vadd.f32 %v2206, %v2322
        %v2481 = vadd.f32 %v2207, %v2327
        %v2482 = vadd.f32 %v2208, %v2332
        %v2483 = vadd.f32 %v2209, %v2337
        %v2484 = vadd.f32 %v2210, %v2342
        %v2485 = vadd.f32 %v2211, %v2347
        %v2486 = vadd.f32 %v2212, %v2352
        %v2487 = vadd.f32 %v2213, %v2357
        %v2488 = vadd.f32 %v2214, %v2362
        %v2489 = vadd.f32 %v2215, %v2367
        %v2490 = vadd.f32 %v2216, %v2372
        %v2491 = vadd.f32 %v2217, %v2377
        %v2492 = vadd.f32 %v2218, %v2382
        %v2493 = vadd.f32 %v2219, %v2387
        %v2494 = vadd.f32 %v2220, %v2392
        %v2495 = vadd.f32 %v2221, %v2397
        %v2496 = vadd.f32 %v2222, %v2402
        %v2497 = vadd.f32 %v2223, %v2407
        %v2498 = vadd.f32 %v2224, %v2412
        %v2499 = vadd.f32 %v2225, %v2417
        %v2500 = vadd.f32 %v2226, %v2422
        %v2501 = vadd.f32 %v2227, %v2427
        %v2502 = vadd.f32 %v2228, %v2432
        %v2503 = vadd.f32 %v2229, %v2437
        %v2504 = vadd.f32 %v2230, %v2442
        %v2505 = vadd.f32 %v2231, %v2447
        %v2506 = vadd.f32 %v2232, %v2452
        %v2507 = vadd.f32 %v2233, %v2457
        %v2508 = vadd.f32 %v2234, %v2462
        %v2509 = vadd.f32 %v2235, %v2467
        %v2510 = vadd.f32 %v2236, %v2472
        %v2511 = vadd.f32 %v2237, %v2477
        %2512 = vst [vmem:[#allocation2] sm:$0xff] %v2480
        %2513 = vst [vmem:[#allocation2 + $0x8] sm:$0xff] %v2481
        %2514 = vst [vmem:[#allocation2 + $0x10] sm:$0xff] %v2482
        %2515 = vst [vmem:[#allocation2 + $0x18] sm:$0xff] %v2483
        %2516 = vst [vmem:[#allocation2 + $0x20] sm:$0xff] %v2484
        %2517 = vst [vmem:[#allocation2 + $0x28] sm:$0xff] %v2485
        %2518 = vst [vmem:[#allocation2 + $0x30] sm:$0xff] %v2486
        %2519 = vst [vmem:[#allocation2 + $0x38] sm:$0xff] %v2487
        %2520 = vst [vmem:[#allocation2 + $0x40] sm:$0xff] %v2488
        %2521 = vst [vmem:[#allocation2 + $0x48] sm:$0xff] %v2489
        %2522 = vst [vmem:[#allocation2 + $0x50] sm:$0xff] %v2490
        %2523 = vst [vmem:[#allocation2 + $0x58] sm:$0xff] %v2491
        %2524 = vst [vmem:[#allocation2 + $0x60] sm:$0xff] %v2492
        %2525 = vst [vmem:[#allocation2 + $0x68] sm:$0xff] %v2493
        %2526 = vst [vmem:[#allocation2 + $0x70] sm:$0xff] %v2494
        %2527 = vst [vmem:[#allocation2 + $0x78] sm:$0xff] %v2495
        %2528 = vst [vmem:[#allocation2 + $0x80] sm:$0xff] %v2496
        %2529 = vst [vmem:[#allocation2 + $0x88] sm:$0xff] %v2497
        %2530 = vst [vmem:[#allocation2 + $0x90] sm:$0xff] %v2498
        %2531 = vst [vmem:[#allocation2 + $0x98] sm:$0xff] %v2499
        %2532 = vst [vmem:[#allocation2 + $0xa0] sm:$0xff] %v2500
        %2533 = vst [vmem:[#allocation2 + $0xa8] sm:$0xff] %v2501
        %2534 = vst [vmem:[#allocation2 + $0xb0] sm:$0xff] %v2502
        %2535 = vst [vmem:[#allocation2 + $0xb8] sm:$0xff] %v2503
        %2536 = vst [vmem:[#allocation2 + $0xc0] sm:$0xff] %v2504
        %2537 = vst [vmem:[#allocation2 + $0xc8] sm:$0xff] %v2505
        %2538 = vst [vmem:[#allocation2 + $0xd0] sm:$0xff] %v2506
        %2539 = vst [vmem:[#allocation2 + $0xd8] sm:$0xff] %v2507
        %2540 = vst [vmem:[#allocation2 + $0xe0] sm:$0xff] %v2508
        %2541 = vst [vmem:[#allocation2 + $0xe8] sm:$0xff] %v2509
        %2542 = vst [vmem:[#allocation2 + $0xf0] sm:$0xff] %v2510
        %2543 = vst [vmem:[#allocation2 + $0xf8] sm:$0xff] %v2511
        %s2544 = scalar_lea.vmem %s291, 48
        %v2545 = vld [vmem:[%s2544] sm:$0xff]
        %v2546 = vld [vmem:[%s2544 + $0x8] sm:$0xff]
        %v2547 = vld [vmem:[%s2544 + $0x18] sm:$0xff]
        %v2548 = vld [vmem:[%s2544 + $0x20] sm:$0xff]
        %v2549 = vld [vmem:[%s2544 + $0x30] sm:$0xff]
        %v2550 = vld [vmem:[%s2544 + $0x38] sm:$0xff]
        %v2551 = vld [vmem:[%s2544 + $0x48] sm:$0xff]
        %v2552 = vld [vmem:[%s2544 + $0x50] sm:$0xff]
        %v2553 = vld [vmem:[%s2544 + $0x60] sm:$0xff]
        %v2554 = vld [vmem:[%s2544 + $0x68] sm:$0xff]
        %v2555 = vld [vmem:[%s2544 + $0x78] sm:$0xff]
        %v2556 = vld [vmem:[%s2544 + $0x80] sm:$0xff]
        %v2557 = vld [vmem:[%s2544 + $0x90] sm:$0xff]
        %v2558 = vld [vmem:[%s2544 + $0x98] sm:$0xff]
        %v2559 = vld [vmem:[%s2544 + $0xa8] sm:$0xff]
        %v2560 = vld [vmem:[%s2544 + $0xb0] sm:$0xff]
        %v2561 = vld [vmem:[%s2544 + $0xc0] sm:$0xff]
        %v2562 = vld [vmem:[%s2544 + $0xc8] sm:$0xff]
        %v2563 = vld [vmem:[%s2544 + $0xd8] sm:$0xff]
        %v2564 = vld [vmem:[%s2544 + $0xe0] sm:$0xff]
        %v2565 = vld [vmem:[%s2544 + $0xf0] sm:$0xff]
        %v2566 = vld [vmem:[%s2544 + $0xf8] sm:$0xff]
        %v2567 = vld [vmem:[%s2544 + $0x108] sm:$0xff]
        %v2568 = vld [vmem:[%s2544 + $0x110] sm:$0xff]
        %v2569 = vld [vmem:[%s2544 + $0x120] sm:$0xff]
        %v2570 = vld [vmem:[%s2544 + $0x128] sm:$0xff]
        %v2571 = vld [vmem:[%s2544 + $0x138] sm:$0xff]
        %v2572 = vld [vmem:[%s2544 + $0x140] sm:$0xff]
        %v2573 = vld [vmem:[%s2544 + $0x150] sm:$0xff]
        %v2574 = vld [vmem:[%s2544 + $0x158] sm:$0xff]
        %v2575 = vld [vmem:[%s2544 + $0x168] sm:$0xff]
        %v2576 = vld [vmem:[%s2544 + $0x170] sm:$0xff]
        %v2577 = vld [vmem:[#allocation2] sm:$0xff]
        %v2578 = vld [vmem:[#allocation2 + $0x8] sm:$0xff]
        %v2579 = vld [vmem:[#allocation2 + $0x10] sm:$0xff]
        %v2580 = vld [vmem:[#allocation2 + $0x18] sm:$0xff]
        %v2581 = vld [vmem:[#allocation2 + $0x20] sm:$0xff]
        %v2582 = vld [vmem:[#allocation2 + $0x28] sm:$0xff]
        %v2583 = vld [vmem:[#allocation2 + $0x30] sm:$0xff]
        %v2584 = vld [vmem:[#allocation2 + $0x38] sm:$0xff]
        %v2585 = vld [vmem:[#allocation2 + $0x40] sm:$0xff]
        %v2586 = vld [vmem:[#allocation2 + $0x48] sm:$0xff]
        %v2587 = vld [vmem:[#allocation2 + $0x50] sm:$0xff]
        %v2588 = vld [vmem:[#allocation2 + $0x58] sm:$0xff]
        %v2589 = vld [vmem:[#allocation2 + $0x60] sm:$0xff]
        %v2590 = vld [vmem:[#allocation2 + $0x68] sm:$0xff]
        %v2591 = vld [vmem:[#allocation2 + $0x70] sm:$0xff]
        %v2592 = vld [vmem:[#allocation2 + $0x78] sm:$0xff]
        %v2593 = vld [vmem:[#allocation2 + $0x80] sm:$0xff]
        %v2594 = vld [vmem:[#allocation2 + $0x88] sm:$0xff]
        %v2595 = vld [vmem:[#allocation2 + $0x90] sm:$0xff]
        %v2596 = vld [vmem:[#allocation2 + $0x98] sm:$0xff]
        %v2597 = vld [vmem:[#allocation2 + $0xa0] sm:$0xff]
        %v2598 = vld [vmem:[#allocation2 + $0xa8] sm:$0xff]
        %v2599 = vld [vmem:[#allocation2 + $0xb0] sm:$0xff]
        %v2600 = vld [vmem:[#allocation2 + $0xb8] sm:$0xff]
        %v2601 = vld [vmem:[#allocation2 + $0xc0] sm:$0xff]
        %v2602 = vld [vmem:[#allocation2 + $0xc8] sm:$0xff]
        %v2603 = vld [vmem:[#allocation2 + $0xd0] sm:$0xff]
        %v2604 = vld [vmem:[#allocation2 + $0xd8] sm:$0xff]
        %v2605 = vld [vmem:[#allocation2 + $0xe0] sm:$0xff]
        %v2606 = vld [vmem:[#allocation2 + $0xe8] sm:$0xff]
        %v2607 = vld [vmem:[#allocation2 + $0xf0] sm:$0xff]
        %v2608 = vld [vmem:[#allocation2 + $0xf8] sm:$0xff]
        %s2609 = scalar_lea.vmem %s1, 768
        %v2610 = vld [vmem:[%s2609] sm:$0xff]
        %v2611 = vld [vmem:[%s2609 + $0x8] sm:$0xff]
        %v2612 = vld [vmem:[%s2609 + $0x10] sm:$0xff]
        %v2613 = vld [vmem:[%s2609 + $0x18] sm:$0xff]
        %v2614 = vld [vmem:[%s2609 + $0x20] sm:$0xff]
        %v2615 = vld [vmem:[%s2609 + $0x28] sm:$0xff]
        %v2616 = vld [vmem:[%s2609 + $0x30] sm:$0xff]
        %v2617 = vld [vmem:[%s2609 + $0x38] sm:$0xff]
        %v2618 = vld [vmem:[%s2609 + $0x40] sm:$0xff]
        %v2619 = vld [vmem:[%s2609 + $0x48] sm:$0xff]
        %v2620 = vld [vmem:[%s2609 + $0x50] sm:$0xff]
        %v2621 = vld [vmem:[%s2609 + $0x58] sm:$0xff]
        %v2622 = vld [vmem:[%s2609 + $0x60] sm:$0xff]
        %v2623 = vld [vmem:[%s2609 + $0x68] sm:$0xff]
        %v2624 = vld [vmem:[%s2609 + $0x70] sm:$0xff]
        %v2625 = vld [vmem:[%s2609 + $0x78] sm:$0xff]
        %2626 = vmatprep.subr.mxu0 0.0
        %2627 = vmatpush1.msra.mxu0 %v2610
        %2628 = vmatprep.subr.mxu0 0.0
        %2629 = vmatpush1.msra.mxu0 %v2611
        %2630 = vmatprep.subr.mxu0 0.0
        %2631 = vmatpush1.msra.mxu0 %v2612
        %2632 = vmatprep.subr.mxu0 0.0
        %2633 = vmatpush1.msra.mxu0 %v2613
        %2634 = vmatprep.subr.mxu0 0.0
        %2635 = vmatpush1.msra.mxu0 %v2614
        %2636 = vmatprep.subr.mxu0 0.0
        %2637 = vmatpush1.msra.mxu0 %v2615
        %2638 = vmatprep.subr.mxu0 0.0
        %2639 = vmatpush1.msra.mxu0 %v2616
        %2640 = vmatprep.subr.mxu0 0.0
        %2641 = vmatpush1.msra.mxu0 %v2617
        %2642 = vmatprep.subr.mxu0 0.0
        %2643 = vmatpush1.msra.mxu0 %v2618
        %2644 = vmatprep.subr.mxu0 0.0
        %2645 = vmatpush1.msra.mxu0 %v2619
        %2646 = vmatprep.subr.mxu0 0.0
        %2647 = vmatpush1.msra.mxu0 %v2620
        %2648 = vmatprep.subr.mxu0 0.0
        %2649 = vmatpush1.msra.mxu0 %v2621
        %2650 = vmatprep.subr.mxu0 0.0
        %2651 = vmatpush1.msra.mxu0 %v2622
        %2652 = vmatprep.subr.mxu0 0.0
        %2653 = vmatpush1.msra.mxu0 %v2623
        %2654 = vmatprep.subr.mxu0 0.0
        %2655 = vmatpush1.msra.mxu0 %v2624
        %2656 = vmatprep.subr.mxu0 0.0
        %2657 = vmatpush1.msra.mxu0 %v2625
        %2658 = vmatprep.subr.mxu0 0.0
        %2659 = vmatpush1.msra.mxu0 0.0
        %2660 = vmatprep.subr.mxu0 0.0
        %2661 = vmatpush1.msra.mxu0 0.0
        %2662 = vmatprep.subr.mxu0 0.0
        %2663 = vmatpush1.msra.mxu0 0.0
        %2664 = vmatprep.subr.mxu0 0.0
        %2665 = vmatpush1.msra.mxu0 0.0
        %2666 = vmatprep.subr.mxu0 0.0
        %2667 = vmatpush1.msra.mxu0 0.0
        %2668 = vmatprep.subr.mxu0 0.0
        %2669 = vmatpush1.msra.mxu0 0.0
        %2670 = vmatprep.subr.mxu0 0.0
        %2671 = vmatpush1.msra.mxu0 0.0
        %2672 = vmatprep.subr.mxu0 0.0
        %2673 = vmatpush1.msra.mxu0 0.0
        %2674 = vmatprep.subr.mxu0 0.0
        %2675 = vmatpush1.msra.mxu0 0.0
        %2676 = vmatprep.subr.mxu0 0.0
        %2677 = vmatpush1.msra.mxu0 0.0
        %2678 = vmatprep.subr.mxu0 0.0
        %2679 = vmatpush1.msra.mxu0 0.0
        %2680 = vmatprep.subr.mxu0 0.0
        %2681 = vmatpush1.msra.mxu0 0.0
        %2682 = vmatprep.subr.mxu0 0.0
        %2683 = vmatpush1.msra.mxu0 0.0
        %2684 = vmatprep.subr.mxu0 0.0
        %2685 = vmatpush1.msra.mxu0 0.0
        %2686 = vmatprep.subr.mxu0 0.0
        %2687 = vmatpush1.msra.mxu0 0.0
        %2688 = vmatprep.subr.mxu0 0.0
        %2689 = vmatpush1.msra.mxu0 0.0
        %2690 = vmatprep.mubr.f32.mxu0 0.0
        %2691 = vmatmul.mubr.f32.gmra.mrb[0].mxu0 %v2545
        %v2692 = vpop.f32.mrb[0].mxu0
        %v2693 = vadd.f32 0.0, %v2692
        %v2694 = vpop.f32.mrb[0].mxu0
        %2695 = vmatprep.mubr.f32.mxu0 0.0
        %2696 = vmatmul.mubr.f32.gmra.mrb[0].mxu0 %v2546
        %v2697 = vpop.f32.mrb[0].mxu0
        %v2698 = vadd.f32 0.0, %v2697
        %v2699 = vpop.f32.mrb[0].mxu0
        %2700 = vmatprep.mubr.f32.mxu0 0.0
        %2701 = vmatmul.mubr.f32.gmra.mrb[0].mxu0 %v2547
        %v2702 = vpop.f32.mrb[0].mxu0
        %v2703 = vadd.f32 0.0, %v2702
        %v2704 = vpop.f32.mrb[0].mxu0
        %2705 = vmatprep.mubr.f32.mxu0 0.0
        %2706 = vmatmul.mubr.f32.gmra.mrb[0].mxu0 %v2548
        %v2707 = vpop.f32.mrb[0].mxu0
        %v2708 = vadd.f32 0.0, %v2707
        %v2709 = vpop.f32.mrb[0].mxu0
        %2710 = vmatprep.mubr.f32.mxu0 0.0
        %2711 = vmatmul.mubr.f32.gmra.mrb[0].mxu0 %v2549
        %v2712 = vpop.f32.mrb[0].mxu0
        %v2713 = vadd.f32 0.0, %v2712
        %v2714 = vpop.f32.mrb[0].mxu0
        %2715 = vmatprep.mubr.f32.mxu0 0.0
        %2716 = vmatmul.mubr.f32.gmra.mrb[0].mxu0 %v2550
        %v2717 = vpop.f32.mrb[0].mxu0
        %v2718 = vadd.f32 0.0, %v2717
        %v2719 = vpop.f32.mrb[0].mxu0
        %2720 = vmatprep.mubr.f32.mxu0 0.0
        %2721 = vmatmul.mubr.f32.gmra.mrb[0].mxu0 %v2551
        %v2722 = vpop.f32.mrb[0].mxu0
        %v2723 = vadd.f32 0.0, %v2722
        %v2724 = vpop.f32.mrb[0].mxu0
        %2725 = vmatprep.mubr.f32.mxu0 0.0
        %2726 = vmatmul.mubr.f32.gmra.mrb[0].mxu0 %v2552
        %v2727 = vpop.f32.mrb[0].mxu0
        %v2728 = vadd.f32 0.0, %v2727
        %v2729 = vpop.f32.mrb[0].mxu0
        %2730 = vmatprep.mubr.f32.mxu0 0.0
        %2731 = vmatmul.mubr.f32.gmra.mrb[0].mxu0 %v2553
        %v2732 = vpop.f32.mrb[0].mxu0
        %v2733 = vadd.f32 0.0, %v2732
        %v2734 = vpop.f32.mrb[0].mxu0
        %2735 = vmatprep.mubr.f32.mxu0 0.0
        %2736 = vmatmul.mubr.f32.gmra.mrb[0].mxu0 %v2554
        %v2737 = vpop.f32.mrb[0].mxu0
        %v2738 = vadd.f32 0.0, %v2737
        %v2739 = vpop.f32.mrb[0].mxu0
        %2740 = vmatprep.mubr.f32.mxu0 0.0
        %2741 = vmatmul.mubr.f32.gmra.mrb[0].mxu0 %v2555
        %v2742 = vpop.f32.mrb[0].mxu0
        %v2743 = vadd.f32 0.0, %v2742
        %v2744 = vpop.f32.mrb[0].mxu0
        %2745 = vmatprep.mubr.f32.mxu0 0.0
        %2746 = vmatmul.mubr.f32.gmra.mrb[0].mxu0 %v2556
        %v2747 = vpop.f32.mrb[0].mxu0
        %v2748 = vadd.f32 0.0, %v2747
        %v2749 = vpop.f32.mrb[0].mxu0
        %2750 = vmatprep.mubr.f32.mxu0 0.0
        %2751 = vmatmul.mubr.f32.gmra.mrb[0].mxu0 %v2557
        %v2752 = vpop.f32.mrb[0].mxu0
        %v2753 = vadd.f32 0.0, %v2752
        %v2754 = vpop.f32.mrb[0].mxu0
        %2755 = vmatprep.mubr.f32.mxu0 0.0
        %2756 = vmatmul.mubr.f32.gmra.mrb[0].mxu0 %v2558
        %v2757 = vpop.f32.mrb[0].mxu0
        %v2758 = vadd.f32 0.0, %v2757
        %v2759 = vpop.f32.mrb[0].mxu0
        %2760 = vmatprep.mubr.f32.mxu0 0.0
        %2761 = vmatmul.mubr.f32.gmra.mrb[0].mxu0 %v2559
        %v2762 = vpop.f32.mrb[0].mxu0
        %v2763 = vadd.f32 0.0, %v2762
        %v2764 = vpop.f32.mrb[0].mxu0
        %2765 = vmatprep.mubr.f32.mxu0 0.0
        %2766 = vmatmul.mubr.f32.gmra.mrb[0].mxu0 %v2560
        %v2767 = vpop.f32.mrb[0].mxu0
        %v2768 = vadd.f32 0.0, %v2767
        %v2769 = vpop.f32.mrb[0].mxu0
        %2770 = vmatprep.mubr.f32.mxu0 0.0
        %2771 = vmatmul.mubr.f32.gmra.mrb[0].mxu0 %v2561
        %v2772 = vpop.f32.mrb[0].mxu0
        %v2773 = vadd.f32 0.0, %v2772
        %v2774 = vpop.f32.mrb[0].mxu0
        %2775 = vmatprep.mubr.f32.mxu0 0.0
        %2776 = vmatmul.mubr.f32.gmra.mrb[0].mxu0 %v2562
        %v2777 = vpop.f32.mrb[0].mxu0
        %v2778 = vadd.f32 0.0, %v2777
        %v2779 = vpop.f32.mrb[0].mxu0
        %2780 = vmatprep.mubr.f32.mxu0 0.0
        %2781 = vmatmul.mubr.f32.gmra.mrb[0].mxu0 %v2563
        %v2782 = vpop.f32.mrb[0].mxu0
        %v2783 = vadd.f32 0.0, %v2782
        %v2784 = vpop.f32.mrb[0].mxu0
        %2785 = vmatprep.mubr.f32.mxu0 0.0
        %2786 = vmatmul.mubr.f32.gmra.mrb[0].mxu0 %v2564
        %v2787 = vpop.f32.mrb[0].mxu0
        %v2788 = vadd.f32 0.0, %v2787
        %v2789 = vpop.f32.mrb[0].mxu0
        %2790 = vmatprep.mubr.f32.mxu0 0.0
        %2791 = vmatmul.mubr.f32.gmra.mrb[0].mxu0 %v2565
        %v2792 = vpop.f32.mrb[0].mxu0
        %v2793 = vadd.f32 0.0, %v2792
        %v2794 = vpop.f32.mrb[0].mxu0
        %2795 = vmatprep.mubr.f32.mxu0 0.0
        %2796 = vmatmul.mubr.f32.gmra.mrb[0].mxu0 %v2566
        %v2797 = vpop.f32.mrb[0].mxu0
        %v2798 = vadd.f32 0.0, %v2797
        %v2799 = vpop.f32.mrb[0].mxu0
        %2800 = vmatprep.mubr.f32.mxu0 0.0
        %2801 = vmatmul.mubr.f32.gmra.mrb[0].mxu0 %v2567
        %v2802 = vpop.f32.mrb[0].mxu0
        %v2803 = vadd.f32 0.0, %v2802
        %v2804 = vpop.f32.mrb[0].mxu0
        %2805 = vmatprep.mubr.f32.mxu0 0.0
        %2806 = vmatmul.mubr.f32.gmra.mrb[0].mxu0 %v2568
        %v2807 = vpop.f32.mrb[0].mxu0
        %v2808 = vadd.f32 0.0, %v2807
        %v2809 = vpop.f32.mrb[0].mxu0
        %2810 = vmatprep.mubr.f32.mxu0 0.0
        %2811 = vmatmul.mubr.f32.gmra.mrb[0].mxu0 %v2569
        %v2812 = vpop.f32.mrb[0].mxu0
        %v2813 = vadd.f32 0.0, %v2812
        %v2814 = vpop.f32.mrb[0].mxu0
        %2815 = vmatprep.mubr.f32.mxu0 0.0
        %2816 = vmatmul.mubr.f32.gmra.mrb[0].mxu0 %v2570
        %v2817 = vpop.f32.mrb[0].mxu0
        %v2818 = vadd.f32 0.0, %v2817
        %v2819 = vpop.f32.mrb[0].mxu0
        %2820 = vmatprep.mubr.f32.mxu0 0.0
        %2821 = vmatmul.mubr.f32.gmra.mrb[0].mxu0 %v2571
        %v2822 = vpop.f32.mrb[0].mxu0
        %v2823 = vadd.f32 0.0, %v2822
        %v2824 = vpop.f32.mrb[0].mxu0
        %2825 = vmatprep.mubr.f32.mxu0 0.0
        %2826 = vmatmul.mubr.f32.gmra.mrb[0].mxu0 %v2572
        %v2827 = vpop.f32.mrb[0].mxu0
        %v2828 = vadd.f32 0.0, %v2827
        %v2829 = vpop.f32.mrb[0].mxu0
        %2830 = vmatprep.mubr.f32.mxu0 0.0
        %2831 = vmatmul.mubr.f32.gmra.mrb[0].mxu0 %v2573
        %v2832 = vpop.f32.mrb[0].mxu0
        %v2833 = vadd.f32 0.0, %v2832
        %v2834 = vpop.f32.mrb[0].mxu0
        %2835 = vmatprep.mubr.f32.mxu0 0.0
        %2836 = vmatmul.mubr.f32.gmra.mrb[0].mxu0 %v2574
        %v2837 = vpop.f32.mrb[0].mxu0
        %v2838 = vadd.f32 0.0, %v2837
        %v2839 = vpop.f32.mrb[0].mxu0
        %2840 = vmatprep.mubr.f32.mxu0 0.0
        %2841 = vmatmul.mubr.f32.gmra.mrb[0].mxu0 %v2575
        %v2842 = vpop.f32.mrb[0].mxu0
        %v2843 = vadd.f32 0.0, %v2842
        %v2844 = vpop.f32.mrb[0].mxu0
        %2845 = vmatprep.mubr.f32.mxu0 0.0
        %2846 = vmatmul.mubr.f32.gmra.mrb[0].mxu0 %v2576
        %v2847 = vpop.f32.mrb[0].mxu0
        %v2848 = vadd.f32 0.0, %v2847
        %v2849 = vpop.f32.mrb[0].mxu0
        %2850 = vdwg.mxu0
        %v2851 = vadd.f32 %v2577, %v2693
        %v2852 = vadd.f32 %v2578, %v2698
        %v2853 = vadd.f32 %v2579, %v2703
        %v2854 = vadd.f32 %v2580, %v2708
        %v2855 = vadd.f32 %v2581, %v2713
        %v2856 = vadd.f32 %v2582, %v2718
        %v2857 = vadd.f32 %v2583, %v2723
        %v2858 = vadd.f32 %v2584, %v2728
        %v2859 = vadd.f32 %v2585, %v2733
        %v2860 = vadd.f32 %v2586, %v2738
        %v2861 = vadd.f32 %v2587, %v2743
        %v2862 = vadd.f32 %v2588, %v2748
        %v2863 = vadd.f32 %v2589, %v2753
        %v2864 = vadd.f32 %v2590, %v2758
        %v2865 = vadd.f32 %v2591, %v2763
        %v2866 = vadd.f32 %v2592, %v2768
        %v2867 = vadd.f32 %v2593, %v2773
        %v2868 = vadd.f32 %v2594, %v2778
        %v2869 = vadd.f32 %v2595, %v2783
        %v2870 = vadd.f32 %v2596, %v2788
        %v2871 = vadd.f32 %v2597, %v2793
        %v2872 = vadd.f32 %v2598, %v2798
        %v2873 = vadd.f32 %v2599, %v2803
        %v2874 = vadd.f32 %v2600, %v2808
        %v2875 = vadd.f32 %v2601, %v2813
        %v2876 = vadd.f32 %v2602, %v2818
        %v2877 = vadd.f32 %v2603, %v2823
        %v2878 = vadd.f32 %v2604, %v2828
        %v2879 = vadd.f32 %v2605, %v2833
        %v2880 = vadd.f32 %v2606, %v2838
        %v2881 = vadd.f32 %v2607, %v2843
        %v2882 = vadd.f32 %v2608, %v2848
        %2883 = vst [vmem:[#allocation2] sm:$0xff] %v2851
        %2884 = vst [vmem:[#allocation2 + $0x8] sm:$0xff] %v2852
        %2885 = vst [vmem:[#allocation2 + $0x10] sm:$0xff] %v2853
        %2886 = vst [vmem:[#allocation2 + $0x18] sm:$0xff] %v2854
        %2887 = vst [vmem:[#allocation2 + $0x20] sm:$0xff] %v2855
        %2888 = vst [vmem:[#allocation2 + $0x28] sm:$0xff] %v2856
        %2889 = vst [vmem:[#allocation2 + $0x30] sm:$0xff] %v2857
        %2890 = vst [vmem:[#allocation2 + $0x38] sm:$0xff] %v2858
        %2891 = vst [vmem:[#allocation2 + $0x40] sm:$0xff] %v2859
        %2892 = vst [vmem:[#allocation2 + $0x48] sm:$0xff] %v2860
        %2893 = vst [vmem:[#allocation2 + $0x50] sm:$0xff] %v2861
        %2894 = vst [vmem:[#allocation2 + $0x58] sm:$0xff] %v2862
        %2895 = vst [vmem:[#allocation2 + $0x60] sm:$0xff] %v2863
        %2896 = vst [vmem:[#allocation2 + $0x68] sm:$0xff] %v2864
        %2897 = vst [vmem:[#allocation2 + $0x70] sm:$0xff] %v2865
        %2898 = vst [vmem:[#allocation2 + $0x78] sm:$0xff] %v2866
        %2899 = vst [vmem:[#allocation2 + $0x80] sm:$0xff] %v2867
        %2900 = vst [vmem:[#allocation2 + $0x88] sm:$0xff] %v2868
        %2901 = vst [vmem:[#allocation2 + $0x90] sm:$0xff] %v2869
        %2902 = vst [vmem:[#allocation2 + $0x98] sm:$0xff] %v2870
        %2903 = vst [vmem:[#allocation2 + $0xa0] sm:$0xff] %v2871
        %2904 = vst [vmem:[#allocation2 + $0xa8] sm:$0xff] %v2872
        %2905 = vst [vmem:[#allocation2 + $0xb0] sm:$0xff] %v2873
        %2906 = vst [vmem:[#allocation2 + $0xb8] sm:$0xff] %v2874
        %2907 = vst [vmem:[#allocation2 + $0xc0] sm:$0xff] %v2875
        %2908 = vst [vmem:[#allocation2 + $0xc8] sm:$0xff] %v2876
        %2909 = vst [vmem:[#allocation2 + $0xd0] sm:$0xff] %v2877
        %2910 = vst [vmem:[#allocation2 + $0xd8] sm:$0xff] %v2878
        %2911 = vst [vmem:[#allocation2 + $0xe0] sm:$0xff] %v2879
        %2912 = vst [vmem:[#allocation2 + $0xe8] sm:$0xff] %v2880
        %2913 = vst [vmem:[#allocation2 + $0xf0] sm:$0xff] %v2881
        %2914 = vst [vmem:[#allocation2 + $0xf8] sm:$0xff] %v2882
        %v2915 = vld [vmem:[%s2544 + $0x1] sm:$0xff]
        %v2916 = vld [vmem:[%s2544 + $0x9] sm:$0xff]
        %v2917 = vld [vmem:[%s2544 + $0x19] sm:$0xff]
        %v2918 = vld [vmem:[%s2544 + $0x21] sm:$0xff]
        %v2919 = vld [vmem:[%s2544 + $0x31] sm:$0xff]
        %v2920 = vld [vmem:[%s2544 + $0x39] sm:$0xff]
        %v2921 = vld [vmem:[%s2544 + $0x49] sm:$0xff]
        %v2922 = vld [vmem:[%s2544 + $0x51] sm:$0xff]
        %v2923 = vld [vmem:[%s2544 + $0x61] sm:$0xff]
        %v2924 = vld [vmem:[%s2544 + $0x69] sm:$0xff]
        %v2925 = vld [vmem:[%s2544 + $0x79] sm:$0xff]
        %v2926 = vld [vmem:[%s2544 + $0x81] sm:$0xff]
        %v2927 = vld [vmem:[%s2544 + $0x91] sm:$0xff]
        %v2928 = vld [vmem:[%s2544 + $0x99] sm:$0xff]
        %v2929 = vld [vmem:[%s2544 + $0xa9] sm:$0xff]
        %v2930 = vld [vmem:[%s2544 + $0xb1] sm:$0xff]
        %v2931 = vld [vmem:[%s2544 + $0xc1] sm:$0xff]
        %v2932 = vld [vmem:[%s2544 + $0xc9] sm:$0xff]
        %v2933 = vld [vmem:[%s2544 + $0xd9] sm:$0xff]
        %v2934 = vld [vmem:[%s2544 + $0xe1] sm:$0xff]
        %v2935 = vld [vmem:[%s2544 + $0xf1] sm:$0xff]
        %v2936 = vld [vmem:[%s2544 + $0xf9] sm:$0xff]
        %v2937 = vld [vmem:[%s2544 + $0x109] sm:$0xff]
        %v2938 = vld [vmem:[%s2544 + $0x111] sm:$0xff]
        %v2939 = vld [vmem:[%s2544 + $0x121] sm:$0xff]
        %v2940 = vld [vmem:[%s2544 + $0x129] sm:$0xff]
        %v2941 = vld [vmem:[%s2544 + $0x139] sm:$0xff]
        %v2942 = vld [vmem:[%s2544 + $0x141] sm:$0xff]
        %v2943 = vld [vmem:[%s2544 + $0x151] sm:$0xff]
        %v2944 = vld [vmem:[%s2544 + $0x159] sm:$0xff]
        %v2945 = vld [vmem:[%s2544 + $0x169] sm:$0xff]
        %v2946 = vld [vmem:[%s2544 + $0x171] sm:$0xff]
        %v2947 = vld [vmem:[#allocation2] sm:$0xff]
        %v2948 = vld [vmem:[#allocation2 + $0x8] sm:$0xff]
        %v2949 = vld [vmem:[#allocation2 + $0x10] sm:$0xff]
        %v2950 = vld [vmem:[#allocation2 + $0x18] sm:$0xff]
        %v2951 = vld [vmem:[#allocation2 + $0x20] sm:$0xff]
        %v2952 = vld [vmem:[#allocation2 + $0x28] sm:$0xff]
        %v2953 = vld [vmem:[#allocation2 + $0x30] sm:$0xff]
        %v2954 = vld [vmem:[#allocation2 + $0x38] sm:$0xff]
        %v2955 = vld [vmem:[#allocation2 + $0x40] sm:$0xff]
        %v2956 = vld [vmem:[#allocation2 + $0x48] sm:$0xff]
        %v2957 = vld [vmem:[#allocation2 + $0x50] sm:$0xff]
        %v2958 = vld [vmem:[#allocation2 + $0x58] sm:$0xff]
        %v2959 = vld [vmem:[#allocation2 + $0x60] sm:$0xff]
        %v2960 = vld [vmem:[#allocation2 + $0x68] sm:$0xff]
        %v2961 = vld [vmem:[#allocation2 + $0x70] sm:$0xff]
        %v2962 = vld [vmem:[#allocation2 + $0x78] sm:$0xff]
        %v2963 = vld [vmem:[#allocation2 + $0x80] sm:$0xff]
        %v2964 = vld [vmem:[#allocation2 + $0x88] sm:$0xff]
        %v2965 = vld [vmem:[#allocation2 + $0x90] sm:$0xff]
        %v2966 = vld [vmem:[#allocation2 + $0x98] sm:$0xff]
        %v2967 = vld [vmem:[#allocation2 + $0xa0] sm:$0xff]
        %v2968 = vld [vmem:[#allocation2 + $0xa8] sm:$0xff]
        %v2969 = vld [vmem:[#allocation2 + $0xb0] sm:$0xff]
        %v2970 = vld [vmem:[#allocation2 + $0xb8] sm:$0xff]
        %v2971 = vld [vmem:[#allocation2 + $0xc0] sm:$0xff]
        %v2972 = vld [vmem:[#allocation2 + $0xc8] sm:$0xff]
        %v2973 = vld [vmem:[#allocation2 + $0xd0] sm:$0xff]
        %v2974 = vld [vmem:[#allocation2 + $0xd8] sm:$0xff]
        %v2975 = vld [vmem:[#allocation2 + $0xe0] sm:$0xff]
        %v2976 = vld [vmem:[#allocation2 + $0xe8] sm:$0xff]
        %v2977 = vld [vmem:[#allocation2 + $0xf0] sm:$0xff]
        %v2978 = vld [vmem:[#allocation2 + $0xf8] sm:$0xff]
        %s2979 = scalar_lea.vmem %s1, 896
        %v2980 = vld [vmem:[%s2979] sm:$0xff]
        %v2981 = vld [vmem:[%s2979 + $0x8] sm:$0xff]
        %v2982 = vld [vmem:[%s2979 + $0x10] sm:$0xff]
        %v2983 = vld [vmem:[%s2979 + $0x18] sm:$0xff]
        %v2984 = vld [vmem:[%s2979 + $0x20] sm:$0xff]
        %v2985 = vld [vmem:[%s2979 + $0x28] sm:$0xff]
        %v2986 = vld [vmem:[%s2979 + $0x30] sm:$0xff]
        %v2987 = vld [vmem:[%s2979 + $0x38] sm:$0xff]
        %v2988 = vld [vmem:[%s2979 + $0x40] sm:$0xff]
        %v2989 = vld [vmem:[%s2979 + $0x48] sm:$0xff]
        %v2990 = vld [vmem:[%s2979 + $0x50] sm:$0xff]
        %v2991 = vld [vmem:[%s2979 + $0x58] sm:$0xff]
        %v2992 = vld [vmem:[%s2979 + $0x60] sm:$0xff]
        %v2993 = vld [vmem:[%s2979 + $0x68] sm:$0xff]
        %v2994 = vld [vmem:[%s2979 + $0x70] sm:$0xff]
        %v2995 = vld [vmem:[%s2979 + $0x78] sm:$0xff]
        %2996 = vmatprep.subr.mxu0 0.0
        %2997 = vmatpush1.msra.mxu0 %v2980
        %2998 = vmatprep.subr.mxu0 0.0
        %2999 = vmatpush1.msra.mxu0 %v2981
        %3000 = vmatprep.subr.mxu0 0.0
        %3001 = vmatpush1.msra.mxu0 %v2982
        %3002 = vmatprep.subr.mxu0 0.0
        %3003 = vmatpush1.msra.mxu0 %v2983
        %3004 = vmatprep.subr.mxu0 0.0
        %3005 = vmatpush1.msra.mxu0 %v2984
        %3006 = vmatprep.subr.mxu0 0.0
        %3007 = vmatpush1.msra.mxu0 %v2985
        %3008 = vmatprep.subr.mxu0 0.0
        %3009 = vmatpush1.msra.mxu0 %v2986
        %3010 = vmatprep.subr.mxu0 0.0
        %3011 = vmatpush1.msra.mxu0 %v2987
        %3012 = vmatprep.subr.mxu0 0.0
        %3013 = vmatpush1.msra.mxu0 %v2988
        %3014 = vmatprep.subr.mxu0 0.0
        %3015 = vmatpush1.msra.mxu0 %v2989
        %3016 = vmatprep.subr.mxu0 0.0
        %3017 = vmatpush1.msra.mxu0 %v2990
        %3018 = vmatprep.subr.mxu0 0.0
        %3019 = vmatpush1.msra.mxu0 %v2991
        %3020 = vmatprep.subr.mxu0 0.0
        %3021 = vmatpush1.msra.mxu0 %v2992
        %3022 = vmatprep.subr.mxu0 0.0
        %3023 = vmatpush1.msra.mxu0 %v2993
        %3024 = vmatprep.subr.mxu0 0.0
        %3025 = vmatpush1.msra.mxu0 %v2994
        %3026 = vmatprep.subr.mxu0 0.0
        %3027 = vmatpush1.msra.mxu0 %v2995
        %3028 = vmatprep.subr.mxu0 0.0
        %3029 = vmatpush1.msra.mxu0 0.0
        %3030 = vmatprep.subr.mxu0 0.0
        %3031 = vmatpush1.msra.mxu0 0.0
        %3032 = vmatprep.subr.mxu0 0.0
        %3033 = vmatpush1.msra.mxu0 0.0
        %3034 = vmatprep.subr.mxu0 0.0
        %3035 = vmatpush1.msra.mxu0 0.0
        %3036 = vmatprep.subr.mxu0 0.0
        %3037 = vmatpush1.msra.mxu0 0.0
        %3038 = vmatprep.subr.mxu0 0.0
        %3039 = vmatpush1.msra.mxu0 0.0
        %3040 = vmatprep.subr.mxu0 0.0
        %3041 = vmatpush1.msra.mxu0 0.0
        %3042 = vmatprep.subr.mxu0 0.0
        %3043 = vmatpush1.msra.mxu0 0.0
        %3044 = vmatprep.subr.mxu0 0.0
        %3045 = vmatpush1.msra.mxu0 0.0
        %3046 = vmatprep.subr.mxu0 0.0
        %3047 = vmatpush1.msra.mxu0 0.0
        %3048 = vmatprep.subr.mxu0 0.0
        %3049 = vmatpush1.msra.mxu0 0.0
        %3050 = vmatprep.subr.mxu0 0.0
        %3051 = vmatpush1.msra.mxu0 0.0
        %3052 = vmatprep.subr.mxu0 0.0
        %3053 = vmatpush1.msra.mxu0 0.0
        %3054 = vmatprep.subr.mxu0 0.0
        %3055 = vmatpush1.msra.mxu0 0.0
        %3056 = vmatprep.subr.mxu0 0.0
        %3057 = vmatpush1.msra.mxu0 0.0
        %3058 = vmatprep.subr.mxu0 0.0
        %3059 = vmatpush1.msra.mxu0 0.0
        %3060 = vmatprep.mubr.f32.mxu0 0.0
        %3061 = vmatmul.mubr.f32.gmra.mrb[0].mxu0 %v2915
        %v3062 = vpop.f32.mrb[0].mxu0
        %v3063 = vadd.f32 0.0, %v3062
        %v3064 = vpop.f32.mrb[0].mxu0
        %3065 = vmatprep.mubr.f32.mxu0 0.0
        %3066 = vmatmul.mubr.f32.gmra.mrb[0].mxu0 %v2916
        %v3067 = vpop.f32.mrb[0].mxu0
        %v3068 = vadd.f32 0.0, %v3067
        %v3069 = vpop.f32.mrb[0].mxu0
        %3070 = vmatprep.mubr.f32.mxu0 0.0
        %3071 = vmatmul.mubr.f32.gmra.mrb[0].mxu0 %v2917
        %v3072 = vpop.f32.mrb[0].mxu0
        %v3073 = vadd.f32 0.0, %v3072
        %v3074 = vpop.f32.mrb[0].mxu0
        %3075 = vmatprep.mubr.f32.mxu0 0.0
        %3076 = vmatmul.mubr.f32.gmra.mrb[0].mxu0 %v2918
        %v3077 = vpop.f32.mrb[0].mxu0
        %v3078 = vadd.f32 0.0, %v3077
        %v3079 = vpop.f32.mrb[0].mxu0
        %3080 = vmatprep.mubr.f32.mxu0 0.0
        %3081 = vmatmul.mubr.f32.gmra.mrb[0].mxu0 %v2919
        %v3082 = vpop.f32.mrb[0].mxu0
        %v3083 = vadd.f32 0.0, %v3082
        %v3084 = vpop.f32.mrb[0].mxu0
        %3085 = vmatprep.mubr.f32.mxu0 0.0
        %3086 = vmatmul.mubr.f32.gmra.mrb[0].mxu0 %v2920
        %v3087 = vpop.f32.mrb[0].mxu0
        %v3088 = vadd.f32 0.0, %v3087
        %v3089 = vpop.f32.mrb[0].mxu0
        %3090 = vmatprep.mubr.f32.mxu0 0.0
        %3091 = vmatmul.mubr.f32.gmra.mrb[0].mxu0 %v2921
        %v3092 = vpop.f32.mrb[0].mxu0
        %v3093 = vadd.f32 0.0, %v3092
        %v3094 = vpop.f32.mrb[0].mxu0
        %3095 = vmatprep.mubr.f32.mxu0 0.0
        %3096 = vmatmul.mubr.f32.gmra.mrb[0].mxu0 %v2922
        %v3097 = vpop.f32.mrb[0].mxu0
        %v3098 = vadd.f32 0.0, %v3097
        %v3099 = vpop.f32.mrb[0].mxu0
        %3100 = vmatprep.mubr.f32.mxu0 0.0
        %3101 = vmatmul.mubr.f32.gmra.mrb[0].mxu0 %v2923
        %v3102 = vpop.f32.mrb[0].mxu0
        %v3103 = vadd.f32 0.0, %v3102
        %v3104 = vpop.f32.mrb[0].mxu0
        %3105 = vmatprep.mubr.f32.mxu0 0.0
        %3106 = vmatmul.mubr.f32.gmra.mrb[0].mxu0 %v2924
        %v3107 = vpop.f32.mrb[0].mxu0
        %v3108 = vadd.f32 0.0, %v3107
        %v3109 = vpop.f32.mrb[0].mxu0
        %3110 = vmatprep.mubr.f32.mxu0 0.0
        %3111 = vmatmul.mubr.f32.gmra.mrb[0].mxu0 %v2925
        %v3112 = vpop.f32.mrb[0].mxu0
        %v3113 = vadd.f32 0.0, %v3112
        %v3114 = vpop.f32.mrb[0].mxu0
        %3115 = vmatprep.mubr.f32.mxu0 0.0
        %3116 = vmatmul.mubr.f32.gmra.mrb[0].mxu0 %v2926
        %v3117 = vpop.f32.mrb[0].mxu0
        %v3118 = vadd.f32 0.0, %v3117
        %v3119 = vpop.f32.mrb[0].mxu0
        %3120 = vmatprep.mubr.f32.mxu0 0.0
        %3121 = vmatmul.mubr.f32.gmra.mrb[0].mxu0 %v2927
        %v3122 = vpop.f32.mrb[0].mxu0
        %v3123 = vadd.f32 0.0, %v3122
        %v3124 = vpop.f32.mrb[0].mxu0
        %3125 = vmatprep.mubr.f32.mxu0 0.0
        %3126 = vmatmul.mubr.f32.gmra.mrb[0].mxu0 %v2928
        %v3127 = vpop.f32.mrb[0].mxu0
        %v3128 = vadd.f32 0.0, %v3127
        %v3129 = vpop.f32.mrb[0].mxu0
        %3130 = vmatprep.mubr.f32.mxu0 0.0
        %3131 = vmatmul.mubr.f32.gmra.mrb[0].mxu0 %v2929
        %v3132 = vpop.f32.mrb[0].mxu0
        %v3133 = vadd.f32 0.0, %v3132
        %v3134 = vpop.f32.mrb[0].mxu0
        %3135 = vmatprep.mubr.f32.mxu0 0.0
        %3136 = vmatmul.mubr.f32.gmra.mrb[0].mxu0 %v2930
        %v3137 = vpop.f32.mrb[0].mxu0
        %v3138 = vadd.f32 0.0, %v3137
        %v3139 = vpop.f32.mrb[0].mxu0
        %3140 = vmatprep.mubr.f32.mxu0 0.0
        %3141 = vmatmul.mubr.f32.gmra.mrb[0].mxu0 %v2931
        %v3142 = vpop.f32.mrb[0].mxu0
        %v3143 = vadd.f32 0.0, %v3142
        %v3144 = vpop.f32.mrb[0].mxu0
        %3145 = vmatprep.mubr.f32.mxu0 0.0
        %3146 = vmatmul.mubr.f32.gmra.mrb[0].mxu0 %v2932
        %v3147 = vpop.f32.mrb[0].mxu0
        %v3148 = vadd.f32 0.0, %v3147
        %v3149 = vpop.f32.mrb[0].mxu0
        %3150 = vmatprep.mubr.f32.mxu0 0.0
        %3151 = vmatmul.mubr.f32.gmra.mrb[0].mxu0 %v2933
        %v3152 = vpop.f32.mrb[0].mxu0
        %v3153 = vadd.f32 0.0, %v3152
        %v3154 = vpop.f32.mrb[0].mxu0
        %3155 = vmatprep.mubr.f32.mxu0 0.0
        %3156 = vmatmul.mubr.f32.gmra.mrb[0].mxu0 %v2934
        %v3157 = vpop.f32.mrb[0].mxu0
        %v3158 = vadd.f32 0.0, %v3157
        %v3159 = vpop.f32.mrb[0].mxu0
        %3160 = vmatprep.mubr.f32.mxu0 0.0
        %3161 = vmatmul.mubr.f32.gmra.mrb[0].mxu0 %v2935
        %v3162 = vpop.f32.mrb[0].mxu0
        %v3163 = vadd.f32 0.0, %v3162
        %v3164 = vpop.f32.mrb[0].mxu0
        %3165 = vmatprep.mubr.f32.mxu0 0.0
        %3166 = vmatmul.mubr.f32.gmra.mrb[0].mxu0 %v2936
        %v3167 = vpop.f32.mrb[0].mxu0
        %v3168 = vadd.f32 0.0, %v3167
        %v3169 = vpop.f32.mrb[0].mxu0
        %3170 = vmatprep.mubr.f32.mxu0 0.0
        %3171 = vmatmul.mubr.f32.gmra.mrb[0].mxu0 %v2937
        %v3172 = vpop.f32.mrb[0].mxu0
        %v3173 = vadd.f32 0.0, %v3172
        %v3174 = vpop.f32.mrb[0].mxu0
        %3175 = vmatprep.mubr.f32.mxu0 0.0
        %3176 = vmatmul.mubr.f32.gmra.mrb[0].mxu0 %v2938
        %v3177 = vpop.f32.mrb[0].mxu0
        %v3178 = vadd.f32 0.0, %v3177
        %v3179 = vpop.f32.mrb[0].mxu0
        %3180 = vmatprep.mubr.f32.mxu0 0.0
        %3181 = vmatmul.mubr.f32.gmra.mrb[0].mxu0 %v2939
        %v3182 = vpop.f32.mrb[0].mxu0
        %v3183 = vadd.f32 0.0, %v3182
        %v3184 = vpop.f32.mrb[0].mxu0
        %3185 = vmatprep.mubr.f32.mxu0 0.0
        %3186 = vmatmul.mubr.f32.gmra.mrb[0].mxu0 %v2940
        %v3187 = vpop.f32.mrb[0].mxu0
        %v3188 = vadd.f32 0.0, %v3187
        %v3189 = vpop.f32.mrb[0].mxu0
        %3190 = vmatprep.mubr.f32.mxu0 0.0
        %3191 = vmatmul.mubr.f32.gmra.mrb[0].mxu0 %v2941
        %v3192 = vpop.f32.mrb[0].mxu0
        %v3193 = vadd.f32 0.0, %v3192
        %v3194 = vpop.f32.mrb[0].mxu0
        %3195 = vmatprep.mubr.f32.mxu0 0.0
        %3196 = vmatmul.mubr.f32.gmra.mrb[0].mxu0 %v2942
        %v3197 = vpop.f32.mrb[0].mxu0
        %v3198 = vadd.f32 0.0, %v3197
        %v3199 = vpop.f32.mrb[0].mxu0
        %3200 = vmatprep.mubr.f32.mxu0 0.0
        %3201 = vmatmul.mubr.f32.gmra.mrb[0].mxu0 %v2943
        %v3202 = vpop.f32.mrb[0].mxu0
        %v3203 = vadd.f32 0.0, %v3202
        %v3204 = vpop.f32.mrb[0].mxu0
        %3205 = vmatprep.mubr.f32.mxu0 0.0
        %3206 = vmatmul.mubr.f32.gmra.mrb[0].mxu0 %v2944
        %v3207 = vpop.f32.mrb[0].mxu0
        %v3208 = vadd.f32 0.0, %v3207
        %v3209 = vpop.f32.mrb[0].mxu0
        %3210 = vmatprep.mubr.f32.mxu0 0.0
        %3211 = vmatmul.mubr.f32.gmra.mrb[0].mxu0 %v2945
        %v3212 = vpop.f32.mrb[0].mxu0
        %v3213 = vadd.f32 0.0, %v3212
        %v3214 = vpop.f32.mrb[0].mxu0
        %3215 = vmatprep.mubr.f32.mxu0 0.0
        %3216 = vmatmul.mubr.f32.gmra.mrb[0].mxu0 %v2946
        %v3217 = vpop.f32.mrb[0].mxu0
        %v3218 = vadd.f32 0.0, %v3217
        %v3219 = vpop.f32.mrb[0].mxu0
        %3220 = vdwg.mxu0
        %v3221 = vadd.f32 %v2947, %v3063
        %v3222 = vadd.f32 %v2948, %v3068
        %v3223 = vadd.f32 %v2949, %v3073
        %v3224 = vadd.f32 %v2950, %v3078
        %v3225 = vadd.f32 %v2951, %v3083
        %v3226 = vadd.f32 %v2952, %v3088
        %v3227 = vadd.f32 %v2953, %v3093
        %v3228 = vadd.f32 %v2954, %v3098
        %v3229 = vadd.f32 %v2955, %v3103
        %v3230 = vadd.f32 %v2956, %v3108
        %v3231 = vadd.f32 %v2957, %v3113
        %v3232 = vadd.f32 %v2958, %v3118
        %v3233 = vadd.f32 %v2959, %v3123
        %v3234 = vadd.f32 %v2960, %v3128
        %v3235 = vadd.f32 %v2961, %v3133
        %v3236 = vadd.f32 %v2962, %v3138
        %v3237 = vadd.f32 %v2963, %v3143
        %v3238 = vadd.f32 %v2964, %v3148
        %v3239 = vadd.f32 %v2965, %v3153
        %v3240 = vadd.f32 %v2966, %v3158
        %v3241 = vadd.f32 %v2967, %v3163
        %v3242 = vadd.f32 %v2968, %v3168
        %v3243 = vadd.f32 %v2969, %v3173
        %v3244 = vadd.f32 %v2970, %v3178
        %v3245 = vadd.f32 %v2971, %v3183
        %v3246 = vadd.f32 %v2972, %v3188
        %v3247 = vadd.f32 %v2973, %v3193
        %v3248 = vadd.f32 %v2974, %v3198
        %v3249 = vadd.f32 %v2975, %v3203
        %v3250 = vadd.f32 %v2976, %v3208
        %v3251 = vadd.f32 %v2977, %v3213
        %v3252 = vadd.f32 %v2978, %v3218
        %3253 = vst [vmem:[#allocation2] sm:$0xff] %v3221
        %3254 = vst [vmem:[#allocation2 + $0x8] sm:$0xff] %v3222
        %3255 = vst [vmem:[#allocation2 + $0x10] sm:$0xff] %v3223
        %3256 = vst [vmem:[#allocation2 + $0x18] sm:$0xff] %v3224
        %3257 = vst [vmem:[#allocation2 + $0x20] sm:$0xff] %v3225
        %3258 = vst [vmem:[#allocation2 + $0x28] sm:$0xff] %v3226
        %3259 = vst [vmem:[#allocation2 + $0x30] sm:$0xff] %v3227
        %3260 = vst [vmem:[#allocation2 + $0x38] sm:$0xff] %v3228
        %3261 = vst [vmem:[#allocation2 + $0x40] sm:$0xff] %v3229
        %3262 = vst [vmem:[#allocation2 + $0x48] sm:$0xff] %v3230
        %3263 = vst [vmem:[#allocation2 + $0x50] sm:$0xff] %v3231
        %3264 = vst [vmem:[#allocation2 + $0x58] sm:$0xff] %v3232
        %3265 = vst [vmem:[#allocation2 + $0x60] sm:$0xff] %v3233
        %3266 = vst [vmem:[#allocation2 + $0x68] sm:$0xff] %v3234
        %3267 = vst [vmem:[#allocation2 + $0x70] sm:$0xff] %v3235
        %3268 = vst [vmem:[#allocation2 + $0x78] sm:$0xff] %v3236
        %3269 = vst [vmem:[#allocation2 + $0x80] sm:$0xff] %v3237
        %3270 = vst [vmem:[#allocation2 + $0x88] sm:$0xff] %v3238
        %3271 = vst [vmem:[#allocation2 + $0x90] sm:$0xff] %v3239
        %3272 = vst [vmem:[#allocation2 + $0x98] sm:$0xff] %v3240
        %3273 = vst [vmem:[#allocation2 + $0xa0] sm:$0xff] %v3241
        %3274 = vst [vmem:[#allocation2 + $0xa8] sm:$0xff] %v3242
        %3275 = vst [vmem:[#allocation2 + $0xb0] sm:$0xff] %v3243
        %3276 = vst [vmem:[#allocation2 + $0xb8] sm:$0xff] %v3244
        %3277 = vst [vmem:[#allocation2 + $0xc0] sm:$0xff] %v3245
        %3278 = vst [vmem:[#allocation2 + $0xc8] sm:$0xff] %v3246
        %3279 = vst [vmem:[#allocation2 + $0xd0] sm:$0xff] %v3247
        %3280 = vst [vmem:[#allocation2 + $0xd8] sm:$0xff] %v3248
        %3281 = vst [vmem:[#allocation2 + $0xe0] sm:$0xff] %v3249
        %3282 = vst [vmem:[#allocation2 + $0xe8] sm:$0xff] %v3250
        %3283 = vst [vmem:[#allocation2 + $0xf0] sm:$0xff] %v3251
        %3284 = vst [vmem:[#allocation2 + $0xf8] sm:$0xff] %v3252
        %v3285 = vld [vmem:[%s2544 + $0x2] sm:$0xff]
        %v3286 = vld [vmem:[%s2544 + $0xa] sm:$0xff]
        %v3287 = vld [vmem:[%s2544 + $0x1a] sm:$0xff]
        %v3288 = vld [vmem:[%s2544 + $0x22] sm:$0xff]
        %v3289 = vld [vmem:[%s2544 + $0x32] sm:$0xff]
        %v3290 = vld [vmem:[%s2544 + $0x3a] sm:$0xff]
        %v3291 = vld [vmem:[%s2544 + $0x4a] sm:$0xff]
        %v3292 = vld [vmem:[%s2544 + $0x52] sm:$0xff]
        %v3293 = vld [vmem:[%s2544 + $0x62] sm:$0xff]
        %v3294 = vld [vmem:[%s2544 + $0x6a] sm:$0xff]
        %v3295 = vld [vmem:[%s2544 + $0x7a] sm:$0xff]
        %v3296 = vld [vmem:[%s2544 + $0x82] sm:$0xff]
        %v3297 = vld [vmem:[%s2544 + $0x92] sm:$0xff]
        %v3298 = vld [vmem:[%s2544 + $0x9a] sm:$0xff]
        %v3299 = vld [vmem:[%s2544 + $0xaa] sm:$0xff]
        %v3300 = vld [vmem:[%s2544 + $0xb2] sm:$0xff]
        %v3301 = vld [vmem:[%s2544 + $0xc2] sm:$0xff]
        %v3302 = vld [vmem:[%s2544 + $0xca] sm:$0xff]
        %v3303 = vld [vmem:[%s2544 + $0xda] sm:$0xff]
        %v3304 = vld [vmem:[%s2544 + $0xe2] sm:$0xff]
        %v3305 = vld [vmem:[%s2544 + $0xf2] sm:$0xff]
        %v3306 = vld [vmem:[%s2544 + $0xfa] sm:$0xff]
        %v3307 = vld [vmem:[%s2544 + $0x10a] sm:$0xff]
        %v3308 = vld [vmem:[%s2544 + $0x112] sm:$0xff]
        %v3309 = vld [vmem:[%s2544 + $0x122] sm:$0xff]
        %v3310 = vld [vmem:[%s2544 + $0x12a] sm:$0xff]
        %v3311 = vld [vmem:[%s2544 + $0x13a] sm:$0xff]
        %v3312 = vld [vmem:[%s2544 + $0x142] sm:$0xff]
        %v3313 = vld [vmem:[%s2544 + $0x152] sm:$0xff]
        %v3314 = vld [vmem:[%s2544 + $0x15a] sm:$0xff]
        %v3315 = vld [vmem:[%s2544 + $0x16a] sm:$0xff]
        %v3316 = vld [vmem:[%s2544 + $0x172] sm:$0xff]
        %v3317 = vld [vmem:[#allocation2] sm:$0xff]
        %v3318 = vld [vmem:[#allocation2 + $0x8] sm:$0xff]
        %v3319 = vld [vmem:[#allocation2 + $0x10] sm:$0xff]
        %v3320 = vld [vmem:[#allocation2 + $0x18] sm:$0xff]
        %v3321 = vld [vmem:[#allocation2 + $0x20] sm:$0xff]
        %v3322 = vld [vmem:[#allocation2 + $0x28] sm:$0xff]
        %v3323 = vld [vmem:[#allocation2 + $0x30] sm:$0xff]
        %v3324 = vld [vmem:[#allocation2 + $0x38] sm:$0xff]
        %v3325 = vld [vmem:[#allocation2 + $0x40] sm:$0xff]
        %v3326 = vld [vmem:[#allocation2 + $0x48] sm:$0xff]
        %v3327 = vld [vmem:[#allocation2 + $0x50] sm:$0xff]
        %v3328 = vld [vmem:[#allocation2 + $0x58] sm:$0xff]
        %v3329 = vld [vmem:[#allocation2 + $0x60] sm:$0xff]
        %v3330 = vld [vmem:[#allocation2 + $0x68] sm:$0xff]
        %v3331 = vld [vmem:[#allocation2 + $0x70] sm:$0xff]
        %v3332 = vld [vmem:[#allocation2 + $0x78] sm:$0xff]
        %v3333 = vld [vmem:[#allocation2 + $0x80] sm:$0xff]
        %v3334 = vld [vmem:[#allocation2 + $0x88] sm:$0xff]
        %v3335 = vld [vmem:[#allocation2 + $0x90] sm:$0xff]
        %v3336 = vld [vmem:[#allocation2 + $0x98] sm:$0xff]
        %v3337 = vld [vmem:[#allocation2 + $0xa0] sm:$0xff]
        %v3338 = vld [vmem:[#allocation2 + $0xa8] sm:$0xff]
        %v3339 = vld [vmem:[#allocation2 + $0xb0] sm:$0xff]
        %v3340 = vld [vmem:[#allocation2 + $0xb8] sm:$0xff]
        %v3341 = vld [vmem:[#allocation2 + $0xc0] sm:$0xff]
        %v3342 = vld [vmem:[#allocation2 + $0xc8] sm:$0xff]
        %v3343 = vld [vmem:[#allocation2 + $0xd0] sm:$0xff]
        %v3344 = vld [vmem:[#allocation2 + $0xd8] sm:$0xff]
        %v3345 = vld [vmem:[#allocation2 + $0xe0] sm:$0xff]
        %v3346 = vld [vmem:[#allocation2 + $0xe8] sm:$0xff]
        %v3347 = vld [vmem:[#allocation2 + $0xf0] sm:$0xff]
        %v3348 = vld [vmem:[#allocation2 + $0xf8] sm:$0xff]
        %s3349 = scalar_lea.vmem %s1, 1024
        %v3350 = vld [vmem:[%s3349] sm:$0xff]
        %v3351 = vld [vmem:[%s3349 + $0x8] sm:$0xff]
        %v3352 = vld [vmem:[%s3349 + $0x10] sm:$0xff]
        %v3353 = vld [vmem:[%s3349 + $0x18] sm:$0xff]
        %v3354 = vld [vmem:[%s3349 + $0x20] sm:$0xff]
        %v3355 = vld [vmem:[%s3349 + $0x28] sm:$0xff]
        %v3356 = vld [vmem:[%s3349 + $0x30] sm:$0xff]
        %v3357 = vld [vmem:[%s3349 + $0x38] sm:$0xff]
        %v3358 = vld [vmem:[%s3349 + $0x40] sm:$0xff]
        %v3359 = vld [vmem:[%s3349 + $0x48] sm:$0xff]
        %v3360 = vld [vmem:[%s3349 + $0x50] sm:$0xff]
        %v3361 = vld [vmem:[%s3349 + $0x58] sm:$0xff]
        %v3362 = vld [vmem:[%s3349 + $0x60] sm:$0xff]
        %v3363 = vld [vmem:[%s3349 + $0x68] sm:$0xff]
        %v3364 = vld [vmem:[%s3349 + $0x70] sm:$0xff]
        %v3365 = vld [vmem:[%s3349 + $0x78] sm:$0xff]
        %3366 = vmatprep.subr.mxu0 0.0
        %3367 = vmatpush1.msra.mxu0 %v3350
        %3368 = vmatprep.subr.mxu0 0.0
        %3369 = vmatpush1.msra.mxu0 %v3351
        %3370 = vmatprep.subr.mxu0 0.0
        %3371 = vmatpush1.msra.mxu0 %v3352
        %3372 = vmatprep.subr.mxu0 0.0
        %3373 = vmatpush1.msra.mxu0 %v3353
        %3374 = vmatprep.subr.mxu0 0.0
        %3375 = vmatpush1.msra.mxu0 %v3354
        %3376 = vmatprep.subr.mxu0 0.0
        %3377 = vmatpush1.msra.mxu0 %v3355
        %3378 = vmatprep.subr.mxu0 0.0
        %3379 = vmatpush1.msra.mxu0 %v3356
        %3380 = vmatprep.subr.mxu0 0.0
        %3381 = vmatpush1.msra.mxu0 %v3357
        %3382 = vmatprep.subr.mxu0 0.0
        %3383 = vmatpush1.msra.mxu0 %v3358
        %3384 = vmatprep.subr.mxu0 0.0
        %3385 = vmatpush1.msra.mxu0 %v3359
        %3386 = vmatprep.subr.mxu0 0.0
        %3387 = vmatpush1.msra.mxu0 %v3360
        %3388 = vmatprep.subr.mxu0 0.0
        %3389 = vmatpush1.msra.mxu0 %v3361
        %3390 = vmatprep.subr.mxu0 0.0
        %3391 = vmatpush1.msra.mxu0 %v3362
        %3392 = vmatprep.subr.mxu0 0.0
        %3393 = vmatpush1.msra.mxu0 %v3363
        %3394 = vmatprep.subr.mxu0 0.0
        %3395 = vmatpush1.msra.mxu0 %v3364
        %3396 = vmatprep.subr.mxu0 0.0
        %3397 = vmatpush1.msra.mxu0 %v3365
        %3398 = vmatprep.subr.mxu0 0.0
        %3399 = vmatpush1.msra.mxu0 0.0
        %3400 = vmatprep.subr.mxu0 0.0
        %3401 = vmatpush1.msra.mxu0 0.0
        %3402 = vmatprep.subr.mxu0 0.0
        %3403 = vmatpush1.msra.mxu0 0.0
        %3404 = vmatprep.subr.mxu0 0.0
        %3405 = vmatpush1.msra.mxu0 0.0
        %3406 = vmatprep.subr.mxu0 0.0
        %3407 = vmatpush1.msra.mxu0 0.0
        %3408 = vmatprep.subr.mxu0 0.0
        %3409 = vmatpush1.msra.mxu0 0.0
        %3410 = vmatprep.subr.mxu0 0.0
        %3411 = vmatpush1.msra.mxu0 0.0
        %3412 = vmatprep.subr.mxu0 0.0
        %3413 = vmatpush1.msra.mxu0 0.0
        %3414 = vmatprep.subr.mxu0 0.0
        %3415 = vmatpush1.msra.mxu0 0.0
        %3416 = vmatprep.subr.mxu0 0.0
        %3417 = vmatpush1.msra.mxu0 0.0
        %3418 = vmatprep.subr.mxu0 0.0
        %3419 = vmatpush1.msra.mxu0 0.0
        %3420 = vmatprep.subr.mxu0 0.0
        %3421 = vmatpush1.msra.mxu0 0.0
        %3422 = vmatprep.subr.mxu0 0.0
        %3423 = vmatpush1.msra.mxu0 0.0
        %3424 = vmatprep.subr.mxu0 0.0
        %3425 = vmatpush1.msra.mxu0 0.0
        %3426 = vmatprep.subr.mxu0 0.0
        %3427 = vmatpush1.msra.mxu0 0.0
        %3428 = vmatprep.subr.mxu0 0.0
        %3429 = vmatpush1.msra.mxu0 0.0
        %3430 = vmatprep.mubr.f32.mxu0 0.0
        %3431 = vmatmul.mubr.f32.gmra.mrb[0].mxu0 %v3285
        %v3432 = vpop.f32.mrb[0].mxu0
        %v3433 = vadd.f32 0.0, %v3432
        %v3434 = vpop.f32.mrb[0].mxu0
        %3435 = vmatprep.mubr.f32.mxu0 0.0
        %3436 = vmatmul.mubr.f32.gmra.mrb[0].mxu0 %v3286
        %v3437 = vpop.f32.mrb[0].mxu0
        %v3438 = vadd.f32 0.0, %v3437
        %v3439 = vpop.f32.mrb[0].mxu0
        %3440 = vmatprep.mubr.f32.mxu0 0.0
        %3441 = vmatmul.mubr.f32.gmra.mrb[0].mxu0 %v3287
        %v3442 = vpop.f32.mrb[0].mxu0
        %v3443 = vadd.f32 0.0, %v3442
        %v3444 = vpop.f32.mrb[0].mxu0
        %3445 = vmatprep.mubr.f32.mxu0 0.0
        %3446 = vmatmul.mubr.f32.gmra.mrb[0].mxu0 %v3288
        %v3447 = vpop.f32.mrb[0].mxu0
        %v3448 = vadd.f32 0.0, %v3447
        %v3449 = vpop.f32.mrb[0].mxu0
        %3450 = vmatprep.mubr.f32.mxu0 0.0
        %3451 = vmatmul.mubr.f32.gmra.mrb[0].mxu0 %v3289
        %v3452 = vpop.f32.mrb[0].mxu0
        %v3453 = vadd.f32 0.0, %v3452
        %v3454 = vpop.f32.mrb[0].mxu0
        %3455 = vmatprep.mubr.f32.mxu0 0.0
        %3456 = vmatmul.mubr.f32.gmra.mrb[0].mxu0 %v3290
        %v3457 = vpop.f32.mrb[0].mxu0
        %v3458 = vadd.f32 0.0, %v3457
        %v3459 = vpop.f32.mrb[0].mxu0
        %3460 = vmatprep.mubr.f32.mxu0 0.0
        %3461 = vmatmul.mubr.f32.gmra.mrb[0].mxu0 %v3291
        %v3462 = vpop.f32.mrb[0].mxu0
        %v3463 = vadd.f32 0.0, %v3462
        %v3464 = vpop.f32.mrb[0].mxu0
        %3465 = vmatprep.mubr.f32.mxu0 0.0
        %3466 = vmatmul.mubr.f32.gmra.mrb[0].mxu0 %v3292
        %v3467 = vpop.f32.mrb[0].mxu0
        %v3468 = vadd.f32 0.0, %v3467
        %v3469 = vpop.f32.mrb[0].mxu0
        %3470 = vmatprep.mubr.f32.mxu0 0.0
        %3471 = vmatmul.mubr.f32.gmra.mrb[0].mxu0 %v3293
        %v3472 = vpop.f32.mrb[0].mxu0
        %v3473 = vadd.f32 0.0, %v3472
        %v3474 = vpop.f32.mrb[0].mxu0
        %3475 = vmatprep.mubr.f32.mxu0 0.0
        %3476 = vmatmul.mubr.f32.gmra.mrb[0].mxu0 %v3294
        %v3477 = vpop.f32.mrb[0].mxu0
        %v3478 = vadd.f32 0.0, %v3477
        %v3479 = vpop.f32.mrb[0].mxu0
        %3480 = vmatprep.mubr.f32.mxu0 0.0
        %3481 = vmatmul.mubr.f32.gmra.mrb[0].mxu0 %v3295
        %v3482 = vpop.f32.mrb[0].mxu0
        %v3483 = vadd.f32 0.0, %v3482
        %v3484 = vpop.f32.mrb[0].mxu0
        %3485 = vmatprep.mubr.f32.mxu0 0.0
        %3486 = vmatmul.mubr.f32.gmra.mrb[0].mxu0 %v3296
        %v3487 = vpop.f32.mrb[0].mxu0
        %v3488 = vadd.f32 0.0, %v3487
        %v3489 = vpop.f32.mrb[0].mxu0
        %3490 = vmatprep.mubr.f32.mxu0 0.0
        %3491 = vmatmul.mubr.f32.gmra.mrb[0].mxu0 %v3297
        %v3492 = vpop.f32.mrb[0].mxu0
        %v3493 = vadd.f32 0.0, %v3492
        %v3494 = vpop.f32.mrb[0].mxu0
        %3495 = vmatprep.mubr.f32.mxu0 0.0
        %3496 = vmatmul.mubr.f32.gmra.mrb[0].mxu0 %v3298
        %v3497 = vpop.f32.mrb[0].mxu0
        %v3498 = vadd.f32 0.0, %v3497
        %v3499 = vpop.f32.mrb[0].mxu0
        %3500 = vmatprep.mubr.f32.mxu0 0.0
        %3501 = vmatmul.mubr.f32.gmra.mrb[0].mxu0 %v3299
        %v3502 = vpop.f32.mrb[0].mxu0
        %v3503 = vadd.f32 0.0, %v3502
        %v3504 = vpop.f32.mrb[0].mxu0
        %3505 = vmatprep.mubr.f32.mxu0 0.0
        %3506 = vmatmul.mubr.f32.gmra.mrb[0].mxu0 %v3300
        %v3507 = vpop.f32.mrb[0].mxu0
        %v3508 = vadd.f32 0.0, %v3507
        %v3509 = vpop.f32.mrb[0].mxu0
        %3510 = vmatprep.mubr.f32.mxu0 0.0
        %3511 = vmatmul.mubr.f32.gmra.mrb[0].mxu0 %v3301
        %v3512 = vpop.f32.mrb[0].mxu0
        %v3513 = vadd.f32 0.0, %v3512
        %v3514 = vpop.f32.mrb[0].mxu0
        %3515 = vmatprep.mubr.f32.mxu0 0.0
        %3516 = vmatmul.mubr.f32.gmra.mrb[0].mxu0 %v3302
        %v3517 = vpop.f32.mrb[0].mxu0
        %v3518 = vadd.f32 0.0, %v3517
        %v3519 = vpop.f32.mrb[0].mxu0
        %3520 = vmatprep.mubr.f32.mxu0 0.0
        %3521 = vmatmul.mubr.f32.gmra.mrb[0].mxu0 %v3303
        %v3522 = vpop.f32.mrb[0].mxu0
        %v3523 = vadd.f32 0.0, %v3522
        %v3524 = vpop.f32.mrb[0].mxu0
        %3525 = vmatprep.mubr.f32.mxu0 0.0
        %3526 = vmatmul.mubr.f32.gmra.mrb[0].mxu0 %v3304
        %v3527 = vpop.f32.mrb[0].mxu0
        %v3528 = vadd.f32 0.0, %v3527
        %v3529 = vpop.f32.mrb[0].mxu0
        %3530 = vmatprep.mubr.f32.mxu0 0.0
        %3531 = vmatmul.mubr.f32.gmra.mrb[0].mxu0 %v3305
        %v3532 = vpop.f32.mrb[0].mxu0
        %v3533 = vadd.f32 0.0, %v3532
        %v3534 = vpop.f32.mrb[0].mxu0
        %3535 = vmatprep.mubr.f32.mxu0 0.0
        %3536 = vmatmul.mubr.f32.gmra.mrb[0].mxu0 %v3306
        %v3537 = vpop.f32.mrb[0].mxu0
        %v3538 = vadd.f32 0.0, %v3537
        %v3539 = vpop.f32.mrb[0].mxu0
        %3540 = vmatprep.mubr.f32.mxu0 0.0
        %3541 = vmatmul.mubr.f32.gmra.mrb[0].mxu0 %v3307
        %v3542 = vpop.f32.mrb[0].mxu0
        %v3543 = vadd.f32 0.0, %v3542
        %v3544 = vpop.f32.mrb[0].mxu0
        %3545 = vmatprep.mubr.f32.mxu0 0.0
        %3546 = vmatmul.mubr.f32.gmra.mrb[0].mxu0 %v3308
        %v3547 = vpop.f32.mrb[0].mxu0
        %v3548 = vadd.f32 0.0, %v3547
        %v3549 = vpop.f32.mrb[0].mxu0
        %3550 = vmatprep.mubr.f32.mxu0 0.0
        %3551 = vmatmul.mubr.f32.gmra.mrb[0].mxu0 %v3309
        %v3552 = vpop.f32.mrb[0].mxu0
        %v3553 = vadd.f32 0.0, %v3552
        %v3554 = vpop.f32.mrb[0].mxu0
        %3555 = vmatprep.mubr.f32.mxu0 0.0
        %3556 = vmatmul.mubr.f32.gmra.mrb[0].mxu0 %v3310
        %v3557 = vpop.f32.mrb[0].mxu0
        %v3558 = vadd.f32 0.0, %v3557
        %v3559 = vpop.f32.mrb[0].mxu0
        %3560 = vmatprep.mubr.f32.mxu0 0.0
        %3561 = vmatmul.mubr.f32.gmra.mrb[0].mxu0 %v3311
        %v3562 = vpop.f32.mrb[0].mxu0
        %v3563 = vadd.f32 0.0, %v3562
        %v3564 = vpop.f32.mrb[0].mxu0
        %3565 = vmatprep.mubr.f32.mxu0 0.0
        %3566 = vmatmul.mubr.f32.gmra.mrb[0].mxu0 %v3312
        %v3567 = vpop.f32.mrb[0].mxu0
        %v3568 = vadd.f32 0.0, %v3567
        %v3569 = vpop.f32.mrb[0].mxu0
        %3570 = vmatprep.mubr.f32.mxu0 0.0
        %3571 = vmatmul.mubr.f32.gmra.mrb[0].mxu0 %v3313
        %v3572 = vpop.f32.mrb[0].mxu0
        %v3573 = vadd.f32 0.0, %v3572
        %v3574 = vpop.f32.mrb[0].mxu0
        %3575 = vmatprep.mubr.f32.mxu0 0.0
        %3576 = vmatmul.mubr.f32.gmra.mrb[0].mxu0 %v3314
        %v3577 = vpop.f32.mrb[0].mxu0
        %v3578 = vadd.f32 0.0, %v3577
        %v3579 = vpop.f32.mrb[0].mxu0
        %3580 = vmatprep.mubr.f32.mxu0 0.0
        %3581 = vmatmul.mubr.f32.gmra.mrb[0].mxu0 %v3315
        %v3582 = vpop.f32.mrb[0].mxu0
        %v3583 = vadd.f32 0.0, %v3582
        %v3584 = vpop.f32.mrb[0].mxu0
        %3585 = vmatprep.mubr.f32.mxu0 0.0
        %3586 = vmatmul.mubr.f32.gmra.mrb[0].mxu0 %v3316
        %v3587 = vpop.f32.mrb[0].mxu0
        %v3588 = vadd.f32 0.0, %v3587
        %v3589 = vpop.f32.mrb[0].mxu0
        %3590 = vdwg.mxu0
        %v3591 = vadd.f32 %v3317, %v3433
        %v3592 = vadd.f32 %v3318, %v3438
        %v3593 = vadd.f32 %v3319, %v3443
        %v3594 = vadd.f32 %v3320, %v3448
        %v3595 = vadd.f32 %v3321, %v3453
        %v3596 = vadd.f32 %v3322, %v3458
        %v3597 = vadd.f32 %v3323, %v3463
        %v3598 = vadd.f32 %v3324, %v3468
        %v3599 = vadd.f32 %v3325, %v3473
        %v3600 = vadd.f32 %v3326, %v3478
        %v3601 = vadd.f32 %v3327, %v3483
        %v3602 = vadd.f32 %v3328, %v3488
        %v3603 = vadd.f32 %v3329, %v3493
        %v3604 = vadd.f32 %v3330, %v3498
        %v3605 = vadd.f32 %v3331, %v3503
        %v3606 = vadd.f32 %v3332, %v3508
        %v3607 = vadd.f32 %v3333, %v3513
        %v3608 = vadd.f32 %v3334, %v3518
        %v3609 = vadd.f32 %v3335, %v3523
        %v3610 = vadd.f32 %v3336, %v3528
        %v3611 = vadd.f32 %v3337, %v3533
        %v3612 = vadd.f32 %v3338, %v3538
        %v3613 = vadd.f32 %v3339, %v3543
        %v3614 = vadd.f32 %v3340, %v3548
        %v3615 = vadd.f32 %v3341, %v3553
        %v3616 = vadd.f32 %v3342, %v3558
        %v3617 = vadd.f32 %v3343, %v3563
        %v3618 = vadd.f32 %v3344, %v3568
        %v3619 = vadd.f32 %v3345, %v3573
        %v3620 = vadd.f32 %v3346, %v3578
        %v3621 = vadd.f32 %v3347, %v3583
        %v3622 = vadd.f32 %v3348, %v3588
        %3623 = vst [vmem:[#allocation2] sm:$0xff] %v3591
        %3624 = vst [vmem:[#allocation2 + $0x8] sm:$0xff] %v3592
        %3625 = vst [vmem:[#allocation2 + $0x10] sm:$0xff] %v3593
        %3626 = vst [vmem:[#allocation2 + $0x18] sm:$0xff] %v3594
        %3627 = vst [vmem:[#allocation2 + $0x20] sm:$0xff] %v3595
        %3628 = vst [vmem:[#allocation2 + $0x28] sm:$0xff] %v3596
        %3629 = vst [vmem:[#allocation2 + $0x30] sm:$0xff] %v3597
        %3630 = vst [vmem:[#allocation2 + $0x38] sm:$0xff] %v3598
        %3631 = vst [vmem:[#allocation2 + $0x40] sm:$0xff] %v3599
        %3632 = vst [vmem:[#allocation2 + $0x48] sm:$0xff] %v3600
        %3633 = vst [vmem:[#allocation2 + $0x50] sm:$0xff] %v3601
        %3634 = vst [vmem:[#allocation2 + $0x58] sm:$0xff] %v3602
        %3635 = vst [vmem:[#allocation2 + $0x60] sm:$0xff] %v3603
        %3636 = vst [vmem:[#allocation2 + $0x68] sm:$0xff] %v3604
        %3637 = vst [vmem:[#allocation2 + $0x70] sm:$0xff] %v3605
        %3638 = vst [vmem:[#allocation2 + $0x78] sm:$0xff] %v3606
        %3639 = vst [vmem:[#allocation2 + $0x80] sm:$0xff] %v3607
        %3640 = vst [vmem:[#allocation2 + $0x88] sm:$0xff] %v3608
        %3641 = vst [vmem:[#allocation2 + $0x90] sm:$0xff] %v3609
        %3642 = vst [vmem:[#allocation2 + $0x98] sm:$0xff] %v3610
        %3643 = vst [vmem:[#allocation2 + $0xa0] sm:$0xff] %v3611
        %3644 = vst [vmem:[#allocation2 + $0xa8] sm:$0xff] %v3612
        %3645 = vst [vmem:[#allocation2 + $0xb0] sm:$0xff] %v3613
        %3646 = vst [vmem:[#allocation2 + $0xb8] sm:$0xff] %v3614
        %3647 = vst [vmem:[#allocation2 + $0xc0] sm:$0xff] %v3615
        %3648 = vst [vmem:[#allocation2 + $0xc8] sm:$0xff] %v3616
        %3649 = vst [vmem:[#allocation2 + $0xd0] sm:$0xff] %v3617
        %3650 = vst [vmem:[#allocation2 + $0xd8] sm:$0xff] %v3618
        %3651 = vst [vmem:[#allocation2 + $0xe0] sm:$0xff] %v3619
        %3652 = vst [vmem:[#allocation2 + $0xe8] sm:$0xff] %v3620
        %3653 = vst [vmem:[#allocation2 + $0xf0] sm:$0xff] %v3621
        %3654 = vst [vmem:[#allocation2 + $0xf8] sm:$0xff] %v3622
        %v3655 = vld [vmem:[#allocation2] sm:$0xff]
        %v3656 = vld [vmem:[#allocation2 + $0x8] sm:$0xff]
        %v3657 = vld [vmem:[#allocation2 + $0x10] sm:$0xff]
        %v3658 = vld [vmem:[#allocation2 + $0x18] sm:$0xff]
        %v3659 = vld [vmem:[#allocation2 + $0x20] sm:$0xff]
        %v3660 = vld [vmem:[#allocation2 + $0x28] sm:$0xff]
        %v3661 = vld [vmem:[#allocation2 + $0x30] sm:$0xff]
        %v3662 = vld [vmem:[#allocation2 + $0x38] sm:$0xff]
        %v3663 = vld [vmem:[#allocation2 + $0x40] sm:$0xff]
        %v3664 = vld [vmem:[#allocation2 + $0x48] sm:$0xff]
        %v3665 = vld [vmem:[#allocation2 + $0x50] sm:$0xff]
        %v3666 = vld [vmem:[#allocation2 + $0x58] sm:$0xff]
        %v3667 = vld [vmem:[#allocation2 + $0x60] sm:$0xff]
        %v3668 = vld [vmem:[#allocation2 + $0x68] sm:$0xff]
        %v3669 = vld [vmem:[#allocation2 + $0x70] sm:$0xff]
        %v3670 = vld [vmem:[#allocation2 + $0x78] sm:$0xff]
        %v3671 = vld [vmem:[#allocation2 + $0x80] sm:$0xff]
        %v3672 = vld [vmem:[#allocation2 + $0x88] sm:$0xff]
        %v3673 = vld [vmem:[#allocation2 + $0x90] sm:$0xff]
        %v3674 = vld [vmem:[#allocation2 + $0x98] sm:$0xff]
        %v3675 = vld [vmem:[#allocation2 + $0xa0] sm:$0xff]
        %v3676 = vld [vmem:[#allocation2 + $0xa8] sm:$0xff]
        %v3677 = vld [vmem:[#allocation2 + $0xb0] sm:$0xff]
        %v3678 = vld [vmem:[#allocation2 + $0xb8] sm:$0xff]
        %v3679 = vld [vmem:[#allocation2 + $0xc0] sm:$0xff]
        %v3680 = vld [vmem:[#allocation2 + $0xc8] sm:$0xff]
        %v3681 = vld [vmem:[#allocation2 + $0xd0] sm:$0xff]
        %v3682 = vld [vmem:[#allocation2 + $0xd8] sm:$0xff]
        %v3683 = vld [vmem:[#allocation2 + $0xe0] sm:$0xff]
        %v3684 = vld [vmem:[#allocation2 + $0xe8] sm:$0xff]
        %v3685 = vld [vmem:[#allocation2 + $0xf0] sm:$0xff]
        %v3686 = vld [vmem:[#allocation2 + $0xf8] sm:$0xff]
        %v3687 = vld [vmem:[%s3] sm:$0x1]
        %v3689 = vlaneseq
        %v3690 = vshrl.u32 %v3689, 7
        %v3691 = vsub.s32 0, %v3690
        %v3692 = vrot.slane %v3687, %v3691
        %v3694 = vmul.f32 %v3655, %v3692
        %v3695 = vmul.f32 %v3656, %v3692
        %v3696 = vmul.f32 %v3657, %v3692
        %v3697 = vmul.f32 %v3658, %v3692
        %v3698 = vmul.f32 %v3659, %v3692
        %v3699 = vmul.f32 %v3660, %v3692
        %v3700 = vmul.f32 %v3661, %v3692
        %v3701 = vmul.f32 %v3662, %v3692
        %v3702 = vmul.f32 %v3663, %v3692
        %v3703 = vmul.f32 %v3664, %v3692
        %v3704 = vmul.f32 %v3665, %v3692
        %v3705 = vmul.f32 %v3666, %v3692
        %v3706 = vmul.f32 %v3667, %v3692
        %v3707 = vmul.f32 %v3668, %v3692
        %v3708 = vmul.f32 %v3669, %v3692
        %v3709 = vmul.f32 %v3670, %v3692
        %v3710 = vmul.f32 %v3671, %v3692
        %v3711 = vmul.f32 %v3672, %v3692
        %v3712 = vmul.f32 %v3673, %v3692
        %v3713 = vmul.f32 %v3674, %v3692
        %v3714 = vmul.f32 %v3675, %v3692
        %v3715 = vmul.f32 %v3676, %v3692
        %v3716 = vmul.f32 %v3677, %v3692
        %v3717 = vmul.f32 %v3678, %v3692
        %v3718 = vmul.f32 %v3679, %v3692
        %v3719 = vmul.f32 %v3680, %v3692
        %v3720 = vmul.f32 %v3681, %v3692
        %v3721 = vmul.f32 %v3682, %v3692
        %v3722 = vmul.f32 %v3683, %v3692
        %v3723 = vmul.f32 %v3684, %v3692
        %v3724 = vmul.f32 %v3685, %v3692
        %v3725 = vmul.f32 %v3686, %v3692
        %v3726 = vld [vmem:[%s4] sm:$0x1]
        %v3728 = vlaneseq
        %v3729 = vshrl.u32 %v3728, 7
        %v3730 = vsub.s32 0, %v3729
        %v3731 = vrot.slane %v3726, %v3730
        %v3733 = vadd.f32 %v3694, %v3731
        %v3734 = vadd.f32 %v3695, %v3731
        %v3735 = vadd.f32 %v3696, %v3731
        %v3736 = vadd.f32 %v3697, %v3731
        %v3737 = vadd.f32 %v3698, %v3731
        %v3738 = vadd.f32 %v3699, %v3731
        %v3739 = vadd.f32 %v3700, %v3731
        %v3740 = vadd.f32 %v3701, %v3731
        %v3741 = vadd.f32 %v3702, %v3731
        %v3742 = vadd.f32 %v3703, %v3731
        %v3743 = vadd.f32 %v3704, %v3731
        %v3744 = vadd.f32 %v3705, %v3731
        %v3745 = vadd.f32 %v3706, %v3731
        %v3746 = vadd.f32 %v3707, %v3731
        %v3747 = vadd.f32 %v3708, %v3731
        %v3748 = vadd.f32 %v3709, %v3731
        %v3749 = vadd.f32 %v3710, %v3731
        %v3750 = vadd.f32 %v3711, %v3731
        %v3751 = vadd.f32 %v3712, %v3731
        %v3752 = vadd.f32 %v3713, %v3731
        %v3753 = vadd.f32 %v3714, %v3731
        %v3754 = vadd.f32 %v3715, %v3731
        %v3755 = vadd.f32 %v3716, %v3731
        %v3756 = vadd.f32 %v3717, %v3731
        %v3757 = vadd.f32 %v3718, %v3731
        %v3758 = vadd.f32 %v3719, %v3731
        %v3759 = vadd.f32 %v3720, %v3731
        %v3760 = vadd.f32 %v3721, %v3731
        %v3761 = vadd.f32 %v3722, %v3731
        %v3762 = vadd.f32 %v3723, %v3731
        %v3763 = vadd.f32 %v3724, %v3731
        %v3764 = vadd.f32 %v3725, %v3731
        %v3765 = vmax.f32 %v3733, 0.0
        %v3766 = vmax.f32 %v3734, 0.0
        %v3767 = vmax.f32 %v3735, 0.0
        %v3768 = vmax.f32 %v3736, 0.0
        %v3769 = vmax.f32 %v3737, 0.0
        %v3770 = vmax.f32 %v3738, 0.0
        %v3771 = vmax.f32 %v3739, 0.0
        %v3772 = vmax.f32 %v3740, 0.0
        %v3773 = vmax.f32 %v3741, 0.0
        %v3774 = vmax.f32 %v3742, 0.0
        %v3775 = vmax.f32 %v3743, 0.0
        %v3776 = vmax.f32 %v3744, 0.0
        %v3777 = vmax.f32 %v3745, 0.0
        %v3778 = vmax.f32 %v3746, 0.0
        %v3779 = vmax.f32 %v3747, 0.0
        %v3780 = vmax.f32 %v3748, 0.0
        %v3781 = vmax.f32 %v3749, 0.0
        %v3782 = vmax.f32 %v3750, 0.0
        %v3783 = vmax.f32 %v3751, 0.0
        %v3784 = vmax.f32 %v3752, 0.0
        %v3785 = vmax.f32 %v3753, 0.0
        %v3786 = vmax.f32 %v3754, 0.0
        %v3787 = vmax.f32 %v3755, 0.0
        %v3788 = vmax.f32 %v3756, 0.0
        %v3789 = vmax.f32 %v3757, 0.0
        %v3790 = vmax.f32 %v3758, 0.0
        %v3791 = vmax.f32 %v3759, 0.0
        %v3792 = vmax.f32 %v3760, 0.0
        %v3793 = vmax.f32 %v3761, 0.0
        %v3794 = vmax.f32 %v3762, 0.0
        %v3795 = vmax.f32 %v3763, 0.0
        %v3796 = vmax.f32 %v3764, 0.0
        %3797 = vst [vmem:[#allocation3] sm:$0xff] 0.0
        %3798 = vst [vmem:[#allocation3 + $0x8] sm:$0xff] 0.0
        %3799 = vst [vmem:[#allocation3 + $0x10] sm:$0x3] 0.0
        %3800 = vst [vmem:[#allocation3 + $0x18] sm:$0xff] 0.0
        %3801 = vst [vmem:[#allocation3 + $0x20] sm:$0xff] 0.0
        %3802 = vst [vmem:[#allocation3 + $0x28] sm:$0x3] 0.0
        %3803 = vst [vmem:[#allocation3 + $0x30] sm:$0xff] 0.0
        %3804 = vst [vmem:[#allocation3 + $0x38] sm:$0xff] 0.0
        %3805 = vst [vmem:[#allocation3 + $0x40] sm:$0x3] 0.0
        %3806 = vst [vmem:[#allocation3 + $0x48] sm:$0xff] 0.0
        %3807 = vst [vmem:[#allocation3 + $0x50] sm:$0xff] 0.0
        %3808 = vst [vmem:[#allocation3 + $0x58] sm:$0x3] 0.0
        %3809 = vst [vmem:[#allocation3 + $0x60] sm:$0xff] 0.0
        %3810 = vst [vmem:[#allocation3 + $0x68] sm:$0xff] 0.0
        %3811 = vst [vmem:[#allocation3 + $0x70] sm:$0x3] 0.0
        %3812 = vst [vmem:[#allocation3 + $0x78] sm:$0xff] 0.0
        %3813 = vst [vmem:[#allocation3 + $0x80] sm:$0xff] 0.0
        %3814 = vst [vmem:[#allocation3 + $0x88] sm:$0x3] 0.0
        %3815 = vst [vmem:[#allocation3 + $0x90] sm:$0xff] 0.0
        %3816 = vst [vmem:[#allocation3 + $0x98] sm:$0xff] 0.0
        %3817 = vst [vmem:[#allocation3 + $0xa0] sm:$0x3] 0.0
        %3818 = vst [vmem:[#allocation3 + $0xa8] sm:$0xff] 0.0
        %3819 = vst [vmem:[#allocation3 + $0xb0] sm:$0xff] 0.0
        %3820 = vst [vmem:[#allocation3 + $0xb8] sm:$0x3] 0.0
        %3821 = vst [vmem:[#allocation3 + $0xc0] sm:$0xff] 0.0
        %3822 = vst [vmem:[#allocation3 + $0xc8] sm:$0xff] 0.0
        %3823 = vst [vmem:[#allocation3 + $0xd0] sm:$0x3] 0.0
        %3824 = vst [vmem:[#allocation3 + $0xd8] sm:$0xff] 0.0
        %3825 = vst [vmem:[#allocation3 + $0xe0] sm:$0xff] 0.0
        %3826 = vst [vmem:[#allocation3 + $0xe8] sm:$0x3] 0.0
        %3827 = vst [vmem:[#allocation3 + $0xf0] sm:$0xff] 0.0
        %3828 = vst [vmem:[#allocation3 + $0xf8] sm:$0xff] 0.0
        %3829 = vst [vmem:[#allocation3 + $0x100] sm:$0x3] 0.0
        %3830 = vst [vmem:[#allocation3 + $0x108] sm:$0xff] 0.0
        %3831 = vst [vmem:[#allocation3 + $0x110] sm:$0xff] 0.0
        %3832 = vst [vmem:[#allocation3 + $0x118] sm:$0x3] 0.0
        %3833 = vst [vmem:[#allocation3 + $0x120] sm:$0xff] 0.0
        %3834 = vst [vmem:[#allocation3 + $0x128] sm:$0xff] 0.0
        %3835 = vst [vmem:[#allocation3 + $0x130] sm:$0x3] 0.0
        %3836 = vst [vmem:[#allocation3 + $0x138] sm:$0xff] 0.0
        %3837 = vst [vmem:[#allocation3 + $0x140] sm:$0xff] 0.0
        %3838 = vst [vmem:[#allocation3 + $0x148] sm:$0x3] 0.0
        %3839 = vst [vmem:[#allocation3 + $0x150] sm:$0xff] 0.0
        %3840 = vst [vmem:[#allocation3 + $0x158] sm:$0xff] 0.0
        %3841 = vst [vmem:[#allocation3 + $0x160] sm:$0x3] 0.0
        %3842 = vst [vmem:[#allocation3 + $0x168] sm:$0xff] 0.0
        %3843 = vst [vmem:[#allocation3 + $0x170] sm:$0xff] 0.0
        %3844 = vst [vmem:[#allocation3 + $0x178] sm:$0x3] 0.0
        %3845 = vst [vmem:[#allocation3 + $0x180] sm:$0xff] 0.0
        %3846 = vst [vmem:[#allocation3 + $0x188] sm:$0xff] 0.0
        %3847 = vst [vmem:[#allocation3 + $0x190] sm:$0x3] 0.0
        %3848 = vst [vmem:[#allocation3 + $0x198] sm:$0xff] 0.0
        %3849 = vst [vmem:[#allocation3 + $0x1a0] sm:$0xff] 0.0
        %3850 = vst [vmem:[#allocation3 + $0x1a8] sm:$0x3] 0.0
        %s3851 = scalar_lea.vmem [#allocation3], 24
        %3852 = vst [vmem:[%s3851 + $0x1] sm:$0xff] %v3765
        %3853 = vst [vmem:[%s3851 + $0x9] sm:$0xff] %v3766
        %3854 = vst [vmem:[%s3851 + $0x19] sm:$0xff] %v3767
        %3855 = vst [vmem:[%s3851 + $0x21] sm:$0xff] %v3768
        %3856 = vst [vmem:[%s3851 + $0x31] sm:$0xff] %v3769
        %3857 = vst [vmem:[%s3851 + $0x39] sm:$0xff] %v3770
        %3858 = vst [vmem:[%s3851 + $0x49] sm:$0xff] %v3771
        %3859 = vst [vmem:[%s3851 + $0x51] sm:$0xff] %v3772
        %3860 = vst [vmem:[%s3851 + $0x61] sm:$0xff] %v3773
        %3861 = vst [vmem:[%s3851 + $0x69] sm:$0xff] %v3774
        %3862 = vst [vmem:[%s3851 + $0x79] sm:$0xff] %v3775
        %3863 = vst [vmem:[%s3851 + $0x81] sm:$0xff] %v3776
        %3864 = vst [vmem:[%s3851 + $0x91] sm:$0xff] %v3777
        %3865 = vst [vmem:[%s3851 + $0x99] sm:$0xff] %v3778
        %3866 = vst [vmem:[%s3851 + $0xa9] sm:$0xff] %v3779
        %3867 = vst [vmem:[%s3851 + $0xb1] sm:$0xff] %v3780
        %3868 = vst [vmem:[%s3851 + $0xc1] sm:$0xff] %v3781
        %3869 = vst [vmem:[%s3851 + $0xc9] sm:$0xff] %v3782
        %3870 = vst [vmem:[%s3851 + $0xd9] sm:$0xff] %v3783
        %3871 = vst [vmem:[%s3851 + $0xe1] sm:$0xff] %v3784
        %3872 = vst [vmem:[%s3851 + $0xf1] sm:$0xff] %v3785
        %3873 = vst [vmem:[%s3851 + $0xf9] sm:$0xff] %v3786
        %3874 = vst [vmem:[%s3851 + $0x109] sm:$0xff] %v3787
        %3875 = vst [vmem:[%s3851 + $0x111] sm:$0xff] %v3788
        %3876 = vst [vmem:[%s3851 + $0x121] sm:$0xff] %v3789
        %3877 = vst [vmem:[%s3851 + $0x129] sm:$0xff] %v3790
        %3878 = vst [vmem:[%s3851 + $0x139] sm:$0xff] %v3791
        %3879 = vst [vmem:[%s3851 + $0x141] sm:$0xff] %v3792
        %3880 = vst [vmem:[%s3851 + $0x151] sm:$0xff] %v3793
        %3881 = vst [vmem:[%s3851 + $0x159] sm:$0xff] %v3794
        %3882 = vst [vmem:[%s3851 + $0x169] sm:$0xff] %v3795
        %3883 = vst [vmem:[%s3851 + $0x171] sm:$0xff] %v3796
        %3884 = vst [vmem:[#allocation2] sm:$0xff] 0.0
        %3885 = vst [vmem:[#allocation2 + $0x8] sm:$0xff] 0.0
        %3886 = vst [vmem:[#allocation2 + $0x10] sm:$0xff] 0.0
        %3887 = vst [vmem:[#allocation2 + $0x18] sm:$0xff] 0.0
        %3888 = vst [vmem:[#allocation2 + $0x20] sm:$0xff] 0.0
        %3889 = vst [vmem:[#allocation2 + $0x28] sm:$0xff] 0.0
        %3890 = vst [vmem:[#allocation2 + $0x30] sm:$0xff] 0.0
        %3891 = vst [vmem:[#allocation2 + $0x38] sm:$0xff] 0.0
        %3892 = vst [vmem:[#allocation2 + $0x40] sm:$0xff] 0.0
        %3893 = vst [vmem:[#allocation2 + $0x48] sm:$0xff] 0.0
        %3894 = vst [vmem:[#allocation2 + $0x50] sm:$0xff] 0.0
        %3895 = vst [vmem:[#allocation2 + $0x58] sm:$0xff] 0.0
        %3896 = vst [vmem:[#allocation2 + $0x60] sm:$0xff] 0.0
        %3897 = vst [vmem:[#allocation2 + $0x68] sm:$0xff] 0.0
        %3898 = vst [vmem:[#allocation2 + $0x70] sm:$0xff] 0.0
        %3899 = vst [vmem:[#allocation2 + $0x78] sm:$0xff] 0.0
        %3900 = vst [vmem:[#allocation2 + $0x80] sm:$0xff] 0.0
        %3901 = vst [vmem:[#allocation2 + $0x88] sm:$0xff] 0.0
        %3902 = vst [vmem:[#allocation2 + $0x90] sm:$0xff] 0.0
        %3903 = vst [vmem:[#allocation2 + $0x98] sm:$0xff] 0.0
        %3904 = vst [vmem:[#allocation2 + $0xa0] sm:$0xff] 0.0
        %3905 = vst [vmem:[#allocation2 + $0xa8] sm:$0xff] 0.0
        %3906 = vst [vmem:[#allocation2 + $0xb0] sm:$0xff] 0.0
        %3907 = vst [vmem:[#allocation2 + $0xb8] sm:$0xff] 0.0
        %3908 = vst [vmem:[#allocation2 + $0xc0] sm:$0xff] 0.0
        %3909 = vst [vmem:[#allocation2 + $0xc8] sm:$0xff] 0.0
        %3910 = vst [vmem:[#allocation2 + $0xd0] sm:$0xff] 0.0
        %3911 = vst [vmem:[#allocation2 + $0xd8] sm:$0xff] 0.0
        %3912 = vst [vmem:[#allocation2 + $0xe0] sm:$0xff] 0.0
        %3913 = vst [vmem:[#allocation2 + $0xe8] sm:$0xff] 0.0
        %3914 = vst [vmem:[#allocation2 + $0xf0] sm:$0xff] 0.0
        %3915 = vst [vmem:[#allocation2 + $0xf8] sm:$0xff] 0.0
        %v3916 = vld [vmem:[#allocation3] sm:$0xff]
        %v3917 = vld [vmem:[#allocation3 + $0x8] sm:$0xff]
        %v3918 = vld [vmem:[#allocation3 + $0x18] sm:$0xff]
        %v3919 = vld [vmem:[#allocation3 + $0x20] sm:$0xff]
        %v3920 = vld [vmem:[#allocation3 + $0x30] sm:$0xff]
        %v3921 = vld [vmem:[#allocation3 + $0x38] sm:$0xff]
        %v3922 = vld [vmem:[#allocation3 + $0x48] sm:$0xff]
        %v3923 = vld [vmem:[#allocation3 + $0x50] sm:$0xff]
        %v3924 = vld [vmem:[#allocation3 + $0x60] sm:$0xff]
        %v3925 = vld [vmem:[#allocation3 + $0x68] sm:$0xff]
        %v3926 = vld [vmem:[#allocation3 + $0x78] sm:$0xff]
        %v3927 = vld [vmem:[#allocation3 + $0x80] sm:$0xff]
        %v3928 = vld [vmem:[#allocation3 + $0x90] sm:$0xff]
        %v3929 = vld [vmem:[#allocation3 + $0x98] sm:$0xff]
        %v3930 = vld [vmem:[#allocation3 + $0xa8] sm:$0xff]
        %v3931 = vld [vmem:[#allocation3 + $0xb0] sm:$0xff]
        %v3932 = vld [vmem:[#allocation3 + $0xc0] sm:$0xff]
        %v3933 = vld [vmem:[#allocation3 + $0xc8] sm:$0xff]
        %v3934 = vld [vmem:[#allocation3 + $0xd8] sm:$0xff]
        %v3935 = vld [vmem:[#allocation3 + $0xe0] sm:$0xff]
        %v3936 = vld [vmem:[#allocation3 + $0xf0] sm:$0xff]
        %v3937 = vld [vmem:[#allocation3 + $0xf8] sm:$0xff]
        %v3938 = vld [vmem:[#allocation3 + $0x108] sm:$0xff]
        %v3939 = vld [vmem:[#allocation3 + $0x110] sm:$0xff]
        %v3940 = vld [vmem:[#allocation3 + $0x120] sm:$0xff]
        %v3941 = vld [vmem:[#allocation3 + $0x128] sm:$0xff]
        %v3942 = vld [vmem:[#allocation3 + $0x138] sm:$0xff]
        %v3943 = vld [vmem:[#allocation3 + $0x140] sm:$0xff]
        %v3944 = vld [vmem:[#allocation3 + $0x150] sm:$0xff]
        %v3945 = vld [vmem:[#allocation3 + $0x158] sm:$0xff]
        %v3946 = vld [vmem:[#allocation3 + $0x168] sm:$0xff]
        %v3947 = vld [vmem:[#allocation3 + $0x170] sm:$0xff]
        %v3948 = vld [vmem:[#allocation2] sm:$0xff]
        %v3949 = vld [vmem:[#allocation2 + $0x8] sm:$0xff]
        %v3950 = vld [vmem:[#allocation2 + $0x10] sm:$0xff]
        %v3951 = vld [vmem:[#allocation2 + $0x18] sm:$0xff]
        %v3952 = vld [vmem:[#allocation2 + $0x20] sm:$0xff]
        %v3953 = vld [vmem:[#allocation2 + $0x28] sm:$0xff]
        %v3954 = vld [vmem:[#allocation2 + $0x30] sm:$0xff]
        %v3955 = vld [vmem:[#allocation2 + $0x38] sm:$0xff]
        %v3956 = vld [vmem:[#allocation2 + $0x40] sm:$0xff]
        %v3957 = vld [vmem:[#allocation2 + $0x48] sm:$0xff]
        %v3958 = vld [vmem:[#allocation2 + $0x50] sm:$0xff]
        %v3959 = vld [vmem:[#allocation2 + $0x58] sm:$0xff]
        %v3960 = vld [vmem:[#allocation2 + $0x60] sm:$0xff]
        %v3961 = vld [vmem:[#allocation2 + $0x68] sm:$0xff]
        %v3962 = vld [vmem:[#allocation2 + $0x70] sm:$0xff]
        %v3963 = vld [vmem:[#allocation2 + $0x78] sm:$0xff]
        %v3964 = vld [vmem:[#allocation2 + $0x80] sm:$0xff]
        %v3965 = vld [vmem:[#allocation2 + $0x88] sm:$0xff]
        %v3966 = vld [vmem:[#allocation2 + $0x90] sm:$0xff]
        %v3967 = vld [vmem:[#allocation2 + $0x98] sm:$0xff]
        %v3968 = vld [vmem:[#allocation2 + $0xa0] sm:$0xff]
        %v3969 = vld [vmem:[#allocation2 + $0xa8] sm:$0xff]
        %v3970 = vld [vmem:[#allocation2 + $0xb0] sm:$0xff]
        %v3971 = vld [vmem:[#allocation2 + $0xb8] sm:$0xff]
        %v3972 = vld [vmem:[#allocation2 + $0xc0] sm:$0xff]
        %v3973 = vld [vmem:[#allocation2 + $0xc8] sm:$0xff]
        %v3974 = vld [vmem:[#allocation2 + $0xd0] sm:$0xff]
        %v3975 = vld [vmem:[#allocation2 + $0xd8] sm:$0xff]
        %v3976 = vld [vmem:[#allocation2 + $0xe0] sm:$0xff]
        %v3977 = vld [vmem:[#allocation2 + $0xe8] sm:$0xff]
        %v3978 = vld [vmem:[#allocation2 + $0xf0] sm:$0xff]
        %v3979 = vld [vmem:[#allocation2 + $0xf8] sm:$0xff]
        %v3980 = vld [vmem:[#allocation4] sm:$0xff]
        %v3981 = vld [vmem:[#allocation4 + $0x8] sm:$0xff]
        %v3982 = vld [vmem:[#allocation4 + $0x10] sm:$0xff]
        %v3983 = vld [vmem:[#allocation4 + $0x18] sm:$0xff]
        %v3984 = vld [vmem:[#allocation4 + $0x20] sm:$0xff]
        %v3985 = vld [vmem:[#allocation4 + $0x28] sm:$0xff]
        %v3986 = vld [vmem:[#allocation4 + $0x30] sm:$0xff]
        %v3987 = vld [vmem:[#allocation4 + $0x38] sm:$0xff]
        %v3988 = vld [vmem:[#allocation4 + $0x40] sm:$0xff]
        %v3989 = vld [vmem:[#allocation4 + $0x48] sm:$0xff]
        %v3990 = vld [vmem:[#allocation4 + $0x50] sm:$0xff]
        %v3991 = vld [vmem:[#allocation4 + $0x58] sm:$0xff]
        %v3992 = vld [vmem:[#allocation4 + $0x60] sm:$0xff]
        %v3993 = vld [vmem:[#allocation4 + $0x68] sm:$0xff]
        %v3994 = vld [vmem:[#allocation4 + $0x70] sm:$0xff]
        %v3995 = vld [vmem:[#allocation4 + $0x78] sm:$0xff]
        %3996 = vmatprep.subr.mxu0 0.0
        %3997 = vmatpush1.msra.mxu0 %v3980
        %3998 = vmatprep.subr.mxu0 0.0
        %3999 = vmatpush1.msra.mxu0 %v3981
        %4000 = vmatprep.subr.mxu0 0.0
        %4001 = vmatpush1.msra.mxu0 %v3982
        %4002 = vmatprep.subr.mxu0 0.0
        %4003 = vmatpush1.msra.mxu0 %v3983
        %4004 = vmatprep.subr.mxu0 0.0
        %4005 = vmatpush1.msra.mxu0 %v3984
        %4006 = vmatprep.subr.mxu0 0.0
        %4007 = vmatpush1.msra.mxu0 %v3985
        %4008 = vmatprep.subr.mxu0 0.0
        %4009 = vmatpush1.msra.mxu0 %v3986
        %4010 = vmatprep.subr.mxu0 0.0
        %4011 = vmatpush1.msra.mxu0 %v3987
        %4012 = vmatprep.subr.mxu0 0.0
        %4013 = vmatpush1.msra.mxu0 %v3988
        %4014 = vmatprep.subr.mxu0 0.0
        %4015 = vmatpush1.msra.mxu0 %v3989
        %4016 = vmatprep.subr.mxu0 0.0
        %4017 = vmatpush1.msra.mxu0 %v3990
        %4018 = vmatprep.subr.mxu0 0.0
        %4019 = vmatpush1.msra.mxu0 %v3991
        %4020 = vmatprep.subr.mxu0 0.0
        %4021 = vmatpush1.msra.mxu0 %v3992
        %4022 = vmatprep.subr.mxu0 0.0
        %4023 = vmatpush1.msra.mxu0 %v3993
        %4024 = vmatprep.subr.mxu0 0.0
        %4025 = vmatpush1.msra.mxu0 %v3994
        %4026 = vmatprep.subr.mxu0 0.0
        %4027 = vmatpush1.msra.mxu0 %v3995
        %4028 = vmatprep.subr.mxu0 0.0
        %4029 = vmatpush1.msra.mxu0 0.0
        %4030 = vmatprep.subr.mxu0 0.0
        %4031 = vmatpush1.msra.mxu0 0.0
        %4032 = vmatprep.subr.mxu0 0.0
        %4033 = vmatpush1.msra.mxu0 0.0
        %4034 = vmatprep.subr.mxu0 0.0
        %4035 = vmatpush1.msra.mxu0 0.0
        %4036 = vmatprep.subr.mxu0 0.0
        %4037 = vmatpush1.msra.mxu0 0.0
        %4038 = vmatprep.subr.mxu0 0.0
        %4039 = vmatpush1.msra.mxu0 0.0
        %4040 = vmatprep.subr.mxu0 0.0
        %4041 = vmatpush1.msra.mxu0 0.0
        %4042 = vmatprep.subr.mxu0 0.0
        %4043 = vmatpush1.msra.mxu0 0.0
        %4044 = vmatprep.subr.mxu0 0.0
        %4045 = vmatpush1.msra.mxu0 0.0
        %4046 = vmatprep.subr.mxu0 0.0
        %4047 = vmatpush1.msra.mxu0 0.0
        %4048 = vmatprep.subr.mxu0 0.0
        %4049 = vmatpush1.msra.mxu0 0.0
        %4050 = vmatprep.subr.mxu0 0.0
        %4051 = vmatpush1.msra.mxu0 0.0
        %4052 = vmatprep.subr.mxu0 0.0
        %4053 = vmatpush1.msra.mxu0 0.0
        %4054 = vmatprep.subr.mxu0 0.0
        %4055 = vmatpush1.msra.mxu0 0.0
        %4056 = vmatprep.subr.mxu0 0.0
        %4057 = vmatpush1.msra.mxu0 0.0
        %4058 = vmatprep.subr.mxu0 0.0
        %4059 = vmatpush1.msra.mxu0 0.0
        %4060 = vmatprep.mubr.f32.mxu0 0.0
        %4061 = vmatmul.mubr.f32.gmra.mrb[0].mxu0 %v3916
        %v4062 = vpop.f32.mrb[0].mxu0
        %v4063 = vadd.f32 0.0, %v4062
        %v4064 = vpop.f32.mrb[0].mxu0
        %4065 = vmatprep.mubr.f32.mxu0 0.0
        %4066 = vmatmul.mubr.f32.gmra.mrb[0].mxu0 %v3917
        %v4067 = vpop.f32.mrb[0].mxu0
        %v4068 = vadd.f32 0.0, %v4067
        %v4069 = vpop.f32.mrb[0].mxu0
        %4070 = vmatprep.mubr.f32.mxu0 0.0
        %4071 = vmatmul.mubr.f32.gmra.mrb[0].mxu0 %v3918
        %v4072 = vpop.f32.mrb[0].mxu0
        %v4073 = vadd.f32 0.0, %v4072
        %v4074 = vpop.f32.mrb[0].mxu0
        %4075 = vmatprep.mubr.f32.mxu0 0.0
        %4076 = vmatmul.mubr.f32.gmra.mrb[0].mxu0 %v3919
        %v4077 = vpop.f32.mrb[0].mxu0
        %v4078 = vadd.f32 0.0, %v4077
        %v4079 = vpop.f32.mrb[0].mxu0
        %4080 = vmatprep.mubr.f32.mxu0 0.0
        %4081 = vmatmul.mubr.f32.gmra.mrb[0].mxu0 %v3920
        %v4082 = vpop.f32.mrb[0].mxu0
        %v4083 = vadd.f32 0.0, %v4082
        %v4084 = vpop.f32.mrb[0].mxu0
        %4085 = vmatprep.mubr.f32.mxu0 0.0
        %4086 = vmatmul.mubr.f32.gmra.mrb[0].mxu0 %v3921
        %v4087 = vpop.f32.mrb[0].mxu0
        %v4088 = vadd.f32 0.0, %v4087
        %v4089 = vpop.f32.mrb[0].mxu0
        %4090 = vmatprep.mubr.f32.mxu0 0.0
        %4091 = vmatmul.mubr.f32.gmra.mrb[0].mxu0 %v3922
        %v4092 = vpop.f32.mrb[0].mxu0
        %v4093 = vadd.f32 0.0, %v4092
        %v4094 = vpop.f32.mrb[0].mxu0
        %4095 = vmatprep.mubr.f32.mxu0 0.0
        %4096 = vmatmul.mubr.f32.gmra.mrb[0].mxu0 %v3923
        %v4097 = vpop.f32.mrb[0].mxu0
        %v4098 = vadd.f32 0.0, %v4097
        %v4099 = vpop.f32.mrb[0].mxu0
        %4100 = vmatprep.mubr.f32.mxu0 0.0
        %4101 = vmatmul.mubr.f32.gmra.mrb[0].mxu0 %v3924
        %v4102 = vpop.f32.mrb[0].mxu0
        %v4103 = vadd.f32 0.0, %v4102
        %v4104 = vpop.f32.mrb[0].mxu0
        %4105 = vmatprep.mubr.f32.mxu0 0.0
        %4106 = vmatmul.mubr.f32.gmra.mrb[0].mxu0 %v3925
        %v4107 = vpop.f32.mrb[0].mxu0
        %v4108 = vadd.f32 0.0, %v4107
        %v4109 = vpop.f32.mrb[0].mxu0
        %4110 = vmatprep.mubr.f32.mxu0 0.0
        %4111 = vmatmul.mubr.f32.gmra.mrb[0].mxu0 %v3926
        %v4112 = vpop.f32.mrb[0].mxu0
        %v4113 = vadd.f32 0.0, %v4112
        %v4114 = vpop.f32.mrb[0].mxu0
        %4115 = vmatprep.mubr.f32.mxu0 0.0
        %4116 = vmatmul.mubr.f32.gmra.mrb[0].mxu0 %v3927
        %v4117 = vpop.f32.mrb[0].mxu0
        %v4118 = vadd.f32 0.0, %v4117
        %v4119 = vpop.f32.mrb[0].mxu0
        %4120 = vmatprep.mubr.f32.mxu0 0.0
        %4121 = vmatmul.mubr.f32.gmra.mrb[0].mxu0 %v3928
        %v4122 = vpop.f32.mrb[0].mxu0
        %v4123 = vadd.f32 0.0, %v4122
        %v4124 = vpop.f32.mrb[0].mxu0
        %4125 = vmatprep.mubr.f32.mxu0 0.0
        %4126 = vmatmul.mubr.f32.gmra.mrb[0].mxu0 %v3929
        %v4127 = vpop.f32.mrb[0].mxu0
        %v4128 = vadd.f32 0.0, %v4127
        %v4129 = vpop.f32.mrb[0].mxu0
        %4130 = vmatprep.mubr.f32.mxu0 0.0
        %4131 = vmatmul.mubr.f32.gmra.mrb[0].mxu0 %v3930
        %v4132 = vpop.f32.mrb[0].mxu0
        %v4133 = vadd.f32 0.0, %v4132
        %v4134 = vpop.f32.mrb[0].mxu0
        %4135 = vmatprep.mubr.f32.mxu0 0.0
        %4136 = vmatmul.mubr.f32.gmra.mrb[0].mxu0 %v3931
        %v4137 = vpop.f32.mrb[0].mxu0
        %v4138 = vadd.f32 0.0, %v4137
        %v4139 = vpop.f32.mrb[0].mxu0
        %4140 = vmatprep.mubr.f32.mxu0 0.0
        %4141 = vmatmul.mubr.f32.gmra.mrb[0].mxu0 %v3932
        %v4142 = vpop.f32.mrb[0].mxu0
        %v4143 = vadd.f32 0.0, %v4142
        %v4144 = vpop.f32.mrb[0].mxu0
        %4145 = vmatprep.mubr.f32.mxu0 0.0
        %4146 = vmatmul.mubr.f32.gmra.mrb[0].mxu0 %v3933
        %v4147 = vpop.f32.mrb[0].mxu0
        %v4148 = vadd.f32 0.0, %v4147
        %v4149 = vpop.f32.mrb[0].mxu0
        %4150 = vmatprep.mubr.f32.mxu0 0.0
        %4151 = vmatmul.mubr.f32.gmra.mrb[0].mxu0 %v3934
        %v4152 = vpop.f32.mrb[0].mxu0
        %v4153 = vadd.f32 0.0, %v4152
        %v4154 = vpop.f32.mrb[0].mxu0
        %4155 = vmatprep.mubr.f32.mxu0 0.0
        %4156 = vmatmul.mubr.f32.gmra.mrb[0].mxu0 %v3935
        %v4157 = vpop.f32.mrb[0].mxu0
        %v4158 = vadd.f32 0.0, %v4157
        %v4159 = vpop.f32.mrb[0].mxu0
        %4160 = vmatprep.mubr.f32.mxu0 0.0
        %4161 = vmatmul.mubr.f32.gmra.mrb[0].mxu0 %v3936
        %v4162 = vpop.f32.mrb[0].mxu0
        %v4163 = vadd.f32 0.0, %v4162
        %v4164 = vpop.f32.mrb[0].mxu0
        %4165 = vmatprep.mubr.f32.mxu0 0.0
        %4166 = vmatmul.mubr.f32.gmra.mrb[0].mxu0 %v3937
        %v4167 = vpop.f32.mrb[0].mxu0
        %v4168 = vadd.f32 0.0, %v4167
        %v4169 = vpop.f32.mrb[0].mxu0
        %4170 = vmatprep.mubr.f32.mxu0 0.0
        %4171 = vmatmul.mubr.f32.gmra.mrb[0].mxu0 %v3938
        %v4172 = vpop.f32.mrb[0].mxu0
        %v4173 = vadd.f32 0.0, %v4172
        %v4174 = vpop.f32.mrb[0].mxu0
        %4175 = vmatprep.mubr.f32.mxu0 0.0
        %4176 = vmatmul.mubr.f32.gmra.mrb[0].mxu0 %v3939
        %v4177 = vpop.f32.mrb[0].mxu0
        %v4178 = vadd.f32 0.0, %v4177
        %v4179 = vpop.f32.mrb[0].mxu0
        %4180 = vmatprep.mubr.f32.mxu0 0.0
        %4181 = vmatmul.mubr.f32.gmra.mrb[0].mxu0 %v3940
        %v4182 = vpop.f32.mrb[0].mxu0
        %v4183 = vadd.f32 0.0, %v4182
        %v4184 = vpop.f32.mrb[0].mxu0
        %4185 = vmatprep.mubr.f32.mxu0 0.0
        %4186 = vmatmul.mubr.f32.gmra.mrb[0].mxu0 %v3941
        %v4187 = vpop.f32.mrb[0].mxu0
        %v4188 = vadd.f32 0.0, %v4187
        %v4189 = vpop.f32.mrb[0].mxu0
        %4190 = vmatprep.mubr.f32.mxu0 0.0
        %4191 = vmatmul.mubr.f32.gmra.mrb[0].mxu0 %v3942
        %v4192 = vpop.f32.mrb[0].mxu0
        %v4193 = vadd.f32 0.0, %v4192
        %v4194 = vpop.f32.mrb[0].mxu0
        %4195 = vmatprep.mubr.f32.mxu0 0.0
        %4196 = vmatmul.mubr.f32.gmra.mrb[0].mxu0 %v3943
        %v4197 = vpop.f32.mrb[0].mxu0
        %v4198 = vadd.f32 0.0, %v4197
        %v4199 = vpop.f32.mrb[0].mxu0
        %4200 = vmatprep.mubr.f32.mxu0 0.0
        %4201 = vmatmul.mubr.f32.gmra.mrb[0].mxu0 %v3944
        %v4202 = vpop.f32.mrb[0].mxu0
        %v4203 = vadd.f32 0.0, %v4202
        %v4204 = vpop.f32.mrb[0].mxu0
        %4205 = vmatprep.mubr.f32.mxu0 0.0
        %4206 = vmatmul.mubr.f32.gmra.mrb[0].mxu0 %v3945
        %v4207 = vpop.f32.mrb[0].mxu0
        %v4208 = vadd.f32 0.0, %v4207
        %v4209 = vpop.f32.mrb[0].mxu0
        %4210 = vmatprep.mubr.f32.mxu0 0.0
        %4211 = vmatmul.mubr.f32.gmra.mrb[0].mxu0 %v3946
        %v4212 = vpop.f32.mrb[0].mxu0
        %v4213 = vadd.f32 0.0, %v4212
        %v4214 = vpop.f32.mrb[0].mxu0
        %4215 = vmatprep.mubr.f32.mxu0 0.0
        %4216 = vmatmul.mubr.f32.gmra.mrb[0].mxu0 %v3947
        %v4217 = vpop.f32.mrb[0].mxu0
        %v4218 = vadd.f32 0.0, %v4217
        %v4219 = vpop.f32.mrb[0].mxu0
        %4220 = vdwg.mxu0
        %v4221 = vadd.f32 %v3948, %v4063
        %v4222 = vadd.f32 %v3949, %v4068
        %v4223 = vadd.f32 %v3950, %v4073
        %v4224 = vadd.f32 %v3951, %v4078
        %v4225 = vadd.f32 %v3952, %v4083
        %v4226 = vadd.f32 %v3953, %v4088
        %v4227 = vadd.f32 %v3954, %v4093
        %v4228 = vadd.f32 %v3955, %v4098
        %v4229 = vadd.f32 %v3956, %v4103
        %v4230 = vadd.f32 %v3957, %v4108
        %v4231 = vadd.f32 %v3958, %v4113
        %v4232 = vadd.f32 %v3959, %v4118
        %v4233 = vadd.f32 %v3960, %v4123
        %v4234 = vadd.f32 %v3961, %v4128
        %v4235 = vadd.f32 %v3962, %v4133
        %v4236 = vadd.f32 %v3963, %v4138
        %v4237 = vadd.f32 %v3964, %v4143
        %v4238 = vadd.f32 %v3965, %v4148
        %v4239 = vadd.f32 %v3966, %v4153
        %v4240 = vadd.f32 %v3967, %v4158
        %v4241 = vadd.f32 %v3968, %v4163
        %v4242 = vadd.f32 %v3969, %v4168
        %v4243 = vadd.f32 %v3970, %v4173
        %v4244 = vadd.f32 %v3971, %v4178
        %v4245 = vadd.f32 %v3972, %v4183
        %v4246 = vadd.f32 %v3973, %v4188
        %v4247 = vadd.f32 %v3974, %v4193
        %v4248 = vadd.f32 %v3975, %v4198
        %v4249 = vadd.f32 %v3976, %v4203
        %v4250 = vadd.f32 %v3977, %v4208
        %v4251 = vadd.f32 %v3978, %v4213
        %v4252 = vadd.f32 %v3979, %v4218
        %4253 = vst [vmem:[#allocation2] sm:$0xff] %v4221
        %4254 = vst [vmem:[#allocation2 + $0x8] sm:$0xff] %v4222
        %4255 = vst [vmem:[#allocation2 + $0x10] sm:$0xff] %v4223
        %4256 = vst [vmem:[#allocation2 + $0x18] sm:$0xff] %v4224
        %4257 = vst [vmem:[#allocation2 + $0x20] sm:$0xff] %v4225
        %4258 = vst [vmem:[#allocation2 + $0x28] sm:$0xff] %v4226
        %4259 = vst [vmem:[#allocation2 + $0x30] sm:$0xff] %v4227
        %4260 = vst [vmem:[#allocation2 + $0x38] sm:$0xff] %v4228
        %4261 = vst [vmem:[#allocation2 + $0x40] sm:$0xff] %v4229
        %4262 = vst [vmem:[#allocation2 + $0x48] sm:$0xff] %v4230
        %4263 = vst [vmem:[#allocation2 + $0x50] sm:$0xff] %v4231
        %4264 = vst [vmem:[#allocation2 + $0x58] sm:$0xff] %v4232
        %4265 = vst [vmem:[#allocation2 + $0x60] sm:$0xff] %v4233
        %4266 = vst [vmem:[#allocation2 + $0x68] sm:$0xff] %v4234
        %4267 = vst [vmem:[#allocation2 + $0x70] sm:$0xff] %v4235
        %4268 = vst [vmem:[#allocation2 + $0x78] sm:$0xff] %v4236
        %4269 = vst [vmem:[#allocation2 + $0x80] sm:$0xff] %v4237
        %4270 = vst [vmem:[#allocation2 + $0x88] sm:$0xff] %v4238
        %4271 = vst [vmem:[#allocation2 + $0x90] sm:$0xff] %v4239
        %4272 = vst [vmem:[#allocation2 + $0x98] sm:$0xff] %v4240
        %4273 = vst [vmem:[#allocation2 + $0xa0] sm:$0xff] %v4241
        %4274 = vst [vmem:[#allocation2 + $0xa8] sm:$0xff] %v4242
        %4275 = vst [vmem:[#allocation2 + $0xb0] sm:$0xff] %v4243
        %4276 = vst [vmem:[#allocation2 + $0xb8] sm:$0xff] %v4244
        %4277 = vst [vmem:[#allocation2 + $0xc0] sm:$0xff] %v4245
        %4278 = vst [vmem:[#allocation2 + $0xc8] sm:$0xff] %v4246
        %4279 = vst [vmem:[#allocation2 + $0xd0] sm:$0xff] %v4247
        %4280 = vst [vmem:[#allocation2 + $0xd8] sm:$0xff] %v4248
        %4281 = vst [vmem:[#allocation2 + $0xe0] sm:$0xff] %v4249
        %4282 = vst [vmem:[#allocation2 + $0xe8] sm:$0xff] %v4250
        %4283 = vst [vmem:[#allocation2 + $0xf0] sm:$0xff] %v4251
        %4284 = vst [vmem:[#allocation2 + $0xf8] sm:$0xff] %v4252
        %v4285 = vld [vmem:[#allocation3 + $0x1] sm:$0xff]
        %v4286 = vld [vmem:[#allocation3 + $0x9] sm:$0xff]
        %v4287 = vld [vmem:[#allocation3 + $0x19] sm:$0xff]
        %v4288 = vld [vmem:[#allocation3 + $0x21] sm:$0xff]
        %v4289 = vld [vmem:[#allocation3 + $0x31] sm:$0xff]
        %v4290 = vld [vmem:[#allocation3 + $0x39] sm:$0xff]
        %v4291 = vld [vmem:[#allocation3 + $0x49] sm:$0xff]
        %v4292 = vld [vmem:[#allocation3 + $0x51] sm:$0xff]
        %v4293 = vld [vmem:[#allocation3 + $0x61] sm:$0xff]
        %v4294 = vld [vmem:[#allocation3 + $0x69] sm:$0xff]
        %v4295 = vld [vmem:[#allocation3 + $0x79] sm:$0xff]
        %v4296 = vld [vmem:[#allocation3 + $0x81] sm:$0xff]
        %v4297 = vld [vmem:[#allocation3 + $0x91] sm:$0xff]
        %v4298 = vld [vmem:[#allocation3 + $0x99] sm:$0xff]
        %v4299 = vld [vmem:[#allocation3 + $0xa9] sm:$0xff]
        %v4300 = vld [vmem:[#allocation3 + $0xb1] sm:$0xff]
        %v4301 = vld [vmem:[#allocation3 + $0xc1] sm:$0xff]
        %v4302 = vld [vmem:[#allocation3 + $0xc9] sm:$0xff]
        %v4303 = vld [vmem:[#allocation3 + $0xd9] sm:$0xff]
        %v4304 = vld [vmem:[#allocation3 + $0xe1] sm:$0xff]
        %v4305 = vld [vmem:[#allocation3 + $0xf1] sm:$0xff]
        %v4306 = vld [vmem:[#allocation3 + $0xf9] sm:$0xff]
        %v4307 = vld [vmem:[#allocation3 + $0x109] sm:$0xff]
        %v4308 = vld [vmem:[#allocation3 + $0x111] sm:$0xff]
        %v4309 = vld [vmem:[#allocation3 + $0x121] sm:$0xff]
        %v4310 = vld [vmem:[#allocation3 + $0x129] sm:$0xff]
        %v4311 = vld [vmem:[#allocation3 + $0x139] sm:$0xff]
        %v4312 = vld [vmem:[#allocation3 + $0x141] sm:$0xff]
        %v4313 = vld [vmem:[#allocation3 + $0x151] sm:$0xff]
        %v4314 = vld [vmem:[#allocation3 + $0x159] sm:$0xff]
        %v4315 = vld [vmem:[#allocation3 + $0x169] sm:$0xff]
        %v4316 = vld [vmem:[#allocation3 + $0x171] sm:$0xff]
        %v4317 = vld [vmem:[#allocation2] sm:$0xff]
        %v4318 = vld [vmem:[#allocation2 + $0x8] sm:$0xff]
        %v4319 = vld [vmem:[#allocation2 + $0x10] sm:$0xff]
        %v4320 = vld [vmem:[#allocation2 + $0x18] sm:$0xff]
        %v4321 = vld [vmem:[#allocation2 + $0x20] sm:$0xff]
        %v4322 = vld [vmem:[#allocation2 + $0x28] sm:$0xff]
        %v4323 = vld [vmem:[#allocation2 + $0x30] sm:$0xff]
        %v4324 = vld [vmem:[#allocation2 + $0x38] sm:$0xff]
        %v4325 = vld [vmem:[#allocation2 + $0x40] sm:$0xff]
        %v4326 = vld [vmem:[#allocation2 + $0x48] sm:$0xff]
        %v4327 = vld [vmem:[#allocation2 + $0x50] sm:$0xff]
        %v4328 = vld [vmem:[#allocation2 + $0x58] sm:$0xff]
        %v4329 = vld [vmem:[#allocation2 + $0x60] sm:$0xff]
        %v4330 = vld [vmem:[#allocation2 + $0x68] sm:$0xff]
        %v4331 = vld [vmem:[#allocation2 + $0x70] sm:$0xff]
        %v4332 = vld [vmem:[#allocation2 + $0x78] sm:$0xff]
        %v4333 = vld [vmem:[#allocation2 + $0x80] sm:$0xff]
        %v4334 = vld [vmem:[#allocation2 + $0x88] sm:$0xff]
        %v4335 = vld [vmem:[#allocation2 + $0x90] sm:$0xff]
        %v4336 = vld [vmem:[#allocation2 + $0x98] sm:$0xff]
        %v4337 = vld [vmem:[#allocation2 + $0xa0] sm:$0xff]
        %v4338 = vld [vmem:[#allocation2 + $0xa8] sm:$0xff]
        %v4339 = vld [vmem:[#allocation2 + $0xb0] sm:$0xff]
        %v4340 = vld [vmem:[#allocation2 + $0xb8] sm:$0xff]
        %v4341 = vld [vmem:[#allocation2 + $0xc0] sm:$0xff]
        %v4342 = vld [vmem:[#allocation2 + $0xc8] sm:$0xff]
        %v4343 = vld [vmem:[#allocation2 + $0xd0] sm:$0xff]
        %v4344 = vld [vmem:[#allocation2 + $0xd8] sm:$0xff]
        %v4345 = vld [vmem:[#allocation2 + $0xe0] sm:$0xff]
        %v4346 = vld [vmem:[#allocation2 + $0xe8] sm:$0xff]
        %v4347 = vld [vmem:[#allocation2 + $0xf0] sm:$0xff]
        %v4348 = vld [vmem:[#allocation2 + $0xf8] sm:$0xff]
        %s4349 = scalar_lea.vmem [#allocation4], 128
        %v4350 = vld [vmem:[%s4349] sm:$0xff]
        %v4351 = vld [vmem:[%s4349 + $0x8] sm:$0xff]
        %v4352 = vld [vmem:[%s4349 + $0x10] sm:$0xff]
        %v4353 = vld [vmem:[%s4349 + $0x18] sm:$0xff]
        %v4354 = vld [vmem:[%s4349 + $0x20] sm:$0xff]
        %v4355 = vld [vmem:[%s4349 + $0x28] sm:$0xff]
        %v4356 = vld [vmem:[%s4349 + $0x30] sm:$0xff]
        %v4357 = vld [vmem:[%s4349 + $0x38] sm:$0xff]
        %v4358 = vld [vmem:[%s4349 + $0x40] sm:$0xff]
        %v4359 = vld [vmem:[%s4349 + $0x48] sm:$0xff]
        %v4360 = vld [vmem:[%s4349 + $0x50] sm:$0xff]
        %v4361 = vld [vmem:[%s4349 + $0x58] sm:$0xff]
        %v4362 = vld [vmem:[%s4349 + $0x60] sm:$0xff]
        %v4363 = vld [vmem:[%s4349 + $0x68] sm:$0xff]
        %v4364 = vld [vmem:[%s4349 + $0x70] sm:$0xff]
        %v4365 = vld [vmem:[%s4349 + $0x78] sm:$0xff]
        %4366 = vmatprep.subr.mxu0 0.0
        %4367 = vmatpush1.msra.mxu0 %v4350
        %4368 = vmatprep.subr.mxu0 0.0
        %4369 = vmatpush1.msra.mxu0 %v4351
        %4370 = vmatprep.subr.mxu0 0.0
        %4371 = vmatpush1.msra.mxu0 %v4352
        %4372 = vmatprep.subr.mxu0 0.0
        %4373 = vmatpush1.msra.mxu0 %v4353
        %4374 = vmatprep.subr.mxu0 0.0
        %4375 = vmatpush1.msra.mxu0 %v4354
        %4376 = vmatprep.subr.mxu0 0.0
        %4377 = vmatpush1.msra.mxu0 %v4355
        %4378 = vmatprep.subr.mxu0 0.0
        %4379 = vmatpush1.msra.mxu0 %v4356
        %4380 = vmatprep.subr.mxu0 0.0
        %4381 = vmatpush1.msra.mxu0 %v4357
        %4382 = vmatprep.subr.mxu0 0.0
        %4383 = vmatpush1.msra.mxu0 %v4358
        %4384 = vmatprep.subr.mxu0 0.0
        %4385 = vmatpush1.msra.mxu0 %v4359
        %4386 = vmatprep.subr.mxu0 0.0
        %4387 = vmatpush1.msra.mxu0 %v4360
        %4388 = vmatprep.subr.mxu0 0.0
        %4389 = vmatpush1.msra.mxu0 %v4361
        %4390 = vmatprep.subr.mxu0 0.0
        %4391 = vmatpush1.msra.mxu0 %v4362
        %4392 = vmatprep.subr.mxu0 0.0
        %4393 = vmatpush1.msra.mxu0 %v4363
        %4394 = vmatprep.subr.mxu0 0.0
        %4395 = vmatpush1.msra.mxu0 %v4364
        %4396 = vmatprep.subr.mxu0 0.0
        %4397 = vmatpush1.msra.mxu0 %v4365
        %4398 = vmatprep.subr.mxu0 0.0
        %4399 = vmatpush1.msra.mxu0 0.0
        %4400 = vmatprep.subr.mxu0 0.0
        %4401 = vmatpush1.msra.mxu0 0.0
        %4402 = vmatprep.subr.mxu0 0.0
        %4403 = vmatpush1.msra.mxu0 0.0
        %4404 = vmatprep.subr.mxu0 0.0
        %4405 = vmatpush1.msra.mxu0 0.0
        %4406 = vmatprep.subr.mxu0 0.0
        %4407 = vmatpush1.msra.mxu0 0.0
        %4408 = vmatprep.subr.mxu0 0.0
        %4409 = vmatpush1.msra.mxu0 0.0
        %4410 = vmatprep.subr.mxu0 0.0
        %4411 = vmatpush1.msra.mxu0 0.0
        %4412 = vmatprep.subr.mxu0 0.0
        %4413 = vmatpush1.msra.mxu0 0.0
        %4414 = vmatprep.subr.mxu0 0.0
        %4415 = vmatpush1.msra.mxu0 0.0
        %4416 = vmatprep.subr.mxu0 0.0
        %4417 = vmatpush1.msra.mxu0 0.0
        %4418 = vmatprep.subr.mxu0 0.0
        %4419 = vmatpush1.msra.mxu0 0.0
        %4420 = vmatprep.subr.mxu0 0.0
        %4421 = vmatpush1.msra.mxu0 0.0
        %4422 = vmatprep.subr.mxu0 0.0
        %4423 = vmatpush1.msra.mxu0 0.0
        %4424 = vmatprep.subr.mxu0 0.0
        %4425 = vmatpush1.msra.mxu0 0.0
        %4426 = vmatprep.subr.mxu0 0.0
        %4427 = vmatpush1.msra.mxu0 0.0
        %4428 = vmatprep.subr.mxu0 0.0
        %4429 = vmatpush1.msra.mxu0 0.0
        %4430 = vmatprep.mubr.f32.mxu0 0.0
        %4431 = vmatmul.mubr.f32.gmra.mrb[0].mxu0 %v4285
        %v4432 = vpop.f32.mrb[0].mxu0
        %v4433 = vadd.f32 0.0, %v4432
        %v4434 = vpop.f32.mrb[0].mxu0
        %4435 = vmatprep.mubr.f32.mxu0 0.0
        %4436 = vmatmul.mubr.f32.gmra.mrb[0].mxu0 %v4286
        %v4437 = vpop.f32.mrb[0].mxu0
        %v4438 = vadd.f32 0.0, %v4437
        %v4439 = vpop.f32.mrb[0].mxu0
        %4440 = vmatprep.mubr.f32.mxu0 0.0
        %4441 = vmatmul.mubr.f32.gmra.mrb[0].mxu0 %v4287
        %v4442 = vpop.f32.mrb[0].mxu0
        %v4443 = vadd.f32 0.0, %v4442
        %v4444 = vpop.f32.mrb[0].mxu0
        %4445 = vmatprep.mubr.f32.mxu0 0.0
        %4446 = vmatmul.mubr.f32.gmra.mrb[0].mxu0 %v4288
        %v4447 = vpop.f32.mrb[0].mxu0
        %v4448 = vadd.f32 0.0, %v4447
        %v4449 = vpop.f32.mrb[0].mxu0
        %4450 = vmatprep.mubr.f32.mxu0 0.0
        %4451 = vmatmul.mubr.f32.gmra.mrb[0].mxu0 %v4289
        %v4452 = vpop.f32.mrb[0].mxu0
        %v4453 = vadd.f32 0.0, %v4452
        %v4454 = vpop.f32.mrb[0].mxu0
        %4455 = vmatprep.mubr.f32.mxu0 0.0
        %4456 = vmatmul.mubr.f32.gmra.mrb[0].mxu0 %v4290
        %v4457 = vpop.f32.mrb[0].mxu0
        %v4458 = vadd.f32 0.0, %v4457
        %v4459 = vpop.f32.mrb[0].mxu0
        %4460 = vmatprep.mubr.f32.mxu0 0.0
        %4461 = vmatmul.mubr.f32.gmra.mrb[0].mxu0 %v4291
        %v4462 = vpop.f32.mrb[0].mxu0
        %v4463 = vadd.f32 0.0, %v4462
        %v4464 = vpop.f32.mrb[0].mxu0
        %4465 = vmatprep.mubr.f32.mxu0 0.0
        %4466 = vmatmul.mubr.f32.gmra.mrb[0].mxu0 %v4292
        %v4467 = vpop.f32.mrb[0].mxu0
        %v4468 = vadd.f32 0.0, %v4467
        %v4469 = vpop.f32.mrb[0].mxu0
        %4470 = vmatprep.mubr.f32.mxu0 0.0
        %4471 = vmatmul.mubr.f32.gmra.mrb[0].mxu0 %v4293
        %v4472 = vpop.f32.mrb[0].mxu0
        %v4473 = vadd.f32 0.0, %v4472
        %v4474 = vpop.f32.mrb[0].mxu0
        %4475 = vmatprep.mubr.f32.mxu0 0.0
        %4476 = vmatmul.mubr.f32.gmra.mrb[0].mxu0 %v4294
        %v4477 = vpop.f32.mrb[0].mxu0
        %v4478 = vadd.f32 0.0, %v4477
        %v4479 = vpop.f32.mrb[0].mxu0
        %4480 = vmatprep.mubr.f32.mxu0 0.0
        %4481 = vmatmul.mubr.f32.gmra.mrb[0].mxu0 %v4295
        %v4482 = vpop.f32.mrb[0].mxu0
        %v4483 = vadd.f32 0.0, %v4482
        %v4484 = vpop.f32.mrb[0].mxu0
        %4485 = vmatprep.mubr.f32.mxu0 0.0
        %4486 = vmatmul.mubr.f32.gmra.mrb[0].mxu0 %v4296
        %v4487 = vpop.f32.mrb[0].mxu0
        %v4488 = vadd.f32 0.0, %v4487
        %v4489 = vpop.f32.mrb[0].mxu0
        %4490 = vmatprep.mubr.f32.mxu0 0.0
        %4491 = vmatmul.mubr.f32.gmra.mrb[0].mxu0 %v4297
        %v4492 = vpop.f32.mrb[0].mxu0
        %v4493 = vadd.f32 0.0, %v4492
        %v4494 = vpop.f32.mrb[0].mxu0
        %4495 = vmatprep.mubr.f32.mxu0 0.0
        %4496 = vmatmul.mubr.f32.gmra.mrb[0].mxu0 %v4298
        %v4497 = vpop.f32.mrb[0].mxu0
        %v4498 = vadd.f32 0.0, %v4497
        %v4499 = vpop.f32.mrb[0].mxu0
        %4500 = vmatprep.mubr.f32.mxu0 0.0
        %4501 = vmatmul.mubr.f32.gmra.mrb[0].mxu0 %v4299
        %v4502 = vpop.f32.mrb[0].mxu0
        %v4503 = vadd.f32 0.0, %v4502
        %v4504 = vpop.f32.mrb[0].mxu0
        %4505 = vmatprep.mubr.f32.mxu0 0.0
        %4506 = vmatmul.mubr.f32.gmra.mrb[0].mxu0 %v4300
        %v4507 = vpop.f32.mrb[0].mxu0
        %v4508 = vadd.f32 0.0, %v4507
        %v4509 = vpop.f32.mrb[0].mxu0
        %4510 = vmatprep.mubr.f32.mxu0 0.0
        %4511 = vmatmul.mubr.f32.gmra.mrb[0].mxu0 %v4301
        %v4512 = vpop.f32.mrb[0].mxu0
        %v4513 = vadd.f32 0.0, %v4512
        %v4514 = vpop.f32.mrb[0].mxu0
        %4515 = vmatprep.mubr.f32.mxu0 0.0
        %4516 = vmatmul.mubr.f32.gmra.mrb[0].mxu0 %v4302
        %v4517 = vpop.f32.mrb[0].mxu0
        %v4518 = vadd.f32 0.0, %v4517
        %v4519 = vpop.f32.mrb[0].mxu0
        %4520 = vmatprep.mubr.f32.mxu0 0.0
        %4521 = vmatmul.mubr.f32.gmra.mrb[0].mxu0 %v4303
        %v4522 = vpop.f32.mrb[0].mxu0
        %v4523 = vadd.f32 0.0, %v4522
        %v4524 = vpop.f32.mrb[0].mxu0
        %4525 = vmatprep.mubr.f32.mxu0 0.0
        %4526 = vmatmul.mubr.f32.gmra.mrb[0].mxu0 %v4304
        %v4527 = vpop.f32.mrb[0].mxu0
        %v4528 = vadd.f32 0.0, %v4527
        %v4529 = vpop.f32.mrb[0].mxu0
        %4530 = vmatprep.mubr.f32.mxu0 0.0
        %4531 = vmatmul.mubr.f32.gmra.mrb[0].mxu0 %v4305
        %v4532 = vpop.f32.mrb[0].mxu0
        %v4533 = vadd.f32 0.0, %v4532
        %v4534 = vpop.f32.mrb[0].mxu0
        %4535 = vmatprep.mubr.f32.mxu0 0.0
        %4536 = vmatmul.mubr.f32.gmra.mrb[0].mxu0 %v4306
        %v4537 = vpop.f32.mrb[0].mxu0
        %v4538 = vadd.f32 0.0, %v4537
        %v4539 = vpop.f32.mrb[0].mxu0
        %4540 = vmatprep.mubr.f32.mxu0 0.0
        %4541 = vmatmul.mubr.f32.gmra.mrb[0].mxu0 %v4307
        %v4542 = vpop.f32.mrb[0].mxu0
        %v4543 = vadd.f32 0.0, %v4542
        %v4544 = vpop.f32.mrb[0].mxu0
        %4545 = vmatprep.mubr.f32.mxu0 0.0
        %4546 = vmatmul.mubr.f32.gmra.mrb[0].mxu0 %v4308
        %v4547 = vpop.f32.mrb[0].mxu0
        %v4548 = vadd.f32 0.0, %v4547
        %v4549 = vpop.f32.mrb[0].mxu0
        %4550 = vmatprep.mubr.f32.mxu0 0.0
        %4551 = vmatmul.mubr.f32.gmra.mrb[0].mxu0 %v4309
        %v4552 = vpop.f32.mrb[0].mxu0
        %v4553 = vadd.f32 0.0, %v4552
        %v4554 = vpop.f32.mrb[0].mxu0
        %4555 = vmatprep.mubr.f32.mxu0 0.0
        %4556 = vmatmul.mubr.f32.gmra.mrb[0].mxu0 %v4310
        %v4557 = vpop.f32.mrb[0].mxu0
        %v4558 = vadd.f32 0.0, %v4557
        %v4559 = vpop.f32.mrb[0].mxu0
        %4560 = vmatprep.mubr.f32.mxu0 0.0
        %4561 = vmatmul.mubr.f32.gmra.mrb[0].mxu0 %v4311
        %v4562 = vpop.f32.mrb[0].mxu0
        %v4563 = vadd.f32 0.0, %v4562
        %v4564 = vpop.f32.mrb[0].mxu0
        %4565 = vmatprep.mubr.f32.mxu0 0.0
        %4566 = vmatmul.mubr.f32.gmra.mrb[0].mxu0 %v4312
        %v4567 = vpop.f32.mrb[0].mxu0
        %v4568 = vadd.f32 0.0, %v4567
        %v4569 = vpop.f32.mrb[0].mxu0
        %4570 = vmatprep.mubr.f32.mxu0 0.0
        %4571 = vmatmul.mubr.f32.gmra.mrb[0].mxu0 %v4313
        %v4572 = vpop.f32.mrb[0].mxu0
        %v4573 = vadd.f32 0.0, %v4572
        %v4574 = vpop.f32.mrb[0].mxu0
        %4575 = vmatprep.mubr.f32.mxu0 0.0
        %4576 = vmatmul.mubr.f32.gmra.mrb[0].mxu0 %v4314
        %v4577 = vpop.f32.mrb[0].mxu0
        %v4578 = vadd.f32 0.0, %v4577
        %v4579 = vpop.f32.mrb[0].mxu0
        %4580 = vmatprep.mubr.f32.mxu0 0.0
        %4581 = vmatmul.mubr.f32.gmra.mrb[0].mxu0 %v4315
        %v4582 = vpop.f32.mrb[0].mxu0
        %v4583 = vadd.f32 0.0, %v4582
        %v4584 = vpop.f32.mrb[0].mxu0
        %4585 = vmatprep.mubr.f32.mxu0 0.0
        %4586 = vmatmul.mubr.f32.gmra.mrb[0].mxu0 %v4316
        %v4587 = vpop.f32.mrb[0].mxu0
        %v4588 = vadd.f32 0.0, %v4587
        %v4589 = vpop.f32.mrb[0].mxu0
        %4590 = vdwg.mxu0
        %v4591 = vadd.f32 %v4317, %v4433
        %v4592 = vadd.f32 %v4318, %v4438
        %v4593 = vadd.f32 %v4319, %v4443
        %v4594 = vadd.f32 %v4320, %v4448
        %v4595 = vadd.f32 %v4321, %v4453
        %v4596 = vadd.f32 %v4322, %v4458
        %v4597 = vadd.f32 %v4323, %v4463
        %v4598 = vadd.f32 %v4324, %v4468
        %v4599 = vadd.f32 %v4325, %v4473
        %v4600 = vadd.f32 %v4326, %v4478
        %v4601 = vadd.f32 %v4327, %v4483
        %v4602 = vadd.f32 %v4328, %v4488
        %v4603 = vadd.f32 %v4329, %v4493
        %v4604 = vadd.f32 %v4330, %v4498
        %v4605 = vadd.f32 %v4331, %v4503
        %v4606 = vadd.f32 %v4332, %v4508
        %v4607 = vadd.f32 %v4333, %v4513
        %v4608 = vadd.f32 %v4334, %v4518
        %v4609 = vadd.f32 %v4335, %v4523
        %v4610 = vadd.f32 %v4336, %v4528
        %v4611 = vadd.f32 %v4337, %v4533
        %v4612 = vadd.f32 %v4338, %v4538
        %v4613 = vadd.f32 %v4339, %v4543
        %v4614 = vadd.f32 %v4340, %v4548
        %v4615 = vadd.f32 %v4341, %v4553
        %v4616 = vadd.f32 %v4342, %v4558
        %v4617 = vadd.f32 %v4343, %v4563
        %v4618 = vadd.f32 %v4344, %v4568
        %v4619 = vadd.f32 %v4345, %v4573
        %v4620 = vadd.f32 %v4346, %v4578
        %v4621 = vadd.f32 %v4347, %v4583
        %v4622 = vadd.f32 %v4348, %v4588
        %4623 = vst [vmem:[#allocation2] sm:$0xff] %v4591
        %4624 = vst [vmem:[#allocation2 + $0x8] sm:$0xff] %v4592
        %4625 = vst [vmem:[#allocation2 + $0x10] sm:$0xff] %v4593
        %4626 = vst [vmem:[#allocation2 + $0x18] sm:$0xff] %v4594
        %4627 = vst [vmem:[#allocation2 + $0x20] sm:$0xff] %v4595
        %4628 = vst [vmem:[#allocation2 + $0x28] sm:$0xff] %v4596
        %4629 = vst [vmem:[#allocation2 + $0x30] sm:$0xff] %v4597
        %4630 = vst [vmem:[#allocation2 + $0x38] sm:$0xff] %v4598
        %4631 = vst [vmem:[#allocation2 + $0x40] sm:$0xff] %v4599
        %4632 = vst [vmem:[#allocation2 + $0x48] sm:$0xff] %v4600
        %4633 = vst [vmem:[#allocation2 + $0x50] sm:$0xff] %v4601
        %4634 = vst [vmem:[#allocation2 + $0x58] sm:$0xff] %v4602
        %4635 = vst [vmem:[#allocation2 + $0x60] sm:$0xff] %v4603
        %4636 = vst [vmem:[#allocation2 + $0x68] sm:$0xff] %v4604
        %4637 = vst [vmem:[#allocation2 + $0x70] sm:$0xff] %v4605
        %4638 = vst [vmem:[#allocation2 + $0x78] sm:$0xff] %v4606
        %4639 = vst [vmem:[#allocation2 + $0x80] sm:$0xff] %v4607
        %4640 = vst [vmem:[#allocation2 + $0x88] sm:$0xff] %v4608
        %4641 = vst [vmem:[#allocation2 + $0x90] sm:$0xff] %v4609
        %4642 = vst [vmem:[#allocation2 + $0x98] sm:$0xff] %v4610
        %4643 = vst [vmem:[#allocation2 + $0xa0] sm:$0xff] %v4611
        %4644 = vst [vmem:[#allocation2 + $0xa8] sm:$0xff] %v4612
        %4645 = vst [vmem:[#allocation2 + $0xb0] sm:$0xff] %v4613
        %4646 = vst [vmem:[#allocation2 + $0xb8] sm:$0xff] %v4614
        %4647 = vst [vmem:[#allocation2 + $0xc0] sm:$0xff] %v4615
        %4648 = vst [vmem:[#allocation2 + $0xc8] sm:$0xff] %v4616
        %4649 = vst [vmem:[#allocation2 + $0xd0] sm:$0xff] %v4617
        %4650 = vst [vmem:[#allocation2 + $0xd8] sm:$0xff] %v4618
        %4651 = vst [vmem:[#allocation2 + $0xe0] sm:$0xff] %v4619
        %4652 = vst [vmem:[#allocation2 + $0xe8] sm:$0xff] %v4620
        %4653 = vst [vmem:[#allocation2 + $0xf0] sm:$0xff] %v4621
        %4654 = vst [vmem:[#allocation2 + $0xf8] sm:$0xff] %v4622
        %v4655 = vld [vmem:[#allocation3 + $0x2] sm:$0xff]
        %v4656 = vld [vmem:[#allocation3 + $0xa] sm:$0xff]
        %v4657 = vld [vmem:[#allocation3 + $0x1a] sm:$0xff]
        %v4658 = vld [vmem:[#allocation3 + $0x22] sm:$0xff]
        %v4659 = vld [vmem:[#allocation3 + $0x32] sm:$0xff]
        %v4660 = vld [vmem:[#allocation3 + $0x3a] sm:$0xff]
        %v4661 = vld [vmem:[#allocation3 + $0x4a] sm:$0xff]
        %v4662 = vld [vmem:[#allocation3 + $0x52] sm:$0xff]
        %v4663 = vld [vmem:[#allocation3 + $0x62] sm:$0xff]
        %v4664 = vld [vmem:[#allocation3 + $0x6a] sm:$0xff]
        %v4665 = vld [vmem:[#allocation3 + $0x7a] sm:$0xff]
        %v4666 = vld [vmem:[#allocation3 + $0x82] sm:$0xff]
        %v4667 = vld [vmem:[#allocation3 + $0x92] sm:$0xff]
        %v4668 = vld [vmem:[#allocation3 + $0x9a] sm:$0xff]
        %v4669 = vld [vmem:[#allocation3 + $0xaa] sm:$0xff]
        %v4670 = vld [vmem:[#allocation3 + $0xb2] sm:$0xff]
        %v4671 = vld [vmem:[#allocation3 + $0xc2] sm:$0xff]
        %v4672 = vld [vmem:[#allocation3 + $0xca] sm:$0xff]
        %v4673 = vld [vmem:[#allocation3 + $0xda] sm:$0xff]
        %v4674 = vld [vmem:[#allocation3 + $0xe2] sm:$0xff]
        %v4675 = vld [vmem:[#allocation3 + $0xf2] sm:$0xff]
        %v4676 = vld [vmem:[#allocation3 + $0xfa] sm:$0xff]
        %v4677 = vld [vmem:[#allocation3 + $0x10a] sm:$0xff]
        %v4678 = vld [vmem:[#allocation3 + $0x112] sm:$0xff]
        %v4679 = vld [vmem:[#allocation3 + $0x122] sm:$0xff]
        %v4680 = vld [vmem:[#allocation3 + $0x12a] sm:$0xff]
        %v4681 = vld [vmem:[#allocation3 + $0x13a] sm:$0xff]
        %v4682 = vld [vmem:[#allocation3 + $0x142] sm:$0xff]
        %v4683 = vld [vmem:[#allocation3 + $0x152] sm:$0xff]
        %v4684 = vld [vmem:[#allocation3 + $0x15a] sm:$0xff]
        %v4685 = vld [vmem:[#allocation3 + $0x16a] sm:$0xff]
        %v4686 = vld [vmem:[#allocation3 + $0x172] sm:$0xff]
        %v4687 = vld [vmem:[#allocation2] sm:$0xff]
        %v4688 = vld [vmem:[#allocation2 + $0x8] sm:$0xff]
        %v4689 = vld [vmem:[#allocation2 + $0x10] sm:$0xff]
        %v4690 = vld [vmem:[#allocation2 + $0x18] sm:$0xff]
        %v4691 = vld [vmem:[#allocation2 + $0x20] sm:$0xff]
        %v4692 = vld [vmem:[#allocation2 + $0x28] sm:$0xff]
        %v4693 = vld [vmem:[#allocation2 + $0x30] sm:$0xff]
        %v4694 = vld [vmem:[#allocation2 + $0x38] sm:$0xff]
        %v4695 = vld [vmem:[#allocation2 + $0x40] sm:$0xff]
        %v4696 = vld [vmem:[#allocation2 + $0x48] sm:$0xff]
        %v4697 = vld [vmem:[#allocation2 + $0x50] sm:$0xff]
        %v4698 = vld [vmem:[#allocation2 + $0x58] sm:$0xff]
        %v4699 = vld [vmem:[#allocation2 + $0x60] sm:$0xff]
        %v4700 = vld [vmem:[#allocation2 + $0x68] sm:$0xff]
        %v4701 = vld [vmem:[#allocation2 + $0x70] sm:$0xff]
        %v4702 = vld [vmem:[#allocation2 + $0x78] sm:$0xff]
        %v4703 = vld [vmem:[#allocation2 + $0x80] sm:$0xff]
        %v4704 = vld [vmem:[#allocation2 + $0x88] sm:$0xff]
        %v4705 = vld [vmem:[#allocation2 + $0x90] sm:$0xff]
        %v4706 = vld [vmem:[#allocation2 + $0x98] sm:$0xff]
        %v4707 = vld [vmem:[#allocation2 + $0xa0] sm:$0xff]
        %v4708 = vld [vmem:[#allocation2 + $0xa8] sm:$0xff]
        %v4709 = vld [vmem:[#allocation2 + $0xb0] sm:$0xff]
        %v4710 = vld [vmem:[#allocation2 + $0xb8] sm:$0xff]
        %v4711 = vld [vmem:[#allocation2 + $0xc0] sm:$0xff]
        %v4712 = vld [vmem:[#allocation2 + $0xc8] sm:$0xff]
        %v4713 = vld [vmem:[#allocation2 + $0xd0] sm:$0xff]
        %v4714 = vld [vmem:[#allocation2 + $0xd8] sm:$0xff]
        %v4715 = vld [vmem:[#allocation2 + $0xe0] sm:$0xff]
        %v4716 = vld [vmem:[#allocation2 + $0xe8] sm:$0xff]
        %v4717 = vld [vmem:[#allocation2 + $0xf0] sm:$0xff]
        %v4718 = vld [vmem:[#allocation2 + $0xf8] sm:$0xff]
        %s4719 = scalar_lea.vmem [#allocation4], 256
        %v4720 = vld [vmem:[%s4719] sm:$0xff]
        %v4721 = vld [vmem:[%s4719 + $0x8] sm:$0xff]
        %v4722 = vld [vmem:[%s4719 + $0x10] sm:$0xff]
        %v4723 = vld [vmem:[%s4719 + $0x18] sm:$0xff]
        %v4724 = vld [vmem:[%s4719 + $0x20] sm:$0xff]
        %v4725 = vld [vmem:[%s4719 + $0x28] sm:$0xff]
        %v4726 = vld [vmem:[%s4719 + $0x30] sm:$0xff]
        %v4727 = vld [vmem:[%s4719 + $0x38] sm:$0xff]
        %v4728 = vld [vmem:[%s4719 + $0x40] sm:$0xff]
        %v4729 = vld [vmem:[%s4719 + $0x48] sm:$0xff]
        %v4730 = vld [vmem:[%s4719 + $0x50] sm:$0xff]
        %v4731 = vld [vmem:[%s4719 + $0x58] sm:$0xff]
        %v4732 = vld [vmem:[%s4719 + $0x60] sm:$0xff]
        %v4733 = vld [vmem:[%s4719 + $0x68] sm:$0xff]
        %v4734 = vld [vmem:[%s4719 + $0x70] sm:$0xff]
        %v4735 = vld [vmem:[%s4719 + $0x78] sm:$0xff]
        %4736 = vmatprep.subr.mxu0 0.0
        %4737 = vmatpush1.msra.mxu0 %v4720
        %4738 = vmatprep.subr.mxu0 0.0
        %4739 = vmatpush1.msra.mxu0 %v4721
        %4740 = vmatprep.subr.mxu0 0.0
        %4741 = vmatpush1.msra.mxu0 %v4722
        %4742 = vmatprep.subr.mxu0 0.0
        %4743 = vmatpush1.msra.mxu0 %v4723
        %4744 = vmatprep.subr.mxu0 0.0
        %4745 = vmatpush1.msra.mxu0 %v4724
        %4746 = vmatprep.subr.mxu0 0.0
        %4747 = vmatpush1.msra.mxu0 %v4725
        %4748 = vmatprep.subr.mxu0 0.0
        %4749 = vmatpush1.msra.mxu0 %v4726
        %4750 = vmatprep.subr.mxu0 0.0
        %4751 = vmatpush1.msra.mxu0 %v4727
        %4752 = vmatprep.subr.mxu0 0.0
        %4753 = vmatpush1.msra.mxu0 %v4728
        %4754 = vmatprep.subr.mxu0 0.0
        %4755 = vmatpush1.msra.mxu0 %v4729
        %4756 = vmatprep.subr.mxu0 0.0
        %4757 = vmatpush1.msra.mxu0 %v4730
        %4758 = vmatprep.subr.mxu0 0.0
        %4759 = vmatpush1.msra.mxu0 %v4731
        %4760 = vmatprep.subr.mxu0 0.0
        %4761 = vmatpush1.msra.mxu0 %v4732
        %4762 = vmatprep.subr.mxu0 0.0
        %4763 = vmatpush1.msra.mxu0 %v4733
        %4764 = vmatprep.subr.mxu0 0.0
        %4765 = vmatpush1.msra.mxu0 %v4734
        %4766 = vmatprep.subr.mxu0 0.0
        %4767 = vmatpush1.msra.mxu0 %v4735
        %4768 = vmatprep.subr.mxu0 0.0
        %4769 = vmatpush1.msra.mxu0 0.0
        %4770 = vmatprep.subr.mxu0 0.0
        %4771 = vmatpush1.msra.mxu0 0.0
        %4772 = vmatprep.subr.mxu0 0.0
        %4773 = vmatpush1.msra.mxu0 0.0
        %4774 = vmatprep.subr.mxu0 0.0
        %4775 = vmatpush1.msra.mxu0 0.0
        %4776 = vmatprep.subr.mxu0 0.0
        %4777 = vmatpush1.msra.mxu0 0.0
        %4778 = vmatprep.subr.mxu0 0.0
        %4779 = vmatpush1.msra.mxu0 0.0
        %4780 = vmatprep.subr.mxu0 0.0
        %4781 = vmatpush1.msra.mxu0 0.0
        %4782 = vmatprep.subr.mxu0 0.0
        %4783 = vmatpush1.msra.mxu0 0.0
        %4784 = vmatprep.subr.mxu0 0.0
        %4785 = vmatpush1.msra.mxu0 0.0
        %4786 = vmatprep.subr.mxu0 0.0
        %4787 = vmatpush1.msra.mxu0 0.0
        %4788 = vmatprep.subr.mxu0 0.0
        %4789 = vmatpush1.msra.mxu0 0.0
        %4790 = vmatprep.subr.mxu0 0.0
        %4791 = vmatpush1.msra.mxu0 0.0
        %4792 = vmatprep.subr.mxu0 0.0
        %4793 = vmatpush1.msra.mxu0 0.0
        %4794 = vmatprep.subr.mxu0 0.0
        %4795 = vmatpush1.msra.mxu0 0.0
        %4796 = vmatprep.subr.mxu0 0.0
        %4797 = vmatpush1.msra.mxu0 0.0
        %4798 = vmatprep.subr.mxu0 0.0
        %4799 = vmatpush1.msra.mxu0 0.0
        %4800 = vmatprep.mubr.f32.mxu0 0.0
        %4801 = vmatmul.mubr.f32.gmra.mrb[0].mxu0 %v4655
        %v4802 = vpop.f32.mrb[0].mxu0
        %v4803 = vadd.f32 0.0, %v4802
        %v4804 = vpop.f32.mrb[0].mxu0
        %4805 = vmatprep.mubr.f32.mxu0 0.0
        %4806 = vmatmul.mubr.f32.gmra.mrb[0].mxu0 %v4656
        %v4807 = vpop.f32.mrb[0].mxu0
        %v4808 = vadd.f32 0.0, %v4807
        %v4809 = vpop.f32.mrb[0].mxu0
        %4810 = vmatprep.mubr.f32.mxu0 0.0
        %4811 = vmatmul.mubr.f32.gmra.mrb[0].mxu0 %v4657
        %v4812 = vpop.f32.mrb[0].mxu0
        %v4813 = vadd.f32 0.0, %v4812
        %v4814 = vpop.f32.mrb[0].mxu0
        %4815 = vmatprep.mubr.f32.mxu0 0.0
        %4816 = vmatmul.mubr.f32.gmra.mrb[0].mxu0 %v4658
        %v4817 = vpop.f32.mrb[0].mxu0
        %v4818 = vadd.f32 0.0, %v4817
        %v4819 = vpop.f32.mrb[0].mxu0
        %4820 = vmatprep.mubr.f32.mxu0 0.0
        %4821 = vmatmul.mubr.f32.gmra.mrb[0].mxu0 %v4659
        %v4822 = vpop.f32.mrb[0].mxu0
        %v4823 = vadd.f32 0.0, %v4822
        %v4824 = vpop.f32.mrb[0].mxu0
        %4825 = vmatprep.mubr.f32.mxu0 0.0
        %4826 = vmatmul.mubr.f32.gmra.mrb[0].mxu0 %v4660
        %v4827 = vpop.f32.mrb[0].mxu0
        %v4828 = vadd.f32 0.0, %v4827
        %v4829 = vpop.f32.mrb[0].mxu0
        %4830 = vmatprep.mubr.f32.mxu0 0.0
        %4831 = vmatmul.mubr.f32.gmra.mrb[0].mxu0 %v4661
        %v4832 = vpop.f32.mrb[0].mxu0
        %v4833 = vadd.f32 0.0, %v4832
        %v4834 = vpop.f32.mrb[0].mxu0
        %4835 = vmatprep.mubr.f32.mxu0 0.0
        %4836 = vmatmul.mubr.f32.gmra.mrb[0].mxu0 %v4662
        %v4837 = vpop.f32.mrb[0].mxu0
        %v4838 = vadd.f32 0.0, %v4837
        %v4839 = vpop.f32.mrb[0].mxu0
        %4840 = vmatprep.mubr.f32.mxu0 0.0
        %4841 = vmatmul.mubr.f32.gmra.mrb[0].mxu0 %v4663
        %v4842 = vpop.f32.mrb[0].mxu0
        %v4843 = vadd.f32 0.0, %v4842
        %v4844 = vpop.f32.mrb[0].mxu0
        %4845 = vmatprep.mubr.f32.mxu0 0.0
        %4846 = vmatmul.mubr.f32.gmra.mrb[0].mxu0 %v4664
        %v4847 = vpop.f32.mrb[0].mxu0
        %v4848 = vadd.f32 0.0, %v4847
        %v4849 = vpop.f32.mrb[0].mxu0
        %4850 = vmatprep.mubr.f32.mxu0 0.0
        %4851 = vmatmul.mubr.f32.gmra.mrb[0].mxu0 %v4665
        %v4852 = vpop.f32.mrb[0].mxu0
        %v4853 = vadd.f32 0.0, %v4852
        %v4854 = vpop.f32.mrb[0].mxu0
        %4855 = vmatprep.mubr.f32.mxu0 0.0
        %4856 = vmatmul.mubr.f32.gmra.mrb[0].mxu0 %v4666
        %v4857 = vpop.f32.mrb[0].mxu0
        %v4858 = vadd.f32 0.0, %v4857
        %v4859 = vpop.f32.mrb[0].mxu0
        %4860 = vmatprep.mubr.f32.mxu0 0.0
        %4861 = vmatmul.mubr.f32.gmra.mrb[0].mxu0 %v4667
        %v4862 = vpop.f32.mrb[0].mxu0
        %v4863 = vadd.f32 0.0, %v4862
        %v4864 = vpop.f32.mrb[0].mxu0
        %4865 = vmatprep.mubr.f32.mxu0 0.0
        %4866 = vmatmul.mubr.f32.gmra.mrb[0].mxu0 %v4668
        %v4867 = vpop.f32.mrb[0].mxu0
        %v4868 = vadd.f32 0.0, %v4867
        %v4869 = vpop.f32.mrb[0].mxu0
        %4870 = vmatprep.mubr.f32.mxu0 0.0
        %4871 = vmatmul.mubr.f32.gmra.mrb[0].mxu0 %v4669
        %v4872 = vpop.f32.mrb[0].mxu0
        %v4873 = vadd.f32 0.0, %v4872
        %v4874 = vpop.f32.mrb[0].mxu0
        %4875 = vmatprep.mubr.f32.mxu0 0.0
        %4876 = vmatmul.mubr.f32.gmra.mrb[0].mxu0 %v4670
        %v4877 = vpop.f32.mrb[0].mxu0
        %v4878 = vadd.f32 0.0, %v4877
        %v4879 = vpop.f32.mrb[0].mxu0
        %4880 = vmatprep.mubr.f32.mxu0 0.0
        %4881 = vmatmul.mubr.f32.gmra.mrb[0].mxu0 %v4671
        %v4882 = vpop.f32.mrb[0].mxu0
        %v4883 = vadd.f32 0.0, %v4882
        %v4884 = vpop.f32.mrb[0].mxu0
        %4885 = vmatprep.mubr.f32.mxu0 0.0
        %4886 = vmatmul.mubr.f32.gmra.mrb[0].mxu0 %v4672
        %v4887 = vpop.f32.mrb[0].mxu0
        %v4888 = vadd.f32 0.0, %v4887
        %v4889 = vpop.f32.mrb[0].mxu0
        %4890 = vmatprep.mubr.f32.mxu0 0.0
        %4891 = vmatmul.mubr.f32.gmra.mrb[0].mxu0 %v4673
        %v4892 = vpop.f32.mrb[0].mxu0
        %v4893 = vadd.f32 0.0, %v4892
        %v4894 = vpop.f32.mrb[0].mxu0
        %4895 = vmatprep.mubr.f32.mxu0 0.0
        %4896 = vmatmul.mubr.f32.gmra.mrb[0].mxu0 %v4674
        %v4897 = vpop.f32.mrb[0].mxu0
        %v4898 = vadd.f32 0.0, %v4897
        %v4899 = vpop.f32.mrb[0].mxu0
        %4900 = vmatprep.mubr.f32.mxu0 0.0
        %4901 = vmatmul.mubr.f32.gmra.mrb[0].mxu0 %v4675
        %v4902 = vpop.f32.mrb[0].mxu0
        %v4903 = vadd.f32 0.0, %v4902
        %v4904 = vpop.f32.mrb[0].mxu0
        %4905 = vmatprep.mubr.f32.mxu0 0.0
        %4906 = vmatmul.mubr.f32.gmra.mrb[0].mxu0 %v4676
        %v4907 = vpop.f32.mrb[0].mxu0
        %v4908 = vadd.f32 0.0, %v4907
        %v4909 = vpop.f32.mrb[0].mxu0
        %4910 = vmatprep.mubr.f32.mxu0 0.0
        %4911 = vmatmul.mubr.f32.gmra.mrb[0].mxu0 %v4677
        %v4912 = vpop.f32.mrb[0].mxu0
        %v4913 = vadd.f32 0.0, %v4912
        %v4914 = vpop.f32.mrb[0].mxu0
        %4915 = vmatprep.mubr.f32.mxu0 0.0
        %4916 = vmatmul.mubr.f32.gmra.mrb[0].mxu0 %v4678
        %v4917 = vpop.f32.mrb[0].mxu0
        %v4918 = vadd.f32 0.0, %v4917
        %v4919 = vpop.f32.mrb[0].mxu0
        %4920 = vmatprep.mubr.f32.mxu0 0.0
        %4921 = vmatmul.mubr.f32.gmra.mrb[0].mxu0 %v4679
        %v4922 = vpop.f32.mrb[0].mxu0
        %v4923 = vadd.f32 0.0, %v4922
        %v4924 = vpop.f32.mrb[0].mxu0
        %4925 = vmatprep.mubr.f32.mxu0 0.0
        %4926 = vmatmul.mubr.f32.gmra.mrb[0].mxu0 %v4680
        %v4927 = vpop.f32.mrb[0].mxu0
        %v4928 = vadd.f32 0.0, %v4927
        %v4929 = vpop.f32.mrb[0].mxu0
        %4930 = vmatprep.mubr.f32.mxu0 0.0
        %4931 = vmatmul.mubr.f32.gmra.mrb[0].mxu0 %v4681
        %v4932 = vpop.f32.mrb[0].mxu0
        %v4933 = vadd.f32 0.0, %v4932
        %v4934 = vpop.f32.mrb[0].mxu0
        %4935 = vmatprep.mubr.f32.mxu0 0.0
        %4936 = vmatmul.mubr.f32.gmra.mrb[0].mxu0 %v4682
        %v4937 = vpop.f32.mrb[0].mxu0
        %v4938 = vadd.f32 0.0, %v4937
        %v4939 = vpop.f32.mrb[0].mxu0
        %4940 = vmatprep.mubr.f32.mxu0 0.0
        %4941 = vmatmul.mubr.f32.gmra.mrb[0].mxu0 %v4683
        %v4942 = vpop.f32.mrb[0].mxu0
        %v4943 = vadd.f32 0.0, %v4942
        %v4944 = vpop.f32.mrb[0].mxu0
        %4945 = vmatprep.mubr.f32.mxu0 0.0
        %4946 = vmatmul.mubr.f32.gmra.mrb[0].mxu0 %v4684
        %v4947 = vpop.f32.mrb[0].mxu0
        %v4948 = vadd.f32 0.0, %v4947
        %v4949 = vpop.f32.mrb[0].mxu0
        %4950 = vmatprep.mubr.f32.mxu0 0.0
        %4951 = vmatmul.mubr.f32.gmra.mrb[0].mxu0 %v4685
        %v4952 = vpop.f32.mrb[0].mxu0
        %v4953 = vadd.f32 0.0, %v4952
        %v4954 = vpop.f32.mrb[0].mxu0
        %4955 = vmatprep.mubr.f32.mxu0 0.0
        %4956 = vmatmul.mubr.f32.gmra.mrb[0].mxu0 %v4686
        %v4957 = vpop.f32.mrb[0].mxu0
        %v4958 = vadd.f32 0.0, %v4957
        %v4959 = vpop.f32.mrb[0].mxu0
        %4960 = vdwg.mxu0
        %v4961 = vadd.f32 %v4687, %v4803
        %v4962 = vadd.f32 %v4688, %v4808
        %v4963 = vadd.f32 %v4689, %v4813
        %v4964 = vadd.f32 %v4690, %v4818
        %v4965 = vadd.f32 %v4691, %v4823
        %v4966 = vadd.f32 %v4692, %v4828
        %v4967 = vadd.f32 %v4693, %v4833
        %v4968 = vadd.f32 %v4694, %v4838
        %v4969 = vadd.f32 %v4695, %v4843
        %v4970 = vadd.f32 %v4696, %v4848
        %v4971 = vadd.f32 %v4697, %v4853
        %v4972 = vadd.f32 %v4698, %v4858
        %v4973 = vadd.f32 %v4699, %v4863
        %v4974 = vadd.f32 %v4700, %v4868
        %v4975 = vadd.f32 %v4701, %v4873
        %v4976 = vadd.f32 %v4702, %v4878
        %v4977 = vadd.f32 %v4703, %v4883
        %v4978 = vadd.f32 %v4704, %v4888
        %v4979 = vadd.f32 %v4705, %v4893
        %v4980 = vadd.f32 %v4706, %v4898
        %v4981 = vadd.f32 %v4707, %v4903
        %v4982 = vadd.f32 %v4708, %v4908
        %v4983 = vadd.f32 %v4709, %v4913
        %v4984 = vadd.f32 %v4710, %v4918
        %v4985 = vadd.f32 %v4711, %v4923
        %v4986 = vadd.f32 %v4712, %v4928
        %v4987 = vadd.f32 %v4713, %v4933
        %v4988 = vadd.f32 %v4714, %v4938
        %v4989 = vadd.f32 %v4715, %v4943
        %v4990 = vadd.f32 %v4716, %v4948
        %v4991 = vadd.f32 %v4717, %v4953
        %v4992 = vadd.f32 %v4718, %v4958
        %4993 = vst [vmem:[#allocation2] sm:$0xff] %v4961
        %4994 = vst [vmem:[#allocation2 + $0x8] sm:$0xff] %v4962
        %4995 = vst [vmem:[#allocation2 + $0x10] sm:$0xff] %v4963
        %4996 = vst [vmem:[#allocation2 + $0x18] sm:$0xff] %v4964
        %4997 = vst [vmem:[#allocation2 + $0x20] sm:$0xff] %v4965
        %4998 = vst [vmem:[#allocation2 + $0x28] sm:$0xff] %v4966
        %4999 = vst [vmem:[#allocation2 + $0x30] sm:$0xff] %v4967
        %5000 = vst [vmem:[#allocation2 + $0x38] sm:$0xff] %v4968
        %5001 = vst [vmem:[#allocation2 + $0x40] sm:$0xff] %v4969
        %5002 = vst [vmem:[#allocation2 + $0x48] sm:$0xff] %v4970
        %5003 = vst [vmem:[#allocation2 + $0x50] sm:$0xff] %v4971
        %5004 = vst [vmem:[#allocation2 + $0x58] sm:$0xff] %v4972
        %5005 = vst [vmem:[#allocation2 + $0x60] sm:$0xff] %v4973
        %5006 = vst [vmem:[#allocation2 + $0x68] sm:$0xff] %v4974
        %5007 = vst [vmem:[#allocation2 + $0x70] sm:$0xff] %v4975
        %5008 = vst [vmem:[#allocation2 + $0x78] sm:$0xff] %v4976
        %5009 = vst [vmem:[#allocation2 + $0x80] sm:$0xff] %v4977
        %5010 = vst [vmem:[#allocation2 + $0x88] sm:$0xff] %v4978
        %5011 = vst [vmem:[#allocation2 + $0x90] sm:$0xff] %v4979
        %5012 = vst [vmem:[#allocation2 + $0x98] sm:$0xff] %v4980
        %5013 = vst [vmem:[#allocation2 + $0xa0] sm:$0xff] %v4981
        %5014 = vst [vmem:[#allocation2 + $0xa8] sm:$0xff] %v4982
        %5015 = vst [vmem:[#allocation2 + $0xb0] sm:$0xff] %v4983
        %5016 = vst [vmem:[#allocation2 + $0xb8] sm:$0xff] %v4984
        %5017 = vst [vmem:[#allocation2 + $0xc0] sm:$0xff] %v4985
        %5018 = vst [vmem:[#allocation2 + $0xc8] sm:$0xff] %v4986
        %5019 = vst [vmem:[#allocation2 + $0xd0] sm:$0xff] %v4987
        %5020 = vst [vmem:[#allocation2 + $0xd8] sm:$0xff] %v4988
        %5021 = vst [vmem:[#allocation2 + $0xe0] sm:$0xff] %v4989
        %5022 = vst [vmem:[#allocation2 + $0xe8] sm:$0xff] %v4990
        %5023 = vst [vmem:[#allocation2 + $0xf0] sm:$0xff] %v4991
        %5024 = vst [vmem:[#allocation2 + $0xf8] sm:$0xff] %v4992
        %v5025 = vld [vmem:[%s3851] sm:$0xff]
        %v5026 = vld [vmem:[%s3851 + $0x8] sm:$0xff]
        %v5027 = vld [vmem:[%s3851 + $0x18] sm:$0xff]
        %v5028 = vld [vmem:[%s3851 + $0x20] sm:$0xff]
        %v5029 = vld [vmem:[%s3851 + $0x30] sm:$0xff]
        %v5030 = vld [vmem:[%s3851 + $0x38] sm:$0xff]
        %v5031 = vld [vmem:[%s3851 + $0x48] sm:$0xff]
        %v5032 = vld [vmem:[%s3851 + $0x50] sm:$0xff]
        %v5033 = vld [vmem:[%s3851 + $0x60] sm:$0xff]
        %v5034 = vld [vmem:[%s3851 + $0x68] sm:$0xff]
        %v5035 = vld [vmem:[%s3851 + $0x78] sm:$0xff]
        %v5036 = vld [vmem:[%s3851 + $0x80] sm:$0xff]
        %v5037 = vld [vmem:[%s3851 + $0x90] sm:$0xff]
        %v5038 = vld [vmem:[%s3851 + $0x98] sm:$0xff]
        %v5039 = vld [vmem:[%s3851 + $0xa8] sm:$0xff]
        %v5040 = vld [vmem:[%s3851 + $0xb0] sm:$0xff]
        %v5041 = vld [vmem:[%s3851 + $0xc0] sm:$0xff]
        %v5042 = vld [vmem:[%s3851 + $0xc8] sm:$0xff]
        %v5043 = vld [vmem:[%s3851 + $0xd8] sm:$0xff]
        %v5044 = vld [vmem:[%s3851 + $0xe0] sm:$0xff]
        %v5045 = vld [vmem:[%s3851 + $0xf0] sm:$0xff]
        %v5046 = vld [vmem:[%s3851 + $0xf8] sm:$0xff]
        %v5047 = vld [vmem:[%s3851 + $0x108] sm:$0xff]
        %v5048 = vld [vmem:[%s3851 + $0x110] sm:$0xff]
        %v5049 = vld [vmem:[%s3851 + $0x120] sm:$0xff]
        %v5050 = vld [vmem:[%s3851 + $0x128] sm:$0xff]
        %v5051 = vld [vmem:[%s3851 + $0x138] sm:$0xff]
        %v5052 = vld [vmem:[%s3851 + $0x140] sm:$0xff]
        %v5053 = vld [vmem:[%s3851 + $0x150] sm:$0xff]
        %v5054 = vld [vmem:[%s3851 + $0x158] sm:$0xff]
        %v5055 = vld [vmem:[%s3851 + $0x168] sm:$0xff]
        %v5056 = vld [vmem:[%s3851 + $0x170] sm:$0xff]
        %v5057 = vld [vmem:[#allocation2] sm:$0xff]
        %v5058 = vld [vmem:[#allocation2 + $0x8] sm:$0xff]
        %v5059 = vld [vmem:[#allocation2 + $0x10] sm:$0xff]
        %v5060 = vld [vmem:[#allocation2 + $0x18] sm:$0xff]
        %v5061 = vld [vmem:[#allocation2 + $0x20] sm:$0xff]
        %v5062 = vld [vmem:[#allocation2 + $0x28] sm:$0xff]
        %v5063 = vld [vmem:[#allocation2 + $0x30] sm:$0xff]
        %v5064 = vld [vmem:[#allocation2 + $0x38] sm:$0xff]
        %v5065 = vld [vmem:[#allocation2 + $0x40] sm:$0xff]
        %v5066 = vld [vmem:[#allocation2 + $0x48] sm:$0xff]
        %v5067 = vld [vmem:[#allocation2 + $0x50] sm:$0xff]
        %v5068 = vld [vmem:[#allocation2 + $0x58] sm:$0xff]
        %v5069 = vld [vmem:[#allocation2 + $0x60] sm:$0xff]
        %v5070 = vld [vmem:[#allocation2 + $0x68] sm:$0xff]
        %v5071 = vld [vmem:[#allocation2 + $0x70] sm:$0xff]
        %v5072 = vld [vmem:[#allocation2 + $0x78] sm:$0xff]
        %v5073 = vld [vmem:[#allocation2 + $0x80] sm:$0xff]
        %v5074 = vld [vmem:[#allocation2 + $0x88] sm:$0xff]
        %v5075 = vld [vmem:[#allocation2 + $0x90] sm:$0xff]
        %v5076 = vld [vmem:[#allocation2 + $0x98] sm:$0xff]
        %v5077 = vld [vmem:[#allocation2 + $0xa0] sm:$0xff]
        %v5078 = vld [vmem:[#allocation2 + $0xa8] sm:$0xff]
        %v5079 = vld [vmem:[#allocation2 + $0xb0] sm:$0xff]
        %v5080 = vld [vmem:[#allocation2 + $0xb8] sm:$0xff]
        %v5081 = vld [vmem:[#allocation2 + $0xc0] sm:$0xff]
        %v5082 = vld [vmem:[#allocation2 + $0xc8] sm:$0xff]
        %v5083 = vld [vmem:[#allocation2 + $0xd0] sm:$0xff]
        %v5084 = vld [vmem:[#allocation2 + $0xd8] sm:$0xff]
        %v5085 = vld [vmem:[#allocation2 + $0xe0] sm:$0xff]
        %v5086 = vld [vmem:[#allocation2 + $0xe8] sm:$0xff]
        %v5087 = vld [vmem:[#allocation2 + $0xf0] sm:$0xff]
        %v5088 = vld [vmem:[#allocation2 + $0xf8] sm:$0xff]
        %s5089 = scalar_lea.vmem [#allocation4], 384
        %v5090 = vld [vmem:[%s5089] sm:$0xff]
        %v5091 = vld [vmem:[%s5089 + $0x8] sm:$0xff]
        %v5092 = vld [vmem:[%s5089 + $0x10] sm:$0xff]
        %v5093 = vld [vmem:[%s5089 + $0x18] sm:$0xff]
        %v5094 = vld [vmem:[%s5089 + $0x20] sm:$0xff]
        %v5095 = vld [vmem:[%s5089 + $0x28] sm:$0xff]
        %v5096 = vld [vmem:[%s5089 + $0x30] sm:$0xff]
        %v5097 = vld [vmem:[%s5089 + $0x38] sm:$0xff]
        %v5098 = vld [vmem:[%s5089 + $0x40] sm:$0xff]
        %v5099 = vld [vmem:[%s5089 + $0x48] sm:$0xff]
        %v5100 = vld [vmem:[%s5089 + $0x50] sm:$0xff]
        %v5101 = vld [vmem:[%s5089 + $0x58] sm:$0xff]
        %v5102 = vld [vmem:[%s5089 + $0x60] sm:$0xff]
        %v5103 = vld [vmem:[%s5089 + $0x68] sm:$0xff]
        %v5104 = vld [vmem:[%s5089 + $0x70] sm:$0xff]
        %v5105 = vld [vmem:[%s5089 + $0x78] sm:$0xff]
        %5106 = vmatprep.subr.mxu0 0.0
        %5107 = vmatpush1.msra.mxu0 %v5090
        %5108 = vmatprep.subr.mxu0 0.0
        %5109 = vmatpush1.msra.mxu0 %v5091
        %5110 = vmatprep.subr.mxu0 0.0
        %5111 = vmatpush1.msra.mxu0 %v5092
        %5112 = vmatprep.subr.mxu0 0.0
        %5113 = vmatpush1.msra.mxu0 %v5093
        %5114 = vmatprep.subr.mxu0 0.0
        %5115 = vmatpush1.msra.mxu0 %v5094
        %5116 = vmatprep.subr.mxu0 0.0
        %5117 = vmatpush1.msra.mxu0 %v5095
        %5118 = vmatprep.subr.mxu0 0.0
        %5119 = vmatpush1.msra.mxu0 %v5096
        %5120 = vmatprep.subr.mxu0 0.0
        %5121 = vmatpush1.msra.mxu0 %v5097
        %5122 = vmatprep.subr.mxu0 0.0
        %5123 = vmatpush1.msra.mxu0 %v5098
        %5124 = vmatprep.subr.mxu0 0.0
        %5125 = vmatpush1.msra.mxu0 %v5099
        %5126 = vmatprep.subr.mxu0 0.0
        %5127 = vmatpush1.msra.mxu0 %v5100
        %5128 = vmatprep.subr.mxu0 0.0
        %5129 = vmatpush1.msra.mxu0 %v5101
        %5130 = vmatprep.subr.mxu0 0.0
        %5131 = vmatpush1.msra.mxu0 %v5102
        %5132 = vmatprep.subr.mxu0 0.0
        %5133 = vmatpush1.msra.mxu0 %v5103
        %5134 = vmatprep.subr.mxu0 0.0
        %5135 = vmatpush1.msra.mxu0 %v5104
        %5136 = vmatprep.subr.mxu0 0.0
        %5137 = vmatpush1.msra.mxu0 %v5105
        %5138 = vmatprep.subr.mxu0 0.0
        %5139 = vmatpush1.msra.mxu0 0.0
        %5140 = vmatprep.subr.mxu0 0.0
        %5141 = vmatpush1.msra.mxu0 0.0
        %5142 = vmatprep.subr.mxu0 0.0
        %5143 = vmatpush1.msra.mxu0 0.0
        %5144 = vmatprep.subr.mxu0 0.0
        %5145 = vmatpush1.msra.mxu0 0.0
        %5146 = vmatprep.subr.mxu0 0.0
        %5147 = vmatpush1.msra.mxu0 0.0
        %5148 = vmatprep.subr.mxu0 0.0
        %5149 = vmatpush1.msra.mxu0 0.0
        %5150 = vmatprep.subr.mxu0 0.0
        %5151 = vmatpush1.msra.mxu0 0.0
        %5152 = vmatprep.subr.mxu0 0.0
        %5153 = vmatpush1.msra.mxu0 0.0
        %5154 = vmatprep.subr.mxu0 0.0
        %5155 = vmatpush1.msra.mxu0 0.0
        %5156 = vmatprep.subr.mxu0 0.0
        %5157 = vmatpush1.msra.mxu0 0.0
        %5158 = vmatprep.subr.mxu0 0.0
        %5159 = vmatpush1.msra.mxu0 0.0
        %5160 = vmatprep.subr.mxu0 0.0
        %5161 = vmatpush1.msra.mxu0 0.0
        %5162 = vmatprep.subr.mxu0 0.0
        %5163 = vmatpush1.msra.mxu0 0.0
        %5164 = vmatprep.subr.mxu0 0.0
        %5165 = vmatpush1.msra.mxu0 0.0
        %5166 = vmatprep.subr.mxu0 0.0
        %5167 = vmatpush1.msra.mxu0 0.0
        %5168 = vmatprep.subr.mxu0 0.0
        %5169 = vmatpush1.msra.mxu0 0.0
        %5170 = vmatprep.mubr.f32.mxu0 0.0
        %5171 = vmatmul.mubr.f32.gmra.mrb[0].mxu0 %v5025
        %v5172 = vpop.f32.mrb[0].mxu0
        %v5173 = vadd.f32 0.0, %v5172
        %v5174 = vpop.f32.mrb[0].mxu0
        %5175 = vmatprep.mubr.f32.mxu0 0.0
        %5176 = vmatmul.mubr.f32.gmra.mrb[0].mxu0 %v5026
        %v5177 = vpop.f32.mrb[0].mxu0
        %v5178 = vadd.f32 0.0, %v5177
        %v5179 = vpop.f32.mrb[0].mxu0
        %5180 = vmatprep.mubr.f32.mxu0 0.0
        %5181 = vmatmul.mubr.f32.gmra.mrb[0].mxu0 %v5027
        %v5182 = vpop.f32.mrb[0].mxu0
        %v5183 = vadd.f32 0.0, %v5182
        %v5184 = vpop.f32.mrb[0].mxu0
        %5185 = vmatprep.mubr.f32.mxu0 0.0
        %5186 = vmatmul.mubr.f32.gmra.mrb[0].mxu0 %v5028
        %v5187 = vpop.f32.mrb[0].mxu0
        %v5188 = vadd.f32 0.0, %v5187
        %v5189 = vpop.f32.mrb[0].mxu0
        %5190 = vmatprep.mubr.f32.mxu0 0.0
        %5191 = vmatmul.mubr.f32.gmra.mrb[0].mxu0 %v5029
        %v5192 = vpop.f32.mrb[0].mxu0
        %v5193 = vadd.f32 0.0, %v5192
        %v5194 = vpop.f32.mrb[0].mxu0
        %5195 = vmatprep.mubr.f32.mxu0 0.0
        %5196 = vmatmul.mubr.f32.gmra.mrb[0].mxu0 %v5030
        %v5197 = vpop.f32.mrb[0].mxu0
        %v5198 = vadd.f32 0.0, %v5197
        %v5199 = vpop.f32.mrb[0].mxu0
        %5200 = vmatprep.mubr.f32.mxu0 0.0
        %5201 = vmatmul.mubr.f32.gmra.mrb[0].mxu0 %v5031
        %v5202 = vpop.f32.mrb[0].mxu0
        %v5203 = vadd.f32 0.0, %v5202
        %v5204 = vpop.f32.mrb[0].mxu0
        %5205 = vmatprep.mubr.f32.mxu0 0.0
        %5206 = vmatmul.mubr.f32.gmra.mrb[0].mxu0 %v5032
        %v5207 = vpop.f32.mrb[0].mxu0
        %v5208 = vadd.f32 0.0, %v5207
        %v5209 = vpop.f32.mrb[0].mxu0
        %5210 = vmatprep.mubr.f32.mxu0 0.0
        %5211 = vmatmul.mubr.f32.gmra.mrb[0].mxu0 %v5033
        %v5212 = vpop.f32.mrb[0].mxu0
        %v5213 = vadd.f32 0.0, %v5212
        %v5214 = vpop.f32.mrb[0].mxu0
        %5215 = vmatprep.mubr.f32.mxu0 0.0
        %5216 = vmatmul.mubr.f32.gmra.mrb[0].mxu0 %v5034
        %v5217 = vpop.f32.mrb[0].mxu0
        %v5218 = vadd.f32 0.0, %v5217
        %v5219 = vpop.f32.mrb[0].mxu0
        %5220 = vmatprep.mubr.f32.mxu0 0.0
        %5221 = vmatmul.mubr.f32.gmra.mrb[0].mxu0 %v5035
        %v5222 = vpop.f32.mrb[0].mxu0
        %v5223 = vadd.f32 0.0, %v5222
        %v5224 = vpop.f32.mrb[0].mxu0
        %5225 = vmatprep.mubr.f32.mxu0 0.0
        %5226 = vmatmul.mubr.f32.gmra.mrb[0].mxu0 %v5036
        %v5227 = vpop.f32.mrb[0].mxu0
        %v5228 = vadd.f32 0.0, %v5227
        %v5229 = vpop.f32.mrb[0].mxu0
        %5230 = vmatprep.mubr.f32.mxu0 0.0
        %5231 = vmatmul.mubr.f32.gmra.mrb[0].mxu0 %v5037
        %v5232 = vpop.f32.mrb[0].mxu0
        %v5233 = vadd.f32 0.0, %v5232
        %v5234 = vpop.f32.mrb[0].mxu0
        %5235 = vmatprep.mubr.f32.mxu0 0.0
        %5236 = vmatmul.mubr.f32.gmra.mrb[0].mxu0 %v5038
        %v5237 = vpop.f32.mrb[0].mxu0
        %v5238 = vadd.f32 0.0, %v5237
        %v5239 = vpop.f32.mrb[0].mxu0
        %5240 = vmatprep.mubr.f32.mxu0 0.0
        %5241 = vmatmul.mubr.f32.gmra.mrb[0].mxu0 %v5039
        %v5242 = vpop.f32.mrb[0].mxu0
        %v5243 = vadd.f32 0.0, %v5242
        %v5244 = vpop.f32.mrb[0].mxu0
        %5245 = vmatprep.mubr.f32.mxu0 0.0
        %5246 = vmatmul.mubr.f32.gmra.mrb[0].mxu0 %v5040
        %v5247 = vpop.f32.mrb[0].mxu0
        %v5248 = vadd.f32 0.0, %v5247
        %v5249 = vpop.f32.mrb[0].mxu0
        %5250 = vmatprep.mubr.f32.mxu0 0.0
        %5251 = vmatmul.mubr.f32.gmra.mrb[0].mxu0 %v5041
        %v5252 = vpop.f32.mrb[0].mxu0
        %v5253 = vadd.f32 0.0, %v5252
        %v5254 = vpop.f32.mrb[0].mxu0
        %5255 = vmatprep.mubr.f32.mxu0 0.0
        %5256 = vmatmul.mubr.f32.gmra.mrb[0].mxu0 %v5042
        %v5257 = vpop.f32.mrb[0].mxu0
        %v5258 = vadd.f32 0.0, %v5257
        %v5259 = vpop.f32.mrb[0].mxu0
        %5260 = vmatprep.mubr.f32.mxu0 0.0
        %5261 = vmatmul.mubr.f32.gmra.mrb[0].mxu0 %v5043
        %v5262 = vpop.f32.mrb[0].mxu0
        %v5263 = vadd.f32 0.0, %v5262
        %v5264 = vpop.f32.mrb[0].mxu0
        %5265 = vmatprep.mubr.f32.mxu0 0.0
        %5266 = vmatmul.mubr.f32.gmra.mrb[0].mxu0 %v5044
        %v5267 = vpop.f32.mrb[0].mxu0
        %v5268 = vadd.f32 0.0, %v5267
        %v5269 = vpop.f32.mrb[0].mxu0
        %5270 = vmatprep.mubr.f32.mxu0 0.0
        %5271 = vmatmul.mubr.f32.gmra.mrb[0].mxu0 %v5045
        %v5272 = vpop.f32.mrb[0].mxu0
        %v5273 = vadd.f32 0.0, %v5272
        %v5274 = vpop.f32.mrb[0].mxu0
        %5275 = vmatprep.mubr.f32.mxu0 0.0
        %5276 = vmatmul.mubr.f32.gmra.mrb[0].mxu0 %v5046
        %v5277 = vpop.f32.mrb[0].mxu0
        %v5278 = vadd.f32 0.0, %v5277
        %v5279 = vpop.f32.mrb[0].mxu0
        %5280 = vmatprep.mubr.f32.mxu0 0.0
        %5281 = vmatmul.mubr.f32.gmra.mrb[0].mxu0 %v5047
        %v5282 = vpop.f32.mrb[0].mxu0
        %v5283 = vadd.f32 0.0, %v5282
        %v5284 = vpop.f32.mrb[0].mxu0
        %5285 = vmatprep.mubr.f32.mxu0 0.0
        %5286 = vmatmul.mubr.f32.gmra.mrb[0].mxu0 %v5048
        %v5287 = vpop.f32.mrb[0].mxu0
        %v5288 = vadd.f32 0.0, %v5287
        %v5289 = vpop.f32.mrb[0].mxu0
        %5290 = vmatprep.mubr.f32.mxu0 0.0
        %5291 = vmatmul.mubr.f32.gmra.mrb[0].mxu0 %v5049
        %v5292 = vpop.f32.mrb[0].mxu0
        %v5293 = vadd.f32 0.0, %v5292
        %v5294 = vpop.f32.mrb[0].mxu0
        %5295 = vmatprep.mubr.f32.mxu0 0.0
        %5296 = vmatmul.mubr.f32.gmra.mrb[0].mxu0 %v5050
        %v5297 = vpop.f32.mrb[0].mxu0
        %v5298 = vadd.f32 0.0, %v5297
        %v5299 = vpop.f32.mrb[0].mxu0
        %5300 = vmatprep.mubr.f32.mxu0 0.0
        %5301 = vmatmul.mubr.f32.gmra.mrb[0].mxu0 %v5051
        %v5302 = vpop.f32.mrb[0].mxu0
        %v5303 = vadd.f32 0.0, %v5302
        %v5304 = vpop.f32.mrb[0].mxu0
        %5305 = vmatprep.mubr.f32.mxu0 0.0
        %5306 = vmatmul.mubr.f32.gmra.mrb[0].mxu0 %v5052
        %v5307 = vpop.f32.mrb[0].mxu0
        %v5308 = vadd.f32 0.0, %v5307
        %v5309 = vpop.f32.mrb[0].mxu0
        %5310 = vmatprep.mubr.f32.mxu0 0.0
        %5311 = vmatmul.mubr.f32.gmra.mrb[0].mxu0 %v5053
        %v5312 = vpop.f32.mrb[0].mxu0
        %v5313 = vadd.f32 0.0, %v5312
        %v5314 = vpop.f32.mrb[0].mxu0
        %5315 = vmatprep.mubr.f32.mxu0 0.0
        %5316 = vmatmul.mubr.f32.gmra.mrb[0].mxu0 %v5054
        %v5317 = vpop.f32.mrb[0].mxu0
        %v5318 = vadd.f32 0.0, %v5317
        %v5319 = vpop.f32.mrb[0].mxu0
        %5320 = vmatprep.mubr.f32.mxu0 0.0
        %5321 = vmatmul.mubr.f32.gmra.mrb[0].mxu0 %v5055
        %v5322 = vpop.f32.mrb[0].mxu0
        %v5323 = vadd.f32 0.0, %v5322
        %v5324 = vpop.f32.mrb[0].mxu0
        %5325 = vmatprep.mubr.f32.mxu0 0.0
        %5326 = vmatmul.mubr.f32.gmra.mrb[0].mxu0 %v5056
        %v5327 = vpop.f32.mrb[0].mxu0
        %v5328 = vadd.f32 0.0, %v5327
        %v5329 = vpop.f32.mrb[0].mxu0
        %5330 = vdwg.mxu0
        %v5331 = vadd.f32 %v5057, %v5173
        %v5332 = vadd.f32 %v5058, %v5178
        %v5333 = vadd.f32 %v5059, %v5183
        %v5334 = vadd.f32 %v5060, %v5188
        %v5335 = vadd.f32 %v5061, %v5193
        %v5336 = vadd.f32 %v5062, %v5198
        %v5337 = vadd.f32 %v5063, %v5203
        %v5338 = vadd.f32 %v5064, %v5208
        %v5339 = vadd.f32 %v5065, %v5213
        %v5340 = vadd.f32 %v5066, %v5218
        %v5341 = vadd.f32 %v5067, %v5223
        %v5342 = vadd.f32 %v5068, %v5228
        %v5343 = vadd.f32 %v5069, %v5233
        %v5344 = vadd.f32 %v5070, %v5238
        %v5345 = vadd.f32 %v5071, %v5243
        %v5346 = vadd.f32 %v5072, %v5248
        %v5347 = vadd.f32 %v5073, %v5253
        %v5348 = vadd.f32 %v5074, %v5258
        %v5349 = vadd.f32 %v5075, %v5263
        %v5350 = vadd.f32 %v5076, %v5268
        %v5351 = vadd.f32 %v5077, %v5273
        %v5352 = vadd.f32 %v5078, %v5278
        %v5353 = vadd.f32 %v5079, %v5283
        %v5354 = vadd.f32 %v5080, %v5288
        %v5355 = vadd.f32 %v5081, %v5293
        %v5356 = vadd.f32 %v5082, %v5298
        %v5357 = vadd.f32 %v5083, %v5303
        %v5358 = vadd.f32 %v5084, %v5308
        %v5359 = vadd.f32 %v5085, %v5313
        %v5360 = vadd.f32 %v5086, %v5318
        %v5361 = vadd.f32 %v5087, %v5323
        %v5362 = vadd.f32 %v5088, %v5328
        %5363 = vst [vmem:[#allocation2] sm:$0xff] %v5331
        %5364 = vst [vmem:[#allocation2 + $0x8] sm:$0xff] %v5332
        %5365 = vst [vmem:[#allocation2 + $0x10] sm:$0xff] %v5333
        %5366 = vst [vmem:[#allocation2 + $0x18] sm:$0xff] %v5334
        %5367 = vst [vmem:[#allocation2 + $0x20] sm:$0xff] %v5335
        %5368 = vst [vmem:[#allocation2 + $0x28] sm:$0xff] %v5336
        %5369 = vst [vmem:[#allocation2 + $0x30] sm:$0xff] %v5337
        %5370 = vst [vmem:[#allocation2 + $0x38] sm:$0xff] %v5338
        %5371 = vst [vmem:[#allocation2 + $0x40] sm:$0xff] %v5339
        %5372 = vst [vmem:[#allocation2 + $0x48] sm:$0xff] %v5340
        %5373 = vst [vmem:[#allocation2 + $0x50] sm:$0xff] %v5341
        %5374 = vst [vmem:[#allocation2 + $0x58] sm:$0xff] %v5342
        %5375 = vst [vmem:[#allocation2 + $0x60] sm:$0xff] %v5343
        %5376 = vst [vmem:[#allocation2 + $0x68] sm:$0xff] %v5344
        %5377 = vst [vmem:[#allocation2 + $0x70] sm:$0xff] %v5345
        %5378 = vst [vmem:[#allocation2 + $0x78] sm:$0xff] %v5346
        %5379 = vst [vmem:[#allocation2 + $0x80] sm:$0xff] %v5347
        %5380 = vst [vmem:[#allocation2 + $0x88] sm:$0xff] %v5348
        %5381 = vst [vmem:[#allocation2 + $0x90] sm:$0xff] %v5349
        %5382 = vst [vmem:[#allocation2 + $0x98] sm:$0xff] %v5350
        %5383 = vst [vmem:[#allocation2 + $0xa0] sm:$0xff] %v5351
        %5384 = vst [vmem:[#allocation2 + $0xa8] sm:$0xff] %v5352
        %5385 = vst [vmem:[#allocation2 + $0xb0] sm:$0xff] %v5353
        %5386 = vst [vmem:[#allocation2 + $0xb8] sm:$0xff] %v5354
        %5387 = vst [vmem:[#allocation2 + $0xc0] sm:$0xff] %v5355
        %5388 = vst [vmem:[#allocation2 + $0xc8] sm:$0xff] %v5356
        %5389 = vst [vmem:[#allocation2 + $0xd0] sm:$0xff] %v5357
        %5390 = vst [vmem:[#allocation2 + $0xd8] sm:$0xff] %v5358
        %5391 = vst [vmem:[#allocation2 + $0xe0] sm:$0xff] %v5359
        %5392 = vst [vmem:[#allocation2 + $0xe8] sm:$0xff] %v5360
        %5393 = vst [vmem:[#allocation2 + $0xf0] sm:$0xff] %v5361
        %5394 = vst [vmem:[#allocation2 + $0xf8] sm:$0xff] %v5362
        %v5395 = vld [vmem:[%s3851 + $0x1] sm:$0xff]
        %v5396 = vld [vmem:[%s3851 + $0x9] sm:$0xff]
        %v5397 = vld [vmem:[%s3851 + $0x19] sm:$0xff]
        %v5398 = vld [vmem:[%s3851 + $0x21] sm:$0xff]
        %v5399 = vld [vmem:[%s3851 + $0x31] sm:$0xff]
        %v5400 = vld [vmem:[%s3851 + $0x39] sm:$0xff]
        %v5401 = vld [vmem:[%s3851 + $0x49] sm:$0xff]
        %v5402 = vld [vmem:[%s3851 + $0x51] sm:$0xff]
        %v5403 = vld [vmem:[%s3851 + $0x61] sm:$0xff]
        %v5404 = vld [vmem:[%s3851 + $0x69] sm:$0xff]
        %v5405 = vld [vmem:[%s3851 + $0x79] sm:$0xff]
        %v5406 = vld [vmem:[%s3851 + $0x81] sm:$0xff]
        %v5407 = vld [vmem:[%s3851 + $0x91] sm:$0xff]
        %v5408 = vld [vmem:[%s3851 + $0x99] sm:$0xff]
        %v5409 = vld [vmem:[%s3851 + $0xa9] sm:$0xff]
        %v5410 = vld [vmem:[%s3851 + $0xb1] sm:$0xff]
        %v5411 = vld [vmem:[%s3851 + $0xc1] sm:$0xff]
        %v5412 = vld [vmem:[%s3851 + $0xc9] sm:$0xff]
        %v5413 = vld [vmem:[%s3851 + $0xd9] sm:$0xff]
        %v5414 = vld [vmem:[%s3851 + $0xe1] sm:$0xff]
        %v5415 = vld [vmem:[%s3851 + $0xf1] sm:$0xff]
        %v5416 = vld [vmem:[%s3851 + $0xf9] sm:$0xff]
        %v5417 = vld [vmem:[%s3851 + $0x109] sm:$0xff]
        %v5418 = vld [vmem:[%s3851 + $0x111] sm:$0xff]
        %v5419 = vld [vmem:[%s3851 + $0x121] sm:$0xff]
        %v5420 = vld [vmem:[%s3851 + $0x129] sm:$0xff]
        %v5421 = vld [vmem:[%s3851 + $0x139] sm:$0xff]
        %v5422 = vld [vmem:[%s3851 + $0x141] sm:$0xff]
        %v5423 = vld [vmem:[%s3851 + $0x151] sm:$0xff]
        %v5424 = vld [vmem:[%s3851 + $0x159] sm:$0xff]
        %v5425 = vld [vmem:[%s3851 + $0x169] sm:$0xff]
        %v5426 = vld [vmem:[%s3851 + $0x171] sm:$0xff]
        %v5427 = vld [vmem:[#allocation2] sm:$0xff]
        %v5428 = vld [vmem:[#allocation2 + $0x8] sm:$0xff]
        %v5429 = vld [vmem:[#allocation2 + $0x10] sm:$0xff]
        %v5430 = vld [vmem:[#allocation2 + $0x18] sm:$0xff]
        %v5431 = vld [vmem:[#allocation2 + $0x20] sm:$0xff]
        %v5432 = vld [vmem:[#allocation2 + $0x28] sm:$0xff]
        %v5433 = vld [vmem:[#allocation2 + $0x30] sm:$0xff]
        %v5434 = vld [vmem:[#allocation2 + $0x38] sm:$0xff]
        %v5435 = vld [vmem:[#allocation2 + $0x40] sm:$0xff]
        %v5436 = vld [vmem:[#allocation2 + $0x48] sm:$0xff]
        %v5437 = vld [vmem:[#allocation2 + $0x50] sm:$0xff]
        %v5438 = vld [vmem:[#allocation2 + $0x58] sm:$0xff]
        %v5439 = vld [vmem:[#allocation2 + $0x60] sm:$0xff]
        %v5440 = vld [vmem:[#allocation2 + $0x68] sm:$0xff]
        %v5441 = vld [vmem:[#allocation2 + $0x70] sm:$0xff]
        %v5442 = vld [vmem:[#allocation2 + $0x78] sm:$0xff]
        %v5443 = vld [vmem:[#allocation2 + $0x80] sm:$0xff]
        %v5444 = vld [vmem:[#allocation2 + $0x88] sm:$0xff]
        %v5445 = vld [vmem:[#allocation2 + $0x90] sm:$0xff]
        %v5446 = vld [vmem:[#allocation2 + $0x98] sm:$0xff]
        %v5447 = vld [vmem:[#allocation2 + $0xa0] sm:$0xff]
        %v5448 = vld [vmem:[#allocation2 + $0xa8] sm:$0xff]
        %v5449 = vld [vmem:[#allocation2 + $0xb0] sm:$0xff]
        %v5450 = vld [vmem:[#allocation2 + $0xb8] sm:$0xff]
        %v5451 = vld [vmem:[#allocation2 + $0xc0] sm:$0xff]
        %v5452 = vld [vmem:[#allocation2 + $0xc8] sm:$0xff]
        %v5453 = vld [vmem:[#allocation2 + $0xd0] sm:$0xff]
        %v5454 = vld [vmem:[#allocation2 + $0xd8] sm:$0xff]
        %v5455 = vld [vmem:[#allocation2 + $0xe0] sm:$0xff]
        %v5456 = vld [vmem:[#allocation2 + $0xe8] sm:$0xff]
        %v5457 = vld [vmem:[#allocation2 + $0xf0] sm:$0xff]
        %v5458 = vld [vmem:[#allocation2 + $0xf8] sm:$0xff]
        %s5459 = scalar_lea.vmem [#allocation4], 512
        %v5460 = vld [vmem:[%s5459] sm:$0xff]
        %v5461 = vld [vmem:[%s5459 + $0x8] sm:$0xff]
        %v5462 = vld [vmem:[%s5459 + $0x10] sm:$0xff]
        %v5463 = vld [vmem:[%s5459 + $0x18] sm:$0xff]
        %v5464 = vld [vmem:[%s5459 + $0x20] sm:$0xff]
        %v5465 = vld [vmem:[%s5459 + $0x28] sm:$0xff]
        %v5466 = vld [vmem:[%s5459 + $0x30] sm:$0xff]
        %v5467 = vld [vmem:[%s5459 + $0x38] sm:$0xff]
        %v5468 = vld [vmem:[%s5459 + $0x40] sm:$0xff]
        %v5469 = vld [vmem:[%s5459 + $0x48] sm:$0xff]
        %v5470 = vld [vmem:[%s5459 + $0x50] sm:$0xff]
        %v5471 = vld [vmem:[%s5459 + $0x58] sm:$0xff]
        %v5472 = vld [vmem:[%s5459 + $0x60] sm:$0xff]
        %v5473 = vld [vmem:[%s5459 + $0x68] sm:$0xff]
        %v5474 = vld [vmem:[%s5459 + $0x70] sm:$0xff]
        %v5475 = vld [vmem:[%s5459 + $0x78] sm:$0xff]
        %5476 = vmatprep.subr.mxu0 0.0
        %5477 = vmatpush1.msra.mxu0 %v5460
        %5478 = vmatprep.subr.mxu0 0.0
        %5479 = vmatpush1.msra.mxu0 %v5461
        %5480 = vmatprep.subr.mxu0 0.0
        %5481 = vmatpush1.msra.mxu0 %v5462
        %5482 = vmatprep.subr.mxu0 0.0
        %5483 = vmatpush1.msra.mxu0 %v5463
        %5484 = vmatprep.subr.mxu0 0.0
        %5485 = vmatpush1.msra.mxu0 %v5464
        %5486 = vmatprep.subr.mxu0 0.0
        %5487 = vmatpush1.msra.mxu0 %v5465
        %5488 = vmatprep.subr.mxu0 0.0
        %5489 = vmatpush1.msra.mxu0 %v5466
        %5490 = vmatprep.subr.mxu0 0.0
        %5491 = vmatpush1.msra.mxu0 %v5467
        %5492 = vmatprep.subr.mxu0 0.0
        %5493 = vmatpush1.msra.mxu0 %v5468
        %5494 = vmatprep.subr.mxu0 0.0
        %5495 = vmatpush1.msra.mxu0 %v5469
        %5496 = vmatprep.subr.mxu0 0.0
        %5497 = vmatpush1.msra.mxu0 %v5470
        %5498 = vmatprep.subr.mxu0 0.0
        %5499 = vmatpush1.msra.mxu0 %v5471
        %5500 = vmatprep.subr.mxu0 0.0
        %5501 = vmatpush1.msra.mxu0 %v5472
        %5502 = vmatprep.subr.mxu0 0.0
        %5503 = vmatpush1.msra.mxu0 %v5473
        %5504 = vmatprep.subr.mxu0 0.0
        %5505 = vmatpush1.msra.mxu0 %v5474
        %5506 = vmatprep.subr.mxu0 0.0
        %5507 = vmatpush1.msra.mxu0 %v5475
        %5508 = vmatprep.subr.mxu0 0.0
        %5509 = vmatpush1.msra.mxu0 0.0
        %5510 = vmatprep.subr.mxu0 0.0
        %5511 = vmatpush1.msra.mxu0 0.0
        %5512 = vmatprep.subr.mxu0 0.0
        %5513 = vmatpush1.msra.mxu0 0.0
        %5514 = vmatprep.subr.mxu0 0.0
        %5515 = vmatpush1.msra.mxu0 0.0
        %5516 = vmatprep.subr.mxu0 0.0
        %5517 = vmatpush1.msra.mxu0 0.0
        %5518 = vmatprep.subr.mxu0 0.0
        %5519 = vmatpush1.msra.mxu0 0.0
        %5520 = vmatprep.subr.mxu0 0.0
        %5521 = vmatpush1.msra.mxu0 0.0
        %5522 = vmatprep.subr.mxu0 0.0
        %5523 = vmatpush1.msra.mxu0 0.0
        %5524 = vmatprep.subr.mxu0 0.0
        %5525 = vmatpush1.msra.mxu0 0.0
        %5526 = vmatprep.subr.mxu0 0.0
        %5527 = vmatpush1.msra.mxu0 0.0
        %5528 = vmatprep.subr.mxu0 0.0
        %5529 = vmatpush1.msra.mxu0 0.0
        %5530 = vmatprep.subr.mxu0 0.0
        %5531 = vmatpush1.msra.mxu0 0.0
        %5532 = vmatprep.subr.mxu0 0.0
        %5533 = vmatpush1.msra.mxu0 0.0
        %5534 = vmatprep.subr.mxu0 0.0
        %5535 = vmatpush1.msra.mxu0 0.0
        %5536 = vmatprep.subr.mxu0 0.0
        %5537 = vmatpush1.msra.mxu0 0.0
        %5538 = vmatprep.subr.mxu0 0.0
        %5539 = vmatpush1.msra.mxu0 0.0
        %5540 = vmatprep.mubr.f32.mxu0 0.0
        %5541 = vmatmul.mubr.f32.gmra.mrb[0].mxu0 %v5395
        %v5542 = vpop.f32.mrb[0].mxu0
        %v5543 = vadd.f32 0.0, %v5542
        %v5544 = vpop.f32.mrb[0].mxu0
        %5545 = vmatprep.mubr.f32.mxu0 0.0
        %5546 = vmatmul.mubr.f32.gmra.mrb[0].mxu0 %v5396
        %v5547 = vpop.f32.mrb[0].mxu0
        %v5548 = vadd.f32 0.0, %v5547
        %v5549 = vpop.f32.mrb[0].mxu0
        %5550 = vmatprep.mubr.f32.mxu0 0.0
        %5551 = vmatmul.mubr.f32.gmra.mrb[0].mxu0 %v5397
        %v5552 = vpop.f32.mrb[0].mxu0
        %v5553 = vadd.f32 0.0, %v5552
        %v5554 = vpop.f32.mrb[0].mxu0
        %5555 = vmatprep.mubr.f32.mxu0 0.0
        %5556 = vmatmul.mubr.f32.gmra.mrb[0].mxu0 %v5398
        %v5557 = vpop.f32.mrb[0].mxu0
        %v5558 = vadd.f32 0.0, %v5557
        %v5559 = vpop.f32.mrb[0].mxu0
        %5560 = vmatprep.mubr.f32.mxu0 0.0
        %5561 = vmatmul.mubr.f32.gmra.mrb[0].mxu0 %v5399
        %v5562 = vpop.f32.mrb[0].mxu0
        %v5563 = vadd.f32 0.0, %v5562
        %v5564 = vpop.f32.mrb[0].mxu0
        %5565 = vmatprep.mubr.f32.mxu0 0.0
        %5566 = vmatmul.mubr.f32.gmra.mrb[0].mxu0 %v5400
        %v5567 = vpop.f32.mrb[0].mxu0
        %v5568 = vadd.f32 0.0, %v5567
        %v5569 = vpop.f32.mrb[0].mxu0
        %5570 = vmatprep.mubr.f32.mxu0 0.0
        %5571 = vmatmul.mubr.f32.gmra.mrb[0].mxu0 %v5401
        %v5572 = vpop.f32.mrb[0].mxu0
        %v5573 = vadd.f32 0.0, %v5572
        %v5574 = vpop.f32.mrb[0].mxu0
        %5575 = vmatprep.mubr.f32.mxu0 0.0
        %5576 = vmatmul.mubr.f32.gmra.mrb[0].mxu0 %v5402
        %v5577 = vpop.f32.mrb[0].mxu0
        %v5578 = vadd.f32 0.0, %v5577
        %v5579 = vpop.f32.mrb[0].mxu0
        %5580 = vmatprep.mubr.f32.mxu0 0.0
        %5581 = vmatmul.mubr.f32.gmra.mrb[0].mxu0 %v5403
        %v5582 = vpop.f32.mrb[0].mxu0
        %v5583 = vadd.f32 0.0, %v5582
        %v5584 = vpop.f32.mrb[0].mxu0
        %5585 = vmatprep.mubr.f32.mxu0 0.0
        %5586 = vmatmul.mubr.f32.gmra.mrb[0].mxu0 %v5404
        %v5587 = vpop.f32.mrb[0].mxu0
        %v5588 = vadd.f32 0.0, %v5587
        %v5589 = vpop.f32.mrb[0].mxu0
        %5590 = vmatprep.mubr.f32.mxu0 0.0
        %5591 = vmatmul.mubr.f32.gmra.mrb[0].mxu0 %v5405
        %v5592 = vpop.f32.mrb[0].mxu0
        %v5593 = vadd.f32 0.0, %v5592
        %v5594 = vpop.f32.mrb[0].mxu0
        %5595 = vmatprep.mubr.f32.mxu0 0.0
        %5596 = vmatmul.mubr.f32.gmra.mrb[0].mxu0 %v5406
        %v5597 = vpop.f32.mrb[0].mxu0
        %v5598 = vadd.f32 0.0, %v5597
        %v5599 = vpop.f32.mrb[0].mxu0
        %5600 = vmatprep.mubr.f32.mxu0 0.0
        %5601 = vmatmul.mubr.f32.gmra.mrb[0].mxu0 %v5407
        %v5602 = vpop.f32.mrb[0].mxu0
        %v5603 = vadd.f32 0.0, %v5602
        %v5604 = vpop.f32.mrb[0].mxu0
        %5605 = vmatprep.mubr.f32.mxu0 0.0
        %5606 = vmatmul.mubr.f32.gmra.mrb[0].mxu0 %v5408
        %v5607 = vpop.f32.mrb[0].mxu0
        %v5608 = vadd.f32 0.0, %v5607
        %v5609 = vpop.f32.mrb[0].mxu0
        %5610 = vmatprep.mubr.f32.mxu0 0.0
        %5611 = vmatmul.mubr.f32.gmra.mrb[0].mxu0 %v5409
        %v5612 = vpop.f32.mrb[0].mxu0
        %v5613 = vadd.f32 0.0, %v5612
        %v5614 = vpop.f32.mrb[0].mxu0
        %5615 = vmatprep.mubr.f32.mxu0 0.0
        %5616 = vmatmul.mubr.f32.gmra.mrb[0].mxu0 %v5410
        %v5617 = vpop.f32.mrb[0].mxu0
        %v5618 = vadd.f32 0.0, %v5617
        %v5619 = vpop.f32.mrb[0].mxu0
        %5620 = vmatprep.mubr.f32.mxu0 0.0
        %5621 = vmatmul.mubr.f32.gmra.mrb[0].mxu0 %v5411
        %v5622 = vpop.f32.mrb[0].mxu0
        %v5623 = vadd.f32 0.0, %v5622
        %v5624 = vpop.f32.mrb[0].mxu0
        %5625 = vmatprep.mubr.f32.mxu0 0.0
        %5626 = vmatmul.mubr.f32.gmra.mrb[0].mxu0 %v5412
        %v5627 = vpop.f32.mrb[0].mxu0
        %v5628 = vadd.f32 0.0, %v5627
        %v5629 = vpop.f32.mrb[0].mxu0
        %5630 = vmatprep.mubr.f32.mxu0 0.0
        %5631 = vmatmul.mubr.f32.gmra.mrb[0].mxu0 %v5413
        %v5632 = vpop.f32.mrb[0].mxu0
        %v5633 = vadd.f32 0.0, %v5632
        %v5634 = vpop.f32.mrb[0].mxu0
        %5635 = vmatprep.mubr.f32.mxu0 0.0
        %5636 = vmatmul.mubr.f32.gmra.mrb[0].mxu0 %v5414
        %v5637 = vpop.f32.mrb[0].mxu0
        %v5638 = vadd.f32 0.0, %v5637
        %v5639 = vpop.f32.mrb[0].mxu0
        %5640 = vmatprep.mubr.f32.mxu0 0.0
        %5641 = vmatmul.mubr.f32.gmra.mrb[0].mxu0 %v5415
        %v5642 = vpop.f32.mrb[0].mxu0
        %v5643 = vadd.f32 0.0, %v5642
        %v5644 = vpop.f32.mrb[0].mxu0
        %5645 = vmatprep.mubr.f32.mxu0 0.0
        %5646 = vmatmul.mubr.f32.gmra.mrb[0].mxu0 %v5416
        %v5647 = vpop.f32.mrb[0].mxu0
        %v5648 = vadd.f32 0.0, %v5647
        %v5649 = vpop.f32.mrb[0].mxu0
        %5650 = vmatprep.mubr.f32.mxu0 0.0
        %5651 = vmatmul.mubr.f32.gmra.mrb[0].mxu0 %v5417
        %v5652 = vpop.f32.mrb[0].mxu0
        %v5653 = vadd.f32 0.0, %v5652
        %v5654 = vpop.f32.mrb[0].mxu0
        %5655 = vmatprep.mubr.f32.mxu0 0.0
        %5656 = vmatmul.mubr.f32.gmra.mrb[0].mxu0 %v5418
        %v5657 = vpop.f32.mrb[0].mxu0
        %v5658 = vadd.f32 0.0, %v5657
        %v5659 = vpop.f32.mrb[0].mxu0
        %5660 = vmatprep.mubr.f32.mxu0 0.0
        %5661 = vmatmul.mubr.f32.gmra.mrb[0].mxu0 %v5419
        %v5662 = vpop.f32.mrb[0].mxu0
        %v5663 = vadd.f32 0.0, %v5662
        %v5664 = vpop.f32.mrb[0].mxu0
        %5665 = vmatprep.mubr.f32.mxu0 0.0
        %5666 = vmatmul.mubr.f32.gmra.mrb[0].mxu0 %v5420
        %v5667 = vpop.f32.mrb[0].mxu0
        %v5668 = vadd.f32 0.0, %v5667
        %v5669 = vpop.f32.mrb[0].mxu0
        %5670 = vmatprep.mubr.f32.mxu0 0.0
        %5671 = vmatmul.mubr.f32.gmra.mrb[0].mxu0 %v5421
        %v5672 = vpop.f32.mrb[0].mxu0
        %v5673 = vadd.f32 0.0, %v5672
        %v5674 = vpop.f32.mrb[0].mxu0
        %5675 = vmatprep.mubr.f32.mxu0 0.0
        %5676 = vmatmul.mubr.f32.gmra.mrb[0].mxu0 %v5422
        %v5677 = vpop.f32.mrb[0].mxu0
        %v5678 = vadd.f32 0.0, %v5677
        %v5679 = vpop.f32.mrb[0].mxu0
        %5680 = vmatprep.mubr.f32.mxu0 0.0
        %5681 = vmatmul.mubr.f32.gmra.mrb[0].mxu0 %v5423
        %v5682 = vpop.f32.mrb[0].mxu0
        %v5683 = vadd.f32 0.0, %v5682
        %v5684 = vpop.f32.mrb[0].mxu0
        %5685 = vmatprep.mubr.f32.mxu0 0.0
        %5686 = vmatmul.mubr.f32.gmra.mrb[0].mxu0 %v5424
        %v5687 = vpop.f32.mrb[0].mxu0
        %v5688 = vadd.f32 0.0, %v5687
        %v5689 = vpop.f32.mrb[0].mxu0
        %5690 = vmatprep.mubr.f32.mxu0 0.0
        %5691 = vmatmul.mubr.f32.gmra.mrb[0].mxu0 %v5425
        %v5692 = vpop.f32.mrb[0].mxu0
        %v5693 = vadd.f32 0.0, %v5692
        %v5694 = vpop.f32.mrb[0].mxu0
        %5695 = vmatprep.mubr.f32.mxu0 0.0
        %5696 = vmatmul.mubr.f32.gmra.mrb[0].mxu0 %v5426
        %v5697 = vpop.f32.mrb[0].mxu0
        %v5698 = vadd.f32 0.0, %v5697
        %v5699 = vpop.f32.mrb[0].mxu0
        %5700 = vdwg.mxu0
        %v5701 = vadd.f32 %v5427, %v5543
        %v5702 = vadd.f32 %v5428, %v5548
        %v5703 = vadd.f32 %v5429, %v5553
        %v5704 = vadd.f32 %v5430, %v5558
        %v5705 = vadd.f32 %v5431, %v5563
        %v5706 = vadd.f32 %v5432, %v5568
        %v5707 = vadd.f32 %v5433, %v5573
        %v5708 = vadd.f32 %v5434, %v5578
        %v5709 = vadd.f32 %v5435, %v5583
        %v5710 = vadd.f32 %v5436, %v5588
        %v5711 = vadd.f32 %v5437, %v5593
        %v5712 = vadd.f32 %v5438, %v5598
        %v5713 = vadd.f32 %v5439, %v5603
        %v5714 = vadd.f32 %v5440, %v5608
        %v5715 = vadd.f32 %v5441, %v5613
        %v5716 = vadd.f32 %v5442, %v5618
        %v5717 = vadd.f32 %v5443, %v5623
        %v5718 = vadd.f32 %v5444, %v5628
        %v5719 = vadd.f32 %v5445, %v5633
        %v5720 = vadd.f32 %v5446, %v5638
        %v5721 = vadd.f32 %v5447, %v5643
        %v5722 = vadd.f32 %v5448, %v5648
        %v5723 = vadd.f32 %v5449, %v5653
        %v5724 = vadd.f32 %v5450, %v5658
        %v5725 = vadd.f32 %v5451, %v5663
        %v5726 = vadd.f32 %v5452, %v5668
        %v5727 = vadd.f32 %v5453, %v5673
        %v5728 = vadd.f32 %v5454, %v5678
        %v5729 = vadd.f32 %v5455, %v5683
        %v5730 = vadd.f32 %v5456, %v5688
        %v5731 = vadd.f32 %v5457, %v5693
        %v5732 = vadd.f32 %v5458, %v5698
        %5733 = vst [vmem:[#allocation2] sm:$0xff] %v5701
        %5734 = vst [vmem:[#allocation2 + $0x8] sm:$0xff] %v5702
        %5735 = vst [vmem:[#allocation2 + $0x10] sm:$0xff] %v5703
        %5736 = vst [vmem:[#allocation2 + $0x18] sm:$0xff] %v5704
        %5737 = vst [vmem:[#allocation2 + $0x20] sm:$0xff] %v5705
        %5738 = vst [vmem:[#allocation2 + $0x28] sm:$0xff] %v5706
        %5739 = vst [vmem:[#allocation2 + $0x30] sm:$0xff] %v5707
        %5740 = vst [vmem:[#allocation2 + $0x38] sm:$0xff] %v5708
        %5741 = vst [vmem:[#allocation2 + $0x40] sm:$0xff] %v5709
        %5742 = vst [vmem:[#allocation2 + $0x48] sm:$0xff] %v5710
        %5743 = vst [vmem:[#allocation2 + $0x50] sm:$0xff] %v5711
        %5744 = vst [vmem:[#allocation2 + $0x58] sm:$0xff] %v5712
        %5745 = vst [vmem:[#allocation2 + $0x60] sm:$0xff] %v5713
        %5746 = vst [vmem:[#allocation2 + $0x68] sm:$0xff] %v5714
        %5747 = vst [vmem:[#allocation2 + $0x70] sm:$0xff] %v5715
        %5748 = vst [vmem:[#allocation2 + $0x78] sm:$0xff] %v5716
        %5749 = vst [vmem:[#allocation2 + $0x80] sm:$0xff] %v5717
        %5750 = vst [vmem:[#allocation2 + $0x88] sm:$0xff] %v5718
        %5751 = vst [vmem:[#allocation2 + $0x90] sm:$0xff] %v5719
        %5752 = vst [vmem:[#allocation2 + $0x98] sm:$0xff] %v5720
        %5753 = vst [vmem:[#allocation2 + $0xa0] sm:$0xff] %v5721
        %5754 = vst [vmem:[#allocation2 + $0xa8] sm:$0xff] %v5722
        %5755 = vst [vmem:[#allocation2 + $0xb0] sm:$0xff] %v5723
        %5756 = vst [vmem:[#allocation2 + $0xb8] sm:$0xff] %v5724
        %5757 = vst [vmem:[#allocation2 + $0xc0] sm:$0xff] %v5725
        %5758 = vst [vmem:[#allocation2 + $0xc8] sm:$0xff] %v5726
        %5759 = vst [vmem:[#allocation2 + $0xd0] sm:$0xff] %v5727
        %5760 = vst [vmem:[#allocation2 + $0xd8] sm:$0xff] %v5728
        %5761 = vst [vmem:[#allocation2 + $0xe0] sm:$0xff] %v5729
        %5762 = vst [vmem:[#allocation2 + $0xe8] sm:$0xff] %v5730
        %5763 = vst [vmem:[#allocation2 + $0xf0] sm:$0xff] %v5731
        %5764 = vst [vmem:[#allocation2 + $0xf8] sm:$0xff] %v5732
        %v5765 = vld [vmem:[%s3851 + $0x2] sm:$0xff]
        %v5766 = vld [vmem:[%s3851 + $0xa] sm:$0xff]
        %v5767 = vld [vmem:[%s3851 + $0x1a] sm:$0xff]
        %v5768 = vld [vmem:[%s3851 + $0x22] sm:$0xff]
        %v5769 = vld [vmem:[%s3851 + $0x32] sm:$0xff]
        %v5770 = vld [vmem:[%s3851 + $0x3a] sm:$0xff]
        %v5771 = vld [vmem:[%s3851 + $0x4a] sm:$0xff]
        %v5772 = vld [vmem:[%s3851 + $0x52] sm:$0xff]
        %v5773 = vld [vmem:[%s3851 + $0x62] sm:$0xff]
        %v5774 = vld [vmem:[%s3851 + $0x6a] sm:$0xff]
        %v5775 = vld [vmem:[%s3851 + $0x7a] sm:$0xff]
        %v5776 = vld [vmem:[%s3851 + $0x82] sm:$0xff]
        %v5777 = vld [vmem:[%s3851 + $0x92] sm:$0xff]
        %v5778 = vld [vmem:[%s3851 + $0x9a] sm:$0xff]
        %v5779 = vld [vmem:[%s3851 + $0xaa] sm:$0xff]
        %v5780 = vld [vmem:[%s3851 + $0xb2] sm:$0xff]
        %v5781 = vld [vmem:[%s3851 + $0xc2] sm:$0xff]
        %v5782 = vld [vmem:[%s3851 + $0xca] sm:$0xff]
        %v5783 = vld [vmem:[%s3851 + $0xda] sm:$0xff]
        %v5784 = vld [vmem:[%s3851 + $0xe2] sm:$0xff]
        %v5785 = vld [vmem:[%s3851 + $0xf2] sm:$0xff]
        %v5786 = vld [vmem:[%s3851 + $0xfa] sm:$0xff]
        %v5787 = vld [vmem:[%s3851 + $0x10a] sm:$0xff]
        %v5788 = vld [vmem:[%s3851 + $0x112] sm:$0xff]
        %v5789 = vld [vmem:[%s3851 + $0x122] sm:$0xff]
        %v5790 = vld [vmem:[%s3851 + $0x12a] sm:$0xff]
        %v5791 = vld [vmem:[%s3851 + $0x13a] sm:$0xff]
        %v5792 = vld [vmem:[%s3851 + $0x142] sm:$0xff]
        %v5793 = vld [vmem:[%s3851 + $0x152] sm:$0xff]
        %v5794 = vld [vmem:[%s3851 + $0x15a] sm:$0xff]
        %v5795 = vld [vmem:[%s3851 + $0x16a] sm:$0xff]
        %v5796 = vld [vmem:[%s3851 + $0x172] sm:$0xff]
        %v5797 = vld [vmem:[#allocation2] sm:$0xff]
        %v5798 = vld [vmem:[#allocation2 + $0x8] sm:$0xff]
        %v5799 = vld [vmem:[#allocation2 + $0x10] sm:$0xff]
        %v5800 = vld [vmem:[#allocation2 + $0x18] sm:$0xff]
        %v5801 = vld [vmem:[#allocation2 + $0x20] sm:$0xff]
        %v5802 = vld [vmem:[#allocation2 + $0x28] sm:$0xff]
        %v5803 = vld [vmem:[#allocation2 + $0x30] sm:$0xff]
        %v5804 = vld [vmem:[#allocation2 + $0x38] sm:$0xff]
        %v5805 = vld [vmem:[#allocation2 + $0x40] sm:$0xff]
        %v5806 = vld [vmem:[#allocation2 + $0x48] sm:$0xff]
        %v5807 = vld [vmem:[#allocation2 + $0x50] sm:$0xff]
        %v5808 = vld [vmem:[#allocation2 + $0x58] sm:$0xff]
        %v5809 = vld [vmem:[#allocation2 + $0x60] sm:$0xff]
        %v5810 = vld [vmem:[#allocation2 + $0x68] sm:$0xff]
        %v5811 = vld [vmem:[#allocation2 + $0x70] sm:$0xff]
        %v5812 = vld [vmem:[#allocation2 + $0x78] sm:$0xff]
        %v5813 = vld [vmem:[#allocation2 + $0x80] sm:$0xff]
        %v5814 = vld [vmem:[#allocation2 + $0x88] sm:$0xff]
        %v5815 = vld [vmem:[#allocation2 + $0x90] sm:$0xff]
        %v5816 = vld [vmem:[#allocation2 + $0x98] sm:$0xff]
        %v5817 = vld [vmem:[#allocation2 + $0xa0] sm:$0xff]
        %v5818 = vld [vmem:[#allocation2 + $0xa8] sm:$0xff]
        %v5819 = vld [vmem:[#allocation2 + $0xb0] sm:$0xff]
        %v5820 = vld [vmem:[#allocation2 + $0xb8] sm:$0xff]
        %v5821 = vld [vmem:[#allocation2 + $0xc0] sm:$0xff]
        %v5822 = vld [vmem:[#allocation2 + $0xc8] sm:$0xff]
        %v5823 = vld [vmem:[#allocation2 + $0xd0] sm:$0xff]
        %v5824 = vld [vmem:[#allocation2 + $0xd8] sm:$0xff]
        %v5825 = vld [vmem:[#allocation2 + $0xe0] sm:$0xff]
        %v5826 = vld [vmem:[#allocation2 + $0xe8] sm:$0xff]
        %v5827 = vld [vmem:[#allocation2 + $0xf0] sm:$0xff]
        %v5828 = vld [vmem:[#allocation2 + $0xf8] sm:$0xff]
        %s5829 = scalar_lea.vmem [#allocation4], 640
        %v5830 = vld [vmem:[%s5829] sm:$0xff]
        %v5831 = vld [vmem:[%s5829 + $0x8] sm:$0xff]
        %v5832 = vld [vmem:[%s5829 + $0x10] sm:$0xff]
        %v5833 = vld [vmem:[%s5829 + $0x18] sm:$0xff]
        %v5834 = vld [vmem:[%s5829 + $0x20] sm:$0xff]
        %v5835 = vld [vmem:[%s5829 + $0x28] sm:$0xff]
        %v5836 = vld [vmem:[%s5829 + $0x30] sm:$0xff]
        %v5837 = vld [vmem:[%s5829 + $0x38] sm:$0xff]
        %v5838 = vld [vmem:[%s5829 + $0x40] sm:$0xff]
        %v5839 = vld [vmem:[%s5829 + $0x48] sm:$0xff]
        %v5840 = vld [vmem:[%s5829 + $0x50] sm:$0xff]
        %v5841 = vld [vmem:[%s5829 + $0x58] sm:$0xff]
        %v5842 = vld [vmem:[%s5829 + $0x60] sm:$0xff]
        %v5843 = vld [vmem:[%s5829 + $0x68] sm:$0xff]
        %v5844 = vld [vmem:[%s5829 + $0x70] sm:$0xff]
        %v5845 = vld [vmem:[%s5829 + $0x78] sm:$0xff]
        %5846 = vmatprep.subr.mxu0 0.0
        %5847 = vmatpush1.msra.mxu0 %v5830
        %5848 = vmatprep.subr.mxu0 0.0
        %5849 = vmatpush1.msra.mxu0 %v5831
        %5850 = vmatprep.subr.mxu0 0.0
        %5851 = vmatpush1.msra.mxu0 %v5832
        %5852 = vmatprep.subr.mxu0 0.0
        %5853 = vmatpush1.msra.mxu0 %v5833
        %5854 = vmatprep.subr.mxu0 0.0
        %5855 = vmatpush1.msra.mxu0 %v5834
        %5856 = vmatprep.subr.mxu0 0.0
        %5857 = vmatpush1.msra.mxu0 %v5835
        %5858 = vmatprep.subr.mxu0 0.0
        %5859 = vmatpush1.msra.mxu0 %v5836
        %5860 = vmatprep.subr.mxu0 0.0
        %5861 = vmatpush1.msra.mxu0 %v5837
        %5862 = vmatprep.subr.mxu0 0.0
        %5863 = vmatpush1.msra.mxu0 %v5838
        %5864 = vmatprep.subr.mxu0 0.0
        %5865 = vmatpush1.msra.mxu0 %v5839
        %5866 = vmatprep.subr.mxu0 0.0
        %5867 = vmatpush1.msra.mxu0 %v5840
        %5868 = vmatprep.subr.mxu0 0.0
        %5869 = vmatpush1.msra.mxu0 %v5841
        %5870 = vmatprep.subr.mxu0 0.0
        %5871 = vmatpush1.msra.mxu0 %v5842
        %5872 = vmatprep.subr.mxu0 0.0
        %5873 = vmatpush1.msra.mxu0 %v5843
        %5874 = vmatprep.subr.mxu0 0.0
        %5875 = vmatpush1.msra.mxu0 %v5844
        %5876 = vmatprep.subr.mxu0 0.0
        %5877 = vmatpush1.msra.mxu0 %v5845
        %5878 = vmatprep.subr.mxu0 0.0
        %5879 = vmatpush1.msra.mxu0 0.0
        %5880 = vmatprep.subr.mxu0 0.0
        %5881 = vmatpush1.msra.mxu0 0.0
        %5882 = vmatprep.subr.mxu0 0.0
        %5883 = vmatpush1.msra.mxu0 0.0
        %5884 = vmatprep.subr.mxu0 0.0
        %5885 = vmatpush1.msra.mxu0 0.0
        %5886 = vmatprep.subr.mxu0 0.0
        %5887 = vmatpush1.msra.mxu0 0.0
        %5888 = vmatprep.subr.mxu0 0.0
        %5889 = vmatpush1.msra.mxu0 0.0
        %5890 = vmatprep.subr.mxu0 0.0
        %5891 = vmatpush1.msra.mxu0 0.0
        %5892 = vmatprep.subr.mxu0 0.0
        %5893 = vmatpush1.msra.mxu0 0.0
        %5894 = vmatprep.subr.mxu0 0.0
        %5895 = vmatpush1.msra.mxu0 0.0
        %5896 = vmatprep.subr.mxu0 0.0
        %5897 = vmatpush1.msra.mxu0 0.0
        %5898 = vmatprep.subr.mxu0 0.0
        %5899 = vmatpush1.msra.mxu0 0.0
        %5900 = vmatprep.subr.mxu0 0.0
        %5901 = vmatpush1.msra.mxu0 0.0
        %5902 = vmatprep.subr.mxu0 0.0
        %5903 = vmatpush1.msra.mxu0 0.0
        %5904 = vmatprep.subr.mxu0 0.0
        %5905 = vmatpush1.msra.mxu0 0.0
        %5906 = vmatprep.subr.mxu0 0.0
        %5907 = vmatpush1.msra.mxu0 0.0
        %5908 = vmatprep.subr.mxu0 0.0
        %5909 = vmatpush1.msra.mxu0 0.0
        %5910 = vmatprep.mubr.f32.mxu0 0.0
        %5911 = vmatmul.mubr.f32.gmra.mrb[0].mxu0 %v5765
        %v5912 = vpop.f32.mrb[0].mxu0
        %v5913 = vadd.f32 0.0, %v5912
        %v5914 = vpop.f32.mrb[0].mxu0
        %5915 = vmatprep.mubr.f32.mxu0 0.0
        %5916 = vmatmul.mubr.f32.gmra.mrb[0].mxu0 %v5766
        %v5917 = vpop.f32.mrb[0].mxu0
        %v5918 = vadd.f32 0.0, %v5917
        %v5919 = vpop.f32.mrb[0].mxu0
        %5920 = vmatprep.mubr.f32.mxu0 0.0
        %5921 = vmatmul.mubr.f32.gmra.mrb[0].mxu0 %v5767
        %v5922 = vpop.f32.mrb[0].mxu0
        %v5923 = vadd.f32 0.0, %v5922
        %v5924 = vpop.f32.mrb[0].mxu0
        %5925 = vmatprep.mubr.f32.mxu0 0.0
        %5926 = vmatmul.mubr.f32.gmra.mrb[0].mxu0 %v5768
        %v5927 = vpop.f32.mrb[0].mxu0
        %v5928 = vadd.f32 0.0, %v5927
        %v5929 = vpop.f32.mrb[0].mxu0
        %5930 = vmatprep.mubr.f32.mxu0 0.0
        %5931 = vmatmul.mubr.f32.gmra.mrb[0].mxu0 %v5769
        %v5932 = vpop.f32.mrb[0].mxu0
        %v5933 = vadd.f32 0.0, %v5932
        %v5934 = vpop.f32.mrb[0].mxu0
        %5935 = vmatprep.mubr.f32.mxu0 0.0
        %5936 = vmatmul.mubr.f32.gmra.mrb[0].mxu0 %v5770
        %v5937 = vpop.f32.mrb[0].mxu0
        %v5938 = vadd.f32 0.0, %v5937
        %v5939 = vpop.f32.mrb[0].mxu0
        %5940 = vmatprep.mubr.f32.mxu0 0.0
        %5941 = vmatmul.mubr.f32.gmra.mrb[0].mxu0 %v5771
        %v5942 = vpop.f32.mrb[0].mxu0
        %v5943 = vadd.f32 0.0, %v5942
        %v5944 = vpop.f32.mrb[0].mxu0
        %5945 = vmatprep.mubr.f32.mxu0 0.0
        %5946 = vmatmul.mubr.f32.gmra.mrb[0].mxu0 %v5772
        %v5947 = vpop.f32.mrb[0].mxu0
        %v5948 = vadd.f32 0.0, %v5947
        %v5949 = vpop.f32.mrb[0].mxu0
        %5950 = vmatprep.mubr.f32.mxu0 0.0
        %5951 = vmatmul.mubr.f32.gmra.mrb[0].mxu0 %v5773
        %v5952 = vpop.f32.mrb[0].mxu0
        %v5953 = vadd.f32 0.0, %v5952
        %v5954 = vpop.f32.mrb[0].mxu0
        %5955 = vmatprep.mubr.f32.mxu0 0.0
        %5956 = vmatmul.mubr.f32.gmra.mrb[0].mxu0 %v5774
        %v5957 = vpop.f32.mrb[0].mxu0
        %v5958 = vadd.f32 0.0, %v5957
        %v5959 = vpop.f32.mrb[0].mxu0
        %5960 = vmatprep.mubr.f32.mxu0 0.0
        %5961 = vmatmul.mubr.f32.gmra.mrb[0].mxu0 %v5775
        %v5962 = vpop.f32.mrb[0].mxu0
        %v5963 = vadd.f32 0.0, %v5962
        %v5964 = vpop.f32.mrb[0].mxu0
        %5965 = vmatprep.mubr.f32.mxu0 0.0
        %5966 = vmatmul.mubr.f32.gmra.mrb[0].mxu0 %v5776
        %v5967 = vpop.f32.mrb[0].mxu0
        %v5968 = vadd.f32 0.0, %v5967
        %v5969 = vpop.f32.mrb[0].mxu0
        %5970 = vmatprep.mubr.f32.mxu0 0.0
        %5971 = vmatmul.mubr.f32.gmra.mrb[0].mxu0 %v5777
        %v5972 = vpop.f32.mrb[0].mxu0
        %v5973 = vadd.f32 0.0, %v5972
        %v5974 = vpop.f32.mrb[0].mxu0
        %5975 = vmatprep.mubr.f32.mxu0 0.0
        %5976 = vmatmul.mubr.f32.gmra.mrb[0].mxu0 %v5778
        %v5977 = vpop.f32.mrb[0].mxu0
        %v5978 = vadd.f32 0.0, %v5977
        %v5979 = vpop.f32.mrb[0].mxu0
        %5980 = vmatprep.mubr.f32.mxu0 0.0
        %5981 = vmatmul.mubr.f32.gmra.mrb[0].mxu0 %v5779
        %v5982 = vpop.f32.mrb[0].mxu0
        %v5983 = vadd.f32 0.0, %v5982
        %v5984 = vpop.f32.mrb[0].mxu0
        %5985 = vmatprep.mubr.f32.mxu0 0.0
        %5986 = vmatmul.mubr.f32.gmra.mrb[0].mxu0 %v5780
        %v5987 = vpop.f32.mrb[0].mxu0
        %v5988 = vadd.f32 0.0, %v5987
        %v5989 = vpop.f32.mrb[0].mxu0
        %5990 = vmatprep.mubr.f32.mxu0 0.0
        %5991 = vmatmul.mubr.f32.gmra.mrb[0].mxu0 %v5781
        %v5992 = vpop.f32.mrb[0].mxu0
        %v5993 = vadd.f32 0.0, %v5992
        %v5994 = vpop.f32.mrb[0].mxu0
        %5995 = vmatprep.mubr.f32.mxu0 0.0
        %5996 = vmatmul.mubr.f32.gmra.mrb[0].mxu0 %v5782
        %v5997 = vpop.f32.mrb[0].mxu0
        %v5998 = vadd.f32 0.0, %v5997
        %v5999 = vpop.f32.mrb[0].mxu0
        %6000 = vmatprep.mubr.f32.mxu0 0.0
        %6001 = vmatmul.mubr.f32.gmra.mrb[0].mxu0 %v5783
        %v6002 = vpop.f32.mrb[0].mxu0
        %v6003 = vadd.f32 0.0, %v6002
        %v6004 = vpop.f32.mrb[0].mxu0
        %6005 = vmatprep.mubr.f32.mxu0 0.0
        %6006 = vmatmul.mubr.f32.gmra.mrb[0].mxu0 %v5784
        %v6007 = vpop.f32.mrb[0].mxu0
        %v6008 = vadd.f32 0.0, %v6007
        %v6009 = vpop.f32.mrb[0].mxu0
        %6010 = vmatprep.mubr.f32.mxu0 0.0
        %6011 = vmatmul.mubr.f32.gmra.mrb[0].mxu0 %v5785
        %v6012 = vpop.f32.mrb[0].mxu0
        %v6013 = vadd.f32 0.0, %v6012
        %v6014 = vpop.f32.mrb[0].mxu0
        %6015 = vmatprep.mubr.f32.mxu0 0.0
        %6016 = vmatmul.mubr.f32.gmra.mrb[0].mxu0 %v5786
        %v6017 = vpop.f32.mrb[0].mxu0
        %v6018 = vadd.f32 0.0, %v6017
        %v6019 = vpop.f32.mrb[0].mxu0
        %6020 = vmatprep.mubr.f32.mxu0 0.0
        %6021 = vmatmul.mubr.f32.gmra.mrb[0].mxu0 %v5787
        %v6022 = vpop.f32.mrb[0].mxu0
        %v6023 = vadd.f32 0.0, %v6022
        %v6024 = vpop.f32.mrb[0].mxu0
        %6025 = vmatprep.mubr.f32.mxu0 0.0
        %6026 = vmatmul.mubr.f32.gmra.mrb[0].mxu0 %v5788
        %v6027 = vpop.f32.mrb[0].mxu0
        %v6028 = vadd.f32 0.0, %v6027
        %v6029 = vpop.f32.mrb[0].mxu0
        %6030 = vmatprep.mubr.f32.mxu0 0.0
        %6031 = vmatmul.mubr.f32.gmra.mrb[0].mxu0 %v5789
        %v6032 = vpop.f32.mrb[0].mxu0
        %v6033 = vadd.f32 0.0, %v6032
        %v6034 = vpop.f32.mrb[0].mxu0
        %6035 = vmatprep.mubr.f32.mxu0 0.0
        %6036 = vmatmul.mubr.f32.gmra.mrb[0].mxu0 %v5790
        %v6037 = vpop.f32.mrb[0].mxu0
        %v6038 = vadd.f32 0.0, %v6037
        %v6039 = vpop.f32.mrb[0].mxu0
        %6040 = vmatprep.mubr.f32.mxu0 0.0
        %6041 = vmatmul.mubr.f32.gmra.mrb[0].mxu0 %v5791
        %v6042 = vpop.f32.mrb[0].mxu0
        %v6043 = vadd.f32 0.0, %v6042
        %v6044 = vpop.f32.mrb[0].mxu0
        %6045 = vmatprep.mubr.f32.mxu0 0.0
        %6046 = vmatmul.mubr.f32.gmra.mrb[0].mxu0 %v5792
        %v6047 = vpop.f32.mrb[0].mxu0
        %v6048 = vadd.f32 0.0, %v6047
        %v6049 = vpop.f32.mrb[0].mxu0
        %6050 = vmatprep.mubr.f32.mxu0 0.0
        %6051 = vmatmul.mubr.f32.gmra.mrb[0].mxu0 %v5793
        %v6052 = vpop.f32.mrb[0].mxu0
        %v6053 = vadd.f32 0.0, %v6052
        %v6054 = vpop.f32.mrb[0].mxu0
        %6055 = vmatprep.mubr.f32.mxu0 0.0
        %6056 = vmatmul.mubr.f32.gmra.mrb[0].mxu0 %v5794
        %v6057 = vpop.f32.mrb[0].mxu0
        %v6058 = vadd.f32 0.0, %v6057
        %v6059 = vpop.f32.mrb[0].mxu0
        %6060 = vmatprep.mubr.f32.mxu0 0.0
        %6061 = vmatmul.mubr.f32.gmra.mrb[0].mxu0 %v5795
        %v6062 = vpop.f32.mrb[0].mxu0
        %v6063 = vadd.f32 0.0, %v6062
        %v6064 = vpop.f32.mrb[0].mxu0
        %6065 = vmatprep.mubr.f32.mxu0 0.0
        %6066 = vmatmul.mubr.f32.gmra.mrb[0].mxu0 %v5796
        %v6067 = vpop.f32.mrb[0].mxu0
        %v6068 = vadd.f32 0.0, %v6067
        %v6069 = vpop.f32.mrb[0].mxu0
        %6070 = vdwg.mxu0
        %v6071 = vadd.f32 %v5797, %v5913
        %v6072 = vadd.f32 %v5798, %v5918
        %v6073 = vadd.f32 %v5799, %v5923
        %v6074 = vadd.f32 %v5800, %v5928
        %v6075 = vadd.f32 %v5801, %v5933
        %v6076 = vadd.f32 %v5802, %v5938
        %v6077 = vadd.f32 %v5803, %v5943
        %v6078 = vadd.f32 %v5804, %v5948
        %v6079 = vadd.f32 %v5805, %v5953
        %v6080 = vadd.f32 %v5806, %v5958
        %v6081 = vadd.f32 %v5807, %v5963
        %v6082 = vadd.f32 %v5808, %v5968
        %v6083 = vadd.f32 %v5809, %v5973
        %v6084 = vadd.f32 %v5810, %v5978
        %v6085 = vadd.f32 %v5811, %v5983
        %v6086 = vadd.f32 %v5812, %v5988
        %v6087 = vadd.f32 %v5813, %v5993
        %v6088 = vadd.f32 %v5814, %v5998
        %v6089 = vadd.f32 %v5815, %v6003
        %v6090 = vadd.f32 %v5816, %v6008
        %v6091 = vadd.f32 %v5817, %v6013
        %v6092 = vadd.f32 %v5818, %v6018
        %v6093 = vadd.f32 %v5819, %v6023
        %v6094 = vadd.f32 %v5820, %v6028
        %v6095 = vadd.f32 %v5821, %v6033
        %v6096 = vadd.f32 %v5822, %v6038
        %v6097 = vadd.f32 %v5823, %v6043
        %v6098 = vadd.f32 %v5824, %v6048
        %v6099 = vadd.f32 %v5825, %v6053
        %v6100 = vadd.f32 %v5826, %v6058
        %v6101 = vadd.f32 %v5827, %v6063
        %v6102 = vadd.f32 %v5828, %v6068
        %6103 = vst [vmem:[#allocation2] sm:$0xff] %v6071
        %6104 = vst [vmem:[#allocation2 + $0x8] sm:$0xff] %v6072
        %6105 = vst [vmem:[#allocation2 + $0x10] sm:$0xff] %v6073
        %6106 = vst [vmem:[#allocation2 + $0x18] sm:$0xff] %v6074
        %6107 = vst [vmem:[#allocation2 + $0x20] sm:$0xff] %v6075
        %6108 = vst [vmem:[#allocation2 + $0x28] sm:$0xff] %v6076
        %6109 = vst [vmem:[#allocation2 + $0x30] sm:$0xff] %v6077
        %6110 = vst [vmem:[#allocation2 + $0x38] sm:$0xff] %v6078
        %6111 = vst [vmem:[#allocation2 + $0x40] sm:$0xff] %v6079
        %6112 = vst [vmem:[#allocation2 + $0x48] sm:$0xff] %v6080
        %6113 = vst [vmem:[#allocation2 + $0x50] sm:$0xff] %v6081
        %6114 = vst [vmem:[#allocation2 + $0x58] sm:$0xff] %v6082
        %6115 = vst [vmem:[#allocation2 + $0x60] sm:$0xff] %v6083
        %6116 = vst [vmem:[#allocation2 + $0x68] sm:$0xff] %v6084
        %6117 = vst [vmem:[#allocation2 + $0x70] sm:$0xff] %v6085
        %6118 = vst [vmem:[#allocation2 + $0x78] sm:$0xff] %v6086
        %6119 = vst [vmem:[#allocation2 + $0x80] sm:$0xff] %v6087
        %6120 = vst [vmem:[#allocation2 + $0x88] sm:$0xff] %v6088
        %6121 = vst [vmem:[#allocation2 + $0x90] sm:$0xff] %v6089
        %6122 = vst [vmem:[#allocation2 + $0x98] sm:$0xff] %v6090
        %6123 = vst [vmem:[#allocation2 + $0xa0] sm:$0xff] %v6091
        %6124 = vst [vmem:[#allocation2 + $0xa8] sm:$0xff] %v6092
        %6125 = vst [vmem:[#allocation2 + $0xb0] sm:$0xff] %v6093
        %6126 = vst [vmem:[#allocation2 + $0xb8] sm:$0xff] %v6094
        %6127 = vst [vmem:[#allocation2 + $0xc0] sm:$0xff] %v6095
        %6128 = vst [vmem:[#allocation2 + $0xc8] sm:$0xff] %v6096
        %6129 = vst [vmem:[#allocation2 + $0xd0] sm:$0xff] %v6097
        %6130 = vst [vmem:[#allocation2 + $0xd8] sm:$0xff] %v6098
        %6131 = vst [vmem:[#allocation2 + $0xe0] sm:$0xff] %v6099
        %6132 = vst [vmem:[#allocation2 + $0xe8] sm:$0xff] %v6100
        %6133 = vst [vmem:[#allocation2 + $0xf0] sm:$0xff] %v6101
        %6134 = vst [vmem:[#allocation2 + $0xf8] sm:$0xff] %v6102
        %s6135 = scalar_lea.vmem [#allocation3], 48
        %v6136 = vld [vmem:[%s6135] sm:$0xff]
        %v6137 = vld [vmem:[%s6135 + $0x8] sm:$0xff]
        %v6138 = vld [vmem:[%s6135 + $0x18] sm:$0xff]
        %v6139 = vld [vmem:[%s6135 + $0x20] sm:$0xff]
        %v6140 = vld [vmem:[%s6135 + $0x30] sm:$0xff]
        %v6141 = vld [vmem:[%s6135 + $0x38] sm:$0xff]
        %v6142 = vld [vmem:[%s6135 + $0x48] sm:$0xff]
        %v6143 = vld [vmem:[%s6135 + $0x50] sm:$0xff]
        %v6144 = vld [vmem:[%s6135 + $0x60] sm:$0xff]
        %v6145 = vld [vmem:[%s6135 + $0x68] sm:$0xff]
        %v6146 = vld [vmem:[%s6135 + $0x78] sm:$0xff]
        %v6147 = vld [vmem:[%s6135 + $0x80] sm:$0xff]
        %v6148 = vld [vmem:[%s6135 + $0x90] sm:$0xff]
        %v6149 = vld [vmem:[%s6135 + $0x98] sm:$0xff]
        %v6150 = vld [vmem:[%s6135 + $0xa8] sm:$0xff]
        %v6151 = vld [vmem:[%s6135 + $0xb0] sm:$0xff]
        %v6152 = vld [vmem:[%s6135 + $0xc0] sm:$0xff]
        %v6153 = vld [vmem:[%s6135 + $0xc8] sm:$0xff]
        %v6154 = vld [vmem:[%s6135 + $0xd8] sm:$0xff]
        %v6155 = vld [vmem:[%s6135 + $0xe0] sm:$0xff]
        %v6156 = vld [vmem:[%s6135 + $0xf0] sm:$0xff]
        %v6157 = vld [vmem:[%s6135 + $0xf8] sm:$0xff]
        %v6158 = vld [vmem:[%s6135 + $0x108] sm:$0xff]
        %v6159 = vld [vmem:[%s6135 + $0x110] sm:$0xff]
        %v6160 = vld [vmem:[%s6135 + $0x120] sm:$0xff]
        %v6161 = vld [vmem:[%s6135 + $0x128] sm:$0xff]
        %v6162 = vld [vmem:[%s6135 + $0x138] sm:$0xff]
        %v6163 = vld [vmem:[%s6135 + $0x140] sm:$0xff]
        %v6164 = vld [vmem:[%s6135 + $0x150] sm:$0xff]
        %v6165 = vld [vmem:[%s6135 + $0x158] sm:$0xff]
        %v6166 = vld [vmem:[%s6135 + $0x168] sm:$0xff]
        %v6167 = vld [vmem:[%s6135 + $0x170] sm:$0xff]
        %v6168 = vld [vmem:[#allocation2] sm:$0xff]
        %v6169 = vld [vmem:[#allocation2 + $0x8] sm:$0xff]
        %v6170 = vld [vmem:[#allocation2 + $0x10] sm:$0xff]
        %v6171 = vld [vmem:[#allocation2 + $0x18] sm:$0xff]
        %v6172 = vld [vmem:[#allocation2 + $0x20] sm:$0xff]
        %v6173 = vld [vmem:[#allocation2 + $0x28] sm:$0xff]
        %v6174 = vld [vmem:[#allocation2 + $0x30] sm:$0xff]
        %v6175 = vld [vmem:[#allocation2 + $0x38] sm:$0xff]
        %v6176 = vld [vmem:[#allocation2 + $0x40] sm:$0xff]
        %v6177 = vld [vmem:[#allocation2 + $0x48] sm:$0xff]
        %v6178 = vld [vmem:[#allocation2 + $0x50] sm:$0xff]
        %v6179 = vld [vmem:[#allocation2 + $0x58] sm:$0xff]
        %v6180 = vld [vmem:[#allocation2 + $0x60] sm:$0xff]
        %v6181 = vld [vmem:[#allocation2 + $0x68] sm:$0xff]
        %v6182 = vld [vmem:[#allocation2 + $0x70] sm:$0xff]
        %v6183 = vld [vmem:[#allocation2 + $0x78] sm:$0xff]
        %v6184 = vld [vmem:[#allocation2 + $0x80] sm:$0xff]
        %v6185 = vld [vmem:[#allocation2 + $0x88] sm:$0xff]
        %v6186 = vld [vmem:[#allocation2 + $0x90] sm:$0xff]
        %v6187 = vld [vmem:[#allocation2 + $0x98] sm:$0xff]
        %v6188 = vld [vmem:[#allocation2 + $0xa0] sm:$0xff]
        %v6189 = vld [vmem:[#allocation2 + $0xa8] sm:$0xff]
        %v6190 = vld [vmem:[#allocation2 + $0xb0] sm:$0xff]
        %v6191 = vld [vmem:[#allocation2 + $0xb8] sm:$0xff]
        %v6192 = vld [vmem:[#allocation2 + $0xc0] sm:$0xff]
        %v6193 = vld [vmem:[#allocation2 + $0xc8] sm:$0xff]
        %v6194 = vld [vmem:[#allocation2 + $0xd0] sm:$0xff]
        %v6195 = vld [vmem:[#allocation2 + $0xd8] sm:$0xff]
        %v6196 = vld [vmem:[#allocation2 + $0xe0] sm:$0xff]
        %v6197 = vld [vmem:[#allocation2 + $0xe8] sm:$0xff]
        %v6198 = vld [vmem:[#allocation2 + $0xf0] sm:$0xff]
        %v6199 = vld [vmem:[#allocation2 + $0xf8] sm:$0xff]
        %s6200 = scalar_lea.vmem [#allocation4], 768
        %v6201 = vld [vmem:[%s6200] sm:$0xff]
        %v6202 = vld [vmem:[%s6200 + $0x8] sm:$0xff]
        %v6203 = vld [vmem:[%s6200 + $0x10] sm:$0xff]
        %v6204 = vld [vmem:[%s6200 + $0x18] sm:$0xff]
        %v6205 = vld [vmem:[%s6200 + $0x20] sm:$0xff]
        %v6206 = vld [vmem:[%s6200 + $0x28] sm:$0xff]
        %v6207 = vld [vmem:[%s6200 + $0x30] sm:$0xff]
        %v6208 = vld [vmem:[%s6200 + $0x38] sm:$0xff]
        %v6209 = vld [vmem:[%s6200 + $0x40] sm:$0xff]
        %v6210 = vld [vmem:[%s6200 + $0x48] sm:$0xff]
        %v6211 = vld [vmem:[%s6200 + $0x50] sm:$0xff]
        %v6212 = vld [vmem:[%s6200 + $0x58] sm:$0xff]
        %v6213 = vld [vmem:[%s6200 + $0x60] sm:$0xff]
        %v6214 = vld [vmem:[%s6200 + $0x68] sm:$0xff]
        %v6215 = vld [vmem:[%s6200 + $0x70] sm:$0xff]
        %v6216 = vld [vmem:[%s6200 + $0x78] sm:$0xff]
        %6217 = vmatprep.subr.mxu0 0.0
        %6218 = vmatpush1.msra.mxu0 %v6201
        %6219 = vmatprep.subr.mxu0 0.0
        %6220 = vmatpush1.msra.mxu0 %v6202
        %6221 = vmatprep.subr.mxu0 0.0
        %6222 = vmatpush1.msra.mxu0 %v6203
        %6223 = vmatprep.subr.mxu0 0.0
        %6224 = vmatpush1.msra.mxu0 %v6204
        %6225 = vmatprep.subr.mxu0 0.0
        %6226 = vmatpush1.msra.mxu0 %v6205
        %6227 = vmatprep.subr.mxu0 0.0
        %6228 = vmatpush1.msra.mxu0 %v6206
        %6229 = vmatprep.subr.mxu0 0.0
        %6230 = vmatpush1.msra.mxu0 %v6207
        %6231 = vmatprep.subr.mxu0 0.0
        %6232 = vmatpush1.msra.mxu0 %v6208
        %6233 = vmatprep.subr.mxu0 0.0
        %6234 = vmatpush1.msra.mxu0 %v6209
        %6235 = vmatprep.subr.mxu0 0.0
        %6236 = vmatpush1.msra.mxu0 %v6210
        %6237 = vmatprep.subr.mxu0 0.0
        %6238 = vmatpush1.msra.mxu0 %v6211
        %6239 = vmatprep.subr.mxu0 0.0
        %6240 = vmatpush1.msra.mxu0 %v6212
        %6241 = vmatprep.subr.mxu0 0.0
        %6242 = vmatpush1.msra.mxu0 %v6213
        %6243 = vmatprep.subr.mxu0 0.0
        %6244 = vmatpush1.msra.mxu0 %v6214
        %6245 = vmatprep.subr.mxu0 0.0
        %6246 = vmatpush1.msra.mxu0 %v6215
        %6247 = vmatprep.subr.mxu0 0.0
        %6248 = vmatpush1.msra.mxu0 %v6216
        %6249 = vmatprep.subr.mxu0 0.0
        %6250 = vmatpush1.msra.mxu0 0.0
        %6251 = vmatprep.subr.mxu0 0.0
        %6252 = vmatpush1.msra.mxu0 0.0
        %6253 = vmatprep.subr.mxu0 0.0
        %6254 = vmatpush1.msra.mxu0 0.0
        %6255 = vmatprep.subr.mxu0 0.0
        %6256 = vmatpush1.msra.mxu0 0.0
        %6257 = vmatprep.subr.mxu0 0.0
        %6258 = vmatpush1.msra.mxu0 0.0
        %6259 = vmatprep.subr.mxu0 0.0
        %6260 = vmatpush1.msra.mxu0 0.0
        %6261 = vmatprep.subr.mxu0 0.0
        %6262 = vmatpush1.msra.mxu0 0.0
        %6263 = vmatprep.subr.mxu0 0.0
        %6264 = vmatpush1.msra.mxu0 0.0
        %6265 = vmatprep.subr.mxu0 0.0
        %6266 = vmatpush1.msra.mxu0 0.0
        %6267 = vmatprep.subr.mxu0 0.0
        %6268 = vmatpush1.msra.mxu0 0.0
        %6269 = vmatprep.subr.mxu0 0.0
        %6270 = vmatpush1.msra.mxu0 0.0
        %6271 = vmatprep.subr.mxu0 0.0
        %6272 = vmatpush1.msra.mxu0 0.0
        %6273 = vmatprep.subr.mxu0 0.0
        %6274 = vmatpush1.msra.mxu0 0.0
        %6275 = vmatprep.subr.mxu0 0.0
        %6276 = vmatpush1.msra.mxu0 0.0
        %6277 = vmatprep.subr.mxu0 0.0
        %6278 = vmatpush1.msra.mxu0 0.0
        %6279 = vmatprep.subr.mxu0 0.0
        %6280 = vmatpush1.msra.mxu0 0.0
        %6281 = vmatprep.mubr.f32.mxu0 0.0
        %6282 = vmatmul.mubr.f32.gmra.mrb[0].mxu0 %v6136
        %v6283 = vpop.f32.mrb[0].mxu0
        %v6284 = vadd.f32 0.0, %v6283
        %v6285 = vpop.f32.mrb[0].mxu0
        %6286 = vmatprep.mubr.f32.mxu0 0.0
        %6287 = vmatmul.mubr.f32.gmra.mrb[0].mxu0 %v6137
        %v6288 = vpop.f32.mrb[0].mxu0
        %v6289 = vadd.f32 0.0, %v6288
        %v6290 = vpop.f32.mrb[0].mxu0
        %6291 = vmatprep.mubr.f32.mxu0 0.0
        %6292 = vmatmul.mubr.f32.gmra.mrb[0].mxu0 %v6138
        %v6293 = vpop.f32.mrb[0].mxu0
        %v6294 = vadd.f32 0.0, %v6293
        %v6295 = vpop.f32.mrb[0].mxu0
        %6296 = vmatprep.mubr.f32.mxu0 0.0
        %6297 = vmatmul.mubr.f32.gmra.mrb[0].mxu0 %v6139
        %v6298 = vpop.f32.mrb[0].mxu0
        %v6299 = vadd.f32 0.0, %v6298
        %v6300 = vpop.f32.mrb[0].mxu0
        %6301 = vmatprep.mubr.f32.mxu0 0.0
        %6302 = vmatmul.mubr.f32.gmra.mrb[0].mxu0 %v6140
        %v6303 = vpop.f32.mrb[0].mxu0
        %v6304 = vadd.f32 0.0, %v6303
        %v6305 = vpop.f32.mrb[0].mxu0
        %6306 = vmatprep.mubr.f32.mxu0 0.0
        %6307 = vmatmul.mubr.f32.gmra.mrb[0].mxu0 %v6141
        %v6308 = vpop.f32.mrb[0].mxu0
        %v6309 = vadd.f32 0.0, %v6308
        %v6310 = vpop.f32.mrb[0].mxu0
        %6311 = vmatprep.mubr.f32.mxu0 0.0
        %6312 = vmatmul.mubr.f32.gmra.mrb[0].mxu0 %v6142
        %v6313 = vpop.f32.mrb[0].mxu0
        %v6314 = vadd.f32 0.0, %v6313
        %v6315 = vpop.f32.mrb[0].mxu0
        %6316 = vmatprep.mubr.f32.mxu0 0.0
        %6317 = vmatmul.mubr.f32.gmra.mrb[0].mxu0 %v6143
        %v6318 = vpop.f32.mrb[0].mxu0
        %v6319 = vadd.f32 0.0, %v6318
        %v6320 = vpop.f32.mrb[0].mxu0
        %6321 = vmatprep.mubr.f32.mxu0 0.0
        %6322 = vmatmul.mubr.f32.gmra.mrb[0].mxu0 %v6144
        %v6323 = vpop.f32.mrb[0].mxu0
        %v6324 = vadd.f32 0.0, %v6323
        %v6325 = vpop.f32.mrb[0].mxu0
        %6326 = vmatprep.mubr.f32.mxu0 0.0
        %6327 = vmatmul.mubr.f32.gmra.mrb[0].mxu0 %v6145
        %v6328 = vpop.f32.mrb[0].mxu0
        %v6329 = vadd.f32 0.0, %v6328
        %v6330 = vpop.f32.mrb[0].mxu0
        %6331 = vmatprep.mubr.f32.mxu0 0.0
        %6332 = vmatmul.mubr.f32.gmra.mrb[0].mxu0 %v6146
        %v6333 = vpop.f32.mrb[0].mxu0
        %v6334 = vadd.f32 0.0, %v6333
        %v6335 = vpop.f32.mrb[0].mxu0
        %6336 = vmatprep.mubr.f32.mxu0 0.0
        %6337 = vmatmul.mubr.f32.gmra.mrb[0].mxu0 %v6147
        %v6338 = vpop.f32.mrb[0].mxu0
        %v6339 = vadd.f32 0.0, %v6338
        %v6340 = vpop.f32.mrb[0].mxu0
        %6341 = vmatprep.mubr.f32.mxu0 0.0
        %6342 = vmatmul.mubr.f32.gmra.mrb[0].mxu0 %v6148
        %v6343 = vpop.f32.mrb[0].mxu0
        %v6344 = vadd.f32 0.0, %v6343
        %v6345 = vpop.f32.mrb[0].mxu0
        %6346 = vmatprep.mubr.f32.mxu0 0.0
        %6347 = vmatmul.mubr.f32.gmra.mrb[0].mxu0 %v6149
        %v6348 = vpop.f32.mrb[0].mxu0
        %v6349 = vadd.f32 0.0, %v6348
        %v6350 = vpop.f32.mrb[0].mxu0
        %6351 = vmatprep.mubr.f32.mxu0 0.0
        %6352 = vmatmul.mubr.f32.gmra.mrb[0].mxu0 %v6150
        %v6353 = vpop.f32.mrb[0].mxu0
        %v6354 = vadd.f32 0.0, %v6353
        %v6355 = vpop.f32.mrb[0].mxu0
        %6356 = vmatprep.mubr.f32.mxu0 0.0
        %6357 = vmatmul.mubr.f32.gmra.mrb[0].mxu0 %v6151
        %v6358 = vpop.f32.mrb[0].mxu0
        %v6359 = vadd.f32 0.0, %v6358
        %v6360 = vpop.f32.mrb[0].mxu0
        %6361 = vmatprep.mubr.f32.mxu0 0.0
        %6362 = vmatmul.mubr.f32.gmra.mrb[0].mxu0 %v6152
        %v6363 = vpop.f32.mrb[0].mxu0
        %v6364 = vadd.f32 0.0, %v6363
        %v6365 = vpop.f32.mrb[0].mxu0
        %6366 = vmatprep.mubr.f32.mxu0 0.0
        %6367 = vmatmul.mubr.f32.gmra.mrb[0].mxu0 %v6153
        %v6368 = vpop.f32.mrb[0].mxu0
        %v6369 = vadd.f32 0.0, %v6368
        %v6370 = vpop.f32.mrb[0].mxu0
        %6371 = vmatprep.mubr.f32.mxu0 0.0
        %6372 = vmatmul.mubr.f32.gmra.mrb[0].mxu0 %v6154
        %v6373 = vpop.f32.mrb[0].mxu0
        %v6374 = vadd.f32 0.0, %v6373
        %v6375 = vpop.f32.mrb[0].mxu0
        %6376 = vmatprep.mubr.f32.mxu0 0.0
        %6377 = vmatmul.mubr.f32.gmra.mrb[0].mxu0 %v6155
        %v6378 = vpop.f32.mrb[0].mxu0
        %v6379 = vadd.f32 0.0, %v6378
        %v6380 = vpop.f32.mrb[0].mxu0
        %6381 = vmatprep.mubr.f32.mxu0 0.0
        %6382 = vmatmul.mubr.f32.gmra.mrb[0].mxu0 %v6156
        %v6383 = vpop.f32.mrb[0].mxu0
        %v6384 = vadd.f32 0.0, %v6383
        %v6385 = vpop.f32.mrb[0].mxu0
        %6386 = vmatprep.mubr.f32.mxu0 0.0
        %6387 = vmatmul.mubr.f32.gmra.mrb[0].mxu0 %v6157
        %v6388 = vpop.f32.mrb[0].mxu0
        %v6389 = vadd.f32 0.0, %v6388
        %v6390 = vpop.f32.mrb[0].mxu0
        %6391 = vmatprep.mubr.f32.mxu0 0.0
        %6392 = vmatmul.mubr.f32.gmra.mrb[0].mxu0 %v6158
        %v6393 = vpop.f32.mrb[0].mxu0
        %v6394 = vadd.f32 0.0, %v6393
        %v6395 = vpop.f32.mrb[0].mxu0
        %6396 = vmatprep.mubr.f32.mxu0 0.0
        %6397 = vmatmul.mubr.f32.gmra.mrb[0].mxu0 %v6159
        %v6398 = vpop.f32.mrb[0].mxu0
        %v6399 = vadd.f32 0.0, %v6398
        %v6400 = vpop.f32.mrb[0].mxu0
        %6401 = vmatprep.mubr.f32.mxu0 0.0
        %6402 = vmatmul.mubr.f32.gmra.mrb[0].mxu0 %v6160
        %v6403 = vpop.f32.mrb[0].mxu0
        %v6404 = vadd.f32 0.0, %v6403
        %v6405 = vpop.f32.mrb[0].mxu0
        %6406 = vmatprep.mubr.f32.mxu0 0.0
        %6407 = vmatmul.mubr.f32.gmra.mrb[0].mxu0 %v6161
        %v6408 = vpop.f32.mrb[0].mxu0
        %v6409 = vadd.f32 0.0, %v6408
        %v6410 = vpop.f32.mrb[0].mxu0
        %6411 = vmatprep.mubr.f32.mxu0 0.0
        %6412 = vmatmul.mubr.f32.gmra.mrb[0].mxu0 %v6162
        %v6413 = vpop.f32.mrb[0].mxu0
        %v6414 = vadd.f32 0.0, %v6413
        %v6415 = vpop.f32.mrb[0].mxu0
        %6416 = vmatprep.mubr.f32.mxu0 0.0
        %6417 = vmatmul.mubr.f32.gmra.mrb[0].mxu0 %v6163
        %v6418 = vpop.f32.mrb[0].mxu0
        %v6419 = vadd.f32 0.0, %v6418
        %v6420 = vpop.f32.mrb[0].mxu0
        %6421 = vmatprep.mubr.f32.mxu0 0.0
        %6422 = vmatmul.mubr.f32.gmra.mrb[0].mxu0 %v6164
        %v6423 = vpop.f32.mrb[0].mxu0
        %v6424 = vadd.f32 0.0, %v6423
        %v6425 = vpop.f32.mrb[0].mxu0
        %6426 = vmatprep.mubr.f32.mxu0 0.0
        %6427 = vmatmul.mubr.f32.gmra.mrb[0].mxu0 %v6165
        %v6428 = vpop.f32.mrb[0].mxu0
        %v6429 = vadd.f32 0.0, %v6428
        %v6430 = vpop.f32.mrb[0].mxu0
        %6431 = vmatprep.mubr.f32.mxu0 0.0
        %6432 = vmatmul.mubr.f32.gmra.mrb[0].mxu0 %v6166
        %v6433 = vpop.f32.mrb[0].mxu0
        %v6434 = vadd.f32 0.0, %v6433
        %v6435 = vpop.f32.mrb[0].mxu0
        %6436 = vmatprep.mubr.f32.mxu0 0.0
        %6437 = vmatmul.mubr.f32.gmra.mrb[0].mxu0 %v6167
        %v6438 = vpop.f32.mrb[0].mxu0
        %v6439 = vadd.f32 0.0, %v6438
        %v6440 = vpop.f32.mrb[0].mxu0
        %6441 = vdwg.mxu0
        %v6442 = vadd.f32 %v6168, %v6284
        %v6443 = vadd.f32 %v6169, %v6289
        %v6444 = vadd.f32 %v6170, %v6294
        %v6445 = vadd.f32 %v6171, %v6299
        %v6446 = vadd.f32 %v6172, %v6304
        %v6447 = vadd.f32 %v6173, %v6309
        %v6448 = vadd.f32 %v6174, %v6314
        %v6449 = vadd.f32 %v6175, %v6319
        %v6450 = vadd.f32 %v6176, %v6324
        %v6451 = vadd.f32 %v6177, %v6329
        %v6452 = vadd.f32 %v6178, %v6334
        %v6453 = vadd.f32 %v6179, %v6339
        %v6454 = vadd.f32 %v6180, %v6344
        %v6455 = vadd.f32 %v6181, %v6349
        %v6456 = vadd.f32 %v6182, %v6354
        %v6457 = vadd.f32 %v6183, %v6359
        %v6458 = vadd.f32 %v6184, %v6364
        %v6459 = vadd.f32 %v6185, %v6369
        %v6460 = vadd.f32 %v6186, %v6374
        %v6461 = vadd.f32 %v6187, %v6379
        %v6462 = vadd.f32 %v6188, %v6384
        %v6463 = vadd.f32 %v6189, %v6389
        %v6464 = vadd.f32 %v6190, %v6394
        %v6465 = vadd.f32 %v6191, %v6399
        %v6466 = vadd.f32 %v6192, %v6404
        %v6467 = vadd.f32 %v6193, %v6409
        %v6468 = vadd.f32 %v6194, %v6414
        %v6469 = vadd.f32 %v6195, %v6419
        %v6470 = vadd.f32 %v6196, %v6424
        %v6471 = vadd.f32 %v6197, %v6429
        %v6472 = vadd.f32 %v6198, %v6434
        %v6473 = vadd.f32 %v6199, %v6439
        %6474 = vst [vmem:[#allocation2] sm:$0xff] %v6442
        %6475 = vst [vmem:[#allocation2 + $0x8] sm:$0xff] %v6443
        %6476 = vst [vmem:[#allocation2 + $0x10] sm:$0xff] %v6444
        %6477 = vst [vmem:[#allocation2 + $0x18] sm:$0xff] %v6445
        %6478 = vst [vmem:[#allocation2 + $0x20] sm:$0xff] %v6446
        %6479 = vst [vmem:[#allocation2 + $0x28] sm:$0xff] %v6447
        %6480 = vst [vmem:[#allocation2 + $0x30] sm:$0xff] %v6448
        %6481 = vst [vmem:[#allocation2 + $0x38] sm:$0xff] %v6449
        %6482 = vst [vmem:[#allocation2 + $0x40] sm:$0xff] %v6450
        %6483 = vst [vmem:[#allocation2 + $0x48] sm:$0xff] %v6451
        %6484 = vst [vmem:[#allocation2 + $0x50] sm:$0xff] %v6452
        %6485 = vst [vmem:[#allocation2 + $0x58] sm:$0xff] %v6453
        %6486 = vst [vmem:[#allocation2 + $0x60] sm:$0xff] %v6454
        %6487 = vst [vmem:[#allocation2 + $0x68] sm:$0xff] %v6455
        %6488 = vst [vmem:[#allocation2 + $0x70] sm:$0xff] %v6456
        %6489 = vst [vmem:[#allocation2 + $0x78] sm:$0xff] %v6457
        %6490 = vst [vmem:[#allocation2 + $0x80] sm:$0xff] %v6458
        %6491 = vst [vmem:[#allocation2 + $0x88] sm:$0xff] %v6459
        %6492 = vst [vmem:[#allocation2 + $0x90] sm:$0xff] %v6460
        %6493 = vst [vmem:[#allocation2 + $0x98] sm:$0xff] %v6461
        %6494 = vst [vmem:[#allocation2 + $0xa0] sm:$0xff] %v6462
        %6495 = vst [vmem:[#allocation2 + $0xa8] sm:$0xff] %v6463
        %6496 = vst [vmem:[#allocation2 + $0xb0] sm:$0xff] %v6464
        %6497 = vst [vmem:[#allocation2 + $0xb8] sm:$0xff] %v6465
        %6498 = vst [vmem:[#allocation2 + $0xc0] sm:$0xff] %v6466
        %6499 = vst [vmem:[#allocation2 + $0xc8] sm:$0xff] %v6467
        %6500 = vst [vmem:[#allocation2 + $0xd0] sm:$0xff] %v6468
        %6501 = vst [vmem:[#allocation2 + $0xd8] sm:$0xff] %v6469
        %6502 = vst [vmem:[#allocation2 + $0xe0] sm:$0xff] %v6470
        %6503 = vst [vmem:[#allocation2 + $0xe8] sm:$0xff] %v6471
        %6504 = vst [vmem:[#allocation2 + $0xf0] sm:$0xff] %v6472
        %6505 = vst [vmem:[#allocation2 + $0xf8] sm:$0xff] %v6473
        %v6506 = vld [vmem:[%s6135 + $0x1] sm:$0xff]
        %v6507 = vld [vmem:[%s6135 + $0x9] sm:$0xff]
        %v6508 = vld [vmem:[%s6135 + $0x19] sm:$0xff]
        %v6509 = vld [vmem:[%s6135 + $0x21] sm:$0xff]
        %v6510 = vld [vmem:[%s6135 + $0x31] sm:$0xff]
        %v6511 = vld [vmem:[%s6135 + $0x39] sm:$0xff]
        %v6512 = vld [vmem:[%s6135 + $0x49] sm:$0xff]
        %v6513 = vld [vmem:[%s6135 + $0x51] sm:$0xff]
        %v6514 = vld [vmem:[%s6135 + $0x61] sm:$0xff]
        %v6515 = vld [vmem:[%s6135 + $0x69] sm:$0xff]
        %v6516 = vld [vmem:[%s6135 + $0x79] sm:$0xff]
        %v6517 = vld [vmem:[%s6135 + $0x81] sm:$0xff]
        %v6518 = vld [vmem:[%s6135 + $0x91] sm:$0xff]
        %v6519 = vld [vmem:[%s6135 + $0x99] sm:$0xff]
        %v6520 = vld [vmem:[%s6135 + $0xa9] sm:$0xff]
        %v6521 = vld [vmem:[%s6135 + $0xb1] sm:$0xff]
        %v6522 = vld [vmem:[%s6135 + $0xc1] sm:$0xff]
        %v6523 = vld [vmem:[%s6135 + $0xc9] sm:$0xff]
        %v6524 = vld [vmem:[%s6135 + $0xd9] sm:$0xff]
        %v6525 = vld [vmem:[%s6135 + $0xe1] sm:$0xff]
        %v6526 = vld [vmem:[%s6135 + $0xf1] sm:$0xff]
        %v6527 = vld [vmem:[%s6135 + $0xf9] sm:$0xff]
        %v6528 = vld [vmem:[%s6135 + $0x109] sm:$0xff]
        %v6529 = vld [vmem:[%s6135 + $0x111] sm:$0xff]
        %v6530 = vld [vmem:[%s6135 + $0x121] sm:$0xff]
        %v6531 = vld [vmem:[%s6135 + $0x129] sm:$0xff]
        %v6532 = vld [vmem:[%s6135 + $0x139] sm:$0xff]
        %v6533 = vld [vmem:[%s6135 + $0x141] sm:$0xff]
        %v6534 = vld [vmem:[%s6135 + $0x151] sm:$0xff]
        %v6535 = vld [vmem:[%s6135 + $0x159] sm:$0xff]
        %v6536 = vld [vmem:[%s6135 + $0x169] sm:$0xff]
        %v6537 = vld [vmem:[%s6135 + $0x171] sm:$0xff]
        %v6538 = vld [vmem:[#allocation2] sm:$0xff]
        %v6539 = vld [vmem:[#allocation2 + $0x8] sm:$0xff]
        %v6540 = vld [vmem:[#allocation2 + $0x10] sm:$0xff]
        %v6541 = vld [vmem:[#allocation2 + $0x18] sm:$0xff]
        %v6542 = vld [vmem:[#allocation2 + $0x20] sm:$0xff]
        %v6543 = vld [vmem:[#allocation2 + $0x28] sm:$0xff]
        %v6544 = vld [vmem:[#allocation2 + $0x30] sm:$0xff]
        %v6545 = vld [vmem:[#allocation2 + $0x38] sm:$0xff]
        %v6546 = vld [vmem:[#allocation2 + $0x40] sm:$0xff]
        %v6547 = vld [vmem:[#allocation2 + $0x48] sm:$0xff]
        %v6548 = vld [vmem:[#allocation2 + $0x50] sm:$0xff]
        %v6549 = vld [vmem:[#allocation2 + $0x58] sm:$0xff]
        %v6550 = vld [vmem:[#allocation2 + $0x60] sm:$0xff]
        %v6551 = vld [vmem:[#allocation2 + $0x68] sm:$0xff]
        %v6552 = vld [vmem:[#allocation2 + $0x70] sm:$0xff]
        %v6553 = vld [vmem:[#allocation2 + $0x78] sm:$0xff]
        %v6554 = vld [vmem:[#allocation2 + $0x80] sm:$0xff]
        %v6555 = vld [vmem:[#allocation2 + $0x88] sm:$0xff]
        %v6556 = vld [vmem:[#allocation2 + $0x90] sm:$0xff]
        %v6557 = vld [vmem:[#allocation2 + $0x98] sm:$0xff]
        %v6558 = vld [vmem:[#allocation2 + $0xa0] sm:$0xff]
        %v6559 = vld [vmem:[#allocation2 + $0xa8] sm:$0xff]
        %v6560 = vld [vmem:[#allocation2 + $0xb0] sm:$0xff]
        %v6561 = vld [vmem:[#allocation2 + $0xb8] sm:$0xff]
        %v6562 = vld [vmem:[#allocation2 + $0xc0] sm:$0xff]
        %v6563 = vld [vmem:[#allocation2 + $0xc8] sm:$0xff]
        %v6564 = vld [vmem:[#allocation2 + $0xd0] sm:$0xff]
        %v6565 = vld [vmem:[#allocation2 + $0xd8] sm:$0xff]
        %v6566 = vld [vmem:[#allocation2 + $0xe0] sm:$0xff]
        %v6567 = vld [vmem:[#allocation2 + $0xe8] sm:$0xff]
        %v6568 = vld [vmem:[#allocation2 + $0xf0] sm:$0xff]
        %v6569 = vld [vmem:[#allocation2 + $0xf8] sm:$0xff]
        %s6570 = scalar_lea.vmem [#allocation4], 896
        %v6571 = vld [vmem:[%s6570] sm:$0xff]
        %v6572 = vld [vmem:[%s6570 + $0x8] sm:$0xff]
        %v6573 = vld [vmem:[%s6570 + $0x10] sm:$0xff]
        %v6574 = vld [vmem:[%s6570 + $0x18] sm:$0xff]
        %v6575 = vld [vmem:[%s6570 + $0x20] sm:$0xff]
        %v6576 = vld [vmem:[%s6570 + $0x28] sm:$0xff]
        %v6577 = vld [vmem:[%s6570 + $0x30] sm:$0xff]
        %v6578 = vld [vmem:[%s6570 + $0x38] sm:$0xff]
        %v6579 = vld [vmem:[%s6570 + $0x40] sm:$0xff]
        %v6580 = vld [vmem:[%s6570 + $0x48] sm:$0xff]
        %v6581 = vld [vmem:[%s6570 + $0x50] sm:$0xff]
        %v6582 = vld [vmem:[%s6570 + $0x58] sm:$0xff]
        %v6583 = vld [vmem:[%s6570 + $0x60] sm:$0xff]
        %v6584 = vld [vmem:[%s6570 + $0x68] sm:$0xff]
        %v6585 = vld [vmem:[%s6570 + $0x70] sm:$0xff]
        %v6586 = vld [vmem:[%s6570 + $0x78] sm:$0xff]
        %6587 = vmatprep.subr.mxu0 0.0
        %6588 = vmatpush1.msra.mxu0 %v6571
        %6589 = vmatprep.subr.mxu0 0.0
        %6590 = vmatpush1.msra.mxu0 %v6572
        %6591 = vmatprep.subr.mxu0 0.0
        %6592 = vmatpush1.msra.mxu0 %v6573
        %6593 = vmatprep.subr.mxu0 0.0
        %6594 = vmatpush1.msra.mxu0 %v6574
        %6595 = vmatprep.subr.mxu0 0.0
        %6596 = vmatpush1.msra.mxu0 %v6575
        %6597 = vmatprep.subr.mxu0 0.0
        %6598 = vmatpush1.msra.mxu0 %v6576
        %6599 = vmatprep.subr.mxu0 0.0
        %6600 = vmatpush1.msra.mxu0 %v6577
        %6601 = vmatprep.subr.mxu0 0.0
        %6602 = vmatpush1.msra.mxu0 %v6578
        %6603 = vmatprep.subr.mxu0 0.0
        %6604 = vmatpush1.msra.mxu0 %v6579
        %6605 = vmatprep.subr.mxu0 0.0
        %6606 = vmatpush1.msra.mxu0 %v6580
        %6607 = vmatprep.subr.mxu0 0.0
        %6608 = vmatpush1.msra.mxu0 %v6581
        %6609 = vmatprep.subr.mxu0 0.0
        %6610 = vmatpush1.msra.mxu0 %v6582
        %6611 = vmatprep.subr.mxu0 0.0
        %6612 = vmatpush1.msra.mxu0 %v6583
        %6613 = vmatprep.subr.mxu0 0.0
        %6614 = vmatpush1.msra.mxu0 %v6584
        %6615 = vmatprep.subr.mxu0 0.0
        %6616 = vmatpush1.msra.mxu0 %v6585
        %6617 = vmatprep.subr.mxu0 0.0
        %6618 = vmatpush1.msra.mxu0 %v6586
        %6619 = vmatprep.subr.mxu0 0.0
        %6620 = vmatpush1.msra.mxu0 0.0
        %6621 = vmatprep.subr.mxu0 0.0
        %6622 = vmatpush1.msra.mxu0 0.0
        %6623 = vmatprep.subr.mxu0 0.0
        %6624 = vmatpush1.msra.mxu0 0.0
        %6625 = vmatprep.subr.mxu0 0.0
        %6626 = vmatpush1.msra.mxu0 0.0
        %6627 = vmatprep.subr.mxu0 0.0
        %6628 = vmatpush1.msra.mxu0 0.0
        %6629 = vmatprep.subr.mxu0 0.0
        %6630 = vmatpush1.msra.mxu0 0.0
        %6631 = vmatprep.subr.mxu0 0.0
        %6632 = vmatpush1.msra.mxu0 0.0
        %6633 = vmatprep.subr.mxu0 0.0
        %6634 = vmatpush1.msra.mxu0 0.0
        %6635 = vmatprep.subr.mxu0 0.0
        %6636 = vmatpush1.msra.mxu0 0.0
        %6637 = vmatprep.subr.mxu0 0.0
        %6638 = vmatpush1.msra.mxu0 0.0
        %6639 = vmatprep.subr.mxu0 0.0
        %6640 = vmatpush1.msra.mxu0 0.0
        %6641 = vmatprep.subr.mxu0 0.0
        %6642 = vmatpush1.msra.mxu0 0.0
        %6643 = vmatprep.subr.mxu0 0.0
        %6644 = vmatpush1.msra.mxu0 0.0
        %6645 = vmatprep.subr.mxu0 0.0
        %6646 = vmatpush1.msra.mxu0 0.0
        %6647 = vmatprep.subr.mxu0 0.0
        %6648 = vmatpush1.msra.mxu0 0.0
        %6649 = vmatprep.subr.mxu0 0.0
        %6650 = vmatpush1.msra.mxu0 0.0
        %6651 = vmatprep.mubr.f32.mxu0 0.0
        %6652 = vmatmul.mubr.f32.gmra.mrb[0].mxu0 %v6506
        %v6653 = vpop.f32.mrb[0].mxu0
        %v6654 = vadd.f32 0.0, %v6653
        %v6655 = vpop.f32.mrb[0].mxu0
        %6656 = vmatprep.mubr.f32.mxu0 0.0
        %6657 = vmatmul.mubr.f32.gmra.mrb[0].mxu0 %v6507
        %v6658 = vpop.f32.mrb[0].mxu0
        %v6659 = vadd.f32 0.0, %v6658
        %v6660 = vpop.f32.mrb[0].mxu0
        %6661 = vmatprep.mubr.f32.mxu0 0.0
        %6662 = vmatmul.mubr.f32.gmra.mrb[0].mxu0 %v6508
        %v6663 = vpop.f32.mrb[0].mxu0
        %v6664 = vadd.f32 0.0, %v6663
        %v6665 = vpop.f32.mrb[0].mxu0
        %6666 = vmatprep.mubr.f32.mxu0 0.0
        %6667 = vmatmul.mubr.f32.gmra.mrb[0].mxu0 %v6509
        %v6668 = vpop.f32.mrb[0].mxu0
        %v6669 = vadd.f32 0.0, %v6668
        %v6670 = vpop.f32.mrb[0].mxu0
        %6671 = vmatprep.mubr.f32.mxu0 0.0
        %6672 = vmatmul.mubr.f32.gmra.mrb[0].mxu0 %v6510
        %v6673 = vpop.f32.mrb[0].mxu0
        %v6674 = vadd.f32 0.0, %v6673
        %v6675 = vpop.f32.mrb[0].mxu0
        %6676 = vmatprep.mubr.f32.mxu0 0.0
        %6677 = vmatmul.mubr.f32.gmra.mrb[0].mxu0 %v6511
        %v6678 = vpop.f32.mrb[0].mxu0
        %v6679 = vadd.f32 0.0, %v6678
        %v6680 = vpop.f32.mrb[0].mxu0
        %6681 = vmatprep.mubr.f32.mxu0 0.0
        %6682 = vmatmul.mubr.f32.gmra.mrb[0].mxu0 %v6512
        %v6683 = vpop.f32.mrb[0].mxu0
        %v6684 = vadd.f32 0.0, %v6683
        %v6685 = vpop.f32.mrb[0].mxu0
        %6686 = vmatprep.mubr.f32.mxu0 0.0
        %6687 = vmatmul.mubr.f32.gmra.mrb[0].mxu0 %v6513
        %v6688 = vpop.f32.mrb[0].mxu0
        %v6689 = vadd.f32 0.0, %v6688
        %v6690 = vpop.f32.mrb[0].mxu0
        %6691 = vmatprep.mubr.f32.mxu0 0.0
        %6692 = vmatmul.mubr.f32.gmra.mrb[0].mxu0 %v6514
        %v6693 = vpop.f32.mrb[0].mxu0
        %v6694 = vadd.f32 0.0, %v6693
        %v6695 = vpop.f32.mrb[0].mxu0
        %6696 = vmatprep.mubr.f32.mxu0 0.0
        %6697 = vmatmul.mubr.f32.gmra.mrb[0].mxu0 %v6515
        %v6698 = vpop.f32.mrb[0].mxu0
        %v6699 = vadd.f32 0.0, %v6698
        %v6700 = vpop.f32.mrb[0].mxu0
        %6701 = vmatprep.mubr.f32.mxu0 0.0
        %6702 = vmatmul.mubr.f32.gmra.mrb[0].mxu0 %v6516
        %v6703 = vpop.f32.mrb[0].mxu0
        %v6704 = vadd.f32 0.0, %v6703
        %v6705 = vpop.f32.mrb[0].mxu0
        %6706 = vmatprep.mubr.f32.mxu0 0.0
        %6707 = vmatmul.mubr.f32.gmra.mrb[0].mxu0 %v6517
        %v6708 = vpop.f32.mrb[0].mxu0
        %v6709 = vadd.f32 0.0, %v6708
        %v6710 = vpop.f32.mrb[0].mxu0
        %6711 = vmatprep.mubr.f32.mxu0 0.0
        %6712 = vmatmul.mubr.f32.gmra.mrb[0].mxu0 %v6518
        %v6713 = vpop.f32.mrb[0].mxu0
        %v6714 = vadd.f32 0.0, %v6713
        %v6715 = vpop.f32.mrb[0].mxu0
        %6716 = vmatprep.mubr.f32.mxu0 0.0
        %6717 = vmatmul.mubr.f32.gmra.mrb[0].mxu0 %v6519
        %v6718 = vpop.f32.mrb[0].mxu0
        %v6719 = vadd.f32 0.0, %v6718
        %v6720 = vpop.f32.mrb[0].mxu0
        %6721 = vmatprep.mubr.f32.mxu0 0.0
        %6722 = vmatmul.mubr.f32.gmra.mrb[0].mxu0 %v6520
        %v6723 = vpop.f32.mrb[0].mxu0
        %v6724 = vadd.f32 0.0, %v6723
        %v6725 = vpop.f32.mrb[0].mxu0
        %6726 = vmatprep.mubr.f32.mxu0 0.0
        %6727 = vmatmul.mubr.f32.gmra.mrb[0].mxu0 %v6521
        %v6728 = vpop.f32.mrb[0].mxu0
        %v6729 = vadd.f32 0.0, %v6728
        %v6730 = vpop.f32.mrb[0].mxu0
        %6731 = vmatprep.mubr.f32.mxu0 0.0
        %6732 = vmatmul.mubr.f32.gmra.mrb[0].mxu0 %v6522
        %v6733 = vpop.f32.mrb[0].mxu0
        %v6734 = vadd.f32 0.0, %v6733
        %v6735 = vpop.f32.mrb[0].mxu0
        %6736 = vmatprep.mubr.f32.mxu0 0.0
        %6737 = vmatmul.mubr.f32.gmra.mrb[0].mxu0 %v6523
        %v6738 = vpop.f32.mrb[0].mxu0
        %v6739 = vadd.f32 0.0, %v6738
        %v6740 = vpop.f32.mrb[0].mxu0
        %6741 = vmatprep.mubr.f32.mxu0 0.0
        %6742 = vmatmul.mubr.f32.gmra.mrb[0].mxu0 %v6524
        %v6743 = vpop.f32.mrb[0].mxu0
        %v6744 = vadd.f32 0.0, %v6743
        %v6745 = vpop.f32.mrb[0].mxu0
        %6746 = vmatprep.mubr.f32.mxu0 0.0
        %6747 = vmatmul.mubr.f32.gmra.mrb[0].mxu0 %v6525
        %v6748 = vpop.f32.mrb[0].mxu0
        %v6749 = vadd.f32 0.0, %v6748
        %v6750 = vpop.f32.mrb[0].mxu0
        %6751 = vmatprep.mubr.f32.mxu0 0.0
        %6752 = vmatmul.mubr.f32.gmra.mrb[0].mxu0 %v6526
        %v6753 = vpop.f32.mrb[0].mxu0
        %v6754 = vadd.f32 0.0, %v6753
        %v6755 = vpop.f32.mrb[0].mxu0
        %6756 = vmatprep.mubr.f32.mxu0 0.0
        %6757 = vmatmul.mubr.f32.gmra.mrb[0].mxu0 %v6527
        %v6758 = vpop.f32.mrb[0].mxu0
        %v6759 = vadd.f32 0.0, %v6758
        %v6760 = vpop.f32.mrb[0].mxu0
        %6761 = vmatprep.mubr.f32.mxu0 0.0
        %6762 = vmatmul.mubr.f32.gmra.mrb[0].mxu0 %v6528
        %v6763 = vpop.f32.mrb[0].mxu0
        %v6764 = vadd.f32 0.0, %v6763
        %v6765 = vpop.f32.mrb[0].mxu0
        %6766 = vmatprep.mubr.f32.mxu0 0.0
        %6767 = vmatmul.mubr.f32.gmra.mrb[0].mxu0 %v6529
        %v6768 = vpop.f32.mrb[0].mxu0
        %v6769 = vadd.f32 0.0, %v6768
        %v6770 = vpop.f32.mrb[0].mxu0
        %6771 = vmatprep.mubr.f32.mxu0 0.0
        %6772 = vmatmul.mubr.f32.gmra.mrb[0].mxu0 %v6530
        %v6773 = vpop.f32.mrb[0].mxu0
        %v6774 = vadd.f32 0.0, %v6773
        %v6775 = vpop.f32.mrb[0].mxu0
        %6776 = vmatprep.mubr.f32.mxu0 0.0
        %6777 = vmatmul.mubr.f32.gmra.mrb[0].mxu0 %v6531
        %v6778 = vpop.f32.mrb[0].mxu0
        %v6779 = vadd.f32 0.0, %v6778
        %v6780 = vpop.f32.mrb[0].mxu0
        %6781 = vmatprep.mubr.f32.mxu0 0.0
        %6782 = vmatmul.mubr.f32.gmra.mrb[0].mxu0 %v6532
        %v6783 = vpop.f32.mrb[0].mxu0
        %v6784 = vadd.f32 0.0, %v6783
        %v6785 = vpop.f32.mrb[0].mxu0
        %6786 = vmatprep.mubr.f32.mxu0 0.0
        %6787 = vmatmul.mubr.f32.gmra.mrb[0].mxu0 %v6533
        %v6788 = vpop.f32.mrb[0].mxu0
        %v6789 = vadd.f32 0.0, %v6788
        %v6790 = vpop.f32.mrb[0].mxu0
        %6791 = vmatprep.mubr.f32.mxu0 0.0
        %6792 = vmatmul.mubr.f32.gmra.mrb[0].mxu0 %v6534
        %v6793 = vpop.f32.mrb[0].mxu0
        %v6794 = vadd.f32 0.0, %v6793
        %v6795 = vpop.f32.mrb[0].mxu0
        %6796 = vmatprep.mubr.f32.mxu0 0.0
        %6797 = vmatmul.mubr.f32.gmra.mrb[0].mxu0 %v6535
        %v6798 = vpop.f32.mrb[0].mxu0
        %v6799 = vadd.f32 0.0, %v6798
        %v6800 = vpop.f32.mrb[0].mxu0
        %6801 = vmatprep.mubr.f32.mxu0 0.0
        %6802 = vmatmul.mubr.f32.gmra.mrb[0].mxu0 %v6536
        %v6803 = vpop.f32.mrb[0].mxu0
        %v6804 = vadd.f32 0.0, %v6803
        %v6805 = vpop.f32.mrb[0].mxu0
        %6806 = vmatprep.mubr.f32.mxu0 0.0
        %6807 = vmatmul.mubr.f32.gmra.mrb[0].mxu0 %v6537
        %v6808 = vpop.f32.mrb[0].mxu0
        %v6809 = vadd.f32 0.0, %v6808
        %v6810 = vpop.f32.mrb[0].mxu0
        %6811 = vdwg.mxu0
        %v6812 = vadd.f32 %v6538, %v6654
        %v6813 = vadd.f32 %v6539, %v6659
        %v6814 = vadd.f32 %v6540, %v6664
        %v6815 = vadd.f32 %v6541, %v6669
        %v6816 = vadd.f32 %v6542, %v6674
        %v6817 = vadd.f32 %v6543, %v6679
        %v6818 = vadd.f32 %v6544, %v6684
        %v6819 = vadd.f32 %v6545, %v6689
        %v6820 = vadd.f32 %v6546, %v6694
        %v6821 = vadd.f32 %v6547, %v6699
        %v6822 = vadd.f32 %v6548, %v6704
        %v6823 = vadd.f32 %v6549, %v6709
        %v6824 = vadd.f32 %v6550, %v6714
        %v6825 = vadd.f32 %v6551, %v6719
        %v6826 = vadd.f32 %v6552, %v6724
        %v6827 = vadd.f32 %v6553, %v6729
        %v6828 = vadd.f32 %v6554, %v6734
        %v6829 = vadd.f32 %v6555, %v6739
        %v6830 = vadd.f32 %v6556, %v6744
        %v6831 = vadd.f32 %v6557, %v6749
        %v6832 = vadd.f32 %v6558, %v6754
        %v6833 = vadd.f32 %v6559, %v6759
        %v6834 = vadd.f32 %v6560, %v6764
        %v6835 = vadd.f32 %v6561, %v6769
        %v6836 = vadd.f32 %v6562, %v6774
        %v6837 = vadd.f32 %v6563, %v6779
        %v6838 = vadd.f32 %v6564, %v6784
        %v6839 = vadd.f32 %v6565, %v6789
        %v6840 = vadd.f32 %v6566, %v6794
        %v6841 = vadd.f32 %v6567, %v6799
        %v6842 = vadd.f32 %v6568, %v6804
        %v6843 = vadd.f32 %v6569, %v6809
        %6844 = vst [vmem:[#allocation2] sm:$0xff] %v6812
        %6845 = vst [vmem:[#allocation2 + $0x8] sm:$0xff] %v6813
        %6846 = vst [vmem:[#allocation2 + $0x10] sm:$0xff] %v6814
        %6847 = vst [vmem:[#allocation2 + $0x18] sm:$0xff] %v6815
        %6848 = vst [vmem:[#allocation2 + $0x20] sm:$0xff] %v6816
        %6849 = vst [vmem:[#allocation2 + $0x28] sm:$0xff] %v6817
        %6850 = vst [vmem:[#allocation2 + $0x30] sm:$0xff] %v6818
        %6851 = vst [vmem:[#allocation2 + $0x38] sm:$0xff] %v6819
        %6852 = vst [vmem:[#allocation2 + $0x40] sm:$0xff] %v6820
        %6853 = vst [vmem:[#allocation2 + $0x48] sm:$0xff] %v6821
        %6854 = vst [vmem:[#allocation2 + $0x50] sm:$0xff] %v6822
        %6855 = vst [vmem:[#allocation2 + $0x58] sm:$0xff] %v6823
        %6856 = vst [vmem:[#allocation2 + $0x60] sm:$0xff] %v6824
        %6857 = vst [vmem:[#allocation2 + $0x68] sm:$0xff] %v6825
        %6858 = vst [vmem:[#allocation2 + $0x70] sm:$0xff] %v6826
        %6859 = vst [vmem:[#allocation2 + $0x78] sm:$0xff] %v6827
        %6860 = vst [vmem:[#allocation2 + $0x80] sm:$0xff] %v6828
        %6861 = vst [vmem:[#allocation2 + $0x88] sm:$0xff] %v6829
        %6862 = vst [vmem:[#allocation2 + $0x90] sm:$0xff] %v6830
        %6863 = vst [vmem:[#allocation2 + $0x98] sm:$0xff] %v6831
        %6864 = vst [vmem:[#allocation2 + $0xa0] sm:$0xff] %v6832
        %6865 = vst [vmem:[#allocation2 + $0xa8] sm:$0xff] %v6833
        %6866 = vst [vmem:[#allocation2 + $0xb0] sm:$0xff] %v6834
        %6867 = vst [vmem:[#allocation2 + $0xb8] sm:$0xff] %v6835
        %6868 = vst [vmem:[#allocation2 + $0xc0] sm:$0xff] %v6836
        %6869 = vst [vmem:[#allocation2 + $0xc8] sm:$0xff] %v6837
        %6870 = vst [vmem:[#allocation2 + $0xd0] sm:$0xff] %v6838
        %6871 = vst [vmem:[#allocation2 + $0xd8] sm:$0xff] %v6839
        %6872 = vst [vmem:[#allocation2 + $0xe0] sm:$0xff] %v6840
        %6873 = vst [vmem:[#allocation2 + $0xe8] sm:$0xff] %v6841
        %6874 = vst [vmem:[#allocation2 + $0xf0] sm:$0xff] %v6842
        %6875 = vst [vmem:[#allocation2 + $0xf8] sm:$0xff] %v6843
        %v6876 = vld [vmem:[%s6135 + $0x2] sm:$0xff]
        %v6877 = vld [vmem:[%s6135 + $0xa] sm:$0xff]
        %v6878 = vld [vmem:[%s6135 + $0x1a] sm:$0xff]
        %v6879 = vld [vmem:[%s6135 + $0x22] sm:$0xff]
        %v6880 = vld [vmem:[%s6135 + $0x32] sm:$0xff]
        %v6881 = vld [vmem:[%s6135 + $0x3a] sm:$0xff]
        %v6882 = vld [vmem:[%s6135 + $0x4a] sm:$0xff]
        %v6883 = vld [vmem:[%s6135 + $0x52] sm:$0xff]
        %v6884 = vld [vmem:[%s6135 + $0x62] sm:$0xff]
        %v6885 = vld [vmem:[%s6135 + $0x6a] sm:$0xff]
        %v6886 = vld [vmem:[%s6135 + $0x7a] sm:$0xff]
        %v6887 = vld [vmem:[%s6135 + $0x82] sm:$0xff]
        %v6888 = vld [vmem:[%s6135 + $0x92] sm:$0xff]
        %v6889 = vld [vmem:[%s6135 + $0x9a] sm:$0xff]
        %v6890 = vld [vmem:[%s6135 + $0xaa] sm:$0xff]
        %v6891 = vld [vmem:[%s6135 + $0xb2] sm:$0xff]
        %v6892 = vld [vmem:[%s6135 + $0xc2] sm:$0xff]
        %v6893 = vld [vmem:[%s6135 + $0xca] sm:$0xff]
        %v6894 = vld [vmem:[%s6135 + $0xda] sm:$0xff]
        %v6895 = vld [vmem:[%s6135 + $0xe2] sm:$0xff]
        %v6896 = vld [vmem:[%s6135 + $0xf2] sm:$0xff]
        %v6897 = vld [vmem:[%s6135 + $0xfa] sm:$0xff]
        %v6898 = vld [vmem:[%s6135 + $0x10a] sm:$0xff]
        %v6899 = vld [vmem:[%s6135 + $0x112] sm:$0xff]
        %v6900 = vld [vmem:[%s6135 + $0x122] sm:$0xff]
        %v6901 = vld [vmem:[%s6135 + $0x12a] sm:$0xff]
        %v6902 = vld [vmem:[%s6135 + $0x13a] sm:$0xff]
        %v6903 = vld [vmem:[%s6135 + $0x142] sm:$0xff]
        %v6904 = vld [vmem:[%s6135 + $0x152] sm:$0xff]
        %v6905 = vld [vmem:[%s6135 + $0x15a] sm:$0xff]
        %v6906 = vld [vmem:[%s6135 + $0x16a] sm:$0xff]
        %v6907 = vld [vmem:[%s6135 + $0x172] sm:$0xff]
        %v6908 = vld [vmem:[#allocation2] sm:$0xff]
        %v6909 = vld [vmem:[#allocation2 + $0x8] sm:$0xff]
        %v6910 = vld [vmem:[#allocation2 + $0x10] sm:$0xff]
        %v6911 = vld [vmem:[#allocation2 + $0x18] sm:$0xff]
        %v6912 = vld [vmem:[#allocation2 + $0x20] sm:$0xff]
        %v6913 = vld [vmem:[#allocation2 + $0x28] sm:$0xff]
        %v6914 = vld [vmem:[#allocation2 + $0x30] sm:$0xff]
        %v6915 = vld [vmem:[#allocation2 + $0x38] sm:$0xff]
        %v6916 = vld [vmem:[#allocation2 + $0x40] sm:$0xff]
        %v6917 = vld [vmem:[#allocation2 + $0x48] sm:$0xff]
        %v6918 = vld [vmem:[#allocation2 + $0x50] sm:$0xff]
        %v6919 = vld [vmem:[#allocation2 + $0x58] sm:$0xff]
        %v6920 = vld [vmem:[#allocation2 + $0x60] sm:$0xff]
        %v6921 = vld [vmem:[#allocation2 + $0x68] sm:$0xff]
        %v6922 = vld [vmem:[#allocation2 + $0x70] sm:$0xff]
        %v6923 = vld [vmem:[#allocation2 + $0x78] sm:$0xff]
        %v6924 = vld [vmem:[#allocation2 + $0x80] sm:$0xff]
        %v6925 = vld [vmem:[#allocation2 + $0x88] sm:$0xff]
        %v6926 = vld [vmem:[#allocation2 + $0x90] sm:$0xff]
        %v6927 = vld [vmem:[#allocation2 + $0x98] sm:$0xff]
        %v6928 = vld [vmem:[#allocation2 + $0xa0] sm:$0xff]
        %v6929 = vld [vmem:[#allocation2 + $0xa8] sm:$0xff]
        %v6930 = vld [vmem:[#allocation2 + $0xb0] sm:$0xff]
        %v6931 = vld [vmem:[#allocation2 + $0xb8] sm:$0xff]
        %v6932 = vld [vmem:[#allocation2 + $0xc0] sm:$0xff]
        %v6933 = vld [vmem:[#allocation2 + $0xc8] sm:$0xff]
        %v6934 = vld [vmem:[#allocation2 + $0xd0] sm:$0xff]
        %v6935 = vld [vmem:[#allocation2 + $0xd8] sm:$0xff]
        %v6936 = vld [vmem:[#allocation2 + $0xe0] sm:$0xff]
        %v6937 = vld [vmem:[#allocation2 + $0xe8] sm:$0xff]
        %v6938 = vld [vmem:[#allocation2 + $0xf0] sm:$0xff]
        %v6939 = vld [vmem:[#allocation2 + $0xf8] sm:$0xff]
        %s6940 = scalar_lea.vmem [#allocation4], 1024
        %v6941 = vld [vmem:[%s6940] sm:$0xff]
        %v6942 = vld [vmem:[%s6940 + $0x8] sm:$0xff]
        %v6943 = vld [vmem:[%s6940 + $0x10] sm:$0xff]
        %v6944 = vld [vmem:[%s6940 + $0x18] sm:$0xff]
        %v6945 = vld [vmem:[%s6940 + $0x20] sm:$0xff]
        %v6946 = vld [vmem:[%s6940 + $0x28] sm:$0xff]
        %v6947 = vld [vmem:[%s6940 + $0x30] sm:$0xff]
        %v6948 = vld [vmem:[%s6940 + $0x38] sm:$0xff]
        %v6949 = vld [vmem:[%s6940 + $0x40] sm:$0xff]
        %v6950 = vld [vmem:[%s6940 + $0x48] sm:$0xff]
        %v6951 = vld [vmem:[%s6940 + $0x50] sm:$0xff]
        %v6952 = vld [vmem:[%s6940 + $0x58] sm:$0xff]
        %v6953 = vld [vmem:[%s6940 + $0x60] sm:$0xff]
        %v6954 = vld [vmem:[%s6940 + $0x68] sm:$0xff]
        %v6955 = vld [vmem:[%s6940 + $0x70] sm:$0xff]
        %v6956 = vld [vmem:[%s6940 + $0x78] sm:$0xff]
        %6957 = vmatprep.subr.mxu0 0.0
        %6958 = vmatpush1.msra.mxu0 %v6941
        %6959 = vmatprep.subr.mxu0 0.0
        %6960 = vmatpush1.msra.mxu0 %v6942
        %6961 = vmatprep.subr.mxu0 0.0
        %6962 = vmatpush1.msra.mxu0 %v6943
        %6963 = vmatprep.subr.mxu0 0.0
        %6964 = vmatpush1.msra.mxu0 %v6944
        %6965 = vmatprep.subr.mxu0 0.0
        %6966 = vmatpush1.msra.mxu0 %v6945
        %6967 = vmatprep.subr.mxu0 0.0
        %6968 = vmatpush1.msra.mxu0 %v6946
        %6969 = vmatprep.subr.mxu0 0.0
        %6970 = vmatpush1.msra.mxu0 %v6947
        %6971 = vmatprep.subr.mxu0 0.0
        %6972 = vmatpush1.msra.mxu0 %v6948
        %6973 = vmatprep.subr.mxu0 0.0
        %6974 = vmatpush1.msra.mxu0 %v6949
        %6975 = vmatprep.subr.mxu0 0.0
        %6976 = vmatpush1.msra.mxu0 %v6950
        %6977 = vmatprep.subr.mxu0 0.0
        %6978 = vmatpush1.msra.mxu0 %v6951
        %6979 = vmatprep.subr.mxu0 0.0
        %6980 = vmatpush1.msra.mxu0 %v6952
        %6981 = vmatprep.subr.mxu0 0.0
        %6982 = vmatpush1.msra.mxu0 %v6953
        %6983 = vmatprep.subr.mxu0 0.0
        %6984 = vmatpush1.msra.mxu0 %v6954
        %6985 = vmatprep.subr.mxu0 0.0
        %6986 = vmatpush1.msra.mxu0 %v6955
        %6987 = vmatprep.subr.mxu0 0.0
        %6988 = vmatpush1.msra.mxu0 %v6956
        %6989 = vmatprep.subr.mxu0 0.0
        %6990 = vmatpush1.msra.mxu0 0.0
        %6991 = vmatprep.subr.mxu0 0.0
        %6992 = vmatpush1.msra.mxu0 0.0
        %6993 = vmatprep.subr.mxu0 0.0
        %6994 = vmatpush1.msra.mxu0 0.0
        %6995 = vmatprep.subr.mxu0 0.0
        %6996 = vmatpush1.msra.mxu0 0.0
        %6997 = vmatprep.subr.mxu0 0.0
        %6998 = vmatpush1.msra.mxu0 0.0
        %6999 = vmatprep.subr.mxu0 0.0
        %7000 = vmatpush1.msra.mxu0 0.0
        %7001 = vmatprep.subr.mxu0 0.0
        %7002 = vmatpush1.msra.mxu0 0.0
        %7003 = vmatprep.subr.mxu0 0.0
        %7004 = vmatpush1.msra.mxu0 0.0
        %7005 = vmatprep.subr.mxu0 0.0
        %7006 = vmatpush1.msra.mxu0 0.0
        %7007 = vmatprep.subr.mxu0 0.0
        %7008 = vmatpush1.msra.mxu0 0.0
        %7009 = vmatprep.subr.mxu0 0.0
        %7010 = vmatpush1.msra.mxu0 0.0
        %7011 = vmatprep.subr.mxu0 0.0
        %7012 = vmatpush1.msra.mxu0 0.0
        %7013 = vmatprep.subr.mxu0 0.0
        %7014 = vmatpush1.msra.mxu0 0.0
        %7015 = vmatprep.subr.mxu0 0.0
        %7016 = vmatpush1.msra.mxu0 0.0
        %7017 = vmatprep.subr.mxu0 0.0
        %7018 = vmatpush1.msra.mxu0 0.0
        %7019 = vmatprep.subr.mxu0 0.0
        %7020 = vmatpush1.msra.mxu0 0.0
        %7021 = vmatprep.mubr.f32.mxu0 0.0
        %7022 = vmatmul.mubr.f32.gmra.mrb[0].mxu0 %v6876
        %v7023 = vpop.f32.mrb[0].mxu0
        %v7024 = vadd.f32 0.0, %v7023
        %v7025 = vpop.f32.mrb[0].mxu0
        %7026 = vmatprep.mubr.f32.mxu0 0.0
        %7027 = vmatmul.mubr.f32.gmra.mrb[0].mxu0 %v6877
        %v7028 = vpop.f32.mrb[0].mxu0
        %v7029 = vadd.f32 0.0, %v7028
        %v7030 = vpop.f32.mrb[0].mxu0
        %7031 = vmatprep.mubr.f32.mxu0 0.0
        %7032 = vmatmul.mubr.f32.gmra.mrb[0].mxu0 %v6878
        %v7033 = vpop.f32.mrb[0].mxu0
        %v7034 = vadd.f32 0.0, %v7033
        %v7035 = vpop.f32.mrb[0].mxu0
        %7036 = vmatprep.mubr.f32.mxu0 0.0
        %7037 = vmatmul.mubr.f32.gmra.mrb[0].mxu0 %v6879
        %v7038 = vpop.f32.mrb[0].mxu0
        %v7039 = vadd.f32 0.0, %v7038
        %v7040 = vpop.f32.mrb[0].mxu0
        %7041 = vmatprep.mubr.f32.mxu0 0.0
        %7042 = vmatmul.mubr.f32.gmra.mrb[0].mxu0 %v6880
        %v7043 = vpop.f32.mrb[0].mxu0
        %v7044 = vadd.f32 0.0, %v7043
        %v7045 = vpop.f32.mrb[0].mxu0
        %7046 = vmatprep.mubr.f32.mxu0 0.0
        %7047 = vmatmul.mubr.f32.gmra.mrb[0].mxu0 %v6881
        %v7048 = vpop.f32.mrb[0].mxu0
        %v7049 = vadd.f32 0.0, %v7048
        %v7050 = vpop.f32.mrb[0].mxu0
        %7051 = vmatprep.mubr.f32.mxu0 0.0
        %7052 = vmatmul.mubr.f32.gmra.mrb[0].mxu0 %v6882
        %v7053 = vpop.f32.mrb[0].mxu0
        %v7054 = vadd.f32 0.0, %v7053
        %v7055 = vpop.f32.mrb[0].mxu0
        %7056 = vmatprep.mubr.f32.mxu0 0.0
        %7057 = vmatmul.mubr.f32.gmra.mrb[0].mxu0 %v6883
        %v7058 = vpop.f32.mrb[0].mxu0
        %v7059 = vadd.f32 0.0, %v7058
        %v7060 = vpop.f32.mrb[0].mxu0
        %7061 = vmatprep.mubr.f32.mxu0 0.0
        %7062 = vmatmul.mubr.f32.gmra.mrb[0].mxu0 %v6884
        %v7063 = vpop.f32.mrb[0].mxu0
        %v7064 = vadd.f32 0.0, %v7063
        %v7065 = vpop.f32.mrb[0].mxu0
        %7066 = vmatprep.mubr.f32.mxu0 0.0
        %7067 = vmatmul.mubr.f32.gmra.mrb[0].mxu0 %v6885
        %v7068 = vpop.f32.mrb[0].mxu0
        %v7069 = vadd.f32 0.0, %v7068
        %v7070 = vpop.f32.mrb[0].mxu0
        %7071 = vmatprep.mubr.f32.mxu0 0.0
        %7072 = vmatmul.mubr.f32.gmra.mrb[0].mxu0 %v6886
        %v7073 = vpop.f32.mrb[0].mxu0
        %v7074 = vadd.f32 0.0, %v7073
        %v7075 = vpop.f32.mrb[0].mxu0
        %7076 = vmatprep.mubr.f32.mxu0 0.0
        %7077 = vmatmul.mubr.f32.gmra.mrb[0].mxu0 %v6887
        %v7078 = vpop.f32.mrb[0].mxu0
        %v7079 = vadd.f32 0.0, %v7078
        %v7080 = vpop.f32.mrb[0].mxu0
        %7081 = vmatprep.mubr.f32.mxu0 0.0
        %7082 = vmatmul.mubr.f32.gmra.mrb[0].mxu0 %v6888
        %v7083 = vpop.f32.mrb[0].mxu0
        %v7084 = vadd.f32 0.0, %v7083
        %v7085 = vpop.f32.mrb[0].mxu0
        %7086 = vmatprep.mubr.f32.mxu0 0.0
        %7087 = vmatmul.mubr.f32.gmra.mrb[0].mxu0 %v6889
        %v7088 = vpop.f32.mrb[0].mxu0
        %v7089 = vadd.f32 0.0, %v7088
        %v7090 = vpop.f32.mrb[0].mxu0
        %7091 = vmatprep.mubr.f32.mxu0 0.0
        %7092 = vmatmul.mubr.f32.gmra.mrb[0].mxu0 %v6890
        %v7093 = vpop.f32.mrb[0].mxu0
        %v7094 = vadd.f32 0.0, %v7093
        %v7095 = vpop.f32.mrb[0].mxu0
        %7096 = vmatprep.mubr.f32.mxu0 0.0
        %7097 = vmatmul.mubr.f32.gmra.mrb[0].mxu0 %v6891
        %v7098 = vpop.f32.mrb[0].mxu0
        %v7099 = vadd.f32 0.0, %v7098
        %v7100 = vpop.f32.mrb[0].mxu0
        %7101 = vmatprep.mubr.f32.mxu0 0.0
        %7102 = vmatmul.mubr.f32.gmra.mrb[0].mxu0 %v6892
        %v7103 = vpop.f32.mrb[0].mxu0
        %v7104 = vadd.f32 0.0, %v7103
        %v7105 = vpop.f32.mrb[0].mxu0
        %7106 = vmatprep.mubr.f32.mxu0 0.0
        %7107 = vmatmul.mubr.f32.gmra.mrb[0].mxu0 %v6893
        %v7108 = vpop.f32.mrb[0].mxu0
        %v7109 = vadd.f32 0.0, %v7108
        %v7110 = vpop.f32.mrb[0].mxu0
        %7111 = vmatprep.mubr.f32.mxu0 0.0
        %7112 = vmatmul.mubr.f32.gmra.mrb[0].mxu0 %v6894
        %v7113 = vpop.f32.mrb[0].mxu0
        %v7114 = vadd.f32 0.0, %v7113
        %v7115 = vpop.f32.mrb[0].mxu0
        %7116 = vmatprep.mubr.f32.mxu0 0.0
        %7117 = vmatmul.mubr.f32.gmra.mrb[0].mxu0 %v6895
        %v7118 = vpop.f32.mrb[0].mxu0
        %v7119 = vadd.f32 0.0, %v7118
        %v7120 = vpop.f32.mrb[0].mxu0
        %7121 = vmatprep.mubr.f32.mxu0 0.0
        %7122 = vmatmul.mubr.f32.gmra.mrb[0].mxu0 %v6896
        %v7123 = vpop.f32.mrb[0].mxu0
        %v7124 = vadd.f32 0.0, %v7123
        %v7125 = vpop.f32.mrb[0].mxu0
        %7126 = vmatprep.mubr.f32.mxu0 0.0
        %7127 = vmatmul.mubr.f32.gmra.mrb[0].mxu0 %v6897
        %v7128 = vpop.f32.mrb[0].mxu0
        %v7129 = vadd.f32 0.0, %v7128
        %v7130 = vpop.f32.mrb[0].mxu0
        %7131 = vmatprep.mubr.f32.mxu0 0.0
        %7132 = vmatmul.mubr.f32.gmra.mrb[0].mxu0 %v6898
        %v7133 = vpop.f32.mrb[0].mxu0
        %v7134 = vadd.f32 0.0, %v7133
        %v7135 = vpop.f32.mrb[0].mxu0
        %7136 = vmatprep.mubr.f32.mxu0 0.0
        %7137 = vmatmul.mubr.f32.gmra.mrb[0].mxu0 %v6899
        %v7138 = vpop.f32.mrb[0].mxu0
        %v7139 = vadd.f32 0.0, %v7138
        %v7140 = vpop.f32.mrb[0].mxu0
        %7141 = vmatprep.mubr.f32.mxu0 0.0
        %7142 = vmatmul.mubr.f32.gmra.mrb[0].mxu0 %v6900
        %v7143 = vpop.f32.mrb[0].mxu0
        %v7144 = vadd.f32 0.0, %v7143
        %v7145 = vpop.f32.mrb[0].mxu0
        %7146 = vmatprep.mubr.f32.mxu0 0.0
        %7147 = vmatmul.mubr.f32.gmra.mrb[0].mxu0 %v6901
        %v7148 = vpop.f32.mrb[0].mxu0
        %v7149 = vadd.f32 0.0, %v7148
        %v7150 = vpop.f32.mrb[0].mxu0
        %7151 = vmatprep.mubr.f32.mxu0 0.0
        %7152 = vmatmul.mubr.f32.gmra.mrb[0].mxu0 %v6902
        %v7153 = vpop.f32.mrb[0].mxu0
        %v7154 = vadd.f32 0.0, %v7153
        %v7155 = vpop.f32.mrb[0].mxu0
        %7156 = vmatprep.mubr.f32.mxu0 0.0
        %7157 = vmatmul.mubr.f32.gmra.mrb[0].mxu0 %v6903
        %v7158 = vpop.f32.mrb[0].mxu0
        %v7159 = vadd.f32 0.0, %v7158
        %v7160 = vpop.f32.mrb[0].mxu0
        %7161 = vmatprep.mubr.f32.mxu0 0.0
        %7162 = vmatmul.mubr.f32.gmra.mrb[0].mxu0 %v6904
        %v7163 = vpop.f32.mrb[0].mxu0
        %v7164 = vadd.f32 0.0, %v7163
        %v7165 = vpop.f32.mrb[0].mxu0
        %7166 = vmatprep.mubr.f32.mxu0 0.0
        %7167 = vmatmul.mubr.f32.gmra.mrb[0].mxu0 %v6905
        %v7168 = vpop.f32.mrb[0].mxu0
        %v7169 = vadd.f32 0.0, %v7168
        %v7170 = vpop.f32.mrb[0].mxu0
        %7171 = vmatprep.mubr.f32.mxu0 0.0
        %7172 = vmatmul.mubr.f32.gmra.mrb[0].mxu0 %v6906
        %v7173 = vpop.f32.mrb[0].mxu0
        %v7174 = vadd.f32 0.0, %v7173
        %v7175 = vpop.f32.mrb[0].mxu0
        %7176 = vmatprep.mubr.f32.mxu0 0.0
        %7177 = vmatmul.mubr.f32.gmra.mrb[0].mxu0 %v6907
        %v7178 = vpop.f32.mrb[0].mxu0
        %v7179 = vadd.f32 0.0, %v7178
        %v7180 = vpop.f32.mrb[0].mxu0
        %7181 = vdwg.mxu0
        %v7182 = vadd.f32 %v6908, %v7024
        %v7183 = vadd.f32 %v6909, %v7029
        %v7184 = vadd.f32 %v6910, %v7034
        %v7185 = vadd.f32 %v6911, %v7039
        %v7186 = vadd.f32 %v6912, %v7044
        %v7187 = vadd.f32 %v6913, %v7049
        %v7188 = vadd.f32 %v6914, %v7054
        %v7189 = vadd.f32 %v6915, %v7059
        %v7190 = vadd.f32 %v6916, %v7064
        %v7191 = vadd.f32 %v6917, %v7069
        %v7192 = vadd.f32 %v6918, %v7074
        %v7193 = vadd.f32 %v6919, %v7079
        %v7194 = vadd.f32 %v6920, %v7084
        %v7195 = vadd.f32 %v6921, %v7089
        %v7196 = vadd.f32 %v6922, %v7094
        %v7197 = vadd.f32 %v6923, %v7099
        %v7198 = vadd.f32 %v6924, %v7104
        %v7199 = vadd.f32 %v6925, %v7109
        %v7200 = vadd.f32 %v6926, %v7114
        %v7201 = vadd.f32 %v6927, %v7119
        %v7202 = vadd.f32 %v6928, %v7124
        %v7203 = vadd.f32 %v6929, %v7129
        %v7204 = vadd.f32 %v6930, %v7134
        %v7205 = vadd.f32 %v6931, %v7139
        %v7206 = vadd.f32 %v6932, %v7144
        %v7207 = vadd.f32 %v6933, %v7149
        %v7208 = vadd.f32 %v6934, %v7154
        %v7209 = vadd.f32 %v6935, %v7159
        %v7210 = vadd.f32 %v6936, %v7164
        %v7211 = vadd.f32 %v6937, %v7169
        %v7212 = vadd.f32 %v6938, %v7174
        %v7213 = vadd.f32 %v6939, %v7179
        %7214 = vst [vmem:[#allocation2] sm:$0xff] %v7182
        %7215 = vst [vmem:[#allocation2 + $0x8] sm:$0xff] %v7183
        %7216 = vst [vmem:[#allocation2 + $0x10] sm:$0xff] %v7184
        %7217 = vst [vmem:[#allocation2 + $0x18] sm:$0xff] %v7185
        %7218 = vst [vmem:[#allocation2 + $0x20] sm:$0xff] %v7186
        %7219 = vst [vmem:[#allocation2 + $0x28] sm:$0xff] %v7187
        %7220 = vst [vmem:[#allocation2 + $0x30] sm:$0xff] %v7188
        %7221 = vst [vmem:[#allocation2 + $0x38] sm:$0xff] %v7189
        %7222 = vst [vmem:[#allocation2 + $0x40] sm:$0xff] %v7190
        %7223 = vst [vmem:[#allocation2 + $0x48] sm:$0xff] %v7191
        %7224 = vst [vmem:[#allocation2 + $0x50] sm:$0xff] %v7192
        %7225 = vst [vmem:[#allocation2 + $0x58] sm:$0xff] %v7193
        %7226 = vst [vmem:[#allocation2 + $0x60] sm:$0xff] %v7194
        %7227 = vst [vmem:[#allocation2 + $0x68] sm:$0xff] %v7195
        %7228 = vst [vmem:[#allocation2 + $0x70] sm:$0xff] %v7196
        %7229 = vst [vmem:[#allocation2 + $0x78] sm:$0xff] %v7197
        %7230 = vst [vmem:[#allocation2 + $0x80] sm:$0xff] %v7198
        %7231 = vst [vmem:[#allocation2 + $0x88] sm:$0xff] %v7199
        %7232 = vst [vmem:[#allocation2 + $0x90] sm:$0xff] %v7200
        %7233 = vst [vmem:[#allocation2 + $0x98] sm:$0xff] %v7201
        %7234 = vst [vmem:[#allocation2 + $0xa0] sm:$0xff] %v7202
        %7235 = vst [vmem:[#allocation2 + $0xa8] sm:$0xff] %v7203
        %7236 = vst [vmem:[#allocation2 + $0xb0] sm:$0xff] %v7204
        %7237 = vst [vmem:[#allocation2 + $0xb8] sm:$0xff] %v7205
        %7238 = vst [vmem:[#allocation2 + $0xc0] sm:$0xff] %v7206
        %7239 = vst [vmem:[#allocation2 + $0xc8] sm:$0xff] %v7207
        %7240 = vst [vmem:[#allocation2 + $0xd0] sm:$0xff] %v7208
        %7241 = vst [vmem:[#allocation2 + $0xd8] sm:$0xff] %v7209
        %7242 = vst [vmem:[#allocation2 + $0xe0] sm:$0xff] %v7210
        %7243 = vst [vmem:[#allocation2 + $0xe8] sm:$0xff] %v7211
        %7244 = vst [vmem:[#allocation2 + $0xf0] sm:$0xff] %v7212
        %7245 = vst [vmem:[#allocation2 + $0xf8] sm:$0xff] %v7213
        %v7246 = vld [vmem:[%s1433 + $0x1] sm:$0xff]
        %v7247 = vld [vmem:[%s1433 + $0x9] sm:$0xff]
        %v7248 = vld [vmem:[%s1433 + $0x19] sm:$0xff]
        %v7249 = vld [vmem:[%s1433 + $0x21] sm:$0xff]
        %v7250 = vld [vmem:[%s1433 + $0x31] sm:$0xff]
        %v7251 = vld [vmem:[%s1433 + $0x39] sm:$0xff]
        %v7252 = vld [vmem:[%s1433 + $0x49] sm:$0xff]
        %v7253 = vld [vmem:[%s1433 + $0x51] sm:$0xff]
        %v7254 = vld [vmem:[%s1433 + $0x61] sm:$0xff]
        %v7255 = vld [vmem:[%s1433 + $0x69] sm:$0xff]
        %v7256 = vld [vmem:[%s1433 + $0x79] sm:$0xff]
        %v7257 = vld [vmem:[%s1433 + $0x81] sm:$0xff]
        %v7258 = vld [vmem:[%s1433 + $0x91] sm:$0xff]
        %v7259 = vld [vmem:[%s1433 + $0x99] sm:$0xff]
        %v7260 = vld [vmem:[%s1433 + $0xa9] sm:$0xff]
        %v7261 = vld [vmem:[%s1433 + $0xb1] sm:$0xff]
        %v7262 = vld [vmem:[%s1433 + $0xc1] sm:$0xff]
        %v7263 = vld [vmem:[%s1433 + $0xc9] sm:$0xff]
        %v7264 = vld [vmem:[%s1433 + $0xd9] sm:$0xff]
        %v7265 = vld [vmem:[%s1433 + $0xe1] sm:$0xff]
        %v7266 = vld [vmem:[%s1433 + $0xf1] sm:$0xff]
        %v7267 = vld [vmem:[%s1433 + $0xf9] sm:$0xff]
        %v7268 = vld [vmem:[%s1433 + $0x109] sm:$0xff]
        %v7269 = vld [vmem:[%s1433 + $0x111] sm:$0xff]
        %v7270 = vld [vmem:[%s1433 + $0x121] sm:$0xff]
        %v7271 = vld [vmem:[%s1433 + $0x129] sm:$0xff]
        %v7272 = vld [vmem:[%s1433 + $0x139] sm:$0xff]
        %v7273 = vld [vmem:[%s1433 + $0x141] sm:$0xff]
        %v7274 = vld [vmem:[%s1433 + $0x151] sm:$0xff]
        %v7275 = vld [vmem:[%s1433 + $0x159] sm:$0xff]
        %v7276 = vld [vmem:[%s1433 + $0x169] sm:$0xff]
        %v7277 = vld [vmem:[%s1433 + $0x171] sm:$0xff]
        %v7278 = vld [vmem:[#allocation2] sm:$0xff]
        %v7279 = vld [vmem:[#allocation2 + $0x8] sm:$0xff]
        %v7280 = vld [vmem:[#allocation2 + $0x10] sm:$0xff]
        %v7281 = vld [vmem:[#allocation2 + $0x18] sm:$0xff]
        %v7282 = vld [vmem:[#allocation2 + $0x20] sm:$0xff]
        %v7283 = vld [vmem:[#allocation2 + $0x28] sm:$0xff]
        %v7284 = vld [vmem:[#allocation2 + $0x30] sm:$0xff]
        %v7285 = vld [vmem:[#allocation2 + $0x38] sm:$0xff]
        %v7286 = vld [vmem:[#allocation2 + $0x40] sm:$0xff]
        %v7287 = vld [vmem:[#allocation2 + $0x48] sm:$0xff]
        %v7288 = vld [vmem:[#allocation2 + $0x50] sm:$0xff]
        %v7289 = vld [vmem:[#allocation2 + $0x58] sm:$0xff]
        %v7290 = vld [vmem:[#allocation2 + $0x60] sm:$0xff]
        %v7291 = vld [vmem:[#allocation2 + $0x68] sm:$0xff]
        %v7292 = vld [vmem:[#allocation2 + $0x70] sm:$0xff]
        %v7293 = vld [vmem:[#allocation2 + $0x78] sm:$0xff]
        %v7294 = vld [vmem:[#allocation2 + $0x80] sm:$0xff]
        %v7295 = vld [vmem:[#allocation2 + $0x88] sm:$0xff]
        %v7296 = vld [vmem:[#allocation2 + $0x90] sm:$0xff]
        %v7297 = vld [vmem:[#allocation2 + $0x98] sm:$0xff]
        %v7298 = vld [vmem:[#allocation2 + $0xa0] sm:$0xff]
        %v7299 = vld [vmem:[#allocation2 + $0xa8] sm:$0xff]
        %v7300 = vld [vmem:[#allocation2 + $0xb0] sm:$0xff]
        %v7301 = vld [vmem:[#allocation2 + $0xb8] sm:$0xff]
        %v7302 = vld [vmem:[#allocation2 + $0xc0] sm:$0xff]
        %v7303 = vld [vmem:[#allocation2 + $0xc8] sm:$0xff]
        %v7304 = vld [vmem:[#allocation2 + $0xd0] sm:$0xff]
        %v7305 = vld [vmem:[#allocation2 + $0xd8] sm:$0xff]
        %v7306 = vld [vmem:[#allocation2 + $0xe0] sm:$0xff]
        %v7307 = vld [vmem:[#allocation2 + $0xe8] sm:$0xff]
        %v7308 = vld [vmem:[#allocation2 + $0xf0] sm:$0xff]
        %v7309 = vld [vmem:[#allocation2 + $0xf8] sm:$0xff]
        %v7310 = vld [vmem:[%s5] sm:$0x1]
        %v7312 = vlaneseq
        %v7313 = vshrl.u32 %v7312, 7
        %v7314 = vsub.s32 0, %v7313
        %v7315 = vrot.slane %v7310, %v7314
        %v7317 = vmul.f32 %v7278, %v7315
        %v7318 = vmul.f32 %v7279, %v7315
        %v7319 = vmul.f32 %v7280, %v7315
        %v7320 = vmul.f32 %v7281, %v7315
        %v7321 = vmul.f32 %v7282, %v7315
        %v7322 = vmul.f32 %v7283, %v7315
        %v7323 = vmul.f32 %v7284, %v7315
        %v7324 = vmul.f32 %v7285, %v7315
        %v7325 = vmul.f32 %v7286, %v7315
        %v7326 = vmul.f32 %v7287, %v7315
        %v7327 = vmul.f32 %v7288, %v7315
        %v7328 = vmul.f32 %v7289, %v7315
        %v7329 = vmul.f32 %v7290, %v7315
        %v7330 = vmul.f32 %v7291, %v7315
        %v7331 = vmul.f32 %v7292, %v7315
        %v7332 = vmul.f32 %v7293, %v7315
        %v7333 = vmul.f32 %v7294, %v7315
        %v7334 = vmul.f32 %v7295, %v7315
        %v7335 = vmul.f32 %v7296, %v7315
        %v7336 = vmul.f32 %v7297, %v7315
        %v7337 = vmul.f32 %v7298, %v7315
        %v7338 = vmul.f32 %v7299, %v7315
        %v7339 = vmul.f32 %v7300, %v7315
        %v7340 = vmul.f32 %v7301, %v7315
        %v7341 = vmul.f32 %v7302, %v7315
        %v7342 = vmul.f32 %v7303, %v7315
        %v7343 = vmul.f32 %v7304, %v7315
        %v7344 = vmul.f32 %v7305, %v7315
        %v7345 = vmul.f32 %v7306, %v7315
        %v7346 = vmul.f32 %v7307, %v7315
        %v7347 = vmul.f32 %v7308, %v7315
        %v7348 = vmul.f32 %v7309, %v7315
        %v7349 = vld [vmem:[%s6] sm:$0x1]
        %v7351 = vlaneseq
        %v7352 = vshrl.u32 %v7351, 7
        %v7353 = vsub.s32 0, %v7352
        %v7354 = vrot.slane %v7349, %v7353
        %v7356 = vadd.f32 %v7317, %v7354
        %v7357 = vadd.f32 %v7318, %v7354
        %v7358 = vadd.f32 %v7319, %v7354
        %v7359 = vadd.f32 %v7320, %v7354
        %v7360 = vadd.f32 %v7321, %v7354
        %v7361 = vadd.f32 %v7322, %v7354
        %v7362 = vadd.f32 %v7323, %v7354
        %v7363 = vadd.f32 %v7324, %v7354
        %v7364 = vadd.f32 %v7325, %v7354
        %v7365 = vadd.f32 %v7326, %v7354
        %v7366 = vadd.f32 %v7327, %v7354
        %v7367 = vadd.f32 %v7328, %v7354
        %v7368 = vadd.f32 %v7329, %v7354
        %v7369 = vadd.f32 %v7330, %v7354
        %v7370 = vadd.f32 %v7331, %v7354
        %v7371 = vadd.f32 %v7332, %v7354
        %v7372 = vadd.f32 %v7333, %v7354
        %v7373 = vadd.f32 %v7334, %v7354
        %v7374 = vadd.f32 %v7335, %v7354
        %v7375 = vadd.f32 %v7336, %v7354
        %v7376 = vadd.f32 %v7337, %v7354
        %v7377 = vadd.f32 %v7338, %v7354
        %v7378 = vadd.f32 %v7339, %v7354
        %v7379 = vadd.f32 %v7340, %v7354
        %v7380 = vadd.f32 %v7341, %v7354
        %v7381 = vadd.f32 %v7342, %v7354
        %v7382 = vadd.f32 %v7343, %v7354
        %v7383 = vadd.f32 %v7344, %v7354
        %v7384 = vadd.f32 %v7345, %v7354
        %v7385 = vadd.f32 %v7346, %v7354
        %v7386 = vadd.f32 %v7347, %v7354
        %v7387 = vadd.f32 %v7348, %v7354
        %v7388 = vadd.f32 %v7356, %v7246
        %v7389 = vadd.f32 %v7357, %v7247
        %v7390 = vadd.f32 %v7358, %v7248
        %v7391 = vadd.f32 %v7359, %v7249
        %v7392 = vadd.f32 %v7360, %v7250
        %v7393 = vadd.f32 %v7361, %v7251
        %v7394 = vadd.f32 %v7362, %v7252
        %v7395 = vadd.f32 %v7363, %v7253
        %v7396 = vadd.f32 %v7364, %v7254
        %v7397 = vadd.f32 %v7365, %v7255
        %v7398 = vadd.f32 %v7366, %v7256
        %v7399 = vadd.f32 %v7367, %v7257
        %v7400 = vadd.f32 %v7368, %v7258
        %v7401 = vadd.f32 %v7369, %v7259
        %v7402 = vadd.f32 %v7370, %v7260
        %v7403 = vadd.f32 %v7371, %v7261
        %v7404 = vadd.f32 %v7372, %v7262
        %v7405 = vadd.f32 %v7373, %v7263
        %v7406 = vadd.f32 %v7374, %v7264
        %v7407 = vadd.f32 %v7375, %v7265
        %v7408 = vadd.f32 %v7376, %v7266
        %v7409 = vadd.f32 %v7377, %v7267
        %v7410 = vadd.f32 %v7378, %v7268
        %v7411 = vadd.f32 %v7379, %v7269
        %v7412 = vadd.f32 %v7380, %v7270
        %v7413 = vadd.f32 %v7381, %v7271
        %v7414 = vadd.f32 %v7382, %v7272
        %v7415 = vadd.f32 %v7383, %v7273
        %v7416 = vadd.f32 %v7384, %v7274
        %v7417 = vadd.f32 %v7385, %v7275
        %v7418 = vadd.f32 %v7386, %v7276
        %v7419 = vadd.f32 %v7387, %v7277
        %v7420 = vmax.f32 %v7388, 0.0
        %v7421 = vmax.f32 %v7389, 0.0
        %v7422 = vmax.f32 %v7390, 0.0
        %v7423 = vmax.f32 %v7391, 0.0
        %v7424 = vmax.f32 %v7392, 0.0
        %v7425 = vmax.f32 %v7393, 0.0
        %v7426 = vmax.f32 %v7394, 0.0
        %v7427 = vmax.f32 %v7395, 0.0
        %v7428 = vmax.f32 %v7396, 0.0
        %v7429 = vmax.f32 %v7397, 0.0
        %v7430 = vmax.f32 %v7398, 0.0
        %v7431 = vmax.f32 %v7399, 0.0
        %v7432 = vmax.f32 %v7400, 0.0
        %v7433 = vmax.f32 %v7401, 0.0
        %v7434 = vmax.f32 %v7402, 0.0
        %v7435 = vmax.f32 %v7403, 0.0
        %v7436 = vmax.f32 %v7404, 0.0
        %v7437 = vmax.f32 %v7405, 0.0
        %v7438 = vmax.f32 %v7406, 0.0
        %v7439 = vmax.f32 %v7407, 0.0
        %v7440 = vmax.f32 %v7408, 0.0
        %v7441 = vmax.f32 %v7409, 0.0
        %v7442 = vmax.f32 %v7410, 0.0
        %v7443 = vmax.f32 %v7411, 0.0
        %v7444 = vmax.f32 %v7412, 0.0
        %v7445 = vmax.f32 %v7413, 0.0
        %v7446 = vmax.f32 %v7414, 0.0
        %v7447 = vmax.f32 %v7415, 0.0
        %v7448 = vmax.f32 %v7416, 0.0
        %v7449 = vmax.f32 %v7417, 0.0
        %v7450 = vmax.f32 %v7418, 0.0
        %v7451 = vmax.f32 %v7419, 0.0
        %7452 = vst [vmem:[%s286] sm:$0xff] %v7420
        %7453 = vst [vmem:[%s286 + $0x8] sm:$0xff] %v7421
        %7454 = vst [vmem:[%s286 + $0x10] sm:$0xff] %v7422
        %7455 = vst [vmem:[%s286 + $0x18] sm:$0xff] %v7423
        %7456 = vst [vmem:[%s286 + $0x20] sm:$0xff] %v7424
        %7457 = vst [vmem:[%s286 + $0x28] sm:$0xff] %v7425
        %7458 = vst [vmem:[%s286 + $0x30] sm:$0xff] %v7426
        %7459 = vst [vmem:[%s286 + $0x38] sm:$0xff] %v7427
        %7460 = vst [vmem:[%s286 + $0x40] sm:$0xff] %v7428
        %7461 = vst [vmem:[%s286 + $0x48] sm:$0xff] %v7429
        %7462 = vst [vmem:[%s286 + $0x50] sm:$0xff] %v7430
        %7463 = vst [vmem:[%s286 + $0x58] sm:$0xff] %v7431
        %7464 = vst [vmem:[%s286 + $0x60] sm:$0xff] %v7432
        %7465 = vst [vmem:[%s286 + $0x68] sm:$0xff] %v7433
        %7466 = vst [vmem:[%s286 + $0x70] sm:$0xff] %v7434
        %7467 = vst [vmem:[%s286 + $0x78] sm:$0xff] %v7435
        %7468 = vst [vmem:[%s286 + $0x80] sm:$0xff] %v7436
        %7469 = vst [vmem:[%s286 + $0x88] sm:$0xff] %v7437
        %7470 = vst [vmem:[%s286 + $0x90] sm:$0xff] %v7438
        %7471 = vst [vmem:[%s286 + $0x98] sm:$0xff] %v7439
        %7472 = vst [vmem:[%s286 + $0xa0] sm:$0xff] %v7440
        %7473 = vst [vmem:[%s286 + $0xa8] sm:$0xff] %v7441
        %7474 = vst [vmem:[%s286 + $0xb0] sm:$0xff] %v7442
        %7475 = vst [vmem:[%s286 + $0xb8] sm:$0xff] %v7443
        %7476 = vst [vmem:[%s286 + $0xc0] sm:$0xff] %v7444
        %7477 = vst [vmem:[%s286 + $0xc8] sm:$0xff] %v7445
        %7478 = vst [vmem:[%s286 + $0xd0] sm:$0xff] %v7446
        %7479 = vst [vmem:[%s286 + $0xd8] sm:$0xff] %v7447
        %7480 = vst [vmem:[%s286 + $0xe0] sm:$0xff] %v7448
        %7481 = vst [vmem:[%s286 + $0xe8] sm:$0xff] %v7449
        %7482 = vst [vmem:[%s286 + $0xf0] sm:$0xff] %v7450
        %7483 = vst [vmem:[%s286 + $0xf8] sm:$0xff] %v7451
        %s7484 = sand.u32 %s182, 1
        %s7485 = scalar_lea.sflag [#allocation6], %s7484
        %s7486 = sand.u32 %s182, 1
        %s7487 = smul.addr %s7486, 256
        %s7488 = scalar_lea.vmem [#allocation7], %s7487
        // Predicated region
        $region53: #{tpu_custom_call.1} parent=47 // pred_check
          %p7489 = pneg %p192
        $region54: #{tpu_custom_call.1} parent=47 // pred_check_branch
          %7491 = sbr.rel (%p7489) target = $region56
        $region55: #{tpu_custom_call.1} parent=47 // pred_region
          %s7493 = ssub.s32 4096, 4096
          %7494 = vsyncadd %s7485, %s7493
          %s7495 = smul.addr %s22, 32
          %s7496 = smul.addr %s7495, 128
          %s7497 = scalar_lea.hbm %s7, %s7496
          %s7498 = sshll.u32 %s7488, 4
          %s7499 = int_to_ptr.vmem [resolvable:$true] %s7498
          %7504 = dma.vmem_to_hbm [thread:$0]  %s7499, 4096, %s7497, %s7485, 128, 128, 8
        $region56: #{tpu_custom_call.1} parent=47 // pred_fallthru
          _
      $region48: #{tpu_custom_call.1} parent=5 // pred_fallthru
        _
      %p7505 = scmp.le.s32.totalorder 2, %s17
      // Predicated region
      $region57: #{tpu_custom_call.1} parent=5 // pred_check
        %p7506 = pneg %p7505
      $region58: #{tpu_custom_call.1} parent=5 // pred_check_branch
        %7508 = sbr.rel (%p7506) target = $region60
      $region59: #{tpu_custom_call.1} parent=5 // pred_region
        %s7509 = ssub.s32 %s17, 2
        // Predicated region
        $region61: #{tpu_custom_call.1} parent=59 // pred_check
          %p7510 = pneg %p198
        $region62: #{tpu_custom_call.1} parent=59 // pred_check_branch
          %7512 = sbr.rel (%p7510) target = $region64
        $region63: #{tpu_custom_call.1} parent=59 // pred_region
          %s7513 = sand.u32 %s183, 1
          %s7514 = scalar_lea.sflag [#allocation6], %s7513
          %s7515 = sand.u32 %s183, 1
          %s7516 = smul.addr %s7515, 256
          %s7517 = scalar_lea.vmem [#allocation7], %s7516
          %7518 = dma.done %s7514, 4096
        $region64: #{tpu_custom_call.1} parent=59 // pred_fallthru
          _
      $region60: #{tpu_custom_call.1} parent=5 // pred_fallthru
        _
    $region6: #{tpu_custom_call.1} parent=1 // loop_footer
      %s21 = sadd.s32 1, %s17
    $region7: #{tpu_custom_call.1} parent=1 // loop_footer_branch
      %16 = sbr.rel target = $region3
    $region8: #{tpu_custom_call.1} parent=1 // loop_exit
      _
    %7519 = vsyncpa [#allocation5], 1
    %s7520 = scalar_lea.sflag [#allocation5], 1
    %7521 = vsyncpa %s7520, 1
    %7522 = vsyncpa [#allocation6], 1
    %s7523 = scalar_lea.sflag [#allocation6], 1
    %7524 = vsyncpa %s7523, 1

</llo_original>
